<compile_context>
chip_gen: v7x
topology: tpu7x:2x2x1
jax: 0.10.0
libtpu: 0.0.40
codegen_flags: <defaults>
</compile_context>

<pallas_src>
import math

import jax
import jax.numpy as jnp
from jax import lax
from jax.experimental import pallas as pl
from jax.experimental.pallas import tpu as pltpu


def _encoder_layer_kernel(x_q_ref, x_kv_ref,
                          wqkv_ref, wo_ref, w1_ref, w2_ref,
                          vecs_ref, b1_ref,
                          o_ref,
                          q_scr, k_scr, v_scr):
    eps = 1e-5
    f32 = jnp.float32
    bf16 = jnp.bfloat16

    nhead, q_tile, head_dim = q_scr.shape
    n_kv = k_scr.shape[0]
    kv_tile = k_scr.shape[2]
    n_ffn = w1_ref.shape[0]

    x_q = x_q_ref[0]                    # (Tq, D) f32 — query rows of this grid step
    x_kv = x_kv_ref[0]                  # (S,  D) f32 — full sequence (keys / values)
    d_model = x_q.shape[1]

    vecs = vecs_ref[...]                # (9, D): bq, bk, bv, bo, b2, g1, be1, g2, be2
    bq, bk, bv = vecs[0:1], vecs[1:2], vecs[2:3]
    bo, b2 = vecs[3:4], vecs[4:5]
    g1, be1 = vecs[5:6], vecs[6:7]
    g2, be2 = vecs[7:8], vecs[8:9]

    def layernorm(v, gamma, beta):
        mu = jnp.mean(v, axis=-1, keepdims=True)
        c = v - mu
        var = jnp.mean(c * c, axis=-1, keepdims=True)
        return c * lax.rsqrt(var + eps) * gamma + beta

    # ---- pre-norm 1 + projections (bf16 MXU operands, f32 accumulation) ------
    scale = 1.0 / math.sqrt(head_dim)
    ln_q = layernorm(x_q, g1, be1).astype(bf16)        # (Tq, D)
    ln_kv = layernorm(x_kv, g1, be1).astype(bf16)      # (S, D)

    # Q only for this query tile; K/V for the whole sequence.
    q = jnp.dot(ln_q, wqkv_ref[:, :d_model], preferred_element_type=f32)
    q = ((q + bq) * scale).astype(bf16)                                     # (Tq, D)
    kv = jnp.dot(ln_kv, wqkv_ref[:, d_model:], preferred_element_type=f32)  # (S, 2D)
    k_full = (kv[:, :d_model] + bk).astype(bf16)
    v_full = (kv[:, d_model:] + bv).astype(bf16)

    # Single lane-aligned head split (head_dim % 128 == 0 -> no masked stores).
    for h in range(nhead):
        lo = h * head_dim
        q_scr[h] = q[:, lo:lo + head_dim]
        k_scr[:, h] = k_full[:, lo:lo + head_dim].reshape(n_kv, kv_tile, head_dim)
        v_scr[:, h] = v_full[:, lo:lo + head_dim].reshape(n_kv, kv_tile, head_dim)
    q3 = q_scr[...]                                     # (H, Tq, E) bf16

    # ---- flash-style attention: KV-tiled online softmax ----------------------
    m0 = jnp.full((nhead, q_tile, 1), -jnp.inf, f32)
    l0 = jnp.zeros((nhead, q_tile, 1), f32)
    a0 = jnp.zeros((nhead, q_tile, head_dim), f32)

    def kv_step(t, carry):
        m, l, acc = carry
        k_t = k_scr[t]                                  # (H, Tk, E)
        v_t = v_scr[t]
        s = jnp.einsum('hqe,hke->hqk', q3, k_t, preferred_element_type=f32)
        m_new = jnp.maximum(m, jnp.max(s, axis=-1, keepdims=True))
        alpha = jnp.exp(m - m_new)
        p = jnp.exp(s - m_new)                          # unnormalized probabilities
        l_new = alpha * l + jnp.sum(p, axis=-1, keepdims=True)
        acc_new = alpha * acc + jnp.einsum('hqk,hke->hqe', p.astype(bf16), v_t,
                                           preferred_element_type=f32)
        return m_new, l_new, acc_new

    _, l, acc = lax.fori_loop(0, n_kv, kv_step, (m0, l0, a0))
    # Deferred softmax normalization: one (H, Tq, E) multiply; EUP reciprocal.
    o3 = acc * pl.reciprocal(l, approx=True)

    # ---- output projection: head sum folded into one D-wide contraction ------
    attn_slab = jnp.concatenate([o3[h] for h in range(nhead)], axis=-1).astype(bf16)  # (Tq, D)
    attn = jnp.dot(attn_slab, wo_ref[...], preferred_element_type=f32) + bo

    src = x_q + attn                                    # residual 1

    # ---- pre-norm 2 + FFN streamed over the hidden dimension -----------------
    ln2 = layernorm(src, g2, be2).astype(bf16)

    def ffn_step(c, acc_ffn):
        h1 = jnp.dot(ln2, w1_ref[c], preferred_element_type=f32)        # (Tq, FC)
        h1 = jnp.maximum(h1 + b1_ref[c], 0.0)                           # bias + ReLU in f32
        return acc_ffn + jnp.dot(h1.astype(bf16), w2_ref[c], preferred_element_type=f32)

    ffn = lax.fori_loop(0, n_ffn, ffn_step, jnp.zeros((q_tile, d_model), f32))

    o_ref[0] = src + ffn + b2                           # residual 2 (+ linear2 bias)


def _vmem_limit_bytes():
    # ~3/4 of the per-core physical VMEM, capped at 96 MiB: 96 MiB on v5e/v6e
    # (128 MiB physical), 48 MiB on v7x (64 MiB) — leaves headroom for compiler
    # scratch and the streamed x / out double-buffers.
    try:
        cap = pltpu.get_tpu_info().vmem_capacity_bytes
    except Exception:
        cap = 128 * 1024 * 1024
    return min((3 * cap) // 4, 96 * 1024 * 1024)


def transformer_encoder_layer(x, params, *, nhead: int,
                              q_tile: int = 128, kv_tile: int = 128,
                              ffn_chunk: int = 512):
    """Pre-norm TransformerEncoderLayer forward. x: (B, S, D) float32."""
    B, S, D = x.shape
    assert D % nhead == 0
    head_dim = D // nhead
    # Heads are split on the lane dimension; keep every slice lane-aligned.
    assert head_dim % 128 == 0, "head_dim must be a multiple of 128 for this kernel"

    q_tile = min(q_tile, S)
    kv_tile = min(kv_tile, S)
    assert S % q_tile == 0 and S % kv_tile == 0

    bf16, f32 = jnp.bfloat16, jnp.float32

    # Fused QKV weight (one wide GEMM per projection pass), bf16 MXU operands.
    wqkv = jnp.concatenate([params["wq"], params["wk"], params["wv"]], axis=1).astype(bf16)  # (D, 3D)
    wo = params["wo"].astype(bf16)                                                            # (D, D)

    dff = params["w1"].shape[1]
    ffn_chunk = min(ffn_chunk, dff)
    assert dff % ffn_chunk == 0
    n_ffn = dff // ffn_chunk
    # Pre-chunk FFN weights so the kernel streams them with fori_loop + leading-axis indexing.
    w1c = params["w1"].reshape(D, n_ffn, ffn_chunk).transpose(1, 0, 2).astype(bf16)   # (n_ffn, D, FC)
    w2c = params["w2"].reshape(n_ffn, ffn_chunk, D).astype(bf16)                      # (n_ffn, FC, D)
    b1c = params["b1"].reshape(n_ffn, 1, ffn_chunk).astype(f32)                       # (n_ffn, 1, FC)

    vecs = jnp.concatenate([params["bq"], params["bk"], params["bv"], params["bo"],
                            params["b2"], params["g1"], params["be1"], params["g2"],
                            params["be2"]], axis=0).astype(f32)                        # (9, D)

    n_q = S // q_tile
    n_kv = S // kv_tile

    def const_spec(shape):
        nd = len(shape)
        # Grid-invariant weights: fetched once, single-buffered (halves weight VMEM).
        return pl.BlockSpec(shape, lambda b, qi, _nd=nd: (0,) * _nd,
                            pipeline_mode=pl.Buffered(1))

    return pl.pallas_call(
        _encoder_layer_kernel,
        out_shape=jax.ShapeDtypeStruct((B, S, D), f32),
        grid=(B, n_q),
        in_specs=[
            pl.BlockSpec((1, q_tile, D), lambda b, qi: (b, qi, 0)),   # query-tile rows
            pl.BlockSpec((1, S, D), lambda b, qi: (b, 0, 0)),         # full rows for K/V
            const_spec(wqkv.shape), const_spec(wo.shape),
            const_spec(w1c.shape), const_spec(w2c.shape),
            const_spec(vecs.shape), const_spec(b1c.shape),
        ],
        out_specs=pl.BlockSpec((1, q_tile, D), lambda b, qi: (b, qi, 0)),
        scratch_shapes=[
            pltpu.VMEM((nhead, q_tile, head_dim), bf16),              # Q, head-major
            pltpu.VMEM((n_kv, nhead, kv_tile, head_dim), bf16),       # K, KV-tiled, head-major
            pltpu.VMEM((n_kv, nhead, kv_tile, head_dim), bf16),       # V
        ],
        compiler_params=pltpu.CompilerParams(
            dimension_semantics=("parallel", "parallel"),
            vmem_limit_bytes=_vmem_limit_bytes()),
    )(x, x, wqkv, wo, w1c, w2c, vecs, b1c)


def init_params(key, d_model: int, dim_feedforward: int):
    """Deterministic synthetic parameters. Weights stored as (in_dim, out_dim)."""
    ks = jax.random.split(key, 8)
    s_attn = 1.0 / math.sqrt(d_model)
    s_ffn = 1.0 / math.sqrt(dim_feedforward)
    f32 = jnp.float32
    return {
        "wq": jax.random.normal(ks[0], (d_model, d_model), f32) * s_attn,
        "bq": jnp.zeros((1, d_model), f32),
        "wk": jax.random.normal(ks[1], (d_model, d_model), f32) * s_attn,
        "bk": jnp.zeros((1, d_model), f32),
        "wv": jax.random.normal(ks[2], (d_model, d_model), f32) * s_attn,
        "bv": jnp.zeros((1, d_model), f32),
        "wo": jax.random.normal(ks[3], (d_model, d_model), f32) * s_attn,
        "bo": jax.random.normal(ks[4], (1, d_model), f32) * 0.01,
        "w1": jax.random.normal(ks[5], (d_model, dim_feedforward), f32) * s_attn,
        "b1": jax.random.normal(ks[6], (1, dim_feedforward), f32) * 0.01,
        "w2": jax.random.normal(ks[7], (dim_feedforward, d_model), f32) * s_ffn,
        "b2": jnp.zeros((1, d_model), f32),
        "g1": jnp.ones((1, d_model), f32),
        "be1": jnp.zeros((1, d_model), f32),
        "g2": jnp.ones((1, d_model), f32),
        "be2": jnp.zeros((1, d_model), f32),
    }


def _reference(x, params, *, nhead):
    """Pure-JAX f32 reference of the same forward pass (for a tolerance check)."""
    B, S, D = x.shape
    E = D // nhead

    def ln(v, g, b):
        mu = jnp.mean(v, axis=-1, keepdims=True)
        var = jnp.mean((v - mu) ** 2, axis=-1, keepdims=True)
        return (v - mu) * lax.rsqrt(var + 1e-5) * g + b

    s2 = ln(x, params["g1"], params["be1"])
    q = (s2 @ params["wq"] + params["bq"]) / math.sqrt(E)
    k = s2 @ params["wk"] + params["bk"]
    v = s2 @ params["wv"] + params["bv"]

    def split(t):                                   # (B, S, D) -> (B, H, S, E)
        return t.reshape(B, S, nhead, E).transpose(0, 2, 1, 3)

    sc = jnp.einsum('bhqe,bhke->bhqk', split(q), split(k))
    p = jax.nn.softmax(sc, axis=-1)
    o = jnp.einsum('bhqk,bhke->bhqe', p, split(v))
    o = o.transpose(0, 2, 1, 3).reshape(B, S, D)
    src = x + o @ params["wo"] + params["bo"]
    s2 = ln(src, params["g2"], params["be2"])
    return src + jnp.maximum(s2 @ params["w1"] + params["b1"], 0.0) @ params["w2"] + params["b2"]


if __name__ == "__main__":
    # Small but TPU-friendly shapes: lane-dense D, head_dim = 128, two query tiles,
    # two KV tiles, and two FFN chunks so every loop / grid axis is exercised.
    B, S, D, NHEAD, DFF = 2, 256, 256, 2, 512

    key = jax.random.PRNGKey(0)
    k_x, k_p = jax.random.split(key)
    x = jax.random.normal(k_x, (B, S, D), jnp.float32)
    params = init_params(k_p, D, DFF)

    out = transformer_encoder_layer(x, params, nhead=NHEAD)
    out = jax.block_until_ready(out)
    assert out.shape == (B, S, D)
    assert bool(jnp.all(jnp.isfinite(out)))

    ref = _reference(x, params, nhead=NHEAD)
    err = float(jnp.max(jnp.abs(out - ref)))
    # bf16 matmul operands + approx reciprocal: typically ~1e-2 absolute deviation.
    assert err < 0.1, f"max |out - ref| = {err}"

    print("KERNEL_OK")
</pallas_src>

<mosaic_0001>
module attributes {stable_mosaic.version = 11 : i64} {
  func.func @_encoder_layer_kernel(%arg0: i32, %arg1: i32, %arg2: memref<1x128x256xf32, #tpu.memory_space<vmem>>, %arg3: memref<1x256x256xf32, #tpu.memory_space<vmem>>, %arg4: memref<256x768xbf16, #tpu.memory_space<vmem>>, %arg5: memref<256x256xbf16, #tpu.memory_space<vmem>>, %arg6: memref<1x256x512xbf16, #tpu.memory_space<vmem>>, %arg7: memref<1x512x256xbf16, #tpu.memory_space<vmem>>, %arg8: memref<9x256xf32, #tpu.memory_space<vmem>>, %arg9: memref<1x1x512xf32, #tpu.memory_space<vmem>>, %arg10: memref<1x128x256xf32, #tpu.memory_space<vmem>>, %arg11: memref<2x128x128xbf16, #tpu.memory_space<vmem>>, %arg12: memref<2x2x128x128xbf16, #tpu.memory_space<vmem>>, %arg13: memref<2x2x128x128xbf16, #tpu.memory_space<vmem>>) attributes {dimension_semantics = [#tpu.dimension_semantics<parallel>, #tpu.dimension_semantics<parallel>], iteration_bounds = array<i64: 2, 2>, scalar_prefetch = 0 : i64, scratch_operands = 3 : i64, tpu.core_type = #tpu.core_type<tc>, window_params = [{transform_indices = @transform_0, window_bounds = array<i64: 1, 128, 256>}, {transform_indices = @transform_1, window_bounds = array<i64: 1, 256, 256>}, {pipeline_mode = #tpu.pipeline_mode<synchronous>, transform_indices = @transform_2, window_bounds = array<i64: 256, 768>}, {pipeline_mode = #tpu.pipeline_mode<synchronous>, transform_indices = @transform_3, window_bounds = array<i64: 256, 256>}, {pipeline_mode = #tpu.pipeline_mode<synchronous>, transform_indices = @transform_4, window_bounds = array<i64: 1, 256, 512>}, {pipeline_mode = #tpu.pipeline_mode<synchronous>, transform_indices = @transform_5, window_bounds = array<i64: 1, 512, 256>}, {pipeline_mode = #tpu.pipeline_mode<synchronous>, transform_indices = @transform_6, window_bounds = array<i64: 9, 256>}, {pipeline_mode = #tpu.pipeline_mode<synchronous>, transform_indices = @transform_7, window_bounds = array<i64: 1, 1, 512>}, {transform_indices = @transform_8, window_bounds = array<i64: 1, 128, 256>}]} {
    %c0 = arith.constant 0 : index
    %c0_0 = arith.constant 0 : index
    %c0_1 = arith.constant 0 : index
    %0 = vector.load %arg2[%c0, %c0_0, %c0_1] : memref<1x128x256xf32, #tpu.memory_space<vmem>>, vector<1x128x256xf32>
    %1 = vector.shape_cast %0 : vector<1x128x256xf32> to vector<128x256xf32>
    %c0_2 = arith.constant 0 : index
    %c0_3 = arith.constant 0 : index
    %c0_4 = arith.constant 0 : index
    %2 = vector.load %arg3[%c0_2, %c0_3, %c0_4] : memref<1x256x256xf32, #tpu.memory_space<vmem>>, vector<1x256x256xf32>
    %3 = vector.shape_cast %2 : vector<1x256x256xf32> to vector<256x256xf32>
    %c0_5 = arith.constant 0 : index
    %c0_6 = arith.constant 0 : index
    %4 = vector.load %arg8[%c0_5, %c0_6] : memref<9x256xf32, #tpu.memory_space<vmem>>, vector<9x256xf32>
    %5 = vector.extract_strided_slice %4 {offsets = [0, 0], sizes = [1, 256], strides = [1, 1]} : vector<9x256xf32> to vector<1x256xf32>
    %6 = vector.extract_strided_slice %4 {offsets = [1, 0], sizes = [1, 256], strides = [1, 1]} : vector<9x256xf32> to vector<1x256xf32>
    %7 = vector.extract_strided_slice %4 {offsets = [2, 0], sizes = [1, 256], strides = [1, 1]} : vector<9x256xf32> to vector<1x256xf32>
    %8 = vector.extract_strided_slice %4 {offsets = [3, 0], sizes = [1, 256], strides = [1, 1]} : vector<9x256xf32> to vector<1x256xf32>
    %9 = vector.extract_strided_slice %4 {offsets = [4, 0], sizes = [1, 256], strides = [1, 1]} : vector<9x256xf32> to vector<1x256xf32>
    %10 = vector.extract_strided_slice %4 {offsets = [5, 0], sizes = [1, 256], strides = [1, 1]} : vector<9x256xf32> to vector<1x256xf32>
    %11 = vector.extract_strided_slice %4 {offsets = [6, 0], sizes = [1, 256], strides = [1, 1]} : vector<9x256xf32> to vector<1x256xf32>
    %12 = vector.extract_strided_slice %4 {offsets = [7, 0], sizes = [1, 256], strides = [1, 1]} : vector<9x256xf32> to vector<1x256xf32>
    %13 = vector.extract_strided_slice %4 {offsets = [8, 0], sizes = [1, 256], strides = [1, 1]} : vector<9x256xf32> to vector<1x256xf32>
    %cst = arith.constant dense<0.000000e+00> : vector<128xf32>
    %14 = vector.multi_reduction <add>, %1, %cst [1] : vector<128x256xf32> to vector<128xf32>
    %15 = vector.shape_cast %14 : vector<128xf32> to vector<128x1xf32>
    %cst_7 = arith.constant 2.560000e+02 : f32
    %16 = vector.broadcast %cst_7 : f32 to vector<128x1xf32>
    %17 = arith.divf %15, %16 : vector<128x1xf32>
    %18 = vector.broadcast %17 : vector<128x1xf32> to vector<128x256xf32>
    %19 = arith.subf %1, %18 : vector<128x256xf32>
    %20 = arith.mulf %19, %19 : vector<128x256xf32>
    %cst_8 = arith.constant dense<0.000000e+00> : vector<128xf32>
    %21 = vector.multi_reduction <add>, %20, %cst_8 [1] : vector<128x256xf32> to vector<128xf32>
    %22 = vector.shape_cast %21 : vector<128xf32> to vector<128x1xf32>
    %cst_9 = arith.constant 2.560000e+02 : f32
    %23 = vector.broadcast %cst_9 : f32 to vector<128x1xf32>
    %24 = arith.divf %22, %23 : vector<128x1xf32>
    %cst_10 = arith.constant 9.99999974E-6 : f32
    %25 = vector.broadcast %cst_10 : f32 to vector<128x1xf32>
    %26 = arith.addf %24, %25 : vector<128x1xf32>
    %27 = math.rsqrt %26 : vector<128x1xf32>
    %28 = vector.broadcast %27 : vector<128x1xf32> to vector<128x256xf32>
    %29 = arith.mulf %19, %28 : vector<128x256xf32>
    %30 = vector.broadcast %10 : vector<1x256xf32> to vector<128x256xf32>
    %31 = arith.mulf %29, %30 : vector<128x256xf32>
    %32 = vector.broadcast %11 : vector<1x256xf32> to vector<128x256xf32>
    %33 = arith.addf %31, %32 : vector<128x256xf32>
    %34 = arith.truncf %33 : vector<128x256xf32> to vector<128x256xbf16>
    %cst_11 = arith.constant dense<0.000000e+00> : vector<256xf32>
    %35 = vector.multi_reduction <add>, %3, %cst_11 [1] : vector<256x256xf32> to vector<256xf32>
    %36 = vector.shape_cast %35 : vector<256xf32> to vector<256x1xf32>
    %cst_12 = arith.constant 2.560000e+02 : f32
    %37 = vector.broadcast %cst_12 : f32 to vector<256x1xf32>
    %38 = arith.divf %36, %37 : vector<256x1xf32>
    %39 = vector.broadcast %38 : vector<256x1xf32> to vector<256x256xf32>
    %40 = arith.subf %3, %39 : vector<256x256xf32>
    %41 = arith.mulf %40, %40 : vector<256x256xf32>
    %cst_13 = arith.constant dense<0.000000e+00> : vector<256xf32>
    %42 = vector.multi_reduction <add>, %41, %cst_13 [1] : vector<256x256xf32> to vector<256xf32>
    %43 = vector.shape_cast %42 : vector<256xf32> to vector<256x1xf32>
    %cst_14 = arith.constant 2.560000e+02 : f32
    %44 = vector.broadcast %cst_14 : f32 to vector<256x1xf32>
    %45 = arith.divf %43, %44 : vector<256x1xf32>
    %cst_15 = arith.constant 9.99999974E-6 : f32
    %46 = vector.broadcast %cst_15 : f32 to vector<256x1xf32>
    %47 = arith.addf %45, %46 : vector<256x1xf32>
    %48 = math.rsqrt %47 : vector<256x1xf32>
    %49 = vector.broadcast %48 : vector<256x1xf32> to vector<256x256xf32>
    %50 = arith.mulf %40, %49 : vector<256x256xf32>
    %51 = vector.broadcast %10 : vector<1x256xf32> to vector<256x256xf32>
    %52 = arith.mulf %50, %51 : vector<256x256xf32>
    %53 = vector.broadcast %11 : vector<1x256xf32> to vector<256x256xf32>
    %54 = arith.addf %52, %53 : vector<256x256xf32>
    %55 = arith.truncf %54 : vector<256x256xf32> to vector<256x256xbf16>
    %c0_16 = arith.constant 0 : index
    %c0_17 = arith.constant 0 : index
    %56 = vector.load %arg4[%c0_16, %c0_17] : memref<256x768xbf16, #tpu.memory_space<vmem>>, vector<256x256xbf16>
    %cst_18 = arith.constant dense<0.000000e+00> : vector<128x256xf32>
    %57 = tpu.matmul %34, %56, %cst_18 {dimension_numbers = #tpu.dot_dimension_numbers<[1], [0], [0], [1], [0, 0, 1, 1], [], []>} : vector<128x256xbf16>, vector<256x256xbf16>, vector<128x256xf32> -> vector<128x256xf32>
    %58 = vector.broadcast %5 : vector<1x256xf32> to vector<128x256xf32>
    %59 = arith.addf %57, %58 : vector<128x256xf32>
    %cst_19 = arith.constant 0.0883883461 : f32
    %60 = vector.broadcast %cst_19 : f32 to vector<128x256xf32>
    %61 = arith.mulf %59, %60 : vector<128x256xf32>
    %62 = arith.truncf %61 : vector<128x256xf32> to vector<128x256xbf16>
    %c0_20 = arith.constant 0 : index
    %c256 = arith.constant 256 : index
    %63 = vector.load %arg4[%c0_20, %c256] : memref<256x768xbf16, #tpu.memory_space<vmem>>, vector<256x512xbf16>
    %cst_21 = arith.constant dense<0.000000e+00> : vector<256x512xf32>
    %64 = tpu.matmul %55, %63, %cst_21 {dimension_numbers = #tpu.dot_dimension_numbers<[1], [0], [0], [1], [0, 0, 1, 1], [], []>} : vector<256x256xbf16>, vector<256x512xbf16>, vector<256x512xf32> -> vector<256x512xf32>
    %65 = vector.extract_strided_slice %64 {offsets = [0, 0], sizes = [256, 256], strides = [1, 1]} : vector<256x512xf32> to vector<256x256xf32>
    %66 = vector.broadcast %6 : vector<1x256xf32> to vector<256x256xf32>
    %67 = arith.addf %65, %66 : vector<256x256xf32>
    %68 = arith.truncf %67 : vector<256x256xf32> to vector<256x256xbf16>
    %69 = vector.extract_strided_slice %64 {offsets = [0, 256], sizes = [256, 256], strides = [1, 1]} : vector<256x512xf32> to vector<256x256xf32>
    %70 = vector.broadcast %7 : vector<1x256xf32> to vector<256x256xf32>
    %71 = arith.addf %69, %70 : vector<256x256xf32>
    %72 = arith.truncf %71 : vector<256x256xf32> to vector<256x256xbf16>
    %73 = vector.extract_strided_slice %62 {offsets = [0, 0], sizes = [128, 128], strides = [1, 1]} : vector<128x256xbf16> to vector<128x128xbf16>
    %c0_22 = arith.constant 0 : index
    %c0_23 = arith.constant 0 : index
    %c0_24 = arith.constant 0 : index
    %74 = vector.load %arg11[%c0_22, %c0_23, %c0_24] : memref<2x128x128xbf16, #tpu.memory_space<vmem>>, vector<1x128x128xbf16>
    %75 = vector.shape_cast %74 : vector<1x128x128xbf16> to vector<128x128xbf16>
    %76 = vector.shape_cast %73 : vector<128x128xbf16> to vector<1x128x128xbf16>
    tpu.vector_store %arg11[%c0_22, %c0_23, %c0_24], %76 {strides = array<i32>} : memref<2x128x128xbf16, #tpu.memory_space<vmem>>, vector<1x128x128xbf16>,
    %77 = vector.extract_strided_slice %68 {offsets = [0, 0], sizes = [256, 128], strides = [1, 1]} : vector<256x256xbf16> to vector<256x128xbf16>
    %78 = vector.shape_cast %77 : vector<256x128xbf16> to vector<2x128x128xbf16>
    %c0_25 = arith.constant 0 : index
    %c0_26 = arith.constant 0 : index
    %c0_27 = arith.constant 0 : index
    %c0_28 = arith.constant 0 : index
    %79 = vector.load %arg12[%c0_25, %c0_26, %c0_27, %c0_28] : memref<2x2x128x128xbf16, #tpu.memory_space<vmem>>, vector<2x1x128x128xbf16>
    %80 = vector.shape_cast %79 : vector<2x1x128x128xbf16> to vector<2x128x128xbf16>
    %81 = vector.shape_cast %78 : vector<2x128x128xbf16> to vector<2x1x128x128xbf16>
    tpu.vector_store %arg12[%c0_25, %c0_26, %c0_27, %c0_28], %81 {strides = array<i32>} : memref<2x2x128x128xbf16, #tpu.memory_space<vmem>>, vector<2x1x128x128xbf16>,
    %82 = vector.extract_strided_slice %72 {offsets = [0, 0], sizes = [256, 128], strides = [1, 1]} : vector<256x256xbf16> to vector<256x128xbf16>
    %83 = vector.shape_cast %82 : vector<256x128xbf16> to vector<2x128x128xbf16>
    %c0_29 = arith.constant 0 : index
    %c0_30 = arith.constant 0 : index
    %c0_31 = arith.constant 0 : index
    %c0_32 = arith.constant 0 : index
    %84 = vector.load %arg13[%c0_29, %c0_30, %c0_31, %c0_32] : memref<2x2x128x128xbf16, #tpu.memory_space<vmem>>, vector<2x1x128x128xbf16>
    %85 = vector.shape_cast %84 : vector<2x1x128x128xbf16> to vector<2x128x128xbf16>
    %86 = vector.shape_cast %83 : vector<2x128x128xbf16> to vector<2x1x128x128xbf16>
    tpu.vector_store %arg13[%c0_29, %c0_30, %c0_31, %c0_32], %86 {strides = array<i32>} : memref<2x2x128x128xbf16, #tpu.memory_space<vmem>>, vector<2x1x128x128xbf16>,
    %87 = vector.extract_strided_slice %62 {offsets = [0, 128], sizes = [128, 128], strides = [1, 1]} : vector<128x256xbf16> to vector<128x128xbf16>
    %c1 = arith.constant 1 : index
    %c0_33 = arith.constant 0 : index
    %c0_34 = arith.constant 0 : index
    %88 = vector.load %arg11[%c1, %c0_33, %c0_34] : memref<2x128x128xbf16, #tpu.memory_space<vmem>>, vector<1x128x128xbf16>
    %89 = vector.shape_cast %88 : vector<1x128x128xbf16> to vector<128x128xbf16>
    %90 = vector.shape_cast %87 : vector<128x128xbf16> to vector<1x128x128xbf16>
    tpu.vector_store %arg11[%c1, %c0_33, %c0_34], %90 {strides = array<i32>} : memref<2x128x128xbf16, #tpu.memory_space<vmem>>, vector<1x128x128xbf16>,
    %91 = vector.extract_strided_slice %68 {offsets = [0, 128], sizes = [256, 128], strides = [1, 1]} : vector<256x256xbf16> to vector<256x128xbf16>
    %92 = vector.shape_cast %91 : vector<256x128xbf16> to vector<2x128x128xbf16>
    %c0_35 = arith.constant 0 : index
    %c1_36 = arith.constant 1 : index
    %c0_37 = arith.constant 0 : index
    %c0_38 = arith.constant 0 : index
    %93 = vector.load %arg12[%c0_35, %c1_36, %c0_37, %c0_38] : memref<2x2x128x128xbf16, #tpu.memory_space<vmem>>, vector<2x1x128x128xbf16>
    %94 = vector.shape_cast %93 : vector<2x1x128x128xbf16> to vector<2x128x128xbf16>
    %95 = vector.shape_cast %92 : vector<2x128x128xbf16> to vector<2x1x128x128xbf16>
    tpu.vector_store %arg12[%c0_35, %c1_36, %c0_37, %c0_38], %95 {strides = array<i32>} : memref<2x2x128x128xbf16, #tpu.memory_space<vmem>>, vector<2x1x128x128xbf16>,
    %96 = vector.extract_strided_slice %72 {offsets = [0, 128], sizes = [256, 128], strides = [1, 1]} : vector<256x256xbf16> to vector<256x128xbf16>
    %97 = vector.shape_cast %96 : vector<256x128xbf16> to vector<2x128x128xbf16>
    %c0_39 = arith.constant 0 : index
    %c1_40 = arith.constant 1 : index
    %c0_41 = arith.constant 0 : index
    %c0_42 = arith.constant 0 : index
    %98 = vector.load %arg13[%c0_39, %c1_40, %c0_41, %c0_42] : memref<2x2x128x128xbf16, #tpu.memory_space<vmem>>, vector<2x1x128x128xbf16>
    %99 = vector.shape_cast %98 : vector<2x1x128x128xbf16> to vector<2x128x128xbf16>
    %100 = vector.shape_cast %97 : vector<2x128x128xbf16> to vector<2x1x128x128xbf16>
    tpu.vector_store %arg13[%c0_39, %c1_40, %c0_41, %c0_42], %100 {strides = array<i32>} : memref<2x2x128x128xbf16, #tpu.memory_space<vmem>>, vector<2x1x128x128xbf16>,
    %c0_43 = arith.constant 0 : index
    %c0_44 = arith.constant 0 : index
    %c0_45 = arith.constant 0 : index
    %101 = vector.load %arg11[%c0_43, %c0_44, %c0_45] : memref<2x128x128xbf16, #tpu.memory_space<vmem>>, vector<2x128x128xbf16>
    %cst_46 = arith.constant 0xFF800000 : f32
    %102 = vector.broadcast %cst_46 : f32 to vector<2x128x1xf32>
    %cst_47 = arith.constant 0.000000e+00 : f32
    %103 = vector.broadcast %cst_47 : f32 to vector<2x128x1xf32>
    %cst_48 = arith.constant 0.000000e+00 : f32
    %104 = vector.broadcast %cst_48 : f32 to vector<2x128x128xf32>
    %c0_i32 = arith.constant 0 : i32
    %c2_i32 = arith.constant 2 : i32
    %105 = arith.addi %c0_i32, %c2_i32 : i32
    %c1_i32 = arith.constant 1 : i32
    %106:3 = scf.for %arg14 = %c0_i32 to %105 step %c1_i32 iter_args(%arg15 = %102, %arg16 = %103, %arg17 = %104) -> (vector<2x128x1xf32>, vector<2x128x1xf32>, vector<2x128x128xf32>)  : i32 {
      %166 = arith.index_cast %arg14 : i32 to index
      %c0_73 = arith.constant 0 : index
      %c0_74 = arith.constant 0 : index
      %c0_75 = arith.constant 0 : index
      %167 = vector.load %arg12[%166, %c0_73, %c0_74, %c0_75] : memref<2x2x128x128xbf16, #tpu.memory_space<vmem>>, vector<1x2x128x128xbf16>
      %168 = vector.shape_cast %167 : vector<1x2x128x128xbf16> to vector<2x128x128xbf16>
      %169 = arith.index_cast %arg14 : i32 to index
      %c0_76 = arith.constant 0 : index
      %c0_77 = arith.constant 0 : index
      %c0_78 = arith.constant 0 : index
      %170 = vector.load %arg13[%169, %c0_76, %c0_77, %c0_78] : memref<2x2x128x128xbf16, #tpu.memory_space<vmem>>, vector<1x2x128x128xbf16>
      %171 = vector.shape_cast %170 : vector<1x2x128x128xbf16> to vector<2x128x128xbf16>
      "tpu.trace_start"() <{level = 10 : i32, message = "hqe,hke->hqk"}> : () -> ()
      %cst_79 = arith.constant dense<0.000000e+00> : vector<2x128x128xf32>
      %172 = tpu.matmul %101, %168, %cst_79 {dimension_numbers = #tpu.dot_dimension_numbers<[2], [2], [1], [1], [0, 0, 0, 1, 1, 1], [0], [0]>} : vector<2x128x128xbf16>, vector<2x128x128xbf16>, vector<2x128x128xf32> -> vector<2x128x128xf32>
      "tpu.trace_stop"() : () -> ()
      %cst_80 = arith.constant dense<0xFF800000> : vector<2x128xf32>
      %173 = vector.multi_reduction <maximumf>, %172, %cst_80 [2] : vector<2x128x128xf32> to vector<2x128xf32>
      %174 = vector.shape_cast %173 : vector<2x128xf32> to vector<2x128x1xf32>
      %175 = arith.maximumf %arg15, %174 : vector<2x128x1xf32>
      %176 = arith.subf %arg15, %175 : vector<2x128x1xf32>
      %177 = math.exp %176 : vector<2x128x1xf32>
      %178 = vector.broadcast %175 : vector<2x128x1xf32> to vector<2x128x128xf32>
      %179 = arith.subf %172, %178 : vector<2x128x128xf32>
      %180 = math.exp %179 : vector<2x128x128xf32>
      %181 = arith.mulf %177, %arg16 : vector<2x128x1xf32>
      %cst_81 = arith.constant dense<0.000000e+00> : vector<2x128xf32>
      %182 = vector.multi_reduction <add>, %180, %cst_81 [2] : vector<2x128x128xf32> to vector<2x128xf32>
      %183 = vector.shape_cast %182 : vector<2x128xf32> to vector<2x128x1xf32>
      %184 = arith.addf %181, %183 : vector<2x128x1xf32>
      %185 = vector.broadcast %177 : vector<2x128x1xf32> to vector<2x128x128xf32>
      %186 = arith.mulf %185, %arg17 : vector<2x128x128xf32>
      %187 = arith.truncf %180 : vector<2x128x128xf32> to vector<2x128x128xbf16>
      "tpu.trace_start"() <{level = 10 : i32, message = "hqk,hke->hqe"}> : () -> ()
      %cst_82 = arith.constant dense<0.000000e+00> : vector<2x128x128xf32>
      %188 = tpu.matmul %187, %171, %cst_82 {dimension_numbers = #tpu.dot_dimension_numbers<[2], [1], [1], [2], [0, 0, 0, 1, 1, 2], [0], [0]>} : vector<2x128x128xbf16>, vector<2x128x128xbf16>, vector<2x128x128xf32> -> vector<2x128x128xf32>
      "tpu.trace_stop"() : () -> ()
      %189 = arith.addf %186, %188 : vector<2x128x128xf32>
      scf.yield %175, %184, %189 : vector<2x128x1xf32>, vector<2x128x1xf32>, vector<2x128x128xf32>
    }
    %c2_i32_49 = arith.constant 2 : i32
    %107 = tpu.reciprocal %106#1 {approx = true} : vector<2x128x1xf32> -> vector<2x128x1xf32>
    %108 = vector.broadcast %107 : vector<2x128x1xf32> to vector<2x128x128xf32>
    %109 = arith.mulf %106#2, %108 : vector<2x128x128xf32>
    %110 = vector.extract_strided_slice %109 {offsets = [0, 0, 0], sizes = [1, 128, 128], strides = [1, 1, 1]} : vector<2x128x128xf32> to vector<1x128x128xf32>
    %111 = vector.shape_cast %110 : vector<1x128x128xf32> to vector<128x128xf32>
    %112 = vector.extract_strided_slice %109 {offsets = [1, 0, 0], sizes = [1, 128, 128], strides = [1, 1, 1]} : vector<2x128x128xf32> to vector<1x128x128xf32>
    %113 = vector.shape_cast %112 : vector<1x128x128xf32> to vector<128x128xf32>
    %114 = tpu.concatenate %111, %113 in 1 : vector<128x128xf32>, vector<128x128xf32> -> vector<128x256xf32>
    %115 = arith.truncf %114 : vector<128x256xf32> to vector<128x256xbf16>
    %c0_50 = arith.constant 0 : index
    %c0_51 = arith.constant 0 : index
    %116 = vector.load %arg5[%c0_50, %c0_51] : memref<256x256xbf16, #tpu.memory_space<vmem>>, vector<256x256xbf16>
    %cst_52 = arith.constant dense<0.000000e+00> : vector<128x256xf32>
    %117 = tpu.matmul %115, %116, %cst_52 {dimension_numbers = #tpu.dot_dimension_numbers<[1], [0], [0], [1], [0, 0, 1, 1], [], []>} : vector<128x256xbf16>, vector<256x256xbf16>, vector<128x256xf32> -> vector<128x256xf32>
    %118 = vector.broadcast %8 : vector<1x256xf32> to vector<128x256xf32>
    %119 = arith.addf %117, %118 : vector<128x256xf32>
    %120 = arith.addf %1, %119 : vector<128x256xf32>
    %cst_53 = arith.constant dense<0.000000e+00> : vector<128xf32>
    %121 = vector.multi_reduction <add>, %120, %cst_53 [1] : vector<128x256xf32> to vector<128xf32>
    %122 = vector.shape_cast %121 : vector<128xf32> to vector<128x1xf32>
    %cst_54 = arith.constant 2.560000e+02 : f32
    %123 = vector.broadcast %cst_54 : f32 to vector<128x1xf32>
    %124 = arith.divf %122, %123 : vector<128x1xf32>
    %125 = vector.broadcast %124 : vector<128x1xf32> to vector<128x256xf32>
    %126 = arith.subf %120, %125 : vector<128x256xf32>
    %127 = arith.mulf %126, %126 : vector<128x256xf32>
    %cst_55 = arith.constant dense<0.000000e+00> : vector<128xf32>
    %128 = vector.multi_reduction <add>, %127, %cst_55 [1] : vector<128x256xf32> to vector<128xf32>
    %129 = vector.shape_cast %128 : vector<128xf32> to vector<128x1xf32>
    %cst_56 = arith.constant 2.560000e+02 : f32
    %130 = vector.broadcast %cst_56 : f32 to vector<128x1xf32>
    %131 = arith.divf %129, %130 : vector<128x1xf32>
    %cst_57 = arith.constant 9.99999974E-6 : f32
    %132 = vector.broadcast %cst_57 : f32 to vector<128x1xf32>
    %133 = arith.addf %131, %132 : vector<128x1xf32>
    %134 = math.rsqrt %133 : vector<128x1xf32>
    %135 = vector.broadcast %134 : vector<128x1xf32> to vector<128x256xf32>
    %136 = arith.mulf %126, %135 : vector<128x256xf32>
    %137 = vector.broadcast %12 : vector<1x256xf32> to vector<128x256xf32>
    %138 = arith.mulf %136, %137 : vector<128x256xf32>
    %139 = vector.broadcast %13 : vector<1x256xf32> to vector<128x256xf32>
    %140 = arith.addf %138, %139 : vector<128x256xf32>
    %141 = arith.truncf %140 : vector<128x256xf32> to vector<128x256xbf16>
    %cst_58 = arith.constant 0.000000e+00 : f32
    %142 = vector.broadcast %cst_58 : f32 to vector<128x256xf32>
    %c0_i32_59 = arith.constant 0 : i32
    %143 = arith.index_cast %c0_i32_59 : i32 to index
    %c0_60 = arith.constant 0 : index
    %c0_61 = arith.constant 0 : index
    %144 = vector.load %arg6[%143, %c0_60, %c0_61] : memref<1x256x512xbf16, #tpu.memory_space<vmem>>, vector<1x256x512xbf16>
    %145 = vector.shape_cast %144 : vector<1x256x512xbf16> to vector<256x512xbf16>
    %cst_62 = arith.constant dense<0.000000e+00> : vector<128x512xf32>
    %146 = tpu.matmul %141, %145, %cst_62 {dimension_numbers = #tpu.dot_dimension_numbers<[1], [0], [0], [1], [0, 0, 1, 1], [], []>} : vector<128x256xbf16>, vector<256x512xbf16>, vector<128x512xf32> -> vector<128x512xf32>
    %147 = arith.index_cast %c0_i32_59 : i32 to index
    %c0_63 = arith.constant 0 : index
    %c0_64 = arith.constant 0 : index
    %148 = vector.load %arg9[%147, %c0_63, %c0_64] : memref<1x1x512xf32, #tpu.memory_space<vmem>>, vector<1x1x512xf32>
    %149 = vector.shape_cast %148 : vector<1x1x512xf32> to vector<1x512xf32>
    %150 = vector.broadcast %149 : vector<1x512xf32> to vector<128x512xf32>
    %151 = arith.addf %146, %150 : vector<128x512xf32>
    %cst_65 = arith.constant 0.000000e+00 : f32
    %152 = vector.broadcast %cst_65 : f32 to vector<128x512xf32>
    %153 = arith.maximumf %151, %152 : vector<128x512xf32>
    %154 = arith.truncf %153 : vector<128x512xf32> to vector<128x512xbf16>
    %155 = arith.index_cast %c0_i32_59 : i32 to index
    %c0_66 = arith.constant 0 : index
    %c0_67 = arith.constant 0 : index
    %156 = vector.load %arg7[%155, %c0_66, %c0_67] : memref<1x512x256xbf16, #tpu.memory_space<vmem>>, vector<1x512x256xbf16>
    %157 = vector.shape_cast %156 : vector<1x512x256xbf16> to vector<512x256xbf16>
    %cst_68 = arith.constant dense<0.000000e+00> : vector<128x256xf32>
    %158 = tpu.matmul %154, %157, %cst_68 {dimension_numbers = #tpu.dot_dimension_numbers<[1], [0], [0], [1], [0, 0, 1, 1], [], []>} : vector<128x512xbf16>, vector<512x256xbf16>, vector<128x256xf32> -> vector<128x256xf32>
    %159 = arith.addf %142, %158 : vector<128x256xf32>
    %c1_i32_69 = arith.constant 1 : i32
    %160 = arith.addf %120, %159 : vector<128x256xf32>
    %161 = vector.broadcast %9 : vector<1x256xf32> to vector<128x256xf32>
    %162 = arith.addf %160, %161 : vector<128x256xf32>
    %c0_70 = arith.constant 0 : index
    %c0_71 = arith.constant 0 : index
    %c0_72 = arith.constant 0 : index
    %163 = vector.load %arg10[%c0_70, %c0_71, %c0_72] : memref<1x128x256xf32, #tpu.memory_space<vmem>>, vector<1x128x256xf32>
    %164 = vector.shape_cast %163 : vector<1x128x256xf32> to vector<128x256xf32>
    %165 = vector.shape_cast %162 : vector<128x256xf32> to vector<1x128x256xf32>
    tpu.vector_store %arg10[%c0_70, %c0_71, %c0_72], %165 {strides = array<i32>} : memref<1x128x256xf32, #tpu.memory_space<vmem>>, vector<1x128x256xf32>,
    return
  }
  func.func @transform_0(%arg0: i32, %arg1: i32) -> (i32, i32, i32) {
    %c0_i32 = arith.constant 0 : i32
    %c0_i32_0 = arith.constant 0 : i32
    return %arg0, %arg1, %c0_i32 : i32, i32, i32
  }
  func.func @transform_1(%arg0: i32, %arg1: i32) -> (i32, i32, i32) {
    %c0_i32 = arith.constant 0 : i32
    %c0_i32_0 = arith.constant 0 : i32
    %c0_i32_1 = arith.constant 0 : i32
    return %arg0, %c0_i32, %c0_i32_0 : i32, i32, i32
  }
  func.func @transform_2(%arg0: i32, %arg1: i32) -> (i32, i32) {
    %c0_i32 = arith.constant 0 : i32
    %c0_i32_0 = arith.constant 0 : i32
    %c0_i32_1 = arith.constant 0 : i32
    return %c0_i32, %c0_i32_0 : i32, i32
  }
  func.func @transform_3(%arg0: i32, %arg1: i32) -> (i32, i32) {
    %c0_i32 = arith.constant 0 : i32
    %c0_i32_0 = arith.constant 0 : i32
    %c0_i32_1 = arith.constant 0 : i32
    return %c0_i32, %c0_i32_0 : i32, i32
  }
  func.func @transform_4(%arg0: i32, %arg1: i32) -> (i32, i32, i32) {
    %c0_i32 = arith.constant 0 : i32
    %c0_i32_0 = arith.constant 0 : i32
    %c0_i32_1 = arith.constant 0 : i32
    %c0_i32_2 = arith.constant 0 : i32
    return %c0_i32, %c0_i32_0, %c0_i32_1 : i32, i32, i32
  }
  func.func @transform_5(%arg0: i32, %arg1: i32) -> (i32, i32, i32) {
    %c0_i32 = arith.constant 0 : i32
    %c0_i32_0 = arith.constant 0 : i32
    %c0_i32_1 = arith.constant 0 : i32
    %c0_i32_2 = arith.constant 0 : i32
    return %c0_i32, %c0_i32_0, %c0_i32_1 : i32, i32, i32
  }
  func.func @transform_6(%arg0: i32, %arg1: i32) -> (i32, i32) {
    %c0_i32 = arith.constant 0 : i32
    %c0_i32_0 = arith.constant 0 : i32
    %c0_i32_1 = arith.constant 0 : i32
    return %c0_i32, %c0_i32_0 : i32, i32
  }
  func.func @transform_7(%arg0: i32, %arg1: i32) -> (i32, i32, i32) {
    %c0_i32 = arith.constant 0 : i32
    %c0_i32_0 = arith.constant 0 : i32
    %c0_i32_1 = arith.constant 0 : i32
    %c0_i32_2 = arith.constant 0 : i32
    return %c0_i32, %c0_i32_0, %c0_i32_1 : i32, i32, i32
  }
  func.func @transform_8(%arg0: i32, %arg1: i32) -> (i32, i32, i32) {
    %c0_i32 = arith.constant 0 : i32
    %c0_i32_0 = arith.constant 0 : i32
    return %arg0, %arg1, %c0_i32 : i32, i32, i32
  }
}

</mosaic_0001>

<llo_original>
// kernel: tpu_custom_call.1
$region0: #{tpu_custom_call.1}
  #allocation0 [shape = 'u32[]', space=smem, size = 0x4, offset = 0x4, fixed_abs, tag = 'smem constant byte address 0x4 - core index']
  #allocation1 [shape = 'u32[144,128]{1,0:T(1,128)}', space=vmem, size = 0x12000, scoped, tag = 'internal scratch']
  #allocation2 [shape = 'bf16[2,128,128]{2,1,0:T(16,128)(2,1)}', space=vmem, size = 0x10000, scoped, tag = 'scratch operand']
  #allocation3 [shape = 'bf16[2,2,128,128]{3,2,1,0:T(16,128)(2,1)}', space=vmem, size = 0x20000, scoped, tag = 'scratch operand']
  #allocation4 [shape = 'bf16[2,2,128,128]{3,2,1,0:T(16,128)(2,1)}', space=vmem, size = 0x20000, scoped, tag = 'scratch operand']
  %s0 = inlined_call_operand.hbm [shape: f32[2,256,256], index: 0, kind: input, shape index: {}]
  %s1 = inlined_call_operand.hbm [shape: f32[2,256,256], index: 1, kind: input, shape index: {}]
  %s2 = inlined_call_operand.hbm [shape: bf16[256,768], index: 2, kind: input, shape index: {}]
  %s3 = inlined_call_operand.hbm [shape: bf16[256,256], index: 3, kind: input, shape index: {}]
  %s4 = inlined_call_operand.hbm [shape: bf16[1,256,512], index: 4, kind: input, shape index: {}]
  %s5 = inlined_call_operand.hbm [shape: bf16[1,512,256], index: 5, kind: input, shape index: {}]
  %s6 = inlined_call_operand.hbm [shape: f32[9,256], index: 6, kind: input, shape index: {}]
  %s7 = inlined_call_operand.hbm [shape: f32[1,1,512], index: 7, kind: input, shape index: {}]
  %s8 = inlined_call_operand.hbm [shape: f32[2,256,256], index: 8, kind: output, shape index: {}]
  %s9 = sld [smem:[#allocation0]]
  $region104: #{tpu_custom_call.1} parent=0
    _
  %s11 = ssub.s32 1, %s9
  %s12 = scalar_select 0, %s11, %s9
  $region1: #{tpu_custom_call.1} parent=0
    #allocation5 [shape = 'u8[262144]{0}', space=vmem, size = 0x40000, scoped, tag = 'input window, operand 0']
    #allocation6 [shape = 's32[2]{0}', space=sflag, size = 0x8, scoped, tag = 'scoped memory for tpu_custom_call.1']
    #allocation7 [shape = 's32[2]{0}', space=sflag, size = 0x8, scoped, tag = 'scoped memory for tpu_custom_call.1']
    #allocation8 [shape = 'u8[524288]{0}', space=vmem, size = 0x80000, scoped, tag = 'input window, operand 1']
    #allocation9 [shape = 's32[2]{0}', space=sflag, size = 0x8, scoped, tag = 'scoped memory for tpu_custom_call.1']
    #allocation10 [shape = 'u8[393216]{0}', space=vmem, size = 0x60000, scoped, tag = 'input window, operand 2, single buffered']
    #allocation11 [shape = 'u8[131072]{0}', space=vmem, size = 0x20000, scoped, tag = 'input window, operand 3, single buffered']
    #allocation12 [shape = 's32[1]{0}', space=sflag, size = 0x4, scoped, tag = 'scoped memory for tpu_custom_call.1']
    #allocation13 [shape = 'u8[262144]{0}', space=vmem, size = 0x40000, scoped, tag = 'input window, operand 4, single buffered']
    #allocation14 [shape = 'u8[262144]{0}', space=vmem, size = 0x40000, scoped, tag = 'input window, operand 5, single buffered']
    #allocation15 [shape = 's32[1]{0}', space=sflag, size = 0x4, scoped, tag = 'scoped memory for tpu_custom_call.1']
    #allocation16 [shape = 'u8[16384]{0}', space=vmem, size = 0x4000, scoped, tag = 'input window, operand 6, single buffered']
    #allocation17 [shape = 'u8[2048]{0}', space=vmem, size = 0x800, scoped, tag = 'input window, operand 7, single buffered']
    #allocation18 [shape = 's32[1]{0}', space=sflag, size = 0x4, scoped, tag = 'scoped memory for tpu_custom_call.1']
    #allocation19 [shape = 'u8[262144]{0}', space=vmem, size = 0x40000, scoped, tag = 'output window, operand 0']
    %13 = vsyncpa [#allocation6], 0
    %s14 = scalar_lea.sflag [#allocation6], 1
    %15 = vsyncpa %s14, 0
    %16 = vsyncpa [#allocation9], 0
    %s17 = scalar_lea.sflag [#allocation9], 1
    %18 = vsyncpa %s17, 0
    %19 = vsyncpa [#allocation12], 0
    %20 = vsyncpa [#allocation15], 0
    %21 = vsyncpa [#allocation18], 0
    %22 = vsyncpa [#allocation7], 0
    %s23 = scalar_lea.sflag [#allocation7], 1
    %24 = vsyncpa %s23, 0
    loop: start=0, step=1, limit=6
    $region2: #{tpu_custom_call.1} parent=1 // loop_pre_header
      _
    $region3: #{tpu_custom_call.1} parent=1 // loop_header
      %s26 = sphi 0, %s30
      %p27 = scmp.ge.s32.totalorder %s26, 6
      %s33 = sphi 0, %s45
      %s34 = sphi 0, %s41
      %s35 = sphi 0, %s33
      %s36 = sphi 0, %s34
      %s37 = sphi 0, %s35
      %s38 = sphi 0, %s36
      %s50 = sphi 0, %s52
      %s53 = sphi 0, %s50
      %s54 = sphi 0, %s53
      %s70 = sphi 0, %s54
      %s76 = sphi 0, %s78
      %s79 = sphi 0, %s76
      %s80 = sphi 0, %s79
      %s96 = sphi 0, %s80
      %s100 = sphi 0, %s100
      %s102 = sphi 0, %s100
      %s103 = sphi 0, %s102
      %s117 = sphi 0, %s103
      %s121 = sphi 0, %s121
      %s123 = sphi 0, %s121
      %s124 = sphi 0, %s123
      %s138 = sphi 0, %s124
      %s142 = sphi 0, %s142
      %s144 = sphi 0, %s142
      %s145 = sphi 0, %s144
      %s159 = sphi 0, %s145
      %s163 = sphi 0, %s163
      %s165 = sphi 0, %s163
      %s166 = sphi 0, %s165
      %s180 = sphi 0, %s166
      %s184 = sphi 0, %s184
      %s186 = sphi 0, %s184
      %s187 = sphi 0, %s186
      %s201 = sphi 0, %s187
      %s205 = sphi 0, %s205
      %s207 = sphi 0, %s205
      %s208 = sphi 0, %s207
      %s222 = sphi 0, %s208
      %s230 = sphi 0, %s232
      %s233 = sphi 0, %s230
      %s234 = sphi 0, %s233
      %s250 = sphi 0, %s234
    $region4: #{tpu_custom_call.1} parent=1 // loop_header_branch
      %29 = sbr.rel (%p27) target = $region8
    $region5: #{tpu_custom_call.1} parent=1 // loop_body
      %s31 = ssub.s32 %s26, 1
      %s32 = ssub.s32 %s26, 2
      %s39 = sadd.s32 1, %s34
      %p40 = scmp.ge.s32.totalorder %s39, 2
      %s41 = scalar_select %p40, 0, %s39
      %s42 = sadd.s32 1, %s33
      %s43 = scalar_select %p40, %s42, %s33
      %p44 = scmp.ge.s32.totalorder %s43, 2
      %s45 = scalar_select %p44, 0, %s43
      %s46 = ssub.s32 %s33, %s45
      %s47 = ssub.s32 %s34, %s41
      %s48 = sor.u32 %s46, %s47
      %p49 = scmp.eq.s32.totalorder %s48, 0
      %s51 = sadd.s32 %s50, 1
      %s52 = scalar_select %p49, %s50, %s51
      %p55 = pneg %p49
      %p56 = scmp.eq.s32.totalorder %s26, 3
      %p57 = por %p55, %p56
      %p58 = scmp.ne.s32.totalorder %s50, %s53
      %p59 = scmp.eq.s32.totalorder %s26, 0
      %p60 = por %p58, %p59
      %p61 = scmp.ne.s32.totalorder %s50, %s53
      %p62 = scmp.eq.s32.totalorder %s31, 3
      %p63 = por %p61, %p62
      %p64 = scmp.ne.s32.totalorder %s53, %s54
      %p65 = scmp.eq.s32.totalorder %s31, 0
      %p66 = por %p64, %p65
      %p67 = scmp.ne.s32.totalorder %s53, %s54
      %p68 = scmp.eq.s32.totalorder %s32, 3
      %p69 = por %p67, %p68
      %p71 = scmp.ne.s32.totalorder %s54, %s70
      %p72 = scmp.eq.s32.totalorder %s32, 0
      %p73 = por %p71, %p72
      %s74 = ssub.s32 %s33, %s45
      %p75 = scmp.eq.s32.totalorder %s74, 0
      %s77 = sadd.s32 %s76, 1
      %s78 = scalar_select %p75, %s76, %s77
      %p81 = pneg %p75
      %p82 = scmp.eq.s32.totalorder %s26, 3
      %p83 = por %p81, %p82
      %p84 = scmp.ne.s32.totalorder %s76, %s79
      %p85 = scmp.eq.s32.totalorder %s26, 0
      %p86 = por %p84, %p85
      %p87 = scmp.ne.s32.totalorder %s76, %s79
      %p88 = scmp.eq.s32.totalorder %s31, 3
      %p89 = por %p87, %p88
      %p90 = scmp.ne.s32.totalorder %s79, %s80
      %p91 = scmp.eq.s32.totalorder %s31, 0
      %p92 = por %p90, %p91
      %p93 = scmp.ne.s32.totalorder %s79, %s80
      %p94 = scmp.eq.s32.totalorder %s32, 3
      %p95 = por %p93, %p94
      %p97 = scmp.ne.s32.totalorder %s80, %s96
      %p98 = scmp.eq.s32.totalorder %s32, 0
      %p99 = por %p97, %p98
      %s101 = sadd.s32 %s100, 1
      %p104 = scmp.eq.s32.totalorder %s26, 3
      %p105 = scmp.ne.s32.totalorder %s100, %s102
      %p106 = scmp.eq.s32.totalorder %s26, 0
      %p107 = por %p105, %p106
      %p108 = scmp.ne.s32.totalorder %s100, %s102
      %p109 = scmp.eq.s32.totalorder %s31, 3
      %p110 = por %p108, %p109
      %p111 = scmp.ne.s32.totalorder %s102, %s103
      %p112 = scmp.eq.s32.totalorder %s31, 0
      %p113 = por %p111, %p112
      %p114 = scmp.ne.s32.totalorder %s102, %s103
      %p115 = scmp.eq.s32.totalorder %s32, 3
      %p116 = por %p114, %p115
      %p118 = scmp.ne.s32.totalorder %s103, %s117
      %p119 = scmp.eq.s32.totalorder %s32, 0
      %p120 = por %p118, %p119
      %s122 = sadd.s32 %s121, 1
      %p125 = scmp.eq.s32.totalorder %s26, 3
      %p126 = scmp.ne.s32.totalorder %s121, %s123
      %p127 = scmp.eq.s32.totalorder %s26, 0
      %p128 = por %p126, %p127
      %p129 = scmp.ne.s32.totalorder %s121, %s123
      %p130 = scmp.eq.s32.totalorder %s31, 3
      %p131 = por %p129, %p130
      %p132 = scmp.ne.s32.totalorder %s123, %s124
      %p133 = scmp.eq.s32.totalorder %s31, 0
      %p134 = por %p132, %p133
      %p135 = scmp.ne.s32.totalorder %s123, %s124
      %p136 = scmp.eq.s32.totalorder %s32, 3
      %p137 = por %p135, %p136
      %p139 = scmp.ne.s32.totalorder %s124, %s138
      %p140 = scmp.eq.s32.totalorder %s32, 0
      %p141 = por %p139, %p140
      %s143 = sadd.s32 %s142, 1
      %p146 = scmp.eq.s32.totalorder %s26, 3
      %p147 = scmp.ne.s32.totalorder %s142, %s144
      %p148 = scmp.eq.s32.totalorder %s26, 0
      %p149 = por %p147, %p148
      %p150 = scmp.ne.s32.totalorder %s142, %s144
      %p151 = scmp.eq.s32.totalorder %s31, 3
      %p152 = por %p150, %p151
      %p153 = scmp.ne.s32.totalorder %s144, %s145
      %p154 = scmp.eq.s32.totalorder %s31, 0
      %p155 = por %p153, %p154
      %p156 = scmp.ne.s32.totalorder %s144, %s145
      %p157 = scmp.eq.s32.totalorder %s32, 3
      %p158 = por %p156, %p157
      %p160 = scmp.ne.s32.totalorder %s145, %s159
      %p161 = scmp.eq.s32.totalorder %s32, 0
      %p162 = por %p160, %p161
      %s164 = sadd.s32 %s163, 1
      %p167 = scmp.eq.s32.totalorder %s26, 3
      %p168 = scmp.ne.s32.totalorder %s163, %s165
      %p169 = scmp.eq.s32.totalorder %s26, 0
      %p170 = por %p168, %p169
      %p171 = scmp.ne.s32.totalorder %s163, %s165
      %p172 = scmp.eq.s32.totalorder %s31, 3
      %p173 = por %p171, %p172
      %p174 = scmp.ne.s32.totalorder %s165, %s166
      %p175 = scmp.eq.s32.totalorder %s31, 0
      %p176 = por %p174, %p175
      %p177 = scmp.ne.s32.totalorder %s165, %s166
      %p178 = scmp.eq.s32.totalorder %s32, 3
      %p179 = por %p177, %p178
      %p181 = scmp.ne.s32.totalorder %s166, %s180
      %p182 = scmp.eq.s32.totalorder %s32, 0
      %p183 = por %p181, %p182
      %s185 = sadd.s32 %s184, 1
      %p188 = scmp.eq.s32.totalorder %s26, 3
      %p189 = scmp.ne.s32.totalorder %s184, %s186
      %p190 = scmp.eq.s32.totalorder %s26, 0
      %p191 = por %p189, %p190
      %p192 = scmp.ne.s32.totalorder %s184, %s186
      %p193 = scmp.eq.s32.totalorder %s31, 3
      %p194 = por %p192, %p193
      %p195 = scmp.ne.s32.totalorder %s186, %s187
      %p196 = scmp.eq.s32.totalorder %s31, 0
      %p197 = por %p195, %p196
      %p198 = scmp.ne.s32.totalorder %s186, %s187
      %p199 = scmp.eq.s32.totalorder %s32, 3
      %p200 = por %p198, %p199
      %p202 = scmp.ne.s32.totalorder %s187, %s201
      %p203 = scmp.eq.s32.totalorder %s32, 0
      %p204 = por %p202, %p203
      %s206 = sadd.s32 %s205, 1
      %p209 = scmp.eq.s32.totalorder %s26, 3
      %p210 = scmp.ne.s32.totalorder %s205, %s207
      %p211 = scmp.eq.s32.totalorder %s26, 0
      %p212 = por %p210, %p211
      %p213 = scmp.ne.s32.totalorder %s205, %s207
      %p214 = scmp.eq.s32.totalorder %s31, 3
      %p215 = por %p213, %p214
      %p216 = scmp.ne.s32.totalorder %s207, %s208
      %p217 = scmp.eq.s32.totalorder %s31, 0
      %p218 = por %p216, %p217
      %p219 = scmp.ne.s32.totalorder %s207, %s208
      %p220 = scmp.eq.s32.totalorder %s32, 3
      %p221 = por %p219, %p220
      %p223 = scmp.ne.s32.totalorder %s208, %s222
      %p224 = scmp.eq.s32.totalorder %s32, 0
      %p225 = por %p223, %p224
      %s226 = ssub.s32 %s33, %s45
      %s227 = ssub.s32 %s34, %s41
      %s228 = sor.u32 %s226, %s227
      %p229 = scmp.eq.s32.totalorder %s228, 0
      %s231 = sadd.s32 %s230, 1
      %s232 = scalar_select %p229, %s230, %s231
      %p235 = pneg %p229
      %p236 = scmp.eq.s32.totalorder %s26, 3
      %p237 = por %p235, %p236
      %p238 = scmp.ne.s32.totalorder %s230, %s233
      %p239 = scmp.eq.s32.totalorder %s26, 0
      %p240 = por %p238, %p239
      %p241 = scmp.ne.s32.totalorder %s230, %s233
      %p242 = scmp.eq.s32.totalorder %s31, 3
      %p243 = por %p241, %p242
      %p244 = scmp.ne.s32.totalorder %s233, %s234
      %p245 = scmp.eq.s32.totalorder %s31, 0
      %p246 = por %p244, %p245
      %p247 = scmp.ne.s32.totalorder %s233, %s234
      %p248 = scmp.eq.s32.totalorder %s32, 3
      %p249 = por %p247, %p248
      %p251 = scmp.ne.s32.totalorder %s234, %s250
      %p252 = scmp.eq.s32.totalorder %s32, 0
      %p253 = por %p251, %p252
      %p254 = scmp.le.s32.totalorder 1, %s26
      %p255 = scmp.lt.s32.totalorder %s26, 5
      %p256 = pnand %p254, %p255
      %p257 = pneg %p256
      // Predicated region
      $region9: #{tpu_custom_call.1} parent=5 // pred_check
        _
      $region10: #{tpu_custom_call.1} parent=5 // pred_check_branch
        %259 = sbr.rel (%p256) target = $region12
      $region11: #{tpu_custom_call.1} parent=5 // pred_region
        %s260 = ssub.s32 %s26, 1
        // Predicated region
        $region13: #{tpu_custom_call.1} parent=11 // pred_check
          %p261 = pneg %p113
        $region14: #{tpu_custom_call.1} parent=11 // pred_check_branch
          %263 = sbr.rel (%p261) target = $region16
        $region15: #{tpu_custom_call.1} parent=11 // pred_region
          %s265 = ssub.s32 12288, 12288
          %266 = vsyncadd [#allocation9], %s265
          %s267 = sshll.u32 [#allocation10], 4
          %s268 = int_to_ptr.vmem [resolvable:$true] %s267
          %273 = dma.hbm_to_vmem [thread:$0]  %s2, 12288, %s268, [#allocation9], 384, 384, 24
        $region16: #{tpu_custom_call.1} parent=11 // pred_fallthru
          _
        // Predicated region
        $region17: #{tpu_custom_call.1} parent=11 // pred_check
          %p274 = pneg %p134
        $region18: #{tpu_custom_call.1} parent=11 // pred_check_branch
          %276 = sbr.rel (%p274) target = $region20
        $region19: #{tpu_custom_call.1} parent=11 // pred_region
          %s278 = ssub.s32 4096, 4096
          %279 = vsyncadd [#allocation12], %s278
          %s280 = sshll.u32 [#allocation11], 4
          %s281 = int_to_ptr.vmem [resolvable:$true] %s280
          %286 = dma.hbm_to_vmem [thread:$0]  %s3, 4096, %s281, [#allocation12], 128, 128, 8
        $region20: #{tpu_custom_call.1} parent=11 // pred_fallthru
          _
        // Predicated region
        $region21: #{tpu_custom_call.1} parent=11 // pred_check
          %p287 = pneg %p155
        $region22: #{tpu_custom_call.1} parent=11 // pred_check_branch
          %289 = sbr.rel (%p287) target = $region24
        $region23: #{tpu_custom_call.1} parent=11 // pred_region
          %s291 = ssub.s32 8192, 8192
          %292 = vsyncadd [#allocation12], %s291
          %s293 = sshll.u32 [#allocation13], 4
          %s294 = int_to_ptr.vmem [resolvable:$true] %s293
          %299 = dma.hbm_to_vmem [thread:$0]  %s4, 8192, %s294, [#allocation12], 256, 256, 16
        $region24: #{tpu_custom_call.1} parent=11 // pred_fallthru
          _
        // Predicated region
        $region25: #{tpu_custom_call.1} parent=11 // pred_check
          %p300 = pneg %p176
        $region26: #{tpu_custom_call.1} parent=11 // pred_check_branch
          %302 = sbr.rel (%p300) target = $region28
        $region27: #{tpu_custom_call.1} parent=11 // pred_region
          %s304 = ssub.s32 8192, 8192
          %305 = vsyncadd [#allocation15], %s304
          %s306 = sshll.u32 [#allocation14], 4
          %s307 = int_to_ptr.vmem [resolvable:$true] %s306
          %312 = dma.hbm_to_vmem [thread:$0]  %s5, 8192, %s307, [#allocation15], 128, 128, 8
        $region28: #{tpu_custom_call.1} parent=11 // pred_fallthru
          _
        // Predicated region
        $region29: #{tpu_custom_call.1} parent=11 // pred_check
          %p313 = pneg %p197
        $region30: #{tpu_custom_call.1} parent=11 // pred_check_branch
          %315 = sbr.rel (%p313) target = $region32
        $region31: #{tpu_custom_call.1} parent=11 // pred_region
          %s317 = ssub.s32 512, 512
          %318 = vsyncadd [#allocation15], %s317
          %s319 = sshll.u32 [#allocation16], 4
          %s320 = int_to_ptr.vmem [resolvable:$true] %s319
          %325 = dma.hbm_to_vmem [thread:$0]  %s6, 512, %s320, [#allocation15], 256, 256, 16
        $region32: #{tpu_custom_call.1} parent=11 // pred_fallthru
          _
        // Predicated region
        $region33: #{tpu_custom_call.1} parent=11 // pred_check
          %p326 = pneg %p218
        $region34: #{tpu_custom_call.1} parent=11 // pred_check_branch
          %328 = sbr.rel (%p326) target = $region36
        $region35: #{tpu_custom_call.1} parent=11 // pred_region
          %s330 = ssub.s32 64, 64
          %331 = vsyncadd [#allocation18], %s330
          %s333 = sshll.u32 [#allocation17], 4
          %s334 = int_to_ptr.vmem [resolvable:$true] %s333
          %336 = dma.hbm_to_vmem [thread:$0]  %s7, 64, %s334, [#allocation18]
        $region36: #{tpu_custom_call.1} parent=11 // pred_fallthru
          _
      $region12: #{tpu_custom_call.1} parent=5 // pred_fallthru
        _
      %p337 = scmp.lt.s32.totalorder %s26, 4
      // Predicated region
      $region37: #{tpu_custom_call.1} parent=5 // pred_check
        %p338 = pneg %p337
      $region38: #{tpu_custom_call.1} parent=5 // pred_check_branch
        %340 = sbr.rel (%p338) target = $region40
      $region39: #{tpu_custom_call.1} parent=5 // pred_region
        // Predicated region
        $region41: #{tpu_custom_call.1} parent=39 // pred_check
          %p341 = pneg %p60
        $region42: #{tpu_custom_call.1} parent=39 // pred_check_branch
          %343 = sbr.rel (%p341) target = $region44
        $region43: #{tpu_custom_call.1} parent=39 // pred_region
          %s344 = sand.u32 %s50, 1
          %s345 = scalar_lea.sflag [#allocation6], %s344
          %s346 = sand.u32 %s50, 1
          %s347 = smul.addr %s346, 256
          %s348 = scalar_lea.vmem [#allocation5], %s347
          %s349 = smul.u32 16, %s34
          %s351 = ssub.s32 4096, 4096
          %352 = vsyncadd %s345, %s351
          %s353 = smul.addr %s349, 2
          %s354 = smul.addr %s33, 64
          %s355 = sadd.s32 %s353, %s354
          %s356 = smul.addr %s355, 128
          %s357 = scalar_lea.hbm %s0, %s356
          %s358 = sshll.u32 %s348, 4
          %s359 = int_to_ptr.vmem [resolvable:$true] %s358
          %364 = dma.hbm_to_vmem [thread:$0]  %s357, 4096, %s359, %s345, 256, 256, 16
        $region44: #{tpu_custom_call.1} parent=39 // pred_fallthru
          _
        // Predicated region
        $region45: #{tpu_custom_call.1} parent=39 // pred_check
          %p365 = pneg %p86
        $region46: #{tpu_custom_call.1} parent=39 // pred_check_branch
          %367 = sbr.rel (%p365) target = $region48
        $region47: #{tpu_custom_call.1} parent=39 // pred_region
          %s368 = sand.u32 %s26, 1
          %s369 = scalar_lea.sflag [#allocation9], %s368
          %s370 = sand.u32 %s76, 1
          %s371 = smul.addr %s370, 512
          %s372 = scalar_lea.vmem [#allocation8], %s371
          %s374 = ssub.s32 8192, 8192
          %375 = vsyncadd %s369, %s374
          %s376 = smul.addr %s33, 64
          %s377 = smul.addr %s376, 128
          %s378 = scalar_lea.hbm %s1, %s377
          %s379 = sshll.u32 %s372, 4
          %s380 = int_to_ptr.vmem [resolvable:$true] %s379
          %385 = dma.hbm_to_vmem [thread:$0]  %s378, 8192, %s380, %s369, 256, 256, 16
        $region48: #{tpu_custom_call.1} parent=39 // pred_fallthru
          _
      $region40: #{tpu_custom_call.1} parent=5 // pred_fallthru
        _
      %p386 = scmp.le.s32.totalorder 1, %s26
      %p387 = scmp.lt.s32.totalorder %s26, 5
      %p388 = pnand %p386, %p387
      %p389 = pneg %p388
      // Predicated region
      $region49: #{tpu_custom_call.1} parent=5 // pred_check
        _
      $region50: #{tpu_custom_call.1} parent=5 // pred_check_branch
        %391 = sbr.rel (%p388) target = $region52
      $region51: #{tpu_custom_call.1} parent=5 // pred_region
        %s392 = ssub.s32 %s26, 1
        %s393 = sand.u32 %s53, 1
        %s394 = scalar_lea.sflag [#allocation6], %s393
        %s395 = sand.u32 %s53, 1
        %s396 = smul.addr %s395, 256
        %s397 = scalar_lea.vmem [#allocation5], %s396
        // Predicated region
        $region53: #{tpu_custom_call.1} parent=51 // pred_check
          %p398 = pneg %p66
        $region54: #{tpu_custom_call.1} parent=51 // pred_check_branch
          %400 = sbr.rel (%p398) target = $region56
        $region55: #{tpu_custom_call.1} parent=51 // pred_region
          %401 = dma.done %s394, 4096
        $region56: #{tpu_custom_call.1} parent=51 // pred_fallthru
          _
        %s402 = sand.u32 %s31, 1
        %s403 = scalar_lea.sflag [#allocation9], %s402
        %s404 = sand.u32 %s79, 1
        %s405 = smul.addr %s404, 512
        %s406 = scalar_lea.vmem [#allocation8], %s405
        // Predicated region
        $region57: #{tpu_custom_call.1} parent=51 // pred_check
          %p407 = pneg %p92
        $region58: #{tpu_custom_call.1} parent=51 // pred_check_branch
          %409 = sbr.rel (%p407) target = $region60
        $region59: #{tpu_custom_call.1} parent=51 // pred_region
          %410 = dma.done %s403, 8192
        $region60: #{tpu_custom_call.1} parent=51 // pred_fallthru
          _
        // Predicated region
        $region61: #{tpu_custom_call.1} parent=51 // pred_check
          %p411 = pneg %p113
        $region62: #{tpu_custom_call.1} parent=51 // pred_check_branch
          %413 = sbr.rel (%p411) target = $region64
        $region63: #{tpu_custom_call.1} parent=51 // pred_region
          %414 = dma.done [#allocation9], 12288
        $region64: #{tpu_custom_call.1} parent=51 // pred_fallthru
          _
        // Predicated region
        $region65: #{tpu_custom_call.1} parent=51 // pred_check
          %p415 = pneg %p134
        $region66: #{tpu_custom_call.1} parent=51 // pred_check_branch
          %417 = sbr.rel (%p415) target = $region68
        $region67: #{tpu_custom_call.1} parent=51 // pred_region
          %418 = dma.done [#allocation12], 4096
        $region68: #{tpu_custom_call.1} parent=51 // pred_fallthru
          _
        // Predicated region
        $region69: #{tpu_custom_call.1} parent=51 // pred_check
          %p419 = pneg %p155
        $region70: #{tpu_custom_call.1} parent=51 // pred_check_branch
          %421 = sbr.rel (%p419) target = $region72
        $region71: #{tpu_custom_call.1} parent=51 // pred_region
          %422 = dma.done [#allocation12], 8192
        $region72: #{tpu_custom_call.1} parent=51 // pred_fallthru
          _
        // Predicated region
        $region73: #{tpu_custom_call.1} parent=51 // pred_check
          %p423 = pneg %p176
        $region74: #{tpu_custom_call.1} parent=51 // pred_check_branch
          %425 = sbr.rel (%p423) target = $region76
        $region75: #{tpu_custom_call.1} parent=51 // pred_region
          %426 = dma.done [#allocation15], 8192
        $region76: #{tpu_custom_call.1} parent=51 // pred_fallthru
          _
        // Predicated region
        $region77: #{tpu_custom_call.1} parent=51 // pred_check
          %p427 = pneg %p197
        $region78: #{tpu_custom_call.1} parent=51 // pred_check_branch
          %429 = sbr.rel (%p427) target = $region80
        $region79: #{tpu_custom_call.1} parent=51 // pred_region
          %430 = dma.done [#allocation15], 512
        $region80: #{tpu_custom_call.1} parent=51 // pred_fallthru
          _
        // Predicated region
        $region81: #{tpu_custom_call.1} parent=51 // pred_check
          %p431 = pneg %p218
        $region82: #{tpu_custom_call.1} parent=51 // pred_check_branch
          %433 = sbr.rel (%p431) target = $region84
        $region83: #{tpu_custom_call.1} parent=51 // pred_region
          %434 = dma.done [#allocation18], 64
        $region84: #{tpu_custom_call.1} parent=51 // pred_fallthru
          _
        %s435 = sand.u32 %s53, 1
        %s436 = scalar_lea.sflag [#allocation6], %s435
        %s437 = sand.u32 %s53, 1
        %s438 = smul.addr %s437, 256
        %s439 = scalar_lea.vmem [#allocation5], %s438
        %p440 = pneg %p66
        %p441 = pneg %p63
        %s442 = sand.u32 %s31, 1
        %s443 = scalar_lea.sflag [#allocation9], %s442
        %s444 = sand.u32 %s79, 1
        %s445 = smul.addr %s444, 512
        %s446 = scalar_lea.vmem [#allocation8], %s445
        %p447 = pneg %p92
        %p448 = pneg %p89
        %p449 = pneg %p113
        %p450 = pneg %p110
        %p451 = pneg %p134
        %p452 = pneg %p131
        %p453 = pneg %p155
        %p454 = pneg %p152
        %p455 = pneg %p176
        %p456 = pneg %p173
        %p457 = pneg %p197
        %p458 = pneg %p194
        %p459 = pneg %p218
        %p460 = pneg %p215
        %p461 = pneg %p246
        %p462 = pneg %p243
        %s463 = sand.u32 %s233, 1
        %s464 = scalar_lea.sflag [#allocation7], %s463
        %s465 = sand.u32 %s233, 1
        %s466 = smul.addr %s465, 256
        %s467 = scalar_lea.vmem [#allocation19], %s466
        %s468 = smul.u32 16, %s36
        %s469 = smul.u32 16, %s36
        %v471 = vld [vmem:[%s397] sm:$0xff]
        %v472 = vld [vmem:[%s397 + $0x8] sm:$0xff]
        %v473 = vld [vmem:[%s397 + $0x10] sm:$0xff]
        %v474 = vld [vmem:[%s397 + $0x18] sm:$0xff]
        %v475 = vld [vmem:[%s397 + $0x20] sm:$0xff]
        %v476 = vld [vmem:[%s397 + $0x28] sm:$0xff]
        %v477 = vld [vmem:[%s397 + $0x30] sm:$0xff]
        %v478 = vld [vmem:[%s397 + $0x38] sm:$0xff]
        %v479 = vld [vmem:[%s397 + $0x40] sm:$0xff]
        %v480 = vld [vmem:[%s397 + $0x48] sm:$0xff]
        %v481 = vld [vmem:[%s397 + $0x50] sm:$0xff]
        %v482 = vld [vmem:[%s397 + $0x58] sm:$0xff]
        %v483 = vld [vmem:[%s397 + $0x60] sm:$0xff]
        %v484 = vld [vmem:[%s397 + $0x68] sm:$0xff]
        %v485 = vld [vmem:[%s397 + $0x70] sm:$0xff]
        %v486 = vld [vmem:[%s397 + $0x78] sm:$0xff]
        %v487 = vld [vmem:[%s397 + $0x80] sm:$0xff]
        %v488 = vld [vmem:[%s397 + $0x88] sm:$0xff]
        %v489 = vld [vmem:[%s397 + $0x90] sm:$0xff]
        %v490 = vld [vmem:[%s397 + $0x98] sm:$0xff]
        %v491 = vld [vmem:[%s397 + $0xa0] sm:$0xff]
        %v492 = vld [vmem:[%s397 + $0xa8] sm:$0xff]
        %v493 = vld [vmem:[%s397 + $0xb0] sm:$0xff]
        %v494 = vld [vmem:[%s397 + $0xb8] sm:$0xff]
        %v495 = vld [vmem:[%s397 + $0xc0] sm:$0xff]
        %v496 = vld [vmem:[%s397 + $0xc8] sm:$0xff]
        %v497 = vld [vmem:[%s397 + $0xd0] sm:$0xff]
        %v498 = vld [vmem:[%s397 + $0xd8] sm:$0xff]
        %v499 = vld [vmem:[%s397 + $0xe0] sm:$0xff]
        %v500 = vld [vmem:[%s397 + $0xe8] sm:$0xff]
        %v501 = vld [vmem:[%s397 + $0xf0] sm:$0xff]
        %v502 = vld [vmem:[%s397 + $0xf8] sm:$0xff]
        %v503 = vld [vmem:[%s406] sm:$0xff]
        %v504 = vld [vmem:[%s406 + $0x8] sm:$0xff]
        %v505 = vld [vmem:[%s406 + $0x10] sm:$0xff]
        %v506 = vld [vmem:[%s406 + $0x18] sm:$0xff]
        %v507 = vld [vmem:[%s406 + $0x20] sm:$0xff]
        %v508 = vld [vmem:[%s406 + $0x28] sm:$0xff]
        %v509 = vld [vmem:[%s406 + $0x30] sm:$0xff]
        %v510 = vld [vmem:[%s406 + $0x38] sm:$0xff]
        %v511 = vld [vmem:[%s406 + $0x40] sm:$0xff]
        %v512 = vld [vmem:[%s406 + $0x48] sm:$0xff]
        %v513 = vld [vmem:[%s406 + $0x50] sm:$0xff]
        %v514 = vld [vmem:[%s406 + $0x58] sm:$0xff]
        %v515 = vld [vmem:[%s406 + $0x60] sm:$0xff]
        %v516 = vld [vmem:[%s406 + $0x68] sm:$0xff]
        %v517 = vld [vmem:[%s406 + $0x70] sm:$0xff]
        %v518 = vld [vmem:[%s406 + $0x78] sm:$0xff]
        %v519 = vld [vmem:[%s406 + $0x80] sm:$0xff]
        %v520 = vld [vmem:[%s406 + $0x88] sm:$0xff]
        %v521 = vld [vmem:[%s406 + $0x90] sm:$0xff]
        %v522 = vld [vmem:[%s406 + $0x98] sm:$0xff]
        %v523 = vld [vmem:[%s406 + $0xa0] sm:$0xff]
        %v524 = vld [vmem:[%s406 + $0xa8] sm:$0xff]
        %v525 = vld [vmem:[%s406 + $0xb0] sm:$0xff]
        %v526 = vld [vmem:[%s406 + $0xb8] sm:$0xff]
        %v527 = vld [vmem:[%s406 + $0xc0] sm:$0xff]
        %v528 = vld [vmem:[%s406 + $0xc8] sm:$0xff]
        %v529 = vld [vmem:[%s406 + $0xd0] sm:$0xff]
        %v530 = vld [vmem:[%s406 + $0xd8] sm:$0xff]
        %v531 = vld [vmem:[%s406 + $0xe0] sm:$0xff]
        %v532 = vld [vmem:[%s406 + $0xe8] sm:$0xff]
        %v533 = vld [vmem:[%s406 + $0xf0] sm:$0xff]
        %v534 = vld [vmem:[%s406 + $0xf8] sm:$0xff]
        %v535 = vld [vmem:[%s406 + $0x100] sm:$0xff]
        %v536 = vld [vmem:[%s406 + $0x108] sm:$0xff]
        %v537 = vld [vmem:[%s406 + $0x110] sm:$0xff]
        %v538 = vld [vmem:[%s406 + $0x118] sm:$0xff]
        %v539 = vld [vmem:[%s406 + $0x120] sm:$0xff]
        %v540 = vld [vmem:[%s406 + $0x128] sm:$0xff]
        %v541 = vld [vmem:[%s406 + $0x130] sm:$0xff]
        %v542 = vld [vmem:[%s406 + $0x138] sm:$0xff]
        %v543 = vld [vmem:[%s406 + $0x140] sm:$0xff]
        %v544 = vld [vmem:[%s406 + $0x148] sm:$0xff]
        %v545 = vld [vmem:[%s406 + $0x150] sm:$0xff]
        %v546 = vld [vmem:[%s406 + $0x158] sm:$0xff]
        %v547 = vld [vmem:[%s406 + $0x160] sm:$0xff]
        %v548 = vld [vmem:[%s406 + $0x168] sm:$0xff]
        %v549 = vld [vmem:[%s406 + $0x170] sm:$0xff]
        %v550 = vld [vmem:[%s406 + $0x178] sm:$0xff]
        %v551 = vld [vmem:[%s406 + $0x180] sm:$0xff]
        %v552 = vld [vmem:[%s406 + $0x188] sm:$0xff]
        %v553 = vld [vmem:[%s406 + $0x190] sm:$0xff]
        %v554 = vld [vmem:[%s406 + $0x198] sm:$0xff]
        %v555 = vld [vmem:[%s406 + $0x1a0] sm:$0xff]
        %v556 = vld [vmem:[%s406 + $0x1a8] sm:$0xff]
        %v557 = vld [vmem:[%s406 + $0x1b0] sm:$0xff]
        %v558 = vld [vmem:[%s406 + $0x1b8] sm:$0xff]
        %v559 = vld [vmem:[%s406 + $0x1c0] sm:$0xff]
        %v560 = vld [vmem:[%s406 + $0x1c8] sm:$0xff]
        %v561 = vld [vmem:[%s406 + $0x1d0] sm:$0xff]
        %v562 = vld [vmem:[%s406 + $0x1d8] sm:$0xff]
        %v563 = vld [vmem:[%s406 + $0x1e0] sm:$0xff]
        %v564 = vld [vmem:[%s406 + $0x1e8] sm:$0xff]
        %v565 = vld [vmem:[%s406 + $0x1f0] sm:$0xff]
        %v566 = vld [vmem:[%s406 + $0x1f8] sm:$0xff]
        %v567 = vld [vmem:[#allocation16] sm:$0xff]
        %v568 = vld [vmem:[#allocation16 + $0x8] sm:$0xff]
        %v569 = vld [vmem:[#allocation16 + $0x10] sm:$0x1]
        %v570 = vld [vmem:[#allocation16 + $0x18] sm:$0x1]
        %v571 = vadd.f32 %v471, %v472
        %572 = vadd.xlane.f32.xlu0 %v571
        %v573 = vpop.xlane.xlu0 %572
        %v574 = vadd.f32 %v473, %v474
        %575 = vadd.xlane.f32.xlu0 %v574
        %v576 = vpop.xlane.xlu0 %575
        %v577 = vadd.f32 %v475, %v476
        %578 = vadd.xlane.f32.xlu0 %v577
        %v579 = vpop.xlane.xlu0 %578
        %v580 = vadd.f32 %v477, %v478
        %581 = vadd.xlane.f32.xlu0 %v580
        %v582 = vpop.xlane.xlu0 %581
        %v583 = vadd.f32 %v479, %v480
        %584 = vadd.xlane.f32.xlu0 %v583
        %v585 = vpop.xlane.xlu0 %584
        %v586 = vadd.f32 %v481, %v482
        %587 = vadd.xlane.f32.xlu0 %v586
        %v588 = vpop.xlane.xlu0 %587
        %v589 = vadd.f32 %v483, %v484
        %590 = vadd.xlane.f32.xlu0 %v589
        %v591 = vpop.xlane.xlu0 %590
        %v592 = vadd.f32 %v485, %v486
        %593 = vadd.xlane.f32.xlu0 %v592
        %v594 = vpop.xlane.xlu0 %593
        %v595 = vadd.f32 %v487, %v488
        %596 = vadd.xlane.f32.xlu0 %v595
        %v597 = vpop.xlane.xlu0 %596
        %v598 = vadd.f32 %v489, %v490
        %599 = vadd.xlane.f32.xlu0 %v598
        %v600 = vpop.xlane.xlu0 %599
        %v601 = vadd.f32 %v491, %v492
        %602 = vadd.xlane.f32.xlu0 %v601
        %v603 = vpop.xlane.xlu0 %602
        %v604 = vadd.f32 %v493, %v494
        %605 = vadd.xlane.f32.xlu0 %v604
        %v606 = vpop.xlane.xlu0 %605
        %v607 = vadd.f32 %v495, %v496
        %608 = vadd.xlane.f32.xlu0 %v607
        %v609 = vpop.xlane.xlu0 %608
        %v610 = vadd.f32 %v497, %v498
        %611 = vadd.xlane.f32.xlu0 %v610
        %v612 = vpop.xlane.xlu0 %611
        %v613 = vadd.f32 %v499, %v500
        %614 = vadd.xlane.f32.xlu0 %v613
        %v615 = vpop.xlane.xlu0 %614
        %v616 = vadd.f32 %v501, %v502
        %617 = vadd.xlane.f32.xlu0 %v616
        %v618 = vpop.xlane.xlu0 %617
        %v619 = vrcp.pop 256.0
        %v620 = vmul.f32 %v573, %v619
        %v621 = vmul.f32 %v576, %v619
        %v622 = vmul.f32 %v579, %v619
        %v623 = vmul.f32 %v582, %v619
        %v624 = vmul.f32 %v585, %v619
        %v625 = vmul.f32 %v588, %v619
        %v626 = vmul.f32 %v591, %v619
        %v627 = vmul.f32 %v594, %v619
        %v628 = vmul.f32 %v597, %v619
        %v629 = vmul.f32 %v600, %v619
        %v630 = vmul.f32 %v603, %v619
        %v631 = vmul.f32 %v606, %v619
        %v632 = vmul.f32 %v609, %v619
        %v633 = vmul.f32 %v612, %v619
        %v634 = vmul.f32 %v615, %v619
        %v635 = vmul.f32 %v618, %v619
        %v636 = vsub.f32 %v471, %v620
        %v637 = vsub.f32 %v472, %v620
        %v638 = vsub.f32 %v473, %v621
        %v639 = vsub.f32 %v474, %v621
        %v640 = vsub.f32 %v475, %v622
        %v641 = vsub.f32 %v476, %v622
        %v642 = vsub.f32 %v477, %v623
        %v643 = vsub.f32 %v478, %v623
        %v644 = vsub.f32 %v479, %v624
        %v645 = vsub.f32 %v480, %v624
        %v646 = vsub.f32 %v481, %v625
        %v647 = vsub.f32 %v482, %v625
        %v648 = vsub.f32 %v483, %v626
        %v649 = vsub.f32 %v484, %v626
        %v650 = vsub.f32 %v485, %v627
        %v651 = vsub.f32 %v486, %v627
        %v652 = vsub.f32 %v487, %v628
        %v653 = vsub.f32 %v488, %v628
        %v654 = vsub.f32 %v489, %v629
        %v655 = vsub.f32 %v490, %v629
        %v656 = vsub.f32 %v491, %v630
        %v657 = vsub.f32 %v492, %v630
        %v658 = vsub.f32 %v493, %v631
        %v659 = vsub.f32 %v494, %v631
        %v660 = vsub.f32 %v495, %v632
        %v661 = vsub.f32 %v496, %v632
        %v662 = vsub.f32 %v497, %v633
        %v663 = vsub.f32 %v498, %v633
        %v664 = vsub.f32 %v499, %v634
        %v665 = vsub.f32 %v500, %v634
        %v666 = vsub.f32 %v501, %v635
        %v667 = vsub.f32 %v502, %v635
        %v668 = vmul.f32 %v636, %v636
        %v669 = vmul.f32 %v637, %v637
        %v670 = vmul.f32 %v638, %v638
        %v671 = vmul.f32 %v639, %v639
        %v672 = vmul.f32 %v640, %v640
        %v673 = vmul.f32 %v641, %v641
        %v674 = vmul.f32 %v642, %v642
        %v675 = vmul.f32 %v643, %v643
        %v676 = vmul.f32 %v644, %v644
        %v677 = vmul.f32 %v645, %v645
        %v678 = vmul.f32 %v646, %v646
        %v679 = vmul.f32 %v647, %v647
        %v680 = vmul.f32 %v648, %v648
        %v681 = vmul.f32 %v649, %v649
        %v682 = vmul.f32 %v650, %v650
        %v683 = vmul.f32 %v651, %v651
        %v684 = vmul.f32 %v652, %v652
        %v685 = vmul.f32 %v653, %v653
        %v686 = vmul.f32 %v654, %v654
        %v687 = vmul.f32 %v655, %v655
        %v688 = vmul.f32 %v656, %v656
        %v689 = vmul.f32 %v657, %v657
        %v690 = vmul.f32 %v658, %v658
        %v691 = vmul.f32 %v659, %v659
        %v692 = vmul.f32 %v660, %v660
        %v693 = vmul.f32 %v661, %v661
        %v694 = vmul.f32 %v662, %v662
        %v695 = vmul.f32 %v663, %v663
        %v696 = vmul.f32 %v664, %v664
        %v697 = vmul.f32 %v665, %v665
        %v698 = vmul.f32 %v666, %v666
        %v699 = vmul.f32 %v667, %v667
        %v700 = vadd.f32 %v668, %v669
        %701 = vadd.xlane.f32.xlu0 %v700
        %v702 = vpop.xlane.xlu0 %701
        %v703 = vadd.f32 %v670, %v671
        %704 = vadd.xlane.f32.xlu0 %v703
        %v705 = vpop.xlane.xlu0 %704
        %v706 = vadd.f32 %v672, %v673
        %707 = vadd.xlane.f32.xlu0 %v706
        %v708 = vpop.xlane.xlu0 %707
        %v709 = vadd.f32 %v674, %v675
        %710 = vadd.xlane.f32.xlu0 %v709
        %v711 = vpop.xlane.xlu0 %710
        %v712 = vadd.f32 %v676, %v677
        %713 = vadd.xlane.f32.xlu0 %v712
        %v714 = vpop.xlane.xlu0 %713
        %v715 = vadd.f32 %v678, %v679
        %716 = vadd.xlane.f32.xlu0 %v715
        %v717 = vpop.xlane.xlu0 %716
        %v718 = vadd.f32 %v680, %v681
        %719 = vadd.xlane.f32.xlu0 %v718
        %v720 = vpop.xlane.xlu0 %719
        %v721 = vadd.f32 %v682, %v683
        %722 = vadd.xlane.f32.xlu0 %v721
        %v723 = vpop.xlane.xlu0 %722
        %v724 = vadd.f32 %v684, %v685
        %725 = vadd.xlane.f32.xlu0 %v724
        %v726 = vpop.xlane.xlu0 %725
        %v727 = vadd.f32 %v686, %v687
        %728 = vadd.xlane.f32.xlu0 %v727
        %v729 = vpop.xlane.xlu0 %728
        %v730 = vadd.f32 %v688, %v689
        %731 = vadd.xlane.f32.xlu0 %v730
        %v732 = vpop.xlane.xlu0 %731
        %v733 = vadd.f32 %v690, %v691
        %734 = vadd.xlane.f32.xlu0 %v733
        %v735 = vpop.xlane.xlu0 %734
        %v736 = vadd.f32 %v692, %v693
        %737 = vadd.xlane.f32.xlu0 %v736
        %v738 = vpop.xlane.xlu0 %737
        %v739 = vadd.f32 %v694, %v695
        %740 = vadd.xlane.f32.xlu0 %v739
        %v741 = vpop.xlane.xlu0 %740
        %v742 = vadd.f32 %v696, %v697
        %743 = vadd.xlane.f32.xlu0 %v742
        %v744 = vpop.xlane.xlu0 %743
        %v745 = vadd.f32 %v698, %v699
        %746 = vadd.xlane.f32.xlu0 %v745
        %v747 = vpop.xlane.xlu0 %746
        %v748 = vmul.f32 %v702, %v619
        %v749 = vmul.f32 %v705, %v619
        %v750 = vmul.f32 %v708, %v619
        %v751 = vmul.f32 %v711, %v619
        %v752 = vmul.f32 %v714, %v619
        %v753 = vmul.f32 %v717, %v619
        %v754 = vmul.f32 %v720, %v619
        %v755 = vmul.f32 %v723, %v619
        %v756 = vmul.f32 %v726, %v619
        %v757 = vmul.f32 %v729, %v619
        %v758 = vmul.f32 %v732, %v619
        %v759 = vmul.f32 %v735, %v619
        %v760 = vmul.f32 %v738, %v619
        %v761 = vmul.f32 %v741, %v619
        %v762 = vmul.f32 %v744, %v619
        %v763 = vmul.f32 %v747, %v619
        %v764 = vadd.f32 %v748, 1e-05
        %v765 = vadd.f32 %v749, 1e-05
        %v766 = vadd.f32 %v750, 1e-05
        %v767 = vadd.f32 %v751, 1e-05
        %v768 = vadd.f32 %v752, 1e-05
        %v769 = vadd.f32 %v753, 1e-05
        %v770 = vadd.f32 %v754, 1e-05
        %v771 = vadd.f32 %v755, 1e-05
        %v772 = vadd.f32 %v756, 1e-05
        %v773 = vadd.f32 %v757, 1e-05
        %v774 = vadd.f32 %v758, 1e-05
        %v775 = vadd.f32 %v759, 1e-05
        %v776 = vadd.f32 %v760, 1e-05
        %v777 = vadd.f32 %v761, 1e-05
        %v778 = vadd.f32 %v762, 1e-05
        %v779 = vadd.f32 %v763, 1e-05
        %v780 = vrsqrt.pop %v764
        %v781 = vrsqrt.pop %v765
        %v782 = vrsqrt.pop %v766
        %v783 = vrsqrt.pop %v767
        %v784 = vrsqrt.pop %v768
        %v785 = vrsqrt.pop %v769
        %v786 = vrsqrt.pop %v770
        %v787 = vrsqrt.pop %v771
        %v788 = vrsqrt.pop %v772
        %v789 = vrsqrt.pop %v773
        %v790 = vrsqrt.pop %v774
        %v791 = vrsqrt.pop %v775
        %v792 = vrsqrt.pop %v776
        %v793 = vrsqrt.pop %v777
        %v794 = vrsqrt.pop %v778
        %v795 = vrsqrt.pop %v779
        %v796 = vmul.f32 %v636, %v780
        %v797 = vmul.f32 %v637, %v780
        %v798 = vmul.f32 %v638, %v781
        %v799 = vmul.f32 %v639, %v781
        %v800 = vmul.f32 %v640, %v782
        %v801 = vmul.f32 %v641, %v782
        %v802 = vmul.f32 %v642, %v783
        %v803 = vmul.f32 %v643, %v783
        %v804 = vmul.f32 %v644, %v784
        %v805 = vmul.f32 %v645, %v784
        %v806 = vmul.f32 %v646, %v785
        %v807 = vmul.f32 %v647, %v785
        %v808 = vmul.f32 %v648, %v786
        %v809 = vmul.f32 %v649, %v786
        %v810 = vmul.f32 %v650, %v787
        %v811 = vmul.f32 %v651, %v787
        %v812 = vmul.f32 %v652, %v788
        %v813 = vmul.f32 %v653, %v788
        %v814 = vmul.f32 %v654, %v789
        %v815 = vmul.f32 %v655, %v789
        %v816 = vmul.f32 %v656, %v790
        %v817 = vmul.f32 %v657, %v790
        %v818 = vmul.f32 %v658, %v791
        %v819 = vmul.f32 %v659, %v791
        %v820 = vmul.f32 %v660, %v792
        %v821 = vmul.f32 %v661, %v792
        %v822 = vmul.f32 %v662, %v793
        %v823 = vmul.f32 %v663, %v793
        %v824 = vmul.f32 %v664, %v794
        %v825 = vmul.f32 %v665, %v794
        %v826 = vmul.f32 %v666, %v795
        %v827 = vmul.f32 %v667, %v795
        %v828 = vlaneseq
        %v829 = vshrl.u32 %v828, 7
        %v830 = vsub.s32 5, %v829
        %v831 = vrot.slane %v567, %v830
        %v832 = vlaneseq
        %v833 = vshrl.u32 %v832, 7
        %v834 = vsub.s32 5, %v833
        %v835 = vrot.slane %v568, %v834
        %v836 = vmul.f32 %v796, %v831
        %v837 = vmul.f32 %v797, %v835
        %v838 = vmul.f32 %v798, %v831
        %v839 = vmul.f32 %v799, %v835
        %v840 = vmul.f32 %v800, %v831
        %v841 = vmul.f32 %v801, %v835
        %v842 = vmul.f32 %v802, %v831
        %v843 = vmul.f32 %v803, %v835
        %v844 = vmul.f32 %v804, %v831
        %v845 = vmul.f32 %v805, %v835
        %v846 = vmul.f32 %v806, %v831
        %v847 = vmul.f32 %v807, %v835
        %v848 = vmul.f32 %v808, %v831
        %v849 = vmul.f32 %v809, %v835
        %v850 = vmul.f32 %v810, %v831
        %v851 = vmul.f32 %v811, %v835
        %v852 = vmul.f32 %v812, %v831
        %v853 = vmul.f32 %v813, %v835
        %v854 = vmul.f32 %v814, %v831
        %v855 = vmul.f32 %v815, %v835
        %v856 = vmul.f32 %v816, %v831
        %v857 = vmul.f32 %v817, %v835
        %v858 = vmul.f32 %v818, %v831
        %v859 = vmul.f32 %v819, %v835
        %v860 = vmul.f32 %v820, %v831
        %v861 = vmul.f32 %v821, %v835
        %v862 = vmul.f32 %v822, %v831
        %v863 = vmul.f32 %v823, %v835
        %v864 = vmul.f32 %v824, %v831
        %v865 = vmul.f32 %v825, %v835
        %v866 = vmul.f32 %v826, %v831
        %v867 = vmul.f32 %v827, %v835
        %v868 = vlaneseq
        %v869 = vshrl.u32 %v868, 7
        %v870 = vsub.s32 6, %v869
        %v871 = vrot.slane %v567, %v870
        %v872 = vlaneseq
        %v873 = vshrl.u32 %v872, 7
        %v874 = vsub.s32 6, %v873
        %v875 = vrot.slane %v568, %v874
        %v876 = vadd.f32 %v836, %v871
        %v877 = vadd.f32 %v837, %v875
        %v878 = vadd.f32 %v838, %v871
        %v879 = vadd.f32 %v839, %v875
        %v880 = vadd.f32 %v840, %v871
        %v881 = vadd.f32 %v841, %v875
        %v882 = vadd.f32 %v842, %v871
        %v883 = vadd.f32 %v843, %v875
        %v884 = vadd.f32 %v844, %v871
        %v885 = vadd.f32 %v845, %v875
        %v886 = vadd.f32 %v846, %v871
        %v887 = vadd.f32 %v847, %v875
        %v888 = vadd.f32 %v848, %v871
        %v889 = vadd.f32 %v849, %v875
        %v890 = vadd.f32 %v850, %v871
        %v891 = vadd.f32 %v851, %v875
        %v892 = vadd.f32 %v852, %v871
        %v893 = vadd.f32 %v853, %v875
        %v894 = vadd.f32 %v854, %v871
        %v895 = vadd.f32 %v855, %v875
        %v896 = vadd.f32 %v856, %v871
        %v897 = vadd.f32 %v857, %v875
        %v898 = vadd.f32 %v858, %v871
        %v899 = vadd.f32 %v859, %v875
        %v900 = vadd.f32 %v860, %v871
        %v901 = vadd.f32 %v861, %v875
        %v902 = vadd.f32 %v862, %v871
        %v903 = vadd.f32 %v863, %v875
        %v904 = vadd.f32 %v864, %v871
        %v905 = vadd.f32 %v865, %v875
        %v906 = vadd.f32 %v866, %v871
        %v907 = vadd.f32 %v867, %v875
        %v908 = vpack.c.bf16 %v878, %v876
        %v909 = vpack.c.bf16 %v879, %v877
        %v910 = vpack.c.bf16 %v882, %v880
        %v911 = vpack.c.bf16 %v883, %v881
        %v912 = vpack.c.bf16 %v886, %v884
        %v913 = vpack.c.bf16 %v887, %v885
        %v914 = vpack.c.bf16 %v890, %v888
        %v915 = vpack.c.bf16 %v891, %v889
        %v916 = vpack.c.bf16 %v894, %v892
        %v917 = vpack.c.bf16 %v895, %v893
        %v918 = vpack.c.bf16 %v898, %v896
        %v919 = vpack.c.bf16 %v899, %v897
        %v920 = vpack.c.bf16 %v902, %v900
        %v921 = vpack.c.bf16 %v903, %v901
        %v922 = vpack.c.bf16 %v906, %v904
        %v923 = vpack.c.bf16 %v907, %v905
        %v924 = vadd.f32 %v503, %v504
        %925 = vadd.xlane.f32.xlu0 %v924
        %v926 = vpop.xlane.xlu0 %925
        %v927 = vadd.f32 %v505, %v506
        %928 = vadd.xlane.f32.xlu0 %v927
        %v929 = vpop.xlane.xlu0 %928
        %v930 = vadd.f32 %v507, %v508
        %931 = vadd.xlane.f32.xlu0 %v930
        %v932 = vpop.xlane.xlu0 %931
        %v933 = vadd.f32 %v509, %v510
        %934 = vadd.xlane.f32.xlu0 %v933
        %v935 = vpop.xlane.xlu0 %934
        %v936 = vadd.f32 %v511, %v512
        %937 = vadd.xlane.f32.xlu0 %v936
        %v938 = vpop.xlane.xlu0 %937
        %v939 = vadd.f32 %v513, %v514
        %940 = vadd.xlane.f32.xlu0 %v939
        %v941 = vpop.xlane.xlu0 %940
        %v942 = vadd.f32 %v515, %v516
        %943 = vadd.xlane.f32.xlu0 %v942
        %v944 = vpop.xlane.xlu0 %943
        %v945 = vadd.f32 %v517, %v518
        %946 = vadd.xlane.f32.xlu0 %v945
        %v947 = vpop.xlane.xlu0 %946
        %v948 = vadd.f32 %v519, %v520
        %949 = vadd.xlane.f32.xlu0 %v948
        %v950 = vpop.xlane.xlu0 %949
        %v951 = vadd.f32 %v521, %v522
        %952 = vadd.xlane.f32.xlu0 %v951
        %v953 = vpop.xlane.xlu0 %952
        %v954 = vadd.f32 %v523, %v524
        %955 = vadd.xlane.f32.xlu0 %v954
        %v956 = vpop.xlane.xlu0 %955
        %v957 = vadd.f32 %v525, %v526
        %958 = vadd.xlane.f32.xlu0 %v957
        %v959 = vpop.xlane.xlu0 %958
        %v960 = vadd.f32 %v527, %v528
        %961 = vadd.xlane.f32.xlu0 %v960
        %v962 = vpop.xlane.xlu0 %961
        %v963 = vadd.f32 %v529, %v530
        %964 = vadd.xlane.f32.xlu0 %v963
        %v965 = vpop.xlane.xlu0 %964
        %v966 = vadd.f32 %v531, %v532
        %967 = vadd.xlane.f32.xlu0 %v966
        %v968 = vpop.xlane.xlu0 %967
        %v969 = vadd.f32 %v533, %v534
        %970 = vadd.xlane.f32.xlu0 %v969
        %v971 = vpop.xlane.xlu0 %970
        %v972 = vadd.f32 %v535, %v536
        %973 = vadd.xlane.f32.xlu0 %v972
        %v974 = vpop.xlane.xlu0 %973
        %v975 = vadd.f32 %v537, %v538
        %976 = vadd.xlane.f32.xlu0 %v975
        %v977 = vpop.xlane.xlu0 %976
        %v978 = vadd.f32 %v539, %v540
        %979 = vadd.xlane.f32.xlu0 %v978
        %v980 = vpop.xlane.xlu0 %979
        %v981 = vadd.f32 %v541, %v542
        %982 = vadd.xlane.f32.xlu0 %v981
        %v983 = vpop.xlane.xlu0 %982
        %v984 = vadd.f32 %v543, %v544
        %985 = vadd.xlane.f32.xlu0 %v984
        %v986 = vpop.xlane.xlu0 %985
        %v987 = vadd.f32 %v545, %v546
        %988 = vadd.xlane.f32.xlu0 %v987
        %v989 = vpop.xlane.xlu0 %988
        %v990 = vadd.f32 %v547, %v548
        %991 = vadd.xlane.f32.xlu0 %v990
        %v992 = vpop.xlane.xlu0 %991
        %v993 = vadd.f32 %v549, %v550
        %994 = vadd.xlane.f32.xlu0 %v993
        %v995 = vpop.xlane.xlu0 %994
        %v996 = vadd.f32 %v551, %v552
        %997 = vadd.xlane.f32.xlu0 %v996
        %v998 = vpop.xlane.xlu0 %997
        %v999 = vadd.f32 %v553, %v554
        %1000 = vadd.xlane.f32.xlu0 %v999
        %v1001 = vpop.xlane.xlu0 %1000
        %v1002 = vadd.f32 %v555, %v556
        %1003 = vadd.xlane.f32.xlu0 %v1002
        %v1004 = vpop.xlane.xlu0 %1003
        %v1005 = vadd.f32 %v557, %v558
        %1006 = vadd.xlane.f32.xlu0 %v1005
        %v1007 = vpop.xlane.xlu0 %1006
        %v1008 = vadd.f32 %v559, %v560
        %1009 = vadd.xlane.f32.xlu0 %v1008
        %v1010 = vpop.xlane.xlu0 %1009
        %v1011 = vadd.f32 %v561, %v562
        %1012 = vadd.xlane.f32.xlu0 %v1011
        %v1013 = vpop.xlane.xlu0 %1012
        %v1014 = vadd.f32 %v563, %v564
        %1015 = vadd.xlane.f32.xlu0 %v1014
        %v1016 = vpop.xlane.xlu0 %1015
        %v1017 = vadd.f32 %v565, %v566
        %1018 = vadd.xlane.f32.xlu0 %v1017
        %v1019 = vpop.xlane.xlu0 %1018
        %v1020 = vmul.f32 %v926, %v619
        %v1021 = vmul.f32 %v929, %v619
        %v1022 = vmul.f32 %v932, %v619
        %v1023 = vmul.f32 %v935, %v619
        %v1024 = vmul.f32 %v938, %v619
        %v1025 = vmul.f32 %v941, %v619
        %v1026 = vmul.f32 %v944, %v619
        %v1027 = vmul.f32 %v947, %v619
        %v1028 = vmul.f32 %v950, %v619
        %v1029 = vmul.f32 %v953, %v619
        %v1030 = vmul.f32 %v956, %v619
        %v1031 = vmul.f32 %v959, %v619
        %v1032 = vmul.f32 %v962, %v619
        %v1033 = vmul.f32 %v965, %v619
        %v1034 = vmul.f32 %v968, %v619
        %v1035 = vmul.f32 %v971, %v619
        %v1036 = vmul.f32 %v974, %v619
        %v1037 = vmul.f32 %v977, %v619
        %v1038 = vmul.f32 %v980, %v619
        %v1039 = vmul.f32 %v983, %v619
        %v1040 = vmul.f32 %v986, %v619
        %v1041 = vmul.f32 %v989, %v619
        %v1042 = vmul.f32 %v992, %v619
        %v1043 = vmul.f32 %v995, %v619
        %v1044 = vmul.f32 %v998, %v619
        %v1045 = vmul.f32 %v1001, %v619
        %v1046 = vmul.f32 %v1004, %v619
        %v1047 = vmul.f32 %v1007, %v619
        %v1048 = vmul.f32 %v1010, %v619
        %v1049 = vmul.f32 %v1013, %v619
        %v1050 = vmul.f32 %v1016, %v619
        %v1051 = vmul.f32 %v1019, %v619
        %v1052 = vsub.f32 %v503, %v1020
        %v1053 = vsub.f32 %v504, %v1020
        %v1054 = vsub.f32 %v505, %v1021
        %v1055 = vsub.f32 %v506, %v1021
        %v1056 = vsub.f32 %v507, %v1022
        %v1057 = vsub.f32 %v508, %v1022
        %v1058 = vsub.f32 %v509, %v1023
        %v1059 = vsub.f32 %v510, %v1023
        %v1060 = vsub.f32 %v511, %v1024
        %v1061 = vsub.f32 %v512, %v1024
        %v1062 = vsub.f32 %v513, %v1025
        %v1063 = vsub.f32 %v514, %v1025
        %v1064 = vsub.f32 %v515, %v1026
        %v1065 = vsub.f32 %v516, %v1026
        %v1066 = vsub.f32 %v517, %v1027
        %v1067 = vsub.f32 %v518, %v1027
        %v1068 = vsub.f32 %v519, %v1028
        %v1069 = vsub.f32 %v520, %v1028
        %v1070 = vsub.f32 %v521, %v1029
        %v1071 = vsub.f32 %v522, %v1029
        %v1072 = vsub.f32 %v523, %v1030
        %v1073 = vsub.f32 %v524, %v1030
        %v1074 = vsub.f32 %v525, %v1031
        %v1075 = vsub.f32 %v526, %v1031
        %v1076 = vsub.f32 %v527, %v1032
        %v1077 = vsub.f32 %v528, %v1032
        %v1078 = vsub.f32 %v529, %v1033
        %v1079 = vsub.f32 %v530, %v1033
        %v1080 = vsub.f32 %v531, %v1034
        %v1081 = vsub.f32 %v532, %v1034
        %v1082 = vsub.f32 %v533, %v1035
        %v1083 = vsub.f32 %v534, %v1035
        %v1084 = vsub.f32 %v535, %v1036
        %v1085 = vsub.f32 %v536, %v1036
        %v1086 = vsub.f32 %v537, %v1037
        %v1087 = vsub.f32 %v538, %v1037
        %v1088 = vsub.f32 %v539, %v1038
        %v1089 = vsub.f32 %v540, %v1038
        %v1090 = vsub.f32 %v541, %v1039
        %v1091 = vsub.f32 %v542, %v1039
        %v1092 = vsub.f32 %v543, %v1040
        %v1093 = vsub.f32 %v544, %v1040
        %v1094 = vsub.f32 %v545, %v1041
        %v1095 = vsub.f32 %v546, %v1041
        %v1096 = vsub.f32 %v547, %v1042
        %v1097 = vsub.f32 %v548, %v1042
        %v1098 = vsub.f32 %v549, %v1043
        %v1099 = vsub.f32 %v550, %v1043
        %v1100 = vsub.f32 %v551, %v1044
        %v1101 = vsub.f32 %v552, %v1044
        %v1102 = vsub.f32 %v553, %v1045
        %v1103 = vsub.f32 %v554, %v1045
        %v1104 = vsub.f32 %v555, %v1046
        %v1105 = vsub.f32 %v556, %v1046
        %v1106 = vsub.f32 %v557, %v1047
        %v1107 = vsub.f32 %v558, %v1047
        %v1108 = vsub.f32 %v559, %v1048
        %v1109 = vsub.f32 %v560, %v1048
        %v1110 = vsub.f32 %v561, %v1049
        %v1111 = vsub.f32 %v562, %v1049
        %v1112 = vsub.f32 %v563, %v1050
        %v1113 = vsub.f32 %v564, %v1050
        %v1114 = vsub.f32 %v565, %v1051
        %v1115 = vsub.f32 %v566, %v1051
        %v1116 = vmul.f32 %v1052, %v1052
        %v1117 = vmul.f32 %v1053, %v1053
        %v1118 = vmul.f32 %v1054, %v1054
        %v1119 = vmul.f32 %v1055, %v1055
        %v1120 = vmul.f32 %v1056, %v1056
        %v1121 = vmul.f32 %v1057, %v1057
        %v1122 = vmul.f32 %v1058, %v1058
        %v1123 = vmul.f32 %v1059, %v1059
        %v1124 = vmul.f32 %v1060, %v1060
        %v1125 = vmul.f32 %v1061, %v1061
        %v1126 = vmul.f32 %v1062, %v1062
        %v1127 = vmul.f32 %v1063, %v1063
        %v1128 = vmul.f32 %v1064, %v1064
        %v1129 = vmul.f32 %v1065, %v1065
        %v1130 = vmul.f32 %v1066, %v1066
        %v1131 = vmul.f32 %v1067, %v1067
        %v1132 = vmul.f32 %v1068, %v1068
        %v1133 = vmul.f32 %v1069, %v1069
        %v1134 = vmul.f32 %v1070, %v1070
        %v1135 = vmul.f32 %v1071, %v1071
        %v1136 = vmul.f32 %v1072, %v1072
        %v1137 = vmul.f32 %v1073, %v1073
        %v1138 = vmul.f32 %v1074, %v1074
        %v1139 = vmul.f32 %v1075, %v1075
        %v1140 = vmul.f32 %v1076, %v1076
        %v1141 = vmul.f32 %v1077, %v1077
        %v1142 = vmul.f32 %v1078, %v1078
        %v1143 = vmul.f32 %v1079, %v1079
        %v1144 = vmul.f32 %v1080, %v1080
        %v1145 = vmul.f32 %v1081, %v1081
        %v1146 = vmul.f32 %v1082, %v1082
        %v1147 = vmul.f32 %v1083, %v1083
        %v1148 = vmul.f32 %v1084, %v1084
        %v1149 = vmul.f32 %v1085, %v1085
        %v1150 = vmul.f32 %v1086, %v1086
        %v1151 = vmul.f32 %v1087, %v1087
        %v1152 = vmul.f32 %v1088, %v1088
        %v1153 = vmul.f32 %v1089, %v1089
        %v1154 = vmul.f32 %v1090, %v1090
        %v1155 = vmul.f32 %v1091, %v1091
        %v1156 = vmul.f32 %v1092, %v1092
        %v1157 = vmul.f32 %v1093, %v1093
        %v1158 = vmul.f32 %v1094, %v1094
        %v1159 = vmul.f32 %v1095, %v1095
        %v1160 = vmul.f32 %v1096, %v1096
        %v1161 = vmul.f32 %v1097, %v1097
        %v1162 = vmul.f32 %v1098, %v1098
        %v1163 = vmul.f32 %v1099, %v1099
        %v1164 = vmul.f32 %v1100, %v1100
        %v1165 = vmul.f32 %v1101, %v1101
        %v1166 = vmul.f32 %v1102, %v1102
        %v1167 = vmul.f32 %v1103, %v1103
        %v1168 = vmul.f32 %v1104, %v1104
        %v1169 = vmul.f32 %v1105, %v1105
        %v1170 = vmul.f32 %v1106, %v1106
        %v1171 = vmul.f32 %v1107, %v1107
        %v1172 = vmul.f32 %v1108, %v1108
        %v1173 = vmul.f32 %v1109, %v1109
        %v1174 = vmul.f32 %v1110, %v1110
        %v1175 = vmul.f32 %v1111, %v1111
        %v1176 = vmul.f32 %v1112, %v1112
        %v1177 = vmul.f32 %v1113, %v1113
        %v1178 = vmul.f32 %v1114, %v1114
        %v1179 = vmul.f32 %v1115, %v1115
        %v1180 = vadd.f32 %v1116, %v1117
        %1181 = vadd.xlane.f32.xlu0 %v1180
        %v1182 = vpop.xlane.xlu0 %1181
        %v1183 = vadd.f32 %v1118, %v1119
        %1184 = vadd.xlane.f32.xlu0 %v1183
        %v1185 = vpop.xlane.xlu0 %1184
        %v1186 = vadd.f32 %v1120, %v1121
        %1187 = vadd.xlane.f32.xlu0 %v1186
        %v1188 = vpop.xlane.xlu0 %1187
        %v1189 = vadd.f32 %v1122, %v1123
        %1190 = vadd.xlane.f32.xlu0 %v1189
        %v1191 = vpop.xlane.xlu0 %1190
        %v1192 = vadd.f32 %v1124, %v1125
        %1193 = vadd.xlane.f32.xlu0 %v1192
        %v1194 = vpop.xlane.xlu0 %1193
        %v1195 = vadd.f32 %v1126, %v1127
        %1196 = vadd.xlane.f32.xlu0 %v1195
        %v1197 = vpop.xlane.xlu0 %1196
        %v1198 = vadd.f32 %v1128, %v1129
        %1199 = vadd.xlane.f32.xlu0 %v1198
        %v1200 = vpop.xlane.xlu0 %1199
        %v1201 = vadd.f32 %v1130, %v1131
        %1202 = vadd.xlane.f32.xlu0 %v1201
        %v1203 = vpop.xlane.xlu0 %1202
        %v1204 = vadd.f32 %v1132, %v1133
        %1205 = vadd.xlane.f32.xlu0 %v1204
        %v1206 = vpop.xlane.xlu0 %1205
        %v1207 = vadd.f32 %v1134, %v1135
        %1208 = vadd.xlane.f32.xlu0 %v1207
        %v1209 = vpop.xlane.xlu0 %1208
        %v1210 = vadd.f32 %v1136, %v1137
        %1211 = vadd.xlane.f32.xlu0 %v1210
        %v1212 = vpop.xlane.xlu0 %1211
        %v1213 = vadd.f32 %v1138, %v1139
        %1214 = vadd.xlane.f32.xlu0 %v1213
        %v1215 = vpop.xlane.xlu0 %1214
        %v1216 = vadd.f32 %v1140, %v1141
        %1217 = vadd.xlane.f32.xlu0 %v1216
        %v1218 = vpop.xlane.xlu0 %1217
        %v1219 = vadd.f32 %v1142, %v1143
        %1220 = vadd.xlane.f32.xlu0 %v1219
        %v1221 = vpop.xlane.xlu0 %1220
        %v1222 = vadd.f32 %v1144, %v1145
        %1223 = vadd.xlane.f32.xlu0 %v1222
        %v1224 = vpop.xlane.xlu0 %1223
        %v1225 = vadd.f32 %v1146, %v1147
        %1226 = vadd.xlane.f32.xlu0 %v1225
        %v1227 = vpop.xlane.xlu0 %1226
        %v1228 = vadd.f32 %v1148, %v1149
        %1229 = vadd.xlane.f32.xlu0 %v1228
        %v1230 = vpop.xlane.xlu0 %1229
        %v1231 = vadd.f32 %v1150, %v1151
        %1232 = vadd.xlane.f32.xlu0 %v1231
        %v1233 = vpop.xlane.xlu0 %1232
        %v1234 = vadd.f32 %v1152, %v1153
        %1235 = vadd.xlane.f32.xlu0 %v1234
        %v1236 = vpop.xlane.xlu0 %1235
        %v1237 = vadd.f32 %v1154, %v1155
        %1238 = vadd.xlane.f32.xlu0 %v1237
        %v1239 = vpop.xlane.xlu0 %1238
        %v1240 = vadd.f32 %v1156, %v1157
        %1241 = vadd.xlane.f32.xlu0 %v1240
        %v1242 = vpop.xlane.xlu0 %1241
        %v1243 = vadd.f32 %v1158, %v1159
        %1244 = vadd.xlane.f32.xlu0 %v1243
        %v1245 = vpop.xlane.xlu0 %1244
        %v1246 = vadd.f32 %v1160, %v1161
        %1247 = vadd.xlane.f32.xlu0 %v1246
        %v1248 = vpop.xlane.xlu0 %1247
        %v1249 = vadd.f32 %v1162, %v1163
        %1250 = vadd.xlane.f32.xlu0 %v1249
        %v1251 = vpop.xlane.xlu0 %1250
        %v1252 = vadd.f32 %v1164, %v1165
        %1253 = vadd.xlane.f32.xlu0 %v1252
        %v1254 = vpop.xlane.xlu0 %1253
        %v1255 = vadd.f32 %v1166, %v1167
        %1256 = vadd.xlane.f32.xlu0 %v1255
        %v1257 = vpop.xlane.xlu0 %1256
        %v1258 = vadd.f32 %v1168, %v1169
        %1259 = vadd.xlane.f32.xlu0 %v1258
        %v1260 = vpop.xlane.xlu0 %1259
        %v1261 = vadd.f32 %v1170, %v1171
        %1262 = vadd.xlane.f32.xlu0 %v1261
        %v1263 = vpop.xlane.xlu0 %1262
        %v1264 = vadd.f32 %v1172, %v1173
        %1265 = vadd.xlane.f32.xlu0 %v1264
        %v1266 = vpop.xlane.xlu0 %1265
        %v1267 = vadd.f32 %v1174, %v1175
        %1268 = vadd.xlane.f32.xlu0 %v1267
        %v1269 = vpop.xlane.xlu0 %1268
        %v1270 = vadd.f32 %v1176, %v1177
        %1271 = vadd.xlane.f32.xlu0 %v1270
        %v1272 = vpop.xlane.xlu0 %1271
        %v1273 = vadd.f32 %v1178, %v1179
        %1274 = vadd.xlane.f32.xlu0 %v1273
        %v1275 = vpop.xlane.xlu0 %1274
        %v1276 = vmul.f32 %v1182, %v619
        %v1277 = vmul.f32 %v1185, %v619
        %v1278 = vmul.f32 %v1188, %v619
        %v1279 = vmul.f32 %v1191, %v619
        %v1280 = vmul.f32 %v1194, %v619
        %v1281 = vmul.f32 %v1197, %v619
        %v1282 = vmul.f32 %v1200, %v619
        %v1283 = vmul.f32 %v1203, %v619
        %v1284 = vmul.f32 %v1206, %v619
        %v1285 = vmul.f32 %v1209, %v619
        %v1286 = vmul.f32 %v1212, %v619
        %v1287 = vmul.f32 %v1215, %v619
        %v1288 = vmul.f32 %v1218, %v619
        %v1289 = vmul.f32 %v1221, %v619
        %v1290 = vmul.f32 %v1224, %v619
        %v1291 = vmul.f32 %v1227, %v619
        %v1292 = vmul.f32 %v1230, %v619
        %v1293 = vmul.f32 %v1233, %v619
        %v1294 = vmul.f32 %v1236, %v619
        %v1295 = vmul.f32 %v1239, %v619
        %v1296 = vmul.f32 %v1242, %v619
        %v1297 = vmul.f32 %v1245, %v619
        %v1298 = vmul.f32 %v1248, %v619
        %v1299 = vmul.f32 %v1251, %v619
        %v1300 = vmul.f32 %v1254, %v619
        %v1301 = vmul.f32 %v1257, %v619
        %v1302 = vmul.f32 %v1260, %v619
        %v1303 = vmul.f32 %v1263, %v619
        %v1304 = vmul.f32 %v1266, %v619
        %v1305 = vmul.f32 %v1269, %v619
        %v1306 = vmul.f32 %v1272, %v619
        %v1307 = vmul.f32 %v1275, %v619
        %v1308 = vadd.f32 %v1276, 1e-05
        %v1309 = vadd.f32 %v1277, 1e-05
        %v1310 = vadd.f32 %v1278, 1e-05
        %v1311 = vadd.f32 %v1279, 1e-05
        %v1312 = vadd.f32 %v1280, 1e-05
        %v1313 = vadd.f32 %v1281, 1e-05
        %v1314 = vadd.f32 %v1282, 1e-05
        %v1315 = vadd.f32 %v1283, 1e-05
        %v1316 = vadd.f32 %v1284, 1e-05
        %v1317 = vadd.f32 %v1285, 1e-05
        %v1318 = vadd.f32 %v1286, 1e-05
        %v1319 = vadd.f32 %v1287, 1e-05
        %v1320 = vadd.f32 %v1288, 1e-05
        %v1321 = vadd.f32 %v1289, 1e-05
        %v1322 = vadd.f32 %v1290, 1e-05
        %v1323 = vadd.f32 %v1291, 1e-05
        %v1324 = vadd.f32 %v1292, 1e-05
        %v1325 = vadd.f32 %v1293, 1e-05
        %v1326 = vadd.f32 %v1294, 1e-05
        %v1327 = vadd.f32 %v1295, 1e-05
        %v1328 = vadd.f32 %v1296, 1e-05
        %v1329 = vadd.f32 %v1297, 1e-05
        %v1330 = vadd.f32 %v1298, 1e-05
        %v1331 = vadd.f32 %v1299, 1e-05
        %v1332 = vadd.f32 %v1300, 1e-05
        %v1333 = vadd.f32 %v1301, 1e-05
        %v1334 = vadd.f32 %v1302, 1e-05
        %v1335 = vadd.f32 %v1303, 1e-05
        %v1336 = vadd.f32 %v1304, 1e-05
        %v1337 = vadd.f32 %v1305, 1e-05
        %v1338 = vadd.f32 %v1306, 1e-05
        %v1339 = vadd.f32 %v1307, 1e-05
        %v1340 = vrsqrt.pop %v1308
        %v1341 = vrsqrt.pop %v1309
        %v1342 = vrsqrt.pop %v1310
        %v1343 = vrsqrt.pop %v1311
        %v1344 = vrsqrt.pop %v1312
        %v1345 = vrsqrt.pop %v1313
        %v1346 = vrsqrt.pop %v1314
        %v1347 = vrsqrt.pop %v1315
        %v1348 = vrsqrt.pop %v1316
        %v1349 = vrsqrt.pop %v1317
        %v1350 = vrsqrt.pop %v1318
        %v1351 = vrsqrt.pop %v1319
        %v1352 = vrsqrt.pop %v1320
        %v1353 = vrsqrt.pop %v1321
        %v1354 = vrsqrt.pop %v1322
        %v1355 = vrsqrt.pop %v1323
        %v1356 = vrsqrt.pop %v1324
        %v1357 = vrsqrt.pop %v1325
        %v1358 = vrsqrt.pop %v1326
        %v1359 = vrsqrt.pop %v1327
        %v1360 = vrsqrt.pop %v1328
        %v1361 = vrsqrt.pop %v1329
        %v1362 = vrsqrt.pop %v1330
        %v1363 = vrsqrt.pop %v1331
        %v1364 = vrsqrt.pop %v1332
        %v1365 = vrsqrt.pop %v1333
        %v1366 = vrsqrt.pop %v1334
        %v1367 = vrsqrt.pop %v1335
        %v1368 = vrsqrt.pop %v1336
        %v1369 = vrsqrt.pop %v1337
        %v1370 = vrsqrt.pop %v1338
        %v1371 = vrsqrt.pop %v1339
        %v1372 = vmul.f32 %v1052, %v1340
        %v1373 = vmul.f32 %v1053, %v1340
        %v1374 = vmul.f32 %v1054, %v1341
        %v1375 = vmul.f32 %v1055, %v1341
        %v1376 = vmul.f32 %v1056, %v1342
        %v1377 = vmul.f32 %v1057, %v1342
        %v1378 = vmul.f32 %v1058, %v1343
        %v1379 = vmul.f32 %v1059, %v1343
        %v1380 = vmul.f32 %v1060, %v1344
        %v1381 = vmul.f32 %v1061, %v1344
        %v1382 = vmul.f32 %v1062, %v1345
        %v1383 = vmul.f32 %v1063, %v1345
        %v1384 = vmul.f32 %v1064, %v1346
        %v1385 = vmul.f32 %v1065, %v1346
        %v1386 = vmul.f32 %v1066, %v1347
        %v1387 = vmul.f32 %v1067, %v1347
        %v1388 = vmul.f32 %v1068, %v1348
        %v1389 = vmul.f32 %v1069, %v1348
        %v1390 = vmul.f32 %v1070, %v1349
        %v1391 = vmul.f32 %v1071, %v1349
        %v1392 = vmul.f32 %v1072, %v1350
        %v1393 = vmul.f32 %v1073, %v1350
        %v1394 = vmul.f32 %v1074, %v1351
        %v1395 = vmul.f32 %v1075, %v1351
        %v1396 = vmul.f32 %v1076, %v1352
        %v1397 = vmul.f32 %v1077, %v1352
        %v1398 = vmul.f32 %v1078, %v1353
        %v1399 = vmul.f32 %v1079, %v1353
        %v1400 = vmul.f32 %v1080, %v1354
        %v1401 = vmul.f32 %v1081, %v1354
        %v1402 = vmul.f32 %v1082, %v1355
        %v1403 = vmul.f32 %v1083, %v1355
        %v1404 = vmul.f32 %v1084, %v1356
        %v1405 = vmul.f32 %v1085, %v1356
        %v1406 = vmul.f32 %v1086, %v1357
        %v1407 = vmul.f32 %v1087, %v1357
        %v1408 = vmul.f32 %v1088, %v1358
        %v1409 = vmul.f32 %v1089, %v1358
        %v1410 = vmul.f32 %v1090, %v1359
        %v1411 = vmul.f32 %v1091, %v1359
        %v1412 = vmul.f32 %v1092, %v1360
        %v1413 = vmul.f32 %v1093, %v1360
        %v1414 = vmul.f32 %v1094, %v1361
        %v1415 = vmul.f32 %v1095, %v1361
        %v1416 = vmul.f32 %v1096, %v1362
        %v1417 = vmul.f32 %v1097, %v1362
        %v1418 = vmul.f32 %v1098, %v1363
        %v1419 = vmul.f32 %v1099, %v1363
        %v1420 = vmul.f32 %v1100, %v1364
        %v1421 = vmul.f32 %v1101, %v1364
        %v1422 = vmul.f32 %v1102, %v1365
        %v1423 = vmul.f32 %v1103, %v1365
        %v1424 = vmul.f32 %v1104, %v1366
        %v1425 = vmul.f32 %v1105, %v1366
        %v1426 = vmul.f32 %v1106, %v1367
        %v1427 = vmul.f32 %v1107, %v1367
        %v1428 = vmul.f32 %v1108, %v1368
        %v1429 = vmul.f32 %v1109, %v1368
        %v1430 = vmul.f32 %v1110, %v1369
        %v1431 = vmul.f32 %v1111, %v1369
        %v1432 = vmul.f32 %v1112, %v1370
        %v1433 = vmul.f32 %v1113, %v1370
        %v1434 = vmul.f32 %v1114, %v1371
        %v1435 = vmul.f32 %v1115, %v1371
        %v1436 = vmul.f32 %v1372, %v831
        %v1437 = vmul.f32 %v1373, %v835
        %v1438 = vmul.f32 %v1374, %v831
        %v1439 = vmul.f32 %v1375, %v835
        %v1440 = vmul.f32 %v1376, %v831
        %v1441 = vmul.f32 %v1377, %v835
        %v1442 = vmul.f32 %v1378, %v831
        %v1443 = vmul.f32 %v1379, %v835
        %v1444 = vmul.f32 %v1380, %v831
        %v1445 = vmul.f32 %v1381, %v835
        %v1446 = vmul.f32 %v1382, %v831
        %v1447 = vmul.f32 %v1383, %v835
        %v1448 = vmul.f32 %v1384, %v831
        %v1449 = vmul.f32 %v1385, %v835
        %v1450 = vmul.f32 %v1386, %v831
        %v1451 = vmul.f32 %v1387, %v835
        %v1452 = vmul.f32 %v1388, %v831
        %v1453 = vmul.f32 %v1389, %v835
        %v1454 = vmul.f32 %v1390, %v831
        %v1455 = vmul.f32 %v1391, %v835
        %v1456 = vmul.f32 %v1392, %v831
        %v1457 = vmul.f32 %v1393, %v835
        %v1458 = vmul.f32 %v1394, %v831
        %v1459 = vmul.f32 %v1395, %v835
        %v1460 = vmul.f32 %v1396, %v831
        %v1461 = vmul.f32 %v1397, %v835
        %v1462 = vmul.f32 %v1398, %v831
        %v1463 = vmul.f32 %v1399, %v835
        %v1464 = vmul.f32 %v1400, %v831
        %v1465 = vmul.f32 %v1401, %v835
        %v1466 = vmul.f32 %v1402, %v831
        %v1467 = vmul.f32 %v1403, %v835
        %v1468 = vmul.f32 %v1404, %v831
        %v1469 = vmul.f32 %v1405, %v835
        %v1470 = vmul.f32 %v1406, %v831
        %v1471 = vmul.f32 %v1407, %v835
        %v1472 = vmul.f32 %v1408, %v831
        %v1473 = vmul.f32 %v1409, %v835
        %v1474 = vmul.f32 %v1410, %v831
        %v1475 = vmul.f32 %v1411, %v835
        %v1476 = vmul.f32 %v1412, %v831
        %v1477 = vmul.f32 %v1413, %v835
        %v1478 = vmul.f32 %v1414, %v831
        %v1479 = vmul.f32 %v1415, %v835
        %v1480 = vmul.f32 %v1416, %v831
        %v1481 = vmul.f32 %v1417, %v835
        %v1482 = vmul.f32 %v1418, %v831
        %v1483 = vmul.f32 %v1419, %v835
        %v1484 = vmul.f32 %v1420, %v831
        %v1485 = vmul.f32 %v1421, %v835
        %v1486 = vmul.f32 %v1422, %v831
        %v1487 = vmul.f32 %v1423, %v835
        %v1488 = vmul.f32 %v1424, %v831
        %v1489 = vmul.f32 %v1425, %v835
        %v1490 = vmul.f32 %v1426, %v831
        %v1491 = vmul.f32 %v1427, %v835
        %v1492 = vmul.f32 %v1428, %v831
        %v1493 = vmul.f32 %v1429, %v835
        %v1494 = vmul.f32 %v1430, %v831
        %v1495 = vmul.f32 %v1431, %v835
        %v1496 = vmul.f32 %v1432, %v831
        %v1497 = vmul.f32 %v1433, %v835
        %v1498 = vmul.f32 %v1434, %v831
        %v1499 = vmul.f32 %v1435, %v835
        %v1500 = vadd.f32 %v1436, %v871
        %v1501 = vadd.f32 %v1437, %v875
        %v1502 = vadd.f32 %v1438, %v871
        %v1503 = vadd.f32 %v1439, %v875
        %v1504 = vadd.f32 %v1440, %v871
        %v1505 = vadd.f32 %v1441, %v875
        %v1506 = vadd.f32 %v1442, %v871
        %v1507 = vadd.f32 %v1443, %v875
        %v1508 = vadd.f32 %v1444, %v871
        %v1509 = vadd.f32 %v1445, %v875
        %v1510 = vadd.f32 %v1446, %v871
        %v1511 = vadd.f32 %v1447, %v875
        %v1512 = vadd.f32 %v1448, %v871
        %v1513 = vadd.f32 %v1449, %v875
        %v1514 = vadd.f32 %v1450, %v871
        %v1515 = vadd.f32 %v1451, %v875
        %v1516 = vadd.f32 %v1452, %v871
        %v1517 = vadd.f32 %v1453, %v875
        %v1518 = vadd.f32 %v1454, %v871
        %v1519 = vadd.f32 %v1455, %v875
        %v1520 = vadd.f32 %v1456, %v871
        %v1521 = vadd.f32 %v1457, %v875
        %v1522 = vadd.f32 %v1458, %v871
        %v1523 = vadd.f32 %v1459, %v875
        %v1524 = vadd.f32 %v1460, %v871
        %v1525 = vadd.f32 %v1461, %v875
        %v1526 = vadd.f32 %v1462, %v871
        %v1527 = vadd.f32 %v1463, %v875
        %v1528 = vadd.f32 %v1464, %v871
        %v1529 = vadd.f32 %v1465, %v875
        %v1530 = vadd.f32 %v1466, %v871
        %v1531 = vadd.f32 %v1467, %v875
        %v1532 = vadd.f32 %v1468, %v871
        %v1533 = vadd.f32 %v1469, %v875
        %v1534 = vadd.f32 %v1470, %v871
        %v1535 = vadd.f32 %v1471, %v875
        %v1536 = vadd.f32 %v1472, %v871
        %v1537 = vadd.f32 %v1473, %v875
        %v1538 = vadd.f32 %v1474, %v871
        %v1539 = vadd.f32 %v1475, %v875
        %v1540 = vadd.f32 %v1476, %v871
        %v1541 = vadd.f32 %v1477, %v875
        %v1542 = vadd.f32 %v1478, %v871
        %v1543 = vadd.f32 %v1479, %v875
        %v1544 = vadd.f32 %v1480, %v871
        %v1545 = vadd.f32 %v1481, %v875
        %v1546 = vadd.f32 %v1482, %v871
        %v1547 = vadd.f32 %v1483, %v875
        %v1548 = vadd.f32 %v1484, %v871
        %v1549 = vadd.f32 %v1485, %v875
        %v1550 = vadd.f32 %v1486, %v871
        %v1551 = vadd.f32 %v1487, %v875
        %v1552 = vadd.f32 %v1488, %v871
        %v1553 = vadd.f32 %v1489, %v875
        %v1554 = vadd.f32 %v1490, %v871
        %v1555 = vadd.f32 %v1491, %v875
        %v1556 = vadd.f32 %v1492, %v871
        %v1557 = vadd.f32 %v1493, %v875
        %v1558 = vadd.f32 %v1494, %v871
        %v1559 = vadd.f32 %v1495, %v875
        %v1560 = vadd.f32 %v1496, %v871
        %v1561 = vadd.f32 %v1497, %v875
        %v1562 = vadd.f32 %v1498, %v871
        %v1563 = vadd.f32 %v1499, %v875
        %v1564 = vpack.c.bf16 %v1502, %v1500
        %v1565 = vpack.c.bf16 %v1503, %v1501
        %v1566 = vpack.c.bf16 %v1506, %v1504
        %v1567 = vpack.c.bf16 %v1507, %v1505
        %v1568 = vpack.c.bf16 %v1510, %v1508
        %v1569 = vpack.c.bf16 %v1511, %v1509
        %v1570 = vpack.c.bf16 %v1514, %v1512
        %v1571 = vpack.c.bf16 %v1515, %v1513
        %v1572 = vpack.c.bf16 %v1518, %v1516
        %v1573 = vpack.c.bf16 %v1519, %v1517
        %v1574 = vpack.c.bf16 %v1522, %v1520
        %v1575 = vpack.c.bf16 %v1523, %v1521
        %v1576 = vpack.c.bf16 %v1526, %v1524
        %v1577 = vpack.c.bf16 %v1527, %v1525
        %v1578 = vpack.c.bf16 %v1530, %v1528
        %v1579 = vpack.c.bf16 %v1531, %v1529
        %v1580 = vpack.c.bf16 %v1534, %v1532
        %v1581 = vpack.c.bf16 %v1535, %v1533
        %v1582 = vpack.c.bf16 %v1538, %v1536
        %v1583 = vpack.c.bf16 %v1539, %v1537
        %v1584 = vpack.c.bf16 %v1542, %v1540
        %v1585 = vpack.c.bf16 %v1543, %v1541
        %v1586 = vpack.c.bf16 %v1546, %v1544
        %v1587 = vpack.c.bf16 %v1547, %v1545
        %v1588 = vpack.c.bf16 %v1550, %v1548
        %v1589 = vpack.c.bf16 %v1551, %v1549
        %v1590 = vpack.c.bf16 %v1554, %v1552
        %v1591 = vpack.c.bf16 %v1555, %v1553
        %v1592 = vpack.c.bf16 %v1558, %v1556
        %v1593 = vpack.c.bf16 %v1559, %v1557
        %v1594 = vpack.c.bf16 %v1562, %v1560
        %v1595 = vpack.c.bf16 %v1563, %v1561
        %v1596 = vld [vmem:[#allocation10] sm:$0xff]
        %v1597 = vld [vmem:[#allocation10 + $0x18] sm:$0xff]
        %v1598 = vld [vmem:[#allocation10 + $0x30] sm:$0xff]
        %v1599 = vld [vmem:[#allocation10 + $0x48] sm:$0xff]
        %v1600 = vld [vmem:[#allocation10 + $0x60] sm:$0xff]
        %v1601 = vld [vmem:[#allocation10 + $0x78] sm:$0xff]
        %v1602 = vld [vmem:[#allocation10 + $0x90] sm:$0xff]
        %v1603 = vld [vmem:[#allocation10 + $0xa8] sm:$0xff]
        %v1604 = vld [vmem:[#allocation10 + $0xc0] sm:$0xff]
        %v1605 = vld [vmem:[#allocation10 + $0xd8] sm:$0xff]
        %v1606 = vld [vmem:[#allocation10 + $0xf0] sm:$0xff]
        %v1607 = vld [vmem:[#allocation10 + $0x108] sm:$0xff]
        %v1608 = vld [vmem:[#allocation10 + $0x120] sm:$0xff]
        %v1609 = vld [vmem:[#allocation10 + $0x138] sm:$0xff]
        %v1610 = vld [vmem:[#allocation10 + $0x150] sm:$0xff]
        %v1611 = vld [vmem:[#allocation10 + $0x168] sm:$0xff]
        %v1612 = vld [vmem:[#allocation10 + $0x180] sm:$0xff]
        %v1613 = vld [vmem:[#allocation10 + $0x198] sm:$0xff]
        %v1614 = vld [vmem:[#allocation10 + $0x1b0] sm:$0xff]
        %v1615 = vld [vmem:[#allocation10 + $0x1c8] sm:$0xff]
        %v1616 = vld [vmem:[#allocation10 + $0x1e0] sm:$0xff]
        %v1617 = vld [vmem:[#allocation10 + $0x1f8] sm:$0xff]
        %v1618 = vld [vmem:[#allocation10 + $0x210] sm:$0xff]
        %v1619 = vld [vmem:[#allocation10 + $0x228] sm:$0xff]
        %v1620 = vld [vmem:[#allocation10 + $0x240] sm:$0xff]
        %v1621 = vld [vmem:[#allocation10 + $0x258] sm:$0xff]
        %v1622 = vld [vmem:[#allocation10 + $0x270] sm:$0xff]
        %v1623 = vld [vmem:[#allocation10 + $0x288] sm:$0xff]
        %v1624 = vld [vmem:[#allocation10 + $0x2a0] sm:$0xff]
        %v1625 = vld [vmem:[#allocation10 + $0x2b8] sm:$0xff]
        %v1626 = vld [vmem:[#allocation10 + $0x2d0] sm:$0xff]
        %v1627 = vld [vmem:[#allocation10 + $0x2e8] sm:$0xff]
        %v1628 = vlaneseq
        %v1629 = vshrl.u32 %v1628, 7
        %v1630 = vsub.s32 0, %v1629
        %v1631 = vrot.slane %v567, %v1630
        %v1632 = vlaneseq
        %v1633 = vshrl.u32 %v1632, 7
        %v1634 = vsub.s32 0, %v1633
        %v1635 = vrot.slane %v568, %v1634
        %v1668 = vunpack.c.l.b16 %v1596
        %v1669 = vunpack.c.h.b16 %v1596
        %v1670 = vunpack.c.l.b16 %v1597
        %v1671 = vunpack.c.h.b16 %v1597
        %v1672 = vunpack.c.l.b16 %v1598
        %v1673 = vunpack.c.h.b16 %v1598
        %v1674 = vunpack.c.l.b16 %v1599
        %v1675 = vunpack.c.h.b16 %v1599
        %v1676 = vunpack.c.l.b16 %v1600
        %v1677 = vunpack.c.h.b16 %v1600
        %v1678 = vunpack.c.l.b16 %v1601
        %v1679 = vunpack.c.h.b16 %v1601
        %v1680 = vunpack.c.l.b16 %v1602
        %v1681 = vunpack.c.h.b16 %v1602
        %v1682 = vunpack.c.l.b16 %v1603
        %v1683 = vunpack.c.h.b16 %v1603
        %v1684 = vunpack.c.l.b16 %v1604
        %v1685 = vunpack.c.h.b16 %v1604
        %v1686 = vunpack.c.l.b16 %v1605
        %v1687 = vunpack.c.h.b16 %v1605
        %v1688 = vunpack.c.l.b16 %v1606
        %v1689 = vunpack.c.h.b16 %v1606
        %v1690 = vunpack.c.l.b16 %v1607
        %v1691 = vunpack.c.h.b16 %v1607
        %v1692 = vunpack.c.l.b16 %v1608
        %v1693 = vunpack.c.h.b16 %v1608
        %v1694 = vunpack.c.l.b16 %v1609
        %v1695 = vunpack.c.h.b16 %v1609
        %v1696 = vunpack.c.l.b16 %v1610
        %v1697 = vunpack.c.h.b16 %v1610
        %v1698 = vunpack.c.l.b16 %v1611
        %v1699 = vunpack.c.h.b16 %v1611
        %v1700 = vunpack.c.l.b16 %v1612
        %v1701 = vunpack.c.h.b16 %v1612
        %v1702 = vunpack.c.l.b16 %v1613
        %v1703 = vunpack.c.h.b16 %v1613
        %v1704 = vunpack.c.l.b16 %v1614
        %v1705 = vunpack.c.h.b16 %v1614
        %v1706 = vunpack.c.l.b16 %v1615
        %v1707 = vunpack.c.h.b16 %v1615
        %v1708 = vunpack.c.l.b16 %v1616
        %v1709 = vunpack.c.h.b16 %v1616
        %v1710 = vunpack.c.l.b16 %v1617
        %v1711 = vunpack.c.h.b16 %v1617
        %v1712 = vunpack.c.l.b16 %v1618
        %v1713 = vunpack.c.h.b16 %v1618
        %v1714 = vunpack.c.l.b16 %v1619
        %v1715 = vunpack.c.h.b16 %v1619
        %v1716 = vunpack.c.l.b16 %v1620
        %v1717 = vunpack.c.h.b16 %v1620
        %v1718 = vunpack.c.l.b16 %v1621
        %v1719 = vunpack.c.h.b16 %v1621
        %v1720 = vunpack.c.l.b16 %v1622
        %v1721 = vunpack.c.h.b16 %v1622
        %v1722 = vunpack.c.l.b16 %v1623
        %v1723 = vunpack.c.h.b16 %v1623
        %v1724 = vunpack.c.l.b16 %v1624
        %v1725 = vunpack.c.h.b16 %v1624
        %v1726 = vunpack.c.l.b16 %v1625
        %v1727 = vunpack.c.h.b16 %v1625
        %v1728 = vunpack.c.l.b16 %v1626
        %v1729 = vunpack.c.h.b16 %v1626
        %v1730 = vunpack.c.l.b16 %v1627
        %v1731 = vunpack.c.h.b16 %v1627
        %v1732 = vpack.c.b16 %v1670, %v1668
        %v1733 = vpack.c.b16 %v1671, %v1669
        %v1734 = vpack.c.b16 %v1674, %v1672
        %v1735 = vpack.c.b16 %v1675, %v1673
        %v1736 = vpack.c.b16 %v1678, %v1676
        %v1737 = vpack.c.b16 %v1679, %v1677
        %v1738 = vpack.c.b16 %v1682, %v1680
        %v1739 = vpack.c.b16 %v1683, %v1681
        %v1740 = vpack.c.b16 %v1686, %v1684
        %v1741 = vpack.c.b16 %v1687, %v1685
        %v1742 = vpack.c.b16 %v1690, %v1688
        %v1743 = vpack.c.b16 %v1691, %v1689
        %v1744 = vpack.c.b16 %v1694, %v1692
        %v1745 = vpack.c.b16 %v1695, %v1693
        %v1746 = vpack.c.b16 %v1698, %v1696
        %v1747 = vpack.c.b16 %v1699, %v1697
        %v1748 = vpack.c.b16 %v1702, %v1700
        %v1749 = vpack.c.b16 %v1703, %v1701
        %v1750 = vpack.c.b16 %v1706, %v1704
        %v1751 = vpack.c.b16 %v1707, %v1705
        %v1752 = vpack.c.b16 %v1710, %v1708
        %v1753 = vpack.c.b16 %v1711, %v1709
        %v1754 = vpack.c.b16 %v1714, %v1712
        %v1755 = vpack.c.b16 %v1715, %v1713
        %v1756 = vpack.c.b16 %v1718, %v1716
        %v1757 = vpack.c.b16 %v1719, %v1717
        %v1758 = vpack.c.b16 %v1722, %v1720
        %v1759 = vpack.c.b16 %v1723, %v1721
        %v1760 = vpack.c.b16 %v1726, %v1724
        %v1761 = vpack.c.b16 %v1727, %v1725
        %v1762 = vpack.c.b16 %v1730, %v1728
        %v1763 = vpack.c.b16 %v1731, %v1729
        %1796 = vmatprep.subr.bf16.mxu0 %v1733
        %1797 = vmatpush1.bf16.msra.mxu0 %v1732
        %1798 = vmatprep.subr.bf16.mxu0 %v1735
        %1799 = vmatpush1.bf16.msra.mxu0 %v1734
        %1800 = vmatprep.subr.bf16.mxu0 %v1737
        %1801 = vmatpush1.bf16.msra.mxu0 %v1736
        %1802 = vmatprep.subr.bf16.mxu0 %v1739
        %1803 = vmatpush1.bf16.msra.mxu0 %v1738
        %1804 = vmatprep.subr.bf16.mxu0 %v1741
        %1805 = vmatpush1.bf16.msra.mxu0 %v1740
        %1806 = vmatprep.subr.bf16.mxu0 %v1743
        %1807 = vmatpush1.bf16.msra.mxu0 %v1742
        %1808 = vmatprep.subr.bf16.mxu0 %v1745
        %1809 = vmatpush1.bf16.msra.mxu0 %v1744
        %1810 = vmatprep.subr.bf16.mxu0 %v1747
        %1811 = vmatpush1.bf16.msra.mxu0 %v1746
        %1812 = vmatprep.subr.bf16.mxu0 %v1749
        %1813 = vmatpush1.bf16.msra.mxu0 %v1748
        %1814 = vmatprep.subr.bf16.mxu0 %v1751
        %1815 = vmatpush1.bf16.msra.mxu0 %v1750
        %1816 = vmatprep.subr.bf16.mxu0 %v1753
        %1817 = vmatpush1.bf16.msra.mxu0 %v1752
        %1818 = vmatprep.subr.bf16.mxu0 %v1755
        %1819 = vmatpush1.bf16.msra.mxu0 %v1754
        %1820 = vmatprep.subr.bf16.mxu0 %v1757
        %1821 = vmatpush1.bf16.msra.mxu0 %v1756
        %1822 = vmatprep.subr.bf16.mxu0 %v1759
        %1823 = vmatpush1.bf16.msra.mxu0 %v1758
        %1824 = vmatprep.subr.bf16.mxu0 %v1761
        %1825 = vmatpush1.bf16.msra.mxu0 %v1760
        %1826 = vmatprep.subr.bf16.mxu0 %v1763
        %1827 = vmatpush1.bf16.msra.mxu0 %v1762
        %1828 = vmatprep.mubr.bf16.mxu0 %v909
        %1829 = vmatmul.mubr.bf16.gmra.mrb[0].mxu0 %v908
        %v1830 = vpop.f32.mrb[0].mxu0
        %v1831 = vadd.f32 %v1631, %v1830
        %v1832 = vpop.f32.mrb[0].mxu0
        %v1833 = vadd.f32 %v1635, %v1832
        %v1834 = vpop.f32.mrb[0].mxu0
        %v1835 = vadd.f32 %v1631, %v1834
        %v1836 = vpop.f32.mrb[0].mxu0
        %v1837 = vadd.f32 %v1635, %v1836
        %1838 = vmatprep.mubr.bf16.mxu0 %v911
        %1839 = vmatmul.mubr.bf16.gmra.mrb[0].mxu0 %v910
        %v1840 = vpop.f32.mrb[0].mxu0
        %v1841 = vadd.f32 %v1631, %v1840
        %v1842 = vpop.f32.mrb[0].mxu0
        %v1843 = vadd.f32 %v1635, %v1842
        %v1844 = vpop.f32.mrb[0].mxu0
        %v1845 = vadd.f32 %v1631, %v1844
        %v1846 = vpop.f32.mrb[0].mxu0
        %v1847 = vadd.f32 %v1635, %v1846
        %1848 = vmatprep.mubr.bf16.mxu0 %v913
        %1849 = vmatmul.mubr.bf16.gmra.mrb[0].mxu0 %v912
        %v1850 = vpop.f32.mrb[0].mxu0
        %v1851 = vadd.f32 %v1631, %v1850
        %v1852 = vpop.f32.mrb[0].mxu0
        %v1853 = vadd.f32 %v1635, %v1852
        %v1854 = vpop.f32.mrb[0].mxu0
        %v1855 = vadd.f32 %v1631, %v1854
        %v1856 = vpop.f32.mrb[0].mxu0
        %v1857 = vadd.f32 %v1635, %v1856
        %1858 = vmatprep.mubr.bf16.mxu0 %v915
        %1859 = vmatmul.mubr.bf16.gmra.mrb[0].mxu0 %v914
        %v1860 = vpop.f32.mrb[0].mxu0
        %v1861 = vadd.f32 %v1631, %v1860
        %v1862 = vpop.f32.mrb[0].mxu0
        %v1863 = vadd.f32 %v1635, %v1862
        %v1864 = vpop.f32.mrb[0].mxu0
        %v1865 = vadd.f32 %v1631, %v1864
        %v1866 = vpop.f32.mrb[0].mxu0
        %v1867 = vadd.f32 %v1635, %v1866
        %1868 = vmatprep.mubr.bf16.mxu0 %v917
        %1869 = vmatmul.mubr.bf16.gmra.mrb[0].mxu0 %v916
        %v1870 = vpop.f32.mrb[0].mxu0
        %v1871 = vadd.f32 %v1631, %v1870
        %v1872 = vpop.f32.mrb[0].mxu0
        %v1873 = vadd.f32 %v1635, %v1872
        %v1874 = vpop.f32.mrb[0].mxu0
        %v1875 = vadd.f32 %v1631, %v1874
        %v1876 = vpop.f32.mrb[0].mxu0
        %v1877 = vadd.f32 %v1635, %v1876
        %1878 = vmatprep.mubr.bf16.mxu0 %v919
        %1879 = vmatmul.mubr.bf16.gmra.mrb[0].mxu0 %v918
        %v1880 = vpop.f32.mrb[0].mxu0
        %v1881 = vadd.f32 %v1631, %v1880
        %v1882 = vpop.f32.mrb[0].mxu0
        %v1883 = vadd.f32 %v1635, %v1882
        %v1884 = vpop.f32.mrb[0].mxu0
        %v1885 = vadd.f32 %v1631, %v1884
        %v1886 = vpop.f32.mrb[0].mxu0
        %v1887 = vadd.f32 %v1635, %v1886
        %1888 = vmatprep.mubr.bf16.mxu0 %v921
        %1889 = vmatmul.mubr.bf16.gmra.mrb[0].mxu0 %v920
        %v1890 = vpop.f32.mrb[0].mxu0
        %v1891 = vadd.f32 %v1631, %v1890
        %v1892 = vpop.f32.mrb[0].mxu0
        %v1893 = vadd.f32 %v1635, %v1892
        %v1894 = vpop.f32.mrb[0].mxu0
        %v1895 = vadd.f32 %v1631, %v1894
        %v1896 = vpop.f32.mrb[0].mxu0
        %v1897 = vadd.f32 %v1635, %v1896
        %1898 = vmatprep.mubr.bf16.mxu0 %v923
        %1899 = vmatmul.mubr.bf16.gmra.mrb[0].mxu0 %v922
        %v1900 = vpop.f32.mrb[0].mxu0
        %v1901 = vadd.f32 %v1631, %v1900
        %v1902 = vpop.f32.mrb[0].mxu0
        %v1903 = vadd.f32 %v1635, %v1902
        %v1904 = vpop.f32.mrb[0].mxu0
        %v1905 = vadd.f32 %v1631, %v1904
        %v1906 = vpop.f32.mrb[0].mxu0
        %v1907 = vadd.f32 %v1635, %v1906
        %1908 = vdwg.mxu0
        %v1909 = vmul.f32 %v1831, 0.088388346
        %v1910 = vmul.f32 %v1833, 0.088388346
        %v1911 = vmul.f32 %v1835, 0.088388346
        %v1912 = vmul.f32 %v1837, 0.088388346
        %v1913 = vmul.f32 %v1841, 0.088388346
        %v1914 = vmul.f32 %v1843, 0.088388346
        %v1915 = vmul.f32 %v1845, 0.088388346
        %v1916 = vmul.f32 %v1847, 0.088388346
        %v1917 = vmul.f32 %v1851, 0.088388346
        %v1918 = vmul.f32 %v1853, 0.088388346
        %v1919 = vmul.f32 %v1855, 0.088388346
        %v1920 = vmul.f32 %v1857, 0.088388346
        %v1921 = vmul.f32 %v1861, 0.088388346
        %v1922 = vmul.f32 %v1863, 0.088388346
        %v1923 = vmul.f32 %v1865, 0.088388346
        %v1924 = vmul.f32 %v1867, 0.088388346
        %v1925 = vmul.f32 %v1871, 0.088388346
        %v1926 = vmul.f32 %v1873, 0.088388346
        %v1927 = vmul.f32 %v1875, 0.088388346
        %v1928 = vmul.f32 %v1877, 0.088388346
        %v1929 = vmul.f32 %v1881, 0.088388346
        %v1930 = vmul.f32 %v1883, 0.088388346
        %v1931 = vmul.f32 %v1885, 0.088388346
        %v1932 = vmul.f32 %v1887, 0.088388346
        %v1933 = vmul.f32 %v1891, 0.088388346
        %v1934 = vmul.f32 %v1893, 0.088388346
        %v1935 = vmul.f32 %v1895, 0.088388346
        %v1936 = vmul.f32 %v1897, 0.088388346
        %v1937 = vmul.f32 %v1901, 0.088388346
        %v1938 = vmul.f32 %v1903, 0.088388346
        %v1939 = vmul.f32 %v1905, 0.088388346
        %v1940 = vmul.f32 %v1907, 0.088388346
        %v1941 = vpack.c.bf16 %v1911, %v1909
        %v1942 = vpack.c.bf16 %v1912, %v1910
        %v1943 = vpack.c.bf16 %v1915, %v1913
        %v1944 = vpack.c.bf16 %v1916, %v1914
        %v1945 = vpack.c.bf16 %v1919, %v1917
        %v1946 = vpack.c.bf16 %v1920, %v1918
        %v1947 = vpack.c.bf16 %v1923, %v1921
        %v1948 = vpack.c.bf16 %v1924, %v1922
        %v1949 = vpack.c.bf16 %v1927, %v1925
        %v1950 = vpack.c.bf16 %v1928, %v1926
        %v1951 = vpack.c.bf16 %v1931, %v1929
        %v1952 = vpack.c.bf16 %v1932, %v1930
        %v1953 = vpack.c.bf16 %v1935, %v1933
        %v1954 = vpack.c.bf16 %v1936, %v1934
        %v1955 = vpack.c.bf16 %v1939, %v1937
        %v1956 = vpack.c.bf16 %v1940, %v1938
        %v1957 = vld [vmem:[#allocation10 + $0x8] sm:$0xff]
        %v1958 = vld [vmem:[#allocation10 + $0x10] sm:$0xff]
        %v1959 = vld [vmem:[#allocation10 + $0x20] sm:$0xff]
        %v1960 = vld [vmem:[#allocation10 + $0x28] sm:$0xff]
        %v1961 = vld [vmem:[#allocation10 + $0x38] sm:$0xff]
        %v1962 = vld [vmem:[#allocation10 + $0x40] sm:$0xff]
        %v1963 = vld [vmem:[#allocation10 + $0x50] sm:$0xff]
        %v1964 = vld [vmem:[#allocation10 + $0x58] sm:$0xff]
        %v1965 = vld [vmem:[#allocation10 + $0x68] sm:$0xff]
        %v1966 = vld [vmem:[#allocation10 + $0x70] sm:$0xff]
        %v1967 = vld [vmem:[#allocation10 + $0x80] sm:$0xff]
        %v1968 = vld [vmem:[#allocation10 + $0x88] sm:$0xff]
        %v1969 = vld [vmem:[#allocation10 + $0x98] sm:$0xff]
        %v1970 = vld [vmem:[#allocation10 + $0xa0] sm:$0xff]
        %v1971 = vld [vmem:[#allocation10 + $0xb0] sm:$0xff]
        %v1972 = vld [vmem:[#allocation10 + $0xb8] sm:$0xff]
        %v1973 = vld [vmem:[#allocation10 + $0xc8] sm:$0xff]
        %v1974 = vld [vmem:[#allocation10 + $0xd0] sm:$0xff]
        %v1975 = vld [vmem:[#allocation10 + $0xe0] sm:$0xff]
        %v1976 = vld [vmem:[#allocation10 + $0xe8] sm:$0xff]
        %v1977 = vld [vmem:[#allocation10 + $0xf8] sm:$0xff]
        %v1978 = vld [vmem:[#allocation10 + $0x100] sm:$0xff]
        %v1979 = vld [vmem:[#allocation10 + $0x110] sm:$0xff]
        %v1980 = vld [vmem:[#allocation10 + $0x118] sm:$0xff]
        %v1981 = vld [vmem:[#allocation10 + $0x128] sm:$0xff]
        %v1982 = vld [vmem:[#allocation10 + $0x130] sm:$0xff]
        %v1983 = vld [vmem:[#allocation10 + $0x140] sm:$0xff]
        %v1984 = vld [vmem:[#allocation10 + $0x148] sm:$0xff]
        %v1985 = vld [vmem:[#allocation10 + $0x158] sm:$0xff]
        %v1986 = vld [vmem:[#allocation10 + $0x160] sm:$0xff]
        %v1987 = vld [vmem:[#allocation10 + $0x170] sm:$0xff]
        %v1988 = vld [vmem:[#allocation10 + $0x178] sm:$0xff]
        %v1989 = vld [vmem:[#allocation10 + $0x188] sm:$0xff]
        %v1990 = vld [vmem:[#allocation10 + $0x190] sm:$0xff]
        %v1991 = vld [vmem:[#allocation10 + $0x1a0] sm:$0xff]
        %v1992 = vld [vmem:[#allocation10 + $0x1a8] sm:$0xff]
        %v1993 = vld [vmem:[#allocation10 + $0x1b8] sm:$0xff]
        %v1994 = vld [vmem:[#allocation10 + $0x1c0] sm:$0xff]
        %v1995 = vld [vmem:[#allocation10 + $0x1d0] sm:$0xff]
        %v1996 = vld [vmem:[#allocation10 + $0x1d8] sm:$0xff]
        %v1997 = vld [vmem:[#allocation10 + $0x1e8] sm:$0xff]
        %v1998 = vld [vmem:[#allocation10 + $0x1f0] sm:$0xff]
        %v1999 = vld [vmem:[#allocation10 + $0x200] sm:$0xff]
        %v2000 = vld [vmem:[#allocation10 + $0x208] sm:$0xff]
        %v2001 = vld [vmem:[#allocation10 + $0x218] sm:$0xff]
        %v2002 = vld [vmem:[#allocation10 + $0x220] sm:$0xff]
        %v2003 = vld [vmem:[#allocation10 + $0x230] sm:$0xff]
        %v2004 = vld [vmem:[#allocation10 + $0x238] sm:$0xff]
        %v2005 = vld [vmem:[#allocation10 + $0x248] sm:$0xff]
        %v2006 = vld [vmem:[#allocation10 + $0x250] sm:$0xff]
        %v2007 = vld [vmem:[#allocation10 + $0x260] sm:$0xff]
        %v2008 = vld [vmem:[#allocation10 + $0x268] sm:$0xff]
        %v2009 = vld [vmem:[#allocation10 + $0x278] sm:$0xff]
        %v2010 = vld [vmem:[#allocation10 + $0x280] sm:$0xff]
        %v2011 = vld [vmem:[#allocation10 + $0x290] sm:$0xff]
        %v2012 = vld [vmem:[#allocation10 + $0x298] sm:$0xff]
        %v2013 = vld [vmem:[#allocation10 + $0x2a8] sm:$0xff]
        %v2014 = vld [vmem:[#allocation10 + $0x2b0] sm:$0xff]
        %v2015 = vld [vmem:[#allocation10 + $0x2c0] sm:$0xff]
        %v2016 = vld [vmem:[#allocation10 + $0x2c8] sm:$0xff]
        %v2017 = vld [vmem:[#allocation10 + $0x2d8] sm:$0xff]
        %v2018 = vld [vmem:[#allocation10 + $0x2e0] sm:$0xff]
        %v2019 = vld [vmem:[#allocation10 + $0x2f0] sm:$0xff]
        %v2020 = vld [vmem:[#allocation10 + $0x2f8] sm:$0xff]
        %v2085 = vunpack.c.l.b16 %v1957
        %v2086 = vunpack.c.h.b16 %v1957
        %v2087 = vunpack.c.l.b16 %v1958
        %v2088 = vunpack.c.h.b16 %v1958
        %v2089 = vunpack.c.l.b16 %v1959
        %v2090 = vunpack.c.h.b16 %v1959
        %v2091 = vunpack.c.l.b16 %v1960
        %v2092 = vunpack.c.h.b16 %v1960
        %v2093 = vunpack.c.l.b16 %v1961
        %v2094 = vunpack.c.h.b16 %v1961
        %v2095 = vunpack.c.l.b16 %v1962
        %v2096 = vunpack.c.h.b16 %v1962
        %v2097 = vunpack.c.l.b16 %v1963
        %v2098 = vunpack.c.h.b16 %v1963
        %v2099 = vunpack.c.l.b16 %v1964
        %v2100 = vunpack.c.h.b16 %v1964
        %v2101 = vunpack.c.l.b16 %v1965
        %v2102 = vunpack.c.h.b16 %v1965
        %v2103 = vunpack.c.l.b16 %v1966
        %v2104 = vunpack.c.h.b16 %v1966
        %v2105 = vunpack.c.l.b16 %v1967
        %v2106 = vunpack.c.h.b16 %v1967
        %v2107 = vunpack.c.l.b16 %v1968
        %v2108 = vunpack.c.h.b16 %v1968
        %v2109 = vunpack.c.l.b16 %v1969
        %v2110 = vunpack.c.h.b16 %v1969
        %v2111 = vunpack.c.l.b16 %v1970
        %v2112 = vunpack.c.h.b16 %v1970
        %v2113 = vunpack.c.l.b16 %v1971
        %v2114 = vunpack.c.h.b16 %v1971
        %v2115 = vunpack.c.l.b16 %v1972
        %v2116 = vunpack.c.h.b16 %v1972
        %v2117 = vunpack.c.l.b16 %v1973
        %v2118 = vunpack.c.h.b16 %v1973
        %v2119 = vunpack.c.l.b16 %v1974
        %v2120 = vunpack.c.h.b16 %v1974
        %v2121 = vunpack.c.l.b16 %v1975
        %v2122 = vunpack.c.h.b16 %v1975
        %v2123 = vunpack.c.l.b16 %v1976
        %v2124 = vunpack.c.h.b16 %v1976
        %v2125 = vunpack.c.l.b16 %v1977
        %v2126 = vunpack.c.h.b16 %v1977
        %v2127 = vunpack.c.l.b16 %v1978
        %v2128 = vunpack.c.h.b16 %v1978
        %v2129 = vunpack.c.l.b16 %v1979
        %v2130 = vunpack.c.h.b16 %v1979
        %v2131 = vunpack.c.l.b16 %v1980
        %v2132 = vunpack.c.h.b16 %v1980
        %v2133 = vunpack.c.l.b16 %v1981
        %v2134 = vunpack.c.h.b16 %v1981
        %v2135 = vunpack.c.l.b16 %v1982
        %v2136 = vunpack.c.h.b16 %v1982
        %v2137 = vunpack.c.l.b16 %v1983
        %v2138 = vunpack.c.h.b16 %v1983
        %v2139 = vunpack.c.l.b16 %v1984
        %v2140 = vunpack.c.h.b16 %v1984
        %v2141 = vunpack.c.l.b16 %v1985
        %v2142 = vunpack.c.h.b16 %v1985
        %v2143 = vunpack.c.l.b16 %v1986
        %v2144 = vunpack.c.h.b16 %v1986
        %v2145 = vunpack.c.l.b16 %v1987
        %v2146 = vunpack.c.h.b16 %v1987
        %v2147 = vunpack.c.l.b16 %v1988
        %v2148 = vunpack.c.h.b16 %v1988
        %v2149 = vunpack.c.l.b16 %v1989
        %v2150 = vunpack.c.h.b16 %v1989
        %v2151 = vunpack.c.l.b16 %v1990
        %v2152 = vunpack.c.h.b16 %v1990
        %v2153 = vunpack.c.l.b16 %v1991
        %v2154 = vunpack.c.h.b16 %v1991
        %v2155 = vunpack.c.l.b16 %v1992
        %v2156 = vunpack.c.h.b16 %v1992
        %v2157 = vunpack.c.l.b16 %v1993
        %v2158 = vunpack.c.h.b16 %v1993
        %v2159 = vunpack.c.l.b16 %v1994
        %v2160 = vunpack.c.h.b16 %v1994
        %v2161 = vunpack.c.l.b16 %v1995
        %v2162 = vunpack.c.h.b16 %v1995
        %v2163 = vunpack.c.l.b16 %v1996
        %v2164 = vunpack.c.h.b16 %v1996
        %v2165 = vunpack.c.l.b16 %v1997
        %v2166 = vunpack.c.h.b16 %v1997
        %v2167 = vunpack.c.l.b16 %v1998
        %v2168 = vunpack.c.h.b16 %v1998
        %v2169 = vunpack.c.l.b16 %v1999
        %v2170 = vunpack.c.h.b16 %v1999
        %v2171 = vunpack.c.l.b16 %v2000
        %v2172 = vunpack.c.h.b16 %v2000
        %v2173 = vunpack.c.l.b16 %v2001
        %v2174 = vunpack.c.h.b16 %v2001
        %v2175 = vunpack.c.l.b16 %v2002
        %v2176 = vunpack.c.h.b16 %v2002
        %v2177 = vunpack.c.l.b16 %v2003
        %v2178 = vunpack.c.h.b16 %v2003
        %v2179 = vunpack.c.l.b16 %v2004
        %v2180 = vunpack.c.h.b16 %v2004
        %v2181 = vunpack.c.l.b16 %v2005
        %v2182 = vunpack.c.h.b16 %v2005
        %v2183 = vunpack.c.l.b16 %v2006
        %v2184 = vunpack.c.h.b16 %v2006
        %v2185 = vunpack.c.l.b16 %v2007
        %v2186 = vunpack.c.h.b16 %v2007
        %v2187 = vunpack.c.l.b16 %v2008
        %v2188 = vunpack.c.h.b16 %v2008
        %v2189 = vunpack.c.l.b16 %v2009
        %v2190 = vunpack.c.h.b16 %v2009
        %v2191 = vunpack.c.l.b16 %v2010
        %v2192 = vunpack.c.h.b16 %v2010
        %v2193 = vunpack.c.l.b16 %v2011
        %v2194 = vunpack.c.h.b16 %v2011
        %v2195 = vunpack.c.l.b16 %v2012
        %v2196 = vunpack.c.h.b16 %v2012
        %v2197 = vunpack.c.l.b16 %v2013
        %v2198 = vunpack.c.h.b16 %v2013
        %v2199 = vunpack.c.l.b16 %v2014
        %v2200 = vunpack.c.h.b16 %v2014
        %v2201 = vunpack.c.l.b16 %v2015
        %v2202 = vunpack.c.h.b16 %v2015
        %v2203 = vunpack.c.l.b16 %v2016
        %v2204 = vunpack.c.h.b16 %v2016
        %v2205 = vunpack.c.l.b16 %v2017
        %v2206 = vunpack.c.h.b16 %v2017
        %v2207 = vunpack.c.l.b16 %v2018
        %v2208 = vunpack.c.h.b16 %v2018
        %v2209 = vunpack.c.l.b16 %v2019
        %v2210 = vunpack.c.h.b16 %v2019
        %v2211 = vunpack.c.l.b16 %v2020
        %v2212 = vunpack.c.h.b16 %v2020
        %v2213 = vpack.c.b16 %v2089, %v2085
        %v2214 = vpack.c.b16 %v2090, %v2086
        %v2215 = vpack.c.b16 %v2091, %v2087
        %v2216 = vpack.c.b16 %v2092, %v2088
        %v2217 = vpack.c.b16 %v2097, %v2093
        %v2218 = vpack.c.b16 %v2098, %v2094
        %v2219 = vpack.c.b16 %v2099, %v2095
        %v2220 = vpack.c.b16 %v2100, %v2096
        %v2221 = vpack.c.b16 %v2105, %v2101
        %v2222 = vpack.c.b16 %v2106, %v2102
        %v2223 = vpack.c.b16 %v2107, %v2103
        %v2224 = vpack.c.b16 %v2108, %v2104
        %v2225 = vpack.c.b16 %v2113, %v2109
        %v2226 = vpack.c.b16 %v2114, %v2110
        %v2227 = vpack.c.b16 %v2115, %v2111
        %v2228 = vpack.c.b16 %v2116, %v2112
        %v2229 = vpack.c.b16 %v2121, %v2117
        %v2230 = vpack.c.b16 %v2122, %v2118
        %v2231 = vpack.c.b16 %v2123, %v2119
        %v2232 = vpack.c.b16 %v2124, %v2120
        %v2233 = vpack.c.b16 %v2129, %v2125
        %v2234 = vpack.c.b16 %v2130, %v2126
        %v2235 = vpack.c.b16 %v2131, %v2127
        %v2236 = vpack.c.b16 %v2132, %v2128
        %v2237 = vpack.c.b16 %v2137, %v2133
        %v2238 = vpack.c.b16 %v2138, %v2134
        %v2239 = vpack.c.b16 %v2139, %v2135
        %v2240 = vpack.c.b16 %v2140, %v2136
        %v2241 = vpack.c.b16 %v2145, %v2141
        %v2242 = vpack.c.b16 %v2146, %v2142
        %v2243 = vpack.c.b16 %v2147, %v2143
        %v2244 = vpack.c.b16 %v2148, %v2144
        %v2245 = vpack.c.b16 %v2153, %v2149
        %v2246 = vpack.c.b16 %v2154, %v2150
        %v2247 = vpack.c.b16 %v2155, %v2151
        %v2248 = vpack.c.b16 %v2156, %v2152
        %v2249 = vpack.c.b16 %v2161, %v2157
        %v2250 = vpack.c.b16 %v2162, %v2158
        %v2251 = vpack.c.b16 %v2163, %v2159
        %v2252 = vpack.c.b16 %v2164, %v2160
        %v2253 = vpack.c.b16 %v2169, %v2165
        %v2254 = vpack.c.b16 %v2170, %v2166
        %v2255 = vpack.c.b16 %v2171, %v2167
        %v2256 = vpack.c.b16 %v2172, %v2168
        %v2257 = vpack.c.b16 %v2177, %v2173
        %v2258 = vpack.c.b16 %v2178, %v2174
        %v2259 = vpack.c.b16 %v2179, %v2175
        %v2260 = vpack.c.b16 %v2180, %v2176
        %v2261 = vpack.c.b16 %v2185, %v2181
        %v2262 = vpack.c.b16 %v2186, %v2182
        %v2263 = vpack.c.b16 %v2187, %v2183
        %v2264 = vpack.c.b16 %v2188, %v2184
        %v2265 = vpack.c.b16 %v2193, %v2189
        %v2266 = vpack.c.b16 %v2194, %v2190
        %v2267 = vpack.c.b16 %v2195, %v2191
        %v2268 = vpack.c.b16 %v2196, %v2192
        %v2269 = vpack.c.b16 %v2201, %v2197
        %v2270 = vpack.c.b16 %v2202, %v2198
        %v2271 = vpack.c.b16 %v2203, %v2199
        %v2272 = vpack.c.b16 %v2204, %v2200
        %v2273 = vpack.c.b16 %v2209, %v2205
        %v2274 = vpack.c.b16 %v2210, %v2206
        %v2275 = vpack.c.b16 %v2211, %v2207
        %v2276 = vpack.c.b16 %v2212, %v2208
        %2341 = vmatprep.subr.bf16.mxu0 %v2214
        %2342 = vmatpush1.bf16.msra.mxu0 %v2213
        %2343 = vmatprep.subr.bf16.mxu0 %v2218
        %2344 = vmatpush1.bf16.msra.mxu0 %v2217
        %2345 = vmatprep.subr.bf16.mxu0 %v2222
        %2346 = vmatpush1.bf16.msra.mxu0 %v2221
        %2347 = vmatprep.subr.bf16.mxu0 %v2226
        %2348 = vmatpush1.bf16.msra.mxu0 %v2225
        %2349 = vmatprep.subr.bf16.mxu0 %v2230
        %2350 = vmatpush1.bf16.msra.mxu0 %v2229
        %2351 = vmatprep.subr.bf16.mxu0 %v2234
        %2352 = vmatpush1.bf16.msra.mxu0 %v2233
        %2353 = vmatprep.subr.bf16.mxu0 %v2238
        %2354 = vmatpush1.bf16.msra.mxu0 %v2237
        %2355 = vmatprep.subr.bf16.mxu0 %v2242
        %2356 = vmatpush1.bf16.msra.mxu0 %v2241
        %2357 = vmatprep.subr.bf16.mxu0 %v2246
        %2358 = vmatpush1.bf16.msra.mxu0 %v2245
        %2359 = vmatprep.subr.bf16.mxu0 %v2250
        %2360 = vmatpush1.bf16.msra.mxu0 %v2249
        %2361 = vmatprep.subr.bf16.mxu0 %v2254
        %2362 = vmatpush1.bf16.msra.mxu0 %v2253
        %2363 = vmatprep.subr.bf16.mxu0 %v2258
        %2364 = vmatpush1.bf16.msra.mxu0 %v2257
        %2365 = vmatprep.subr.bf16.mxu0 %v2262
        %2366 = vmatpush1.bf16.msra.mxu0 %v2261
        %2367 = vmatprep.subr.bf16.mxu0 %v2266
        %2368 = vmatpush1.bf16.msra.mxu0 %v2265
        %2369 = vmatprep.subr.bf16.mxu0 %v2270
        %2370 = vmatpush1.bf16.msra.mxu0 %v2269
        %2371 = vmatprep.subr.bf16.mxu0 %v2274
        %2372 = vmatpush1.bf16.msra.mxu0 %v2273
        %2373 = vmatprep.mubr.bf16.mxu0 %v1565
        %2374 = vmatmul.mubr.bf16.gmra.mrb[0].mxu0 %v1564
        %v2375 = vpop.f32.mrb[0].mxu0
        %v2376 = vadd.f32 0.0, %v2375
        %v2377 = vpop.f32.mrb[0].mxu0
        %v2378 = vadd.f32 0.0, %v2377
        %v2379 = vpop.f32.mrb[0].mxu0
        %v2380 = vadd.f32 0.0, %v2379
        %v2381 = vpop.f32.mrb[0].mxu0
        %v2382 = vadd.f32 0.0, %v2381
        %2383 = vmatprep.mubr.bf16.mxu0 %v1567
        %2384 = vmatmul.mubr.bf16.gmra.mrb[0].mxu0 %v1566
        %v2385 = vpop.f32.mrb[0].mxu0
        %v2386 = vadd.f32 0.0, %v2385
        %v2387 = vpop.f32.mrb[0].mxu0
        %v2388 = vadd.f32 0.0, %v2387
        %v2389 = vpop.f32.mrb[0].mxu0
        %v2390 = vadd.f32 0.0, %v2389
        %v2391 = vpop.f32.mrb[0].mxu0
        %v2392 = vadd.f32 0.0, %v2391
        %2393 = vmatprep.mubr.bf16.mxu0 %v1569
        %2394 = vmatmul.mubr.bf16.gmra.mrb[0].mxu0 %v1568
        %v2395 = vpop.f32.mrb[0].mxu0
        %v2396 = vadd.f32 0.0, %v2395
        %v2397 = vpop.f32.mrb[0].mxu0
        %v2398 = vadd.f32 0.0, %v2397
        %v2399 = vpop.f32.mrb[0].mxu0
        %v2400 = vadd.f32 0.0, %v2399
        %v2401 = vpop.f32.mrb[0].mxu0
        %v2402 = vadd.f32 0.0, %v2401
        %2403 = vmatprep.mubr.bf16.mxu0 %v1571
        %2404 = vmatmul.mubr.bf16.gmra.mrb[0].mxu0 %v1570
        %v2405 = vpop.f32.mrb[0].mxu0
        %v2406 = vadd.f32 0.0, %v2405
        %v2407 = vpop.f32.mrb[0].mxu0
        %v2408 = vadd.f32 0.0, %v2407
        %v2409 = vpop.f32.mrb[0].mxu0
        %v2410 = vadd.f32 0.0, %v2409
        %v2411 = vpop.f32.mrb[0].mxu0
        %v2412 = vadd.f32 0.0, %v2411
        %2413 = vmatprep.mubr.bf16.mxu0 %v1573
        %2414 = vmatmul.mubr.bf16.gmra.mrb[0].mxu0 %v1572
        %v2415 = vpop.f32.mrb[0].mxu0
        %v2416 = vadd.f32 0.0, %v2415
        %v2417 = vpop.f32.mrb[0].mxu0
        %v2418 = vadd.f32 0.0, %v2417
        %v2419 = vpop.f32.mrb[0].mxu0
        %v2420 = vadd.f32 0.0, %v2419
        %v2421 = vpop.f32.mrb[0].mxu0
        %v2422 = vadd.f32 0.0, %v2421
        %2423 = vmatprep.mubr.bf16.mxu0 %v1575
        %2424 = vmatmul.mubr.bf16.gmra.mrb[0].mxu0 %v1574
        %v2425 = vpop.f32.mrb[0].mxu0
        %v2426 = vadd.f32 0.0, %v2425
        %v2427 = vpop.f32.mrb[0].mxu0
        %v2428 = vadd.f32 0.0, %v2427
        %v2429 = vpop.f32.mrb[0].mxu0
        %v2430 = vadd.f32 0.0, %v2429
        %v2431 = vpop.f32.mrb[0].mxu0
        %v2432 = vadd.f32 0.0, %v2431
        %2433 = vmatprep.mubr.bf16.mxu0 %v1577
        %2434 = vmatmul.mubr.bf16.gmra.mrb[0].mxu0 %v1576
        %v2435 = vpop.f32.mrb[0].mxu0
        %v2436 = vadd.f32 0.0, %v2435
        %v2437 = vpop.f32.mrb[0].mxu0
        %v2438 = vadd.f32 0.0, %v2437
        %v2439 = vpop.f32.mrb[0].mxu0
        %v2440 = vadd.f32 0.0, %v2439
        %v2441 = vpop.f32.mrb[0].mxu0
        %v2442 = vadd.f32 0.0, %v2441
        %2443 = vmatprep.mubr.bf16.mxu0 %v1579
        %2444 = vmatmul.mubr.bf16.gmra.mrb[0].mxu0 %v1578
        %v2445 = vpop.f32.mrb[0].mxu0
        %v2446 = vadd.f32 0.0, %v2445
        %v2447 = vpop.f32.mrb[0].mxu0
        %v2448 = vadd.f32 0.0, %v2447
        %v2449 = vpop.f32.mrb[0].mxu0
        %v2450 = vadd.f32 0.0, %v2449
        %v2451 = vpop.f32.mrb[0].mxu0
        %v2452 = vadd.f32 0.0, %v2451
        %2453 = vmatprep.mubr.bf16.mxu0 %v1581
        %2454 = vmatmul.mubr.bf16.gmra.mrb[0].mxu0 %v1580
        %v2455 = vpop.f32.mrb[0].mxu0
        %v2456 = vadd.f32 0.0, %v2455
        %v2457 = vpop.f32.mrb[0].mxu0
        %v2458 = vadd.f32 0.0, %v2457
        %v2459 = vpop.f32.mrb[0].mxu0
        %v2460 = vadd.f32 0.0, %v2459
        %v2461 = vpop.f32.mrb[0].mxu0
        %v2462 = vadd.f32 0.0, %v2461
        %2463 = vmatprep.mubr.bf16.mxu0 %v1583
        %2464 = vmatmul.mubr.bf16.gmra.mrb[0].mxu0 %v1582
        %v2465 = vpop.f32.mrb[0].mxu0
        %v2466 = vadd.f32 0.0, %v2465
        %v2467 = vpop.f32.mrb[0].mxu0
        %v2468 = vadd.f32 0.0, %v2467
        %v2469 = vpop.f32.mrb[0].mxu0
        %v2470 = vadd.f32 0.0, %v2469
        %v2471 = vpop.f32.mrb[0].mxu0
        %v2472 = vadd.f32 0.0, %v2471
        %2473 = vmatprep.mubr.bf16.mxu0 %v1585
        %2474 = vmatmul.mubr.bf16.gmra.mrb[0].mxu0 %v1584
        %v2475 = vpop.f32.mrb[0].mxu0
        %v2476 = vadd.f32 0.0, %v2475
        %v2477 = vpop.f32.mrb[0].mxu0
        %v2478 = vadd.f32 0.0, %v2477
        %v2479 = vpop.f32.mrb[0].mxu0
        %v2480 = vadd.f32 0.0, %v2479
        %v2481 = vpop.f32.mrb[0].mxu0
        %v2482 = vadd.f32 0.0, %v2481
        %2483 = vmatprep.mubr.bf16.mxu0 %v1587
        %2484 = vmatmul.mubr.bf16.gmra.mrb[0].mxu0 %v1586
        %v2485 = vpop.f32.mrb[0].mxu0
        %v2486 = vadd.f32 0.0, %v2485
        %v2487 = vpop.f32.mrb[0].mxu0
        %v2488 = vadd.f32 0.0, %v2487
        %v2489 = vpop.f32.mrb[0].mxu0
        %v2490 = vadd.f32 0.0, %v2489
        %v2491 = vpop.f32.mrb[0].mxu0
        %v2492 = vadd.f32 0.0, %v2491
        %2493 = vmatprep.mubr.bf16.mxu0 %v1589
        %2494 = vmatmul.mubr.bf16.gmra.mrb[0].mxu0 %v1588
        %v2495 = vpop.f32.mrb[0].mxu0
        %v2496 = vadd.f32 0.0, %v2495
        %v2497 = vpop.f32.mrb[0].mxu0
        %v2498 = vadd.f32 0.0, %v2497
        %v2499 = vpop.f32.mrb[0].mxu0
        %v2500 = vadd.f32 0.0, %v2499
        %v2501 = vpop.f32.mrb[0].mxu0
        %v2502 = vadd.f32 0.0, %v2501
        %2503 = vmatprep.mubr.bf16.mxu0 %v1591
        %2504 = vmatmul.mubr.bf16.gmra.mrb[0].mxu0 %v1590
        %v2505 = vpop.f32.mrb[0].mxu0
        %v2506 = vadd.f32 0.0, %v2505
        %v2507 = vpop.f32.mrb[0].mxu0
        %v2508 = vadd.f32 0.0, %v2507
        %v2509 = vpop.f32.mrb[0].mxu0
        %v2510 = vadd.f32 0.0, %v2509
        %v2511 = vpop.f32.mrb[0].mxu0
        %v2512 = vadd.f32 0.0, %v2511
        %2513 = vmatprep.mubr.bf16.mxu0 %v1593
        %2514 = vmatmul.mubr.bf16.gmra.mrb[0].mxu0 %v1592
        %v2515 = vpop.f32.mrb[0].mxu0
        %v2516 = vadd.f32 0.0, %v2515
        %v2517 = vpop.f32.mrb[0].mxu0
        %v2518 = vadd.f32 0.0, %v2517
        %v2519 = vpop.f32.mrb[0].mxu0
        %v2520 = vadd.f32 0.0, %v2519
        %v2521 = vpop.f32.mrb[0].mxu0
        %v2522 = vadd.f32 0.0, %v2521
        %2523 = vmatprep.mubr.bf16.mxu0 %v1595
        %2524 = vmatmul.mubr.bf16.gmra.mrb[0].mxu0 %v1594
        %v2525 = vpop.f32.mrb[0].mxu0
        %v2526 = vadd.f32 0.0, %v2525
        %v2527 = vpop.f32.mrb[0].mxu0
        %v2528 = vadd.f32 0.0, %v2527
        %v2529 = vpop.f32.mrb[0].mxu0
        %v2530 = vadd.f32 0.0, %v2529
        %v2531 = vpop.f32.mrb[0].mxu0
        %v2532 = vadd.f32 0.0, %v2531
        %2533 = vdwg.mxu0
        %2534 = vmatprep.subr.bf16.mxu0 %v2216
        %2535 = vmatpush1.bf16.msra.mxu0 %v2215
        %2536 = vmatprep.subr.bf16.mxu0 %v2220
        %2537 = vmatpush1.bf16.msra.mxu0 %v2219
        %2538 = vmatprep.subr.bf16.mxu0 %v2224
        %2539 = vmatpush1.bf16.msra.mxu0 %v2223
        %2540 = vmatprep.subr.bf16.mxu0 %v2228
        %2541 = vmatpush1.bf16.msra.mxu0 %v2227
        %2542 = vmatprep.subr.bf16.mxu0 %v2232
        %2543 = vmatpush1.bf16.msra.mxu0 %v2231
        %2544 = vmatprep.subr.bf16.mxu0 %v2236
        %2545 = vmatpush1.bf16.msra.mxu0 %v2235
        %2546 = vmatprep.subr.bf16.mxu0 %v2240
        %2547 = vmatpush1.bf16.msra.mxu0 %v2239
        %2548 = vmatprep.subr.bf16.mxu0 %v2244
        %2549 = vmatpush1.bf16.msra.mxu0 %v2243
        %2550 = vmatprep.subr.bf16.mxu0 %v2248
        %2551 = vmatpush1.bf16.msra.mxu0 %v2247
        %2552 = vmatprep.subr.bf16.mxu0 %v2252
        %2553 = vmatpush1.bf16.msra.mxu0 %v2251
        %2554 = vmatprep.subr.bf16.mxu0 %v2256
        %2555 = vmatpush1.bf16.msra.mxu0 %v2255
        %2556 = vmatprep.subr.bf16.mxu0 %v2260
        %2557 = vmatpush1.bf16.msra.mxu0 %v2259
        %2558 = vmatprep.subr.bf16.mxu0 %v2264
        %2559 = vmatpush1.bf16.msra.mxu0 %v2263
        %2560 = vmatprep.subr.bf16.mxu0 %v2268
        %2561 = vmatpush1.bf16.msra.mxu0 %v2267
        %2562 = vmatprep.subr.bf16.mxu0 %v2272
        %2563 = vmatpush1.bf16.msra.mxu0 %v2271
        %2564 = vmatprep.subr.bf16.mxu0 %v2276
        %2565 = vmatpush1.bf16.msra.mxu0 %v2275
        %2566 = vmatprep.mubr.bf16.mxu0 %v1565
        %2567 = vmatmul.mubr.bf16.gmra.mrb[0].mxu0 %v1564
        %v2568 = vpop.f32.mrb[0].mxu0
        %v2569 = vadd.f32 0.0, %v2568
        %v2570 = vpop.f32.mrb[0].mxu0
        %v2571 = vadd.f32 0.0, %v2570
        %v2572 = vpop.f32.mrb[0].mxu0
        %v2573 = vadd.f32 0.0, %v2572
        %v2574 = vpop.f32.mrb[0].mxu0
        %v2575 = vadd.f32 0.0, %v2574
        %2576 = vmatprep.mubr.bf16.mxu0 %v1567
        %2577 = vmatmul.mubr.bf16.gmra.mrb[0].mxu0 %v1566
        %v2578 = vpop.f32.mrb[0].mxu0
        %v2579 = vadd.f32 0.0, %v2578
        %v2580 = vpop.f32.mrb[0].mxu0
        %v2581 = vadd.f32 0.0, %v2580
        %v2582 = vpop.f32.mrb[0].mxu0
        %v2583 = vadd.f32 0.0, %v2582
        %v2584 = vpop.f32.mrb[0].mxu0
        %v2585 = vadd.f32 0.0, %v2584
        %2586 = vmatprep.mubr.bf16.mxu0 %v1569
        %2587 = vmatmul.mubr.bf16.gmra.mrb[0].mxu0 %v1568
        %v2588 = vpop.f32.mrb[0].mxu0
        %v2589 = vadd.f32 0.0, %v2588
        %v2590 = vpop.f32.mrb[0].mxu0
        %v2591 = vadd.f32 0.0, %v2590
        %v2592 = vpop.f32.mrb[0].mxu0
        %v2593 = vadd.f32 0.0, %v2592
        %v2594 = vpop.f32.mrb[0].mxu0
        %v2595 = vadd.f32 0.0, %v2594
        %2596 = vmatprep.mubr.bf16.mxu0 %v1571
        %2597 = vmatmul.mubr.bf16.gmra.mrb[0].mxu0 %v1570
        %v2598 = vpop.f32.mrb[0].mxu0
        %v2599 = vadd.f32 0.0, %v2598
        %v2600 = vpop.f32.mrb[0].mxu0
        %v2601 = vadd.f32 0.0, %v2600
        %v2602 = vpop.f32.mrb[0].mxu0
        %v2603 = vadd.f32 0.0, %v2602
        %v2604 = vpop.f32.mrb[0].mxu0
        %v2605 = vadd.f32 0.0, %v2604
        %2606 = vmatprep.mubr.bf16.mxu0 %v1573
        %2607 = vmatmul.mubr.bf16.gmra.mrb[0].mxu0 %v1572
        %v2608 = vpop.f32.mrb[0].mxu0
        %v2609 = vadd.f32 0.0, %v2608
        %v2610 = vpop.f32.mrb[0].mxu0
        %v2611 = vadd.f32 0.0, %v2610
        %v2612 = vpop.f32.mrb[0].mxu0
        %v2613 = vadd.f32 0.0, %v2612
        %v2614 = vpop.f32.mrb[0].mxu0
        %v2615 = vadd.f32 0.0, %v2614
        %2616 = vmatprep.mubr.bf16.mxu0 %v1575
        %2617 = vmatmul.mubr.bf16.gmra.mrb[0].mxu0 %v1574
        %v2618 = vpop.f32.mrb[0].mxu0
        %v2619 = vadd.f32 0.0, %v2618
        %v2620 = vpop.f32.mrb[0].mxu0
        %v2621 = vadd.f32 0.0, %v2620
        %v2622 = vpop.f32.mrb[0].mxu0
        %v2623 = vadd.f32 0.0, %v2622
        %v2624 = vpop.f32.mrb[0].mxu0
        %v2625 = vadd.f32 0.0, %v2624
        %2626 = vmatprep.mubr.bf16.mxu0 %v1577
        %2627 = vmatmul.mubr.bf16.gmra.mrb[0].mxu0 %v1576
        %v2628 = vpop.f32.mrb[0].mxu0
        %v2629 = vadd.f32 0.0, %v2628
        %v2630 = vpop.f32.mrb[0].mxu0
        %v2631 = vadd.f32 0.0, %v2630
        %v2632 = vpop.f32.mrb[0].mxu0
        %v2633 = vadd.f32 0.0, %v2632
        %v2634 = vpop.f32.mrb[0].mxu0
        %v2635 = vadd.f32 0.0, %v2634
        %2636 = vmatprep.mubr.bf16.mxu0 %v1579
        %2637 = vmatmul.mubr.bf16.gmra.mrb[0].mxu0 %v1578
        %v2638 = vpop.f32.mrb[0].mxu0
        %v2639 = vadd.f32 0.0, %v2638
        %v2640 = vpop.f32.mrb[0].mxu0
        %v2641 = vadd.f32 0.0, %v2640
        %v2642 = vpop.f32.mrb[0].mxu0
        %v2643 = vadd.f32 0.0, %v2642
        %v2644 = vpop.f32.mrb[0].mxu0
        %v2645 = vadd.f32 0.0, %v2644
        %2646 = vmatprep.mubr.bf16.mxu0 %v1581
        %2647 = vmatmul.mubr.bf16.gmra.mrb[0].mxu0 %v1580
        %v2648 = vpop.f32.mrb[0].mxu0
        %v2649 = vadd.f32 0.0, %v2648
        %v2650 = vpop.f32.mrb[0].mxu0
        %v2651 = vadd.f32 0.0, %v2650
        %v2652 = vpop.f32.mrb[0].mxu0
        %v2653 = vadd.f32 0.0, %v2652
        %v2654 = vpop.f32.mrb[0].mxu0
        %v2655 = vadd.f32 0.0, %v2654
        %2656 = vmatprep.mubr.bf16.mxu0 %v1583
        %2657 = vmatmul.mubr.bf16.gmra.mrb[0].mxu0 %v1582
        %v2658 = vpop.f32.mrb[0].mxu0
        %v2659 = vadd.f32 0.0, %v2658
        %v2660 = vpop.f32.mrb[0].mxu0
        %v2661 = vadd.f32 0.0, %v2660
        %v2662 = vpop.f32.mrb[0].mxu0
        %v2663 = vadd.f32 0.0, %v2662
        %v2664 = vpop.f32.mrb[0].mxu0
        %v2665 = vadd.f32 0.0, %v2664
        %2666 = vmatprep.mubr.bf16.mxu0 %v1585
        %2667 = vmatmul.mubr.bf16.gmra.mrb[0].mxu0 %v1584
        %v2668 = vpop.f32.mrb[0].mxu0
        %v2669 = vadd.f32 0.0, %v2668
        %v2670 = vpop.f32.mrb[0].mxu0
        %v2671 = vadd.f32 0.0, %v2670
        %v2672 = vpop.f32.mrb[0].mxu0
        %v2673 = vadd.f32 0.0, %v2672
        %v2674 = vpop.f32.mrb[0].mxu0
        %v2675 = vadd.f32 0.0, %v2674
        %2676 = vmatprep.mubr.bf16.mxu0 %v1587
        %2677 = vmatmul.mubr.bf16.gmra.mrb[0].mxu0 %v1586
        %v2678 = vpop.f32.mrb[0].mxu0
        %v2679 = vadd.f32 0.0, %v2678
        %v2680 = vpop.f32.mrb[0].mxu0
        %v2681 = vadd.f32 0.0, %v2680
        %v2682 = vpop.f32.mrb[0].mxu0
        %v2683 = vadd.f32 0.0, %v2682
        %v2684 = vpop.f32.mrb[0].mxu0
        %v2685 = vadd.f32 0.0, %v2684
        %2686 = vmatprep.mubr.bf16.mxu0 %v1589
        %2687 = vmatmul.mubr.bf16.gmra.mrb[0].mxu0 %v1588
        %v2688 = vpop.f32.mrb[0].mxu0
        %v2689 = vadd.f32 0.0, %v2688
        %v2690 = vpop.f32.mrb[0].mxu0
        %v2691 = vadd.f32 0.0, %v2690
        %v2692 = vpop.f32.mrb[0].mxu0
        %v2693 = vadd.f32 0.0, %v2692
        %v2694 = vpop.f32.mrb[0].mxu0
        %v2695 = vadd.f32 0.0, %v2694
        %2696 = vmatprep.mubr.bf16.mxu0 %v1591
        %2697 = vmatmul.mubr.bf16.gmra.mrb[0].mxu0 %v1590
        %v2698 = vpop.f32.mrb[0].mxu0
        %v2699 = vadd.f32 0.0, %v2698
        %v2700 = vpop.f32.mrb[0].mxu0
        %v2701 = vadd.f32 0.0, %v2700
        %v2702 = vpop.f32.mrb[0].mxu0
        %v2703 = vadd.f32 0.0, %v2702
        %v2704 = vpop.f32.mrb[0].mxu0
        %v2705 = vadd.f32 0.0, %v2704
        %2706 = vmatprep.mubr.bf16.mxu0 %v1593
        %2707 = vmatmul.mubr.bf16.gmra.mrb[0].mxu0 %v1592
        %v2708 = vpop.f32.mrb[0].mxu0
        %v2709 = vadd.f32 0.0, %v2708
        %v2710 = vpop.f32.mrb[0].mxu0
        %v2711 = vadd.f32 0.0, %v2710
        %v2712 = vpop.f32.mrb[0].mxu0
        %v2713 = vadd.f32 0.0, %v2712
        %v2714 = vpop.f32.mrb[0].mxu0
        %v2715 = vadd.f32 0.0, %v2714
        %2716 = vmatprep.mubr.bf16.mxu0 %v1595
        %2717 = vmatmul.mubr.bf16.gmra.mrb[0].mxu0 %v1594
        %v2718 = vpop.f32.mrb[0].mxu0
        %v2719 = vadd.f32 0.0, %v2718
        %v2720 = vpop.f32.mrb[0].mxu0
        %v2721 = vadd.f32 0.0, %v2720
        %v2722 = vpop.f32.mrb[0].mxu0
        %v2723 = vadd.f32 0.0, %v2722
        %v2724 = vpop.f32.mrb[0].mxu0
        %v2725 = vadd.f32 0.0, %v2724
        %2726 = vdwg.mxu0
        %v2727 = vlaneseq
        %v2728 = vshrl.u32 %v2727, 7
        %v2729 = vsub.s32 1, %v2728
        %v2730 = vrot.slane %v567, %v2729
        %v2731 = vlaneseq
        %v2732 = vshrl.u32 %v2731, 7
        %v2733 = vsub.s32 1, %v2732
        %v2734 = vrot.slane %v568, %v2733
        %v2735 = vadd.f32 %v2376, %v2730
        %v2736 = vadd.f32 %v2378, %v2734
        %v2737 = vadd.f32 %v2380, %v2730
        %v2738 = vadd.f32 %v2382, %v2734
        %v2739 = vadd.f32 %v2386, %v2730
        %v2740 = vadd.f32 %v2388, %v2734
        %v2741 = vadd.f32 %v2390, %v2730
        %v2742 = vadd.f32 %v2392, %v2734
        %v2743 = vadd.f32 %v2396, %v2730
        %v2744 = vadd.f32 %v2398, %v2734
        %v2745 = vadd.f32 %v2400, %v2730
        %v2746 = vadd.f32 %v2402, %v2734
        %v2747 = vadd.f32 %v2406, %v2730
        %v2748 = vadd.f32 %v2408, %v2734
        %v2749 = vadd.f32 %v2410, %v2730
        %v2750 = vadd.f32 %v2412, %v2734
        %v2751 = vadd.f32 %v2416, %v2730
        %v2752 = vadd.f32 %v2418, %v2734
        %v2753 = vadd.f32 %v2420, %v2730
        %v2754 = vadd.f32 %v2422, %v2734
        %v2755 = vadd.f32 %v2426, %v2730
        %v2756 = vadd.f32 %v2428, %v2734
        %v2757 = vadd.f32 %v2430, %v2730
        %v2758 = vadd.f32 %v2432, %v2734
        %v2759 = vadd.f32 %v2436, %v2730
        %v2760 = vadd.f32 %v2438, %v2734
        %v2761 = vadd.f32 %v2440, %v2730
        %v2762 = vadd.f32 %v2442, %v2734
        %v2763 = vadd.f32 %v2446, %v2730
        %v2764 = vadd.f32 %v2448, %v2734
        %v2765 = vadd.f32 %v2450, %v2730
        %v2766 = vadd.f32 %v2452, %v2734
        %v2767 = vadd.f32 %v2456, %v2730
        %v2768 = vadd.f32 %v2458, %v2734
        %v2769 = vadd.f32 %v2460, %v2730
        %v2770 = vadd.f32 %v2462, %v2734
        %v2771 = vadd.f32 %v2466, %v2730
        %v2772 = vadd.f32 %v2468, %v2734
        %v2773 = vadd.f32 %v2470, %v2730
        %v2774 = vadd.f32 %v2472, %v2734
        %v2775 = vadd.f32 %v2476, %v2730
        %v2776 = vadd.f32 %v2478, %v2734
        %v2777 = vadd.f32 %v2480, %v2730
        %v2778 = vadd.f32 %v2482, %v2734
        %v2779 = vadd.f32 %v2486, %v2730
        %v2780 = vadd.f32 %v2488, %v2734
        %v2781 = vadd.f32 %v2490, %v2730
        %v2782 = vadd.f32 %v2492, %v2734
        %v2783 = vadd.f32 %v2496, %v2730
        %v2784 = vadd.f32 %v2498, %v2734
        %v2785 = vadd.f32 %v2500, %v2730
        %v2786 = vadd.f32 %v2502, %v2734
        %v2787 = vadd.f32 %v2506, %v2730
        %v2788 = vadd.f32 %v2508, %v2734
        %v2789 = vadd.f32 %v2510, %v2730
        %v2790 = vadd.f32 %v2512, %v2734
        %v2791 = vadd.f32 %v2516, %v2730
        %v2792 = vadd.f32 %v2518, %v2734
        %v2793 = vadd.f32 %v2520, %v2730
        %v2794 = vadd.f32 %v2522, %v2734
        %v2795 = vadd.f32 %v2526, %v2730
        %v2796 = vadd.f32 %v2528, %v2734
        %v2797 = vadd.f32 %v2530, %v2730
        %v2798 = vadd.f32 %v2532, %v2734
        %v2799 = vpack.c.bf16 %v2737, %v2735
        %v2800 = vpack.c.bf16 %v2738, %v2736
        %v2801 = vpack.c.bf16 %v2741, %v2739
        %v2802 = vpack.c.bf16 %v2742, %v2740
        %v2803 = vpack.c.bf16 %v2745, %v2743
        %v2804 = vpack.c.bf16 %v2746, %v2744
        %v2805 = vpack.c.bf16 %v2749, %v2747
        %v2806 = vpack.c.bf16 %v2750, %v2748
        %v2807 = vpack.c.bf16 %v2753, %v2751
        %v2808 = vpack.c.bf16 %v2754, %v2752
        %v2809 = vpack.c.bf16 %v2757, %v2755
        %v2810 = vpack.c.bf16 %v2758, %v2756
        %v2811 = vpack.c.bf16 %v2761, %v2759
        %v2812 = vpack.c.bf16 %v2762, %v2760
        %v2813 = vpack.c.bf16 %v2765, %v2763
        %v2814 = vpack.c.bf16 %v2766, %v2764
        %v2815 = vpack.c.bf16 %v2769, %v2767
        %v2816 = vpack.c.bf16 %v2770, %v2768
        %v2817 = vpack.c.bf16 %v2773, %v2771
        %v2818 = vpack.c.bf16 %v2774, %v2772
        %v2819 = vpack.c.bf16 %v2777, %v2775
        %v2820 = vpack.c.bf16 %v2778, %v2776
        %v2821 = vpack.c.bf16 %v2781, %v2779
        %v2822 = vpack.c.bf16 %v2782, %v2780
        %v2823 = vpack.c.bf16 %v2785, %v2783
        %v2824 = vpack.c.bf16 %v2786, %v2784
        %v2825 = vpack.c.bf16 %v2789, %v2787
        %v2826 = vpack.c.bf16 %v2790, %v2788
        %v2827 = vpack.c.bf16 %v2793, %v2791
        %v2828 = vpack.c.bf16 %v2794, %v2792
        %v2829 = vpack.c.bf16 %v2797, %v2795
        %v2830 = vpack.c.bf16 %v2798, %v2796
        %v2831 = vlaneseq
        %v2832 = vshrl.u32 %v2831, 7
        %v2833 = vsub.s32 2, %v2832
        %v2834 = vrot.slane %v567, %v2833
        %v2835 = vlaneseq
        %v2836 = vshrl.u32 %v2835, 7
        %v2837 = vsub.s32 2, %v2836
        %v2838 = vrot.slane %v568, %v2837
        %v2839 = vadd.f32 %v2569, %v2834
        %v2840 = vadd.f32 %v2571, %v2838
        %v2841 = vadd.f32 %v2573, %v2834
        %v2842 = vadd.f32 %v2575, %v2838
        %v2843 = vadd.f32 %v2579, %v2834
        %v2844 = vadd.f32 %v2581, %v2838
        %v2845 = vadd.f32 %v2583, %v2834
        %v2846 = vadd.f32 %v2585, %v2838
        %v2847 = vadd.f32 %v2589, %v2834
        %v2848 = vadd.f32 %v2591, %v2838
        %v2849 = vadd.f32 %v2593, %v2834
        %v2850 = vadd.f32 %v2595, %v2838
        %v2851 = vadd.f32 %v2599, %v2834
        %v2852 = vadd.f32 %v2601, %v2838
        %v2853 = vadd.f32 %v2603, %v2834
        %v2854 = vadd.f32 %v2605, %v2838
        %v2855 = vadd.f32 %v2609, %v2834
        %v2856 = vadd.f32 %v2611, %v2838
        %v2857 = vadd.f32 %v2613, %v2834
        %v2858 = vadd.f32 %v2615, %v2838
        %v2859 = vadd.f32 %v2619, %v2834
        %v2860 = vadd.f32 %v2621, %v2838
        %v2861 = vadd.f32 %v2623, %v2834
        %v2862 = vadd.f32 %v2625, %v2838
        %v2863 = vadd.f32 %v2629, %v2834
        %v2864 = vadd.f32 %v2631, %v2838
        %v2865 = vadd.f32 %v2633, %v2834
        %v2866 = vadd.f32 %v2635, %v2838
        %v2867 = vadd.f32 %v2639, %v2834
        %v2868 = vadd.f32 %v2641, %v2838
        %v2869 = vadd.f32 %v2643, %v2834
        %v2870 = vadd.f32 %v2645, %v2838
        %v2871 = vadd.f32 %v2649, %v2834
        %v2872 = vadd.f32 %v2651, %v2838
        %v2873 = vadd.f32 %v2653, %v2834
        %v2874 = vadd.f32 %v2655, %v2838
        %v2875 = vadd.f32 %v2659, %v2834
        %v2876 = vadd.f32 %v2661, %v2838
        %v2877 = vadd.f32 %v2663, %v2834
        %v2878 = vadd.f32 %v2665, %v2838
        %v2879 = vadd.f32 %v2669, %v2834
        %v2880 = vadd.f32 %v2671, %v2838
        %v2881 = vadd.f32 %v2673, %v2834
        %v2882 = vadd.f32 %v2675, %v2838
        %v2883 = vadd.f32 %v2679, %v2834
        %v2884 = vadd.f32 %v2681, %v2838
        %v2885 = vadd.f32 %v2683, %v2834
        %v2886 = vadd.f32 %v2685, %v2838
        %v2887 = vadd.f32 %v2689, %v2834
        %v2888 = vadd.f32 %v2691, %v2838
        %v2889 = vadd.f32 %v2693, %v2834
        %v2890 = vadd.f32 %v2695, %v2838
        %v2891 = vadd.f32 %v2699, %v2834
        %v2892 = vadd.f32 %v2701, %v2838
        %v2893 = vadd.f32 %v2703, %v2834
        %v2894 = vadd.f32 %v2705, %v2838
        %v2895 = vadd.f32 %v2709, %v2834
        %v2896 = vadd.f32 %v2711, %v2838
        %v2897 = vadd.f32 %v2713, %v2834
        %v2898 = vadd.f32 %v2715, %v2838
        %v2899 = vadd.f32 %v2719, %v2834
        %v2900 = vadd.f32 %v2721, %v2838
        %v2901 = vadd.f32 %v2723, %v2834
        %v2902 = vadd.f32 %v2725, %v2838
        %v2903 = vpack.c.bf16 %v2841, %v2839
        %v2904 = vpack.c.bf16 %v2842, %v2840
        %v2905 = vpack.c.bf16 %v2845, %v2843
        %v2906 = vpack.c.bf16 %v2846, %v2844
        %v2907 = vpack.c.bf16 %v2849, %v2847
        %v2908 = vpack.c.bf16 %v2850, %v2848
        %v2909 = vpack.c.bf16 %v2853, %v2851
        %v2910 = vpack.c.bf16 %v2854, %v2852
        %v2911 = vpack.c.bf16 %v2857, %v2855
        %v2912 = vpack.c.bf16 %v2858, %v2856
        %v2913 = vpack.c.bf16 %v2861, %v2859
        %v2914 = vpack.c.bf16 %v2862, %v2860
        %v2915 = vpack.c.bf16 %v2865, %v2863
        %v2916 = vpack.c.bf16 %v2866, %v2864
        %v2917 = vpack.c.bf16 %v2869, %v2867
        %v2918 = vpack.c.bf16 %v2870, %v2868
        %v2919 = vpack.c.bf16 %v2873, %v2871
        %v2920 = vpack.c.bf16 %v2874, %v2872
        %v2921 = vpack.c.bf16 %v2877, %v2875
        %v2922 = vpack.c.bf16 %v2878, %v2876
        %v2923 = vpack.c.bf16 %v2881, %v2879
        %v2924 = vpack.c.bf16 %v2882, %v2880
        %v2925 = vpack.c.bf16 %v2885, %v2883
        %v2926 = vpack.c.bf16 %v2886, %v2884
        %v2927 = vpack.c.bf16 %v2889, %v2887
        %v2928 = vpack.c.bf16 %v2890, %v2888
        %v2929 = vpack.c.bf16 %v2893, %v2891
        %v2930 = vpack.c.bf16 %v2894, %v2892
        %v2931 = vpack.c.bf16 %v2897, %v2895
        %v2932 = vpack.c.bf16 %v2898, %v2896
        %v2933 = vpack.c.bf16 %v2901, %v2899
        %v2934 = vpack.c.bf16 %v2902, %v2900
        %2935 = vst [vmem:[#allocation2] sm:$0xff] %v1941
        %2936 = vst [vmem:[#allocation2 + $0x8] sm:$0xff] %v1943
        %2937 = vst [vmem:[#allocation2 + $0x10] sm:$0xff] %v1945
        %2938 = vst [vmem:[#allocation2 + $0x18] sm:$0xff] %v1947
        %2939 = vst [vmem:[#allocation2 + $0x20] sm:$0xff] %v1949
        %2940 = vst [vmem:[#allocation2 + $0x28] sm:$0xff] %v1951
        %2941 = vst [vmem:[#allocation2 + $0x30] sm:$0xff] %v1953
        %2942 = vst [vmem:[#allocation2 + $0x38] sm:$0xff] %v1955
        %2943 = vst [vmem:[#allocation3] sm:$0xff] %v2799
        %2944 = vst [vmem:[#allocation3 + $0x8] sm:$0xff] %v2801
        %2945 = vst [vmem:[#allocation3 + $0x10] sm:$0xff] %v2803
        %2946 = vst [vmem:[#allocation3 + $0x18] sm:$0xff] %v2805
        %2947 = vst [vmem:[#allocation3 + $0x20] sm:$0xff] %v2807
        %2948 = vst [vmem:[#allocation3 + $0x28] sm:$0xff] %v2809
        %2949 = vst [vmem:[#allocation3 + $0x30] sm:$0xff] %v2811
        %2950 = vst [vmem:[#allocation3 + $0x38] sm:$0xff] %v2813
        %2951 = vst [vmem:[#allocation3 + $0x80] sm:$0xff] %v2815
        %2952 = vst [vmem:[#allocation3 + $0x88] sm:$0xff] %v2817
        %2953 = vst [vmem:[#allocation3 + $0x90] sm:$0xff] %v2819
        %2954 = vst [vmem:[#allocation3 + $0x98] sm:$0xff] %v2821
        %2955 = vst [vmem:[#allocation3 + $0xa0] sm:$0xff] %v2823
        %2956 = vst [vmem:[#allocation3 + $0xa8] sm:$0xff] %v2825
        %2957 = vst [vmem:[#allocation3 + $0xb0] sm:$0xff] %v2827
        %2958 = vst [vmem:[#allocation3 + $0xb8] sm:$0xff] %v2829
        %2959 = vst [vmem:[#allocation4] sm:$0xff] %v2903
        %2960 = vst [vmem:[#allocation4 + $0x8] sm:$0xff] %v2905
        %2961 = vst [vmem:[#allocation4 + $0x10] sm:$0xff] %v2907
        %2962 = vst [vmem:[#allocation4 + $0x18] sm:$0xff] %v2909
        %2963 = vst [vmem:[#allocation4 + $0x20] sm:$0xff] %v2911
        %2964 = vst [vmem:[#allocation4 + $0x28] sm:$0xff] %v2913
        %2965 = vst [vmem:[#allocation4 + $0x30] sm:$0xff] %v2915
        %2966 = vst [vmem:[#allocation4 + $0x38] sm:$0xff] %v2917
        %2967 = vst [vmem:[#allocation4 + $0x80] sm:$0xff] %v2919
        %2968 = vst [vmem:[#allocation4 + $0x88] sm:$0xff] %v2921
        %2969 = vst [vmem:[#allocation4 + $0x90] sm:$0xff] %v2923
        %2970 = vst [vmem:[#allocation4 + $0x98] sm:$0xff] %v2925
        %2971 = vst [vmem:[#allocation4 + $0xa0] sm:$0xff] %v2927
        %2972 = vst [vmem:[#allocation4 + $0xa8] sm:$0xff] %v2929
        %2973 = vst [vmem:[#allocation4 + $0xb0] sm:$0xff] %v2931
        %2974 = vst [vmem:[#allocation4 + $0xb8] sm:$0xff] %v2933
        %s2975 = scalar_lea.vmem [#allocation2], 64
        %2976 = vst [vmem:[%s2975] sm:$0xff] %v1942
        %2977 = vst [vmem:[%s2975 + $0x8] sm:$0xff] %v1944
        %2978 = vst [vmem:[%s2975 + $0x10] sm:$0xff] %v1946
        %2979 = vst [vmem:[%s2975 + $0x18] sm:$0xff] %v1948
        %2980 = vst [vmem:[%s2975 + $0x20] sm:$0xff] %v1950
        %2981 = vst [vmem:[%s2975 + $0x28] sm:$0xff] %v1952
        %2982 = vst [vmem:[%s2975 + $0x30] sm:$0xff] %v1954
        %2983 = vst [vmem:[%s2975 + $0x38] sm:$0xff] %v1956
        %s2984 = scalar_lea.vmem [#allocation3], 64
        %2985 = vst [vmem:[%s2984] sm:$0xff] %v2800
        %2986 = vst [vmem:[%s2984 + $0x8] sm:$0xff] %v2802
        %2987 = vst [vmem:[%s2984 + $0x10] sm:$0xff] %v2804
        %2988 = vst [vmem:[%s2984 + $0x18] sm:$0xff] %v2806
        %2989 = vst [vmem:[%s2984 + $0x20] sm:$0xff] %v2808
        %2990 = vst [vmem:[%s2984 + $0x28] sm:$0xff] %v2810
        %2991 = vst [vmem:[%s2984 + $0x30] sm:$0xff] %v2812
        %2992 = vst [vmem:[%s2984 + $0x38] sm:$0xff] %v2814
        %2993 = vst [vmem:[%s2984 + $0x80] sm:$0xff] %v2816
        %2994 = vst [vmem:[%s2984 + $0x88] sm:$0xff] %v2818
        %2995 = vst [vmem:[%s2984 + $0x90] sm:$0xff] %v2820
        %2996 = vst [vmem:[%s2984 + $0x98] sm:$0xff] %v2822
        %2997 = vst [vmem:[%s2984 + $0xa0] sm:$0xff] %v2824
        %2998 = vst [vmem:[%s2984 + $0xa8] sm:$0xff] %v2826
        %2999 = vst [vmem:[%s2984 + $0xb0] sm:$0xff] %v2828
        %3000 = vst [vmem:[%s2984 + $0xb8] sm:$0xff] %v2830
        %s3001 = scalar_lea.vmem [#allocation4], 64
        %3002 = vst [vmem:[%s3001] sm:$0xff] %v2904
        %3003 = vst [vmem:[%s3001 + $0x8] sm:$0xff] %v2906
        %3004 = vst [vmem:[%s3001 + $0x10] sm:$0xff] %v2908
        %3005 = vst [vmem:[%s3001 + $0x18] sm:$0xff] %v2910
        %3006 = vst [vmem:[%s3001 + $0x20] sm:$0xff] %v2912
        %3007 = vst [vmem:[%s3001 + $0x28] sm:$0xff] %v2914
        %3008 = vst [vmem:[%s3001 + $0x30] sm:$0xff] %v2916
        %3009 = vst [vmem:[%s3001 + $0x38] sm:$0xff] %v2918
        %3010 = vst [vmem:[%s3001 + $0x80] sm:$0xff] %v2920
        %3011 = vst [vmem:[%s3001 + $0x88] sm:$0xff] %v2922
        %3012 = vst [vmem:[%s3001 + $0x90] sm:$0xff] %v2924
        %3013 = vst [vmem:[%s3001 + $0x98] sm:$0xff] %v2926
        %3014 = vst [vmem:[%s3001 + $0xa0] sm:$0xff] %v2928
        %3015 = vst [vmem:[%s3001 + $0xa8] sm:$0xff] %v2930
        %3016 = vst [vmem:[%s3001 + $0xb0] sm:$0xff] %v2932
        %3017 = vst [vmem:[%s3001 + $0xb8] sm:$0xff] %v2934
        %v3018 = vld [vmem:[#allocation2] sm:$0xff]
        %v3019 = vld [vmem:[#allocation2 + $0x8] sm:$0xff]
        %v3020 = vld [vmem:[#allocation2 + $0x10] sm:$0xff]
        %v3021 = vld [vmem:[#allocation2 + $0x18] sm:$0xff]
        %v3022 = vld [vmem:[#allocation2 + $0x20] sm:$0xff]
        %v3023 = vld [vmem:[#allocation2 + $0x28] sm:$0xff]
        %v3024 = vld [vmem:[#allocation2 + $0x30] sm:$0xff]
        %v3025 = vld [vmem:[#allocation2 + $0x38] sm:$0xff]
        %v3026 = vld [vmem:[#allocation2 + $0x40] sm:$0xff]
        %v3027 = vld [vmem:[#allocation2 + $0x48] sm:$0xff]
        %v3028 = vld [vmem:[#allocation2 + $0x50] sm:$0xff]
        %v3029 = vld [vmem:[#allocation2 + $0x58] sm:$0xff]
        %v3030 = vld [vmem:[#allocation2 + $0x60] sm:$0xff]
        %v3031 = vld [vmem:[#allocation2 + $0x68] sm:$0xff]
        %v3032 = vld [vmem:[#allocation2 + $0x70] sm:$0xff]
        %v3033 = vld [vmem:[#allocation2 + $0x78] sm:$0xff]
        loop: start=0, step=1, limit=2
        $region85: #{tpu_custom_call.1} parent=51 // loop_pre_header
          _
        $region86: #{tpu_custom_call.1} parent=51 // loop_header
          %s3035 = sphi 0, %s3039
          %p3036 = scmp.ge.s32.totalorder %s3035, 2
          %v3040 = vphi -inf, %v3431
          %v3041 = vphi -inf, %v3432
          %v3042 = vphi -inf, %v3433
          %v3043 = vphi -inf, %v3434
          %v3044 = vphi -inf, %v3435
          %v3045 = vphi -inf, %v3436
          %v3046 = vphi -inf, %v3437
          %v3047 = vphi -inf, %v3438
          %v3048 = vphi -inf, %v3439
          %v3049 = vphi -inf, %v3440
          %v3050 = vphi -inf, %v3441
          %v3051 = vphi -inf, %v3442
          %v3052 = vphi -inf, %v3443
          %v3053 = vphi -inf, %v3444
          %v3054 = vphi -inf, %v3445
          %v3055 = vphi -inf, %v3446
          %v3056 = vphi -inf, %v3447
          %v3057 = vphi -inf, %v3448
          %v3058 = vphi -inf, %v3449
          %v3059 = vphi -inf, %v3450
          %v3060 = vphi -inf, %v3451
          %v3061 = vphi -inf, %v3452
          %v3062 = vphi -inf, %v3453
          %v3063 = vphi -inf, %v3454
          %v3064 = vphi -inf, %v3455
          %v3065 = vphi -inf, %v3456
          %v3066 = vphi -inf, %v3457
          %v3067 = vphi -inf, %v3458
          %v3068 = vphi -inf, %v3459
          %v3069 = vphi -inf, %v3460
          %v3070 = vphi -inf, %v3461
          %v3071 = vphi -inf, %v3462
          %v3072 = vphi 0.0, %v3751
          %v3073 = vphi 0.0, %v3752
          %v3074 = vphi 0.0, %v3753
          %v3075 = vphi 0.0, %v3754
          %v3076 = vphi 0.0, %v3755
          %v3077 = vphi 0.0, %v3756
          %v3078 = vphi 0.0, %v3757
          %v3079 = vphi 0.0, %v3758
          %v3080 = vphi 0.0, %v3759
          %v3081 = vphi 0.0, %v3760
          %v3082 = vphi 0.0, %v3761
          %v3083 = vphi 0.0, %v3762
          %v3084 = vphi 0.0, %v3763
          %v3085 = vphi 0.0, %v3764
          %v3086 = vphi 0.0, %v3765
          %v3087 = vphi 0.0, %v3766
          %v3088 = vphi 0.0, %v3767
          %v3089 = vphi 0.0, %v3768
          %v3090 = vphi 0.0, %v3769
          %v3091 = vphi 0.0, %v3770
          %v3092 = vphi 0.0, %v3771
          %v3093 = vphi 0.0, %v3772
          %v3094 = vphi 0.0, %v3773
          %v3095 = vphi 0.0, %v3774
          %v3096 = vphi 0.0, %v3775
          %v3097 = vphi 0.0, %v3776
          %v3098 = vphi 0.0, %v3777
          %v3099 = vphi 0.0, %v3778
          %v3100 = vphi 0.0, %v3779
          %v3101 = vphi 0.0, %v3780
          %v3102 = vphi 0.0, %v3781
          %v3103 = vphi 0.0, %v3782
          %v3104 = vphi 0.0, %v4025
          %v3105 = vphi 0.0, %v4026
          %v3106 = vphi 0.0, %v4027
          %v3107 = vphi 0.0, %v4028
          %v3108 = vphi 0.0, %v4029
          %v3109 = vphi 0.0, %v4030
          %v3110 = vphi 0.0, %v4031
          %v3111 = vphi 0.0, %v4032
          %v3112 = vphi 0.0, %v4033
          %v3113 = vphi 0.0, %v4034
          %v3114 = vphi 0.0, %v4035
          %v3115 = vphi 0.0, %v4036
          %v3116 = vphi 0.0, %v4037
          %v3117 = vphi 0.0, %v4038
          %v3118 = vphi 0.0, %v4039
          %v3119 = vphi 0.0, %v4040
          %v3120 = vphi 0.0, %v4041
          %v3121 = vphi 0.0, %v4042
          %v3122 = vphi 0.0, %v4043
          %v3123 = vphi 0.0, %v4044
          %v3124 = vphi 0.0, %v4045
          %v3125 = vphi 0.0, %v4046
          %v3126 = vphi 0.0, %v4047
          %v3127 = vphi 0.0, %v4048
          %v3128 = vphi 0.0, %v4049
          %v3129 = vphi 0.0, %v4050
          %v3130 = vphi 0.0, %v4051
          %v3131 = vphi 0.0, %v4052
          %v3132 = vphi 0.0, %v4053
          %v3133 = vphi 0.0, %v4054
          %v3134 = vphi 0.0, %v4055
          %v3135 = vphi 0.0, %v4056
        $region87: #{tpu_custom_call.1} parent=51 // loop_header_branch
          %3038 = sbr.rel (%p3036) target = $region91
        $region88: #{tpu_custom_call.1} parent=51 // loop_body
          %s3136 = smul.u32 %s3035, 16
          %s3137 = smul.addr %s3136, 8
          %s3138 = scalar_lea.vmem [#allocation3], %s3137
          %v3139 = vld [vmem:[%s3138] sm:$0xff]
          %v3140 = vld [vmem:[%s3138 + $0x8] sm:$0xff]
          %v3141 = vld [vmem:[%s3138 + $0x10] sm:$0xff]
          %v3142 = vld [vmem:[%s3138 + $0x18] sm:$0xff]
          %v3143 = vld [vmem:[%s3138 + $0x20] sm:$0xff]
          %v3144 = vld [vmem:[%s3138 + $0x28] sm:$0xff]
          %v3145 = vld [vmem:[%s3138 + $0x30] sm:$0xff]
          %v3146 = vld [vmem:[%s3138 + $0x38] sm:$0xff]
          %v3147 = vld [vmem:[%s3138 + $0x40] sm:$0xff]
          %v3148 = vld [vmem:[%s3138 + $0x48] sm:$0xff]
          %v3149 = vld [vmem:[%s3138 + $0x50] sm:$0xff]
          %v3150 = vld [vmem:[%s3138 + $0x58] sm:$0xff]
          %v3151 = vld [vmem:[%s3138 + $0x60] sm:$0xff]
          %v3152 = vld [vmem:[%s3138 + $0x68] sm:$0xff]
          %v3153 = vld [vmem:[%s3138 + $0x70] sm:$0xff]
          %v3154 = vld [vmem:[%s3138 + $0x78] sm:$0xff]
          %s3155 = smul.addr %s3136, 8
          %s3156 = scalar_lea.vmem [#allocation4], %s3155
          %v3157 = vld [vmem:[%s3156] sm:$0xff]
          %v3158 = vld [vmem:[%s3156 + $0x8] sm:$0xff]
          %v3159 = vld [vmem:[%s3156 + $0x10] sm:$0xff]
          %v3160 = vld [vmem:[%s3156 + $0x18] sm:$0xff]
          %v3161 = vld [vmem:[%s3156 + $0x20] sm:$0xff]
          %v3162 = vld [vmem:[%s3156 + $0x28] sm:$0xff]
          %v3163 = vld [vmem:[%s3156 + $0x30] sm:$0xff]
          %v3164 = vld [vmem:[%s3156 + $0x38] sm:$0xff]
          %v3165 = vld [vmem:[%s3156 + $0x40] sm:$0xff]
          %v3166 = vld [vmem:[%s3156 + $0x48] sm:$0xff]
          %v3167 = vld [vmem:[%s3156 + $0x50] sm:$0xff]
          %v3168 = vld [vmem:[%s3156 + $0x58] sm:$0xff]
          %v3169 = vld [vmem:[%s3156 + $0x60] sm:$0xff]
          %v3170 = vld [vmem:[%s3156 + $0x68] sm:$0xff]
          %v3171 = vld [vmem:[%s3156 + $0x70] sm:$0xff]
          %v3172 = vld [vmem:[%s3156 + $0x78] sm:$0xff]
          %3173 = vmatprep.subr.bf16.mxu0 0
          %3174 = vmatpush1.bf16.xpose.msra.mxu0 %v3139
          %3175 = vmatprep.subr.bf16.mxu0 0
          %3176 = vmatpush1.bf16.xpose.msra.mxu0 %v3140
          %3177 = vmatprep.subr.bf16.mxu0 0
          %3178 = vmatpush1.bf16.xpose.msra.mxu0 %v3141
          %3179 = vmatprep.subr.bf16.mxu0 0
          %3180 = vmatpush1.bf16.xpose.msra.mxu0 %v3142
          %3181 = vmatprep.subr.bf16.mxu0 0
          %3182 = vmatpush1.bf16.xpose.msra.mxu0 %v3143
          %3183 = vmatprep.subr.bf16.mxu0 0
          %3184 = vmatpush1.bf16.xpose.msra.mxu0 %v3144
          %3185 = vmatprep.subr.bf16.mxu0 0
          %3186 = vmatpush1.bf16.xpose.msra.mxu0 %v3145
          %3187 = vmatprep.subr.bf16.mxu0 0
          %3188 = vmatpush1.bf16.xpose.msra.mxu0 %v3146
          %3189 = vmatprep.subr.bf16.mxu0 0
          %3190 = vmatpush1.bf16.xpose.msra.mxu0 0
          %3191 = vmatprep.subr.bf16.mxu0 0
          %3192 = vmatpush1.bf16.xpose.msra.mxu0 0
          %3193 = vmatprep.subr.bf16.mxu0 0
          %3194 = vmatpush1.bf16.xpose.msra.mxu0 0
          %3195 = vmatprep.subr.bf16.mxu0 0
          %3196 = vmatpush1.bf16.xpose.msra.mxu0 0
          %3197 = vmatprep.subr.bf16.mxu0 0
          %3198 = vmatpush1.bf16.xpose.msra.mxu0 0
          %3199 = vmatprep.subr.bf16.mxu0 0
          %3200 = vmatpush1.bf16.xpose.msra.mxu0 0
          %3201 = vmatprep.subr.bf16.mxu0 0
          %3202 = vmatpush1.bf16.xpose.msra.mxu0 0
          %3203 = vmatprep.subr.bf16.mxu0 0
          %3204 = vmatpush1.bf16.xpose.msra.mxu0 0
          %3205 = vmatprep.mubr.bf16.mxu0 0
          %3206 = vmatmul.mubr.bf16.gmra.mrb[0].mxu0 %v3018
          %v3207 = vpop.f32.mrb[0].mxu0
          %v3208 = vadd.f32 0.0, %v3207
          %v3209 = vpop.f32.mrb[0].mxu0
          %v3210 = vpop.f32.mrb[0].mxu0
          %v3211 = vadd.f32 0.0, %v3210
          %v3212 = vpop.f32.mrb[0].mxu0
          %3213 = vmatprep.mubr.bf16.mxu0 0
          %3214 = vmatmul.mubr.bf16.gmra.mrb[0].mxu0 %v3019
          %v3215 = vpop.f32.mrb[0].mxu0
          %v3216 = vadd.f32 0.0, %v3215
          %v3217 = vpop.f32.mrb[0].mxu0
          %v3218 = vpop.f32.mrb[0].mxu0
          %v3219 = vadd.f32 0.0, %v3218
          %v3220 = vpop.f32.mrb[0].mxu0
          %3221 = vmatprep.mubr.bf16.mxu0 0
          %3222 = vmatmul.mubr.bf16.gmra.mrb[0].mxu0 %v3020
          %v3223 = vpop.f32.mrb[0].mxu0
          %v3224 = vadd.f32 0.0, %v3223
          %v3225 = vpop.f32.mrb[0].mxu0
          %v3226 = vpop.f32.mrb[0].mxu0
          %v3227 = vadd.f32 0.0, %v3226
          %v3228 = vpop.f32.mrb[0].mxu0
          %3229 = vmatprep.mubr.bf16.mxu0 0
          %3230 = vmatmul.mubr.bf16.gmra.mrb[0].mxu0 %v3021
          %v3231 = vpop.f32.mrb[0].mxu0
          %v3232 = vadd.f32 0.0, %v3231
          %v3233 = vpop.f32.mrb[0].mxu0
          %v3234 = vpop.f32.mrb[0].mxu0
          %v3235 = vadd.f32 0.0, %v3234
          %v3236 = vpop.f32.mrb[0].mxu0
          %3237 = vmatprep.mubr.bf16.mxu0 0
          %3238 = vmatmul.mubr.bf16.gmra.mrb[0].mxu0 %v3022
          %v3239 = vpop.f32.mrb[0].mxu0
          %v3240 = vadd.f32 0.0, %v3239
          %v3241 = vpop.f32.mrb[0].mxu0
          %v3242 = vpop.f32.mrb[0].mxu0
          %v3243 = vadd.f32 0.0, %v3242
          %v3244 = vpop.f32.mrb[0].mxu0
          %3245 = vmatprep.mubr.bf16.mxu0 0
          %3246 = vmatmul.mubr.bf16.gmra.mrb[0].mxu0 %v3023
          %v3247 = vpop.f32.mrb[0].mxu0
          %v3248 = vadd.f32 0.0, %v3247
          %v3249 = vpop.f32.mrb[0].mxu0
          %v3250 = vpop.f32.mrb[0].mxu0
          %v3251 = vadd.f32 0.0, %v3250
          %v3252 = vpop.f32.mrb[0].mxu0
          %3253 = vmatprep.mubr.bf16.mxu0 0
          %3254 = vmatmul.mubr.bf16.gmra.mrb[0].mxu0 %v3024
          %v3255 = vpop.f32.mrb[0].mxu0
          %v3256 = vadd.f32 0.0, %v3255
          %v3257 = vpop.f32.mrb[0].mxu0
          %v3258 = vpop.f32.mrb[0].mxu0
          %v3259 = vadd.f32 0.0, %v3258
          %v3260 = vpop.f32.mrb[0].mxu0
          %3261 = vmatprep.mubr.bf16.mxu0 0
          %3262 = vmatmul.mubr.bf16.gmra.mrb[0].mxu0 %v3025
          %v3263 = vpop.f32.mrb[0].mxu0
          %v3264 = vadd.f32 0.0, %v3263
          %v3265 = vpop.f32.mrb[0].mxu0
          %v3266 = vpop.f32.mrb[0].mxu0
          %v3267 = vadd.f32 0.0, %v3266
          %v3268 = vpop.f32.mrb[0].mxu0
          %3269 = vdwg.mxu0
          %3270 = vmatprep.subr.bf16.mxu0 0
          %3271 = vmatpush1.bf16.xpose.msra.mxu0 %v3147
          %3272 = vmatprep.subr.bf16.mxu0 0
          %3273 = vmatpush1.bf16.xpose.msra.mxu0 %v3148
          %3274 = vmatprep.subr.bf16.mxu0 0
          %3275 = vmatpush1.bf16.xpose.msra.mxu0 %v3149
          %3276 = vmatprep.subr.bf16.mxu0 0
          %3277 = vmatpush1.bf16.xpose.msra.mxu0 %v3150
          %3278 = vmatprep.subr.bf16.mxu0 0
          %3279 = vmatpush1.bf16.xpose.msra.mxu0 %v3151
          %3280 = vmatprep.subr.bf16.mxu0 0
          %3281 = vmatpush1.bf16.xpose.msra.mxu0 %v3152
          %3282 = vmatprep.subr.bf16.mxu0 0
          %3283 = vmatpush1.bf16.xpose.msra.mxu0 %v3153
          %3284 = vmatprep.subr.bf16.mxu0 0
          %3285 = vmatpush1.bf16.xpose.msra.mxu0 %v3154
          %3286 = vmatprep.subr.bf16.mxu0 0
          %3287 = vmatpush1.bf16.xpose.msra.mxu0 0
          %3288 = vmatprep.subr.bf16.mxu0 0
          %3289 = vmatpush1.bf16.xpose.msra.mxu0 0
          %3290 = vmatprep.subr.bf16.mxu0 0
          %3291 = vmatpush1.bf16.xpose.msra.mxu0 0
          %3292 = vmatprep.subr.bf16.mxu0 0
          %3293 = vmatpush1.bf16.xpose.msra.mxu0 0
          %3294 = vmatprep.subr.bf16.mxu0 0
          %3295 = vmatpush1.bf16.xpose.msra.mxu0 0
          %3296 = vmatprep.subr.bf16.mxu0 0
          %3297 = vmatpush1.bf16.xpose.msra.mxu0 0
          %3298 = vmatprep.subr.bf16.mxu0 0
          %3299 = vmatpush1.bf16.xpose.msra.mxu0 0
          %3300 = vmatprep.subr.bf16.mxu0 0
          %3301 = vmatpush1.bf16.xpose.msra.mxu0 0
          %3302 = vmatprep.mubr.bf16.mxu0 0
          %3303 = vmatmul.mubr.bf16.gmra.mrb[0].mxu0 %v3026
          %v3304 = vpop.f32.mrb[0].mxu0
          %v3305 = vadd.f32 0.0, %v3304
          %v3306 = vpop.f32.mrb[0].mxu0
          %v3307 = vpop.f32.mrb[0].mxu0
          %v3308 = vadd.f32 0.0, %v3307
          %v3309 = vpop.f32.mrb[0].mxu0
          %3310 = vmatprep.mubr.bf16.mxu0 0
          %3311 = vmatmul.mubr.bf16.gmra.mrb[0].mxu0 %v3027
          %v3312 = vpop.f32.mrb[0].mxu0
          %v3313 = vadd.f32 0.0, %v3312
          %v3314 = vpop.f32.mrb[0].mxu0
          %v3315 = vpop.f32.mrb[0].mxu0
          %v3316 = vadd.f32 0.0, %v3315
          %v3317 = vpop.f32.mrb[0].mxu0
          %3318 = vmatprep.mubr.bf16.mxu0 0
          %3319 = vmatmul.mubr.bf16.gmra.mrb[0].mxu0 %v3028
          %v3320 = vpop.f32.mrb[0].mxu0
          %v3321 = vadd.f32 0.0, %v3320
          %v3322 = vpop.f32.mrb[0].mxu0
          %v3323 = vpop.f32.mrb[0].mxu0
          %v3324 = vadd.f32 0.0, %v3323
          %v3325 = vpop.f32.mrb[0].mxu0
          %3326 = vmatprep.mubr.bf16.mxu0 0
          %3327 = vmatmul.mubr.bf16.gmra.mrb[0].mxu0 %v3029
          %v3328 = vpop.f32.mrb[0].mxu0
          %v3329 = vadd.f32 0.0, %v3328
          %v3330 = vpop.f32.mrb[0].mxu0
          %v3331 = vpop.f32.mrb[0].mxu0
          %v3332 = vadd.f32 0.0, %v3331
          %v3333 = vpop.f32.mrb[0].mxu0
          %3334 = vmatprep.mubr.bf16.mxu0 0
          %3335 = vmatmul.mubr.bf16.gmra.mrb[0].mxu0 %v3030
          %v3336 = vpop.f32.mrb[0].mxu0
          %v3337 = vadd.f32 0.0, %v3336
          %v3338 = vpop.f32.mrb[0].mxu0
          %v3339 = vpop.f32.mrb[0].mxu0
          %v3340 = vadd.f32 0.0, %v3339
          %v3341 = vpop.f32.mrb[0].mxu0
          %3342 = vmatprep.mubr.bf16.mxu0 0
          %3343 = vmatmul.mubr.bf16.gmra.mrb[0].mxu0 %v3031
          %v3344 = vpop.f32.mrb[0].mxu0
          %v3345 = vadd.f32 0.0, %v3344
          %v3346 = vpop.f32.mrb[0].mxu0
          %v3347 = vpop.f32.mrb[0].mxu0
          %v3348 = vadd.f32 0.0, %v3347
          %v3349 = vpop.f32.mrb[0].mxu0
          %3350 = vmatprep.mubr.bf16.mxu0 0
          %3351 = vmatmul.mubr.bf16.gmra.mrb[0].mxu0 %v3032
          %v3352 = vpop.f32.mrb[0].mxu0
          %v3353 = vadd.f32 0.0, %v3352
          %v3354 = vpop.f32.mrb[0].mxu0
          %v3355 = vpop.f32.mrb[0].mxu0
          %v3356 = vadd.f32 0.0, %v3355
          %v3357 = vpop.f32.mrb[0].mxu0
          %3358 = vmatprep.mubr.bf16.mxu0 0
          %3359 = vmatmul.mubr.bf16.gmra.mrb[0].mxu0 %v3033
          %v3360 = vpop.f32.mrb[0].mxu0
          %v3361 = vadd.f32 0.0, %v3360
          %v3362 = vpop.f32.mrb[0].mxu0
          %v3363 = vpop.f32.mrb[0].mxu0
          %v3364 = vadd.f32 0.0, %v3363
          %v3365 = vpop.f32.mrb[0].mxu0
          %3366 = vdwg.mxu0
          %3367 = vmax.xlane.f32.xlu0 %v3208
          %v3368 = vpop.xlane.xlu0 %3367
          %3369 = vmax.xlane.f32.xlu0 %v3211
          %v3370 = vpop.xlane.xlu0 %3369
          %3371 = vmax.xlane.f32.xlu0 %v3216
          %v3372 = vpop.xlane.xlu0 %3371
          %3373 = vmax.xlane.f32.xlu0 %v3219
          %v3374 = vpop.xlane.xlu0 %3373
          %3375 = vmax.xlane.f32.xlu0 %v3224
          %v3376 = vpop.xlane.xlu0 %3375
          %3377 = vmax.xlane.f32.xlu0 %v3227
          %v3378 = vpop.xlane.xlu0 %3377
          %3379 = vmax.xlane.f32.xlu0 %v3232
          %v3380 = vpop.xlane.xlu0 %3379
          %3381 = vmax.xlane.f32.xlu0 %v3235
          %v3382 = vpop.xlane.xlu0 %3381
          %3383 = vmax.xlane.f32.xlu0 %v3240
          %v3384 = vpop.xlane.xlu0 %3383
          %3385 = vmax.xlane.f32.xlu0 %v3243
          %v3386 = vpop.xlane.xlu0 %3385
          %3387 = vmax.xlane.f32.xlu0 %v3248
          %v3388 = vpop.xlane.xlu0 %3387
          %3389 = vmax.xlane.f32.xlu0 %v3251
          %v3390 = vpop.xlane.xlu0 %3389
          %3391 = vmax.xlane.f32.xlu0 %v3256
          %v3392 = vpop.xlane.xlu0 %3391
          %3393 = vmax.xlane.f32.xlu0 %v3259
          %v3394 = vpop.xlane.xlu0 %3393
          %3395 = vmax.xlane.f32.xlu0 %v3264
          %v3396 = vpop.xlane.xlu0 %3395
          %3397 = vmax.xlane.f32.xlu0 %v3267
          %v3398 = vpop.xlane.xlu0 %3397
          %3399 = vmax.xlane.f32.xlu0 %v3305
          %v3400 = vpop.xlane.xlu0 %3399
          %3401 = vmax.xlane.f32.xlu0 %v3308
          %v3402 = vpop.xlane.xlu0 %3401
          %3403 = vmax.xlane.f32.xlu0 %v3313
          %v3404 = vpop.xlane.xlu0 %3403
          %3405 = vmax.xlane.f32.xlu0 %v3316
          %v3406 = vpop.xlane.xlu0 %3405
          %3407 = vmax.xlane.f32.xlu0 %v3321
          %v3408 = vpop.xlane.xlu0 %3407
          %3409 = vmax.xlane.f32.xlu0 %v3324
          %v3410 = vpop.xlane.xlu0 %3409
          %3411 = vmax.xlane.f32.xlu0 %v3329
          %v3412 = vpop.xlane.xlu0 %3411
          %3413 = vmax.xlane.f32.xlu0 %v3332
          %v3414 = vpop.xlane.xlu0 %3413
          %3415 = vmax.xlane.f32.xlu0 %v3337
          %v3416 = vpop.xlane.xlu0 %3415
          %3417 = vmax.xlane.f32.xlu0 %v3340
          %v3418 = vpop.xlane.xlu0 %3417
          %3419 = vmax.xlane.f32.xlu0 %v3345
          %v3420 = vpop.xlane.xlu0 %3419
          %3421 = vmax.xlane.f32.xlu0 %v3348
          %v3422 = vpop.xlane.xlu0 %3421
          %3423 = vmax.xlane.f32.xlu0 %v3353
          %v3424 = vpop.xlane.xlu0 %3423
          %3425 = vmax.xlane.f32.xlu0 %v3356
          %v3426 = vpop.xlane.xlu0 %3425
          %3427 = vmax.xlane.f32.xlu0 %v3361
          %v3428 = vpop.xlane.xlu0 %3427
          %3429 = vmax.xlane.f32.xlu0 %v3364
          %v3430 = vpop.xlane.xlu0 %3429
          %v3431 = vmax.f32 %v3040, %v3368
          %v3432 = vmax.f32 %v3041, %v3370
          %v3433 = vmax.f32 %v3042, %v3372
          %v3434 = vmax.f32 %v3043, %v3374
          %v3435 = vmax.f32 %v3044, %v3376
          %v3436 = vmax.f32 %v3045, %v3378
          %v3437 = vmax.f32 %v3046, %v3380
          %v3438 = vmax.f32 %v3047, %v3382
          %v3439 = vmax.f32 %v3048, %v3384
          %v3440 = vmax.f32 %v3049, %v3386
          %v3441 = vmax.f32 %v3050, %v3388
          %v3442 = vmax.f32 %v3051, %v3390
          %v3443 = vmax.f32 %v3052, %v3392
          %v3444 = vmax.f32 %v3053, %v3394
          %v3445 = vmax.f32 %v3054, %v3396
          %v3446 = vmax.f32 %v3055, %v3398
          %v3447 = vmax.f32 %v3056, %v3400
          %v3448 = vmax.f32 %v3057, %v3402
          %v3449 = vmax.f32 %v3058, %v3404
          %v3450 = vmax.f32 %v3059, %v3406
          %v3451 = vmax.f32 %v3060, %v3408
          %v3452 = vmax.f32 %v3061, %v3410
          %v3453 = vmax.f32 %v3062, %v3412
          %v3454 = vmax.f32 %v3063, %v3414
          %v3455 = vmax.f32 %v3064, %v3416
          %v3456 = vmax.f32 %v3065, %v3418
          %v3457 = vmax.f32 %v3066, %v3420
          %v3458 = vmax.f32 %v3067, %v3422
          %v3459 = vmax.f32 %v3068, %v3424
          %v3460 = vmax.f32 %v3069, %v3426
          %v3461 = vmax.f32 %v3070, %v3428
          %v3462 = vmax.f32 %v3071, %v3430
          %v3463 = vsub.f32 %v3040, %v3431
          %v3464 = vsub.f32 %v3041, %v3432
          %v3465 = vsub.f32 %v3042, %v3433
          %v3466 = vsub.f32 %v3043, %v3434
          %v3467 = vsub.f32 %v3044, %v3435
          %v3468 = vsub.f32 %v3045, %v3436
          %v3469 = vsub.f32 %v3046, %v3437
          %v3470 = vsub.f32 %v3047, %v3438
          %v3471 = vsub.f32 %v3048, %v3439
          %v3472 = vsub.f32 %v3049, %v3440
          %v3473 = vsub.f32 %v3050, %v3441
          %v3474 = vsub.f32 %v3051, %v3442
          %v3475 = vsub.f32 %v3052, %v3443
          %v3476 = vsub.f32 %v3053, %v3444
          %v3477 = vsub.f32 %v3054, %v3445
          %v3478 = vsub.f32 %v3055, %v3446
          %v3479 = vsub.f32 %v3056, %v3447
          %v3480 = vsub.f32 %v3057, %v3448
          %v3481 = vsub.f32 %v3058, %v3449
          %v3482 = vsub.f32 %v3059, %v3450
          %v3483 = vsub.f32 %v3060, %v3451
          %v3484 = vsub.f32 %v3061, %v3452
          %v3485 = vsub.f32 %v3062, %v3453
          %v3486 = vsub.f32 %v3063, %v3454
          %v3487 = vsub.f32 %v3064, %v3455
          %v3488 = vsub.f32 %v3065, %v3456
          %v3489 = vsub.f32 %v3066, %v3457
          %v3490 = vsub.f32 %v3067, %v3458
          %v3491 = vsub.f32 %v3068, %v3459
          %v3492 = vsub.f32 %v3069, %v3460
          %v3493 = vsub.f32 %v3070, %v3461
          %v3494 = vsub.f32 %v3071, %v3462
          %v3495 = vmul.f32 %v3463, 1.442695
          %v3496 = vpow.pop %v3495
          %v3497 = vmul.f32 %v3464, 1.442695
          %v3498 = vpow.pop %v3497
          %v3499 = vmul.f32 %v3465, 1.442695
          %v3500 = vpow.pop %v3499
          %v3501 = vmul.f32 %v3466, 1.442695
          %v3502 = vpow.pop %v3501
          %v3503 = vmul.f32 %v3467, 1.442695
          %v3504 = vpow.pop %v3503
          %v3505 = vmul.f32 %v3468, 1.442695
          %v3506 = vpow.pop %v3505
          %v3507 = vmul.f32 %v3469, 1.442695
          %v3508 = vpow.pop %v3507
          %v3509 = vmul.f32 %v3470, 1.442695
          %v3510 = vpow.pop %v3509
          %v3511 = vmul.f32 %v3471, 1.442695
          %v3512 = vpow.pop %v3511
          %v3513 = vmul.f32 %v3472, 1.442695
          %v3514 = vpow.pop %v3513
          %v3515 = vmul.f32 %v3473, 1.442695
          %v3516 = vpow.pop %v3515
          %v3517 = vmul.f32 %v3474, 1.442695
          %v3518 = vpow.pop %v3517
          %v3519 = vmul.f32 %v3475, 1.442695
          %v3520 = vpow.pop %v3519
          %v3521 = vmul.f32 %v3476, 1.442695
          %v3522 = vpow.pop %v3521
          %v3523 = vmul.f32 %v3477, 1.442695
          %v3524 = vpow.pop %v3523
          %v3525 = vmul.f32 %v3478, 1.442695
          %v3526 = vpow.pop %v3525
          %v3527 = vmul.f32 %v3479, 1.442695
          %v3528 = vpow.pop %v3527
          %v3529 = vmul.f32 %v3480, 1.442695
          %v3530 = vpow.pop %v3529
          %v3531 = vmul.f32 %v3481, 1.442695
          %v3532 = vpow.pop %v3531
          %v3533 = vmul.f32 %v3482, 1.442695
          %v3534 = vpow.pop %v3533
          %v3535 = vmul.f32 %v3483, 1.442695
          %v3536 = vpow.pop %v3535
          %v3537 = vmul.f32 %v3484, 1.442695
          %v3538 = vpow.pop %v3537
          %v3539 = vmul.f32 %v3485, 1.442695
          %v3540 = vpow.pop %v3539
          %v3541 = vmul.f32 %v3486, 1.442695
          %v3542 = vpow.pop %v3541
          %v3543 = vmul.f32 %v3487, 1.442695
          %v3544 = vpow.pop %v3543
          %v3545 = vmul.f32 %v3488, 1.442695
          %v3546 = vpow.pop %v3545
          %v3547 = vmul.f32 %v3489, 1.442695
          %v3548 = vpow.pop %v3547
          %v3549 = vmul.f32 %v3490, 1.442695
          %v3550 = vpow.pop %v3549
          %v3551 = vmul.f32 %v3491, 1.442695
          %v3552 = vpow.pop %v3551
          %v3553 = vmul.f32 %v3492, 1.442695
          %v3554 = vpow.pop %v3553
          %v3555 = vmul.f32 %v3493, 1.442695
          %v3556 = vpow.pop %v3555
          %v3557 = vmul.f32 %v3494, 1.442695
          %v3558 = vpow.pop %v3557
          %v3559 = vsub.f32 %v3208, %v3431
          %v3560 = vsub.f32 %v3211, %v3432
          %v3561 = vsub.f32 %v3216, %v3433
          %v3562 = vsub.f32 %v3219, %v3434
          %v3563 = vsub.f32 %v3224, %v3435
          %v3564 = vsub.f32 %v3227, %v3436
          %v3565 = vsub.f32 %v3232, %v3437
          %v3566 = vsub.f32 %v3235, %v3438
          %v3567 = vsub.f32 %v3240, %v3439
          %v3568 = vsub.f32 %v3243, %v3440
          %v3569 = vsub.f32 %v3248, %v3441
          %v3570 = vsub.f32 %v3251, %v3442
          %v3571 = vsub.f32 %v3256, %v3443
          %v3572 = vsub.f32 %v3259, %v3444
          %v3573 = vsub.f32 %v3264, %v3445
          %v3574 = vsub.f32 %v3267, %v3446
          %v3575 = vsub.f32 %v3305, %v3447
          %v3576 = vsub.f32 %v3308, %v3448
          %v3577 = vsub.f32 %v3313, %v3449
          %v3578 = vsub.f32 %v3316, %v3450
          %v3579 = vsub.f32 %v3321, %v3451
          %v3580 = vsub.f32 %v3324, %v3452
          %v3581 = vsub.f32 %v3329, %v3453
          %v3582 = vsub.f32 %v3332, %v3454
          %v3583 = vsub.f32 %v3337, %v3455
          %v3584 = vsub.f32 %v3340, %v3456
          %v3585 = vsub.f32 %v3345, %v3457
          %v3586 = vsub.f32 %v3348, %v3458
          %v3587 = vsub.f32 %v3353, %v3459
          %v3588 = vsub.f32 %v3356, %v3460
          %v3589 = vsub.f32 %v3361, %v3461
          %v3590 = vsub.f32 %v3364, %v3462
          %v3591 = vmul.f32 %v3559, 1.442695
          %v3592 = vpow.pop %v3591
          %v3593 = vmul.f32 %v3560, 1.442695
          %v3594 = vpow.pop %v3593
          %v3595 = vmul.f32 %v3561, 1.442695
          %v3596 = vpow.pop %v3595
          %v3597 = vmul.f32 %v3562, 1.442695
          %v3598 = vpow.pop %v3597
          %v3599 = vmul.f32 %v3563, 1.442695
          %v3600 = vpow.pop %v3599
          %v3601 = vmul.f32 %v3564, 1.442695
          %v3602 = vpow.pop %v3601
          %v3603 = vmul.f32 %v3565, 1.442695
          %v3604 = vpow.pop %v3603
          %v3605 = vmul.f32 %v3566, 1.442695
          %v3606 = vpow.pop %v3605
          %v3607 = vmul.f32 %v3567, 1.442695
          %v3608 = vpow.pop %v3607
          %v3609 = vmul.f32 %v3568, 1.442695
          %v3610 = vpow.pop %v3609
          %v3611 = vmul.f32 %v3569, 1.442695
          %v3612 = vpow.pop %v3611
          %v3613 = vmul.f32 %v3570, 1.442695
          %v3614 = vpow.pop %v3613
          %v3615 = vmul.f32 %v3571, 1.442695
          %v3616 = vpow.pop %v3615
          %v3617 = vmul.f32 %v3572, 1.442695
          %v3618 = vpow.pop %v3617
          %v3619 = vmul.f32 %v3573, 1.442695
          %v3620 = vpow.pop %v3619
          %v3621 = vmul.f32 %v3574, 1.442695
          %v3622 = vpow.pop %v3621
          %v3623 = vmul.f32 %v3575, 1.442695
          %v3624 = vpow.pop %v3623
          %v3625 = vmul.f32 %v3576, 1.442695
          %v3626 = vpow.pop %v3625
          %v3627 = vmul.f32 %v3577, 1.442695
          %v3628 = vpow.pop %v3627
          %v3629 = vmul.f32 %v3578, 1.442695
          %v3630 = vpow.pop %v3629
          %v3631 = vmul.f32 %v3579, 1.442695
          %v3632 = vpow.pop %v3631
          %v3633 = vmul.f32 %v3580, 1.442695
          %v3634 = vpow.pop %v3633
          %v3635 = vmul.f32 %v3581, 1.442695
          %v3636 = vpow.pop %v3635
          %v3637 = vmul.f32 %v3582, 1.442695
          %v3638 = vpow.pop %v3637
          %v3639 = vmul.f32 %v3583, 1.442695
          %v3640 = vpow.pop %v3639
          %v3641 = vmul.f32 %v3584, 1.442695
          %v3642 = vpow.pop %v3641
          %v3643 = vmul.f32 %v3585, 1.442695
          %v3644 = vpow.pop %v3643
          %v3645 = vmul.f32 %v3586, 1.442695
          %v3646 = vpow.pop %v3645
          %v3647 = vmul.f32 %v3587, 1.442695
          %v3648 = vpow.pop %v3647
          %v3649 = vmul.f32 %v3588, 1.442695
          %v3650 = vpow.pop %v3649
          %v3651 = vmul.f32 %v3589, 1.442695
          %v3652 = vpow.pop %v3651
          %v3653 = vmul.f32 %v3590, 1.442695
          %v3654 = vpow.pop %v3653
          %v3655 = vmul.f32 %v3496, %v3072
          %v3656 = vmul.f32 %v3498, %v3073
          %v3657 = vmul.f32 %v3500, %v3074
          %v3658 = vmul.f32 %v3502, %v3075
          %v3659 = vmul.f32 %v3504, %v3076
          %v3660 = vmul.f32 %v3506, %v3077
          %v3661 = vmul.f32 %v3508, %v3078
          %v3662 = vmul.f32 %v3510, %v3079
          %v3663 = vmul.f32 %v3512, %v3080
          %v3664 = vmul.f32 %v3514, %v3081
          %v3665 = vmul.f32 %v3516, %v3082
          %v3666 = vmul.f32 %v3518, %v3083
          %v3667 = vmul.f32 %v3520, %v3084
          %v3668 = vmul.f32 %v3522, %v3085
          %v3669 = vmul.f32 %v3524, %v3086
          %v3670 = vmul.f32 %v3526, %v3087
          %v3671 = vmul.f32 %v3528, %v3088
          %v3672 = vmul.f32 %v3530, %v3089
          %v3673 = vmul.f32 %v3532, %v3090
          %v3674 = vmul.f32 %v3534, %v3091
          %v3675 = vmul.f32 %v3536, %v3092
          %v3676 = vmul.f32 %v3538, %v3093
          %v3677 = vmul.f32 %v3540, %v3094
          %v3678 = vmul.f32 %v3542, %v3095
          %v3679 = vmul.f32 %v3544, %v3096
          %v3680 = vmul.f32 %v3546, %v3097
          %v3681 = vmul.f32 %v3548, %v3098
          %v3682 = vmul.f32 %v3550, %v3099
          %v3683 = vmul.f32 %v3552, %v3100
          %v3684 = vmul.f32 %v3554, %v3101
          %v3685 = vmul.f32 %v3556, %v3102
          %v3686 = vmul.f32 %v3558, %v3103
          %3687 = vadd.xlane.f32.xlu0 %v3592
          %v3688 = vpop.xlane.xlu0 %3687
          %3689 = vadd.xlane.f32.xlu0 %v3594
          %v3690 = vpop.xlane.xlu0 %3689
          %3691 = vadd.xlane.f32.xlu0 %v3596
          %v3692 = vpop.xlane.xlu0 %3691
          %3693 = vadd.xlane.f32.xlu0 %v3598
          %v3694 = vpop.xlane.xlu0 %3693
          %3695 = vadd.xlane.f32.xlu0 %v3600
          %v3696 = vpop.xlane.xlu0 %3695
          %3697 = vadd.xlane.f32.xlu0 %v3602
          %v3698 = vpop.xlane.xlu0 %3697
          %3699 = vadd.xlane.f32.xlu0 %v3604
          %v3700 = vpop.xlane.xlu0 %3699
          %3701 = vadd.xlane.f32.xlu0 %v3606
          %v3702 = vpop.xlane.xlu0 %3701
          %3703 = vadd.xlane.f32.xlu0 %v3608
          %v3704 = vpop.xlane.xlu0 %3703
          %3705 = vadd.xlane.f32.xlu0 %v3610
          %v3706 = vpop.xlane.xlu0 %3705
          %3707 = vadd.xlane.f32.xlu0 %v3612
          %v3708 = vpop.xlane.xlu0 %3707
          %3709 = vadd.xlane.f32.xlu0 %v3614
          %v3710 = vpop.xlane.xlu0 %3709
          %3711 = vadd.xlane.f32.xlu0 %v3616
          %v3712 = vpop.xlane.xlu0 %3711
          %3713 = vadd.xlane.f32.xlu0 %v3618
          %v3714 = vpop.xlane.xlu0 %3713
          %3715 = vadd.xlane.f32.xlu0 %v3620
          %v3716 = vpop.xlane.xlu0 %3715
          %3717 = vadd.xlane.f32.xlu0 %v3622
          %v3718 = vpop.xlane.xlu0 %3717
          %3719 = vadd.xlane.f32.xlu0 %v3624
          %v3720 = vpop.xlane.xlu0 %3719
          %3721 = vadd.xlane.f32.xlu0 %v3626
          %v3722 = vpop.xlane.xlu0 %3721
          %3723 = vadd.xlane.f32.xlu0 %v3628
          %v3724 = vpop.xlane.xlu0 %3723
          %3725 = vadd.xlane.f32.xlu0 %v3630
          %v3726 = vpop.xlane.xlu0 %3725
          %3727 = vadd.xlane.f32.xlu0 %v3632
          %v3728 = vpop.xlane.xlu0 %3727
          %3729 = vadd.xlane.f32.xlu0 %v3634
          %v3730 = vpop.xlane.xlu0 %3729
          %3731 = vadd.xlane.f32.xlu0 %v3636
          %v3732 = vpop.xlane.xlu0 %3731
          %3733 = vadd.xlane.f32.xlu0 %v3638
          %v3734 = vpop.xlane.xlu0 %3733
          %3735 = vadd.xlane.f32.xlu0 %v3640
          %v3736 = vpop.xlane.xlu0 %3735
          %3737 = vadd.xlane.f32.xlu0 %v3642
          %v3738 = vpop.xlane.xlu0 %3737
          %3739 = vadd.xlane.f32.xlu0 %v3644
          %v3740 = vpop.xlane.xlu0 %3739
          %3741 = vadd.xlane.f32.xlu0 %v3646
          %v3742 = vpop.xlane.xlu0 %3741
          %3743 = vadd.xlane.f32.xlu0 %v3648
          %v3744 = vpop.xlane.xlu0 %3743
          %3745 = vadd.xlane.f32.xlu0 %v3650
          %v3746 = vpop.xlane.xlu0 %3745
          %3747 = vadd.xlane.f32.xlu0 %v3652
          %v3748 = vpop.xlane.xlu0 %3747
          %3749 = vadd.xlane.f32.xlu0 %v3654
          %v3750 = vpop.xlane.xlu0 %3749
          %v3751 = vadd.f32 %v3655, %v3688
          %v3752 = vadd.f32 %v3656, %v3690
          %v3753 = vadd.f32 %v3657, %v3692
          %v3754 = vadd.f32 %v3658, %v3694
          %v3755 = vadd.f32 %v3659, %v3696
          %v3756 = vadd.f32 %v3660, %v3698
          %v3757 = vadd.f32 %v3661, %v3700
          %v3758 = vadd.f32 %v3662, %v3702
          %v3759 = vadd.f32 %v3663, %v3704
          %v3760 = vadd.f32 %v3664, %v3706
          %v3761 = vadd.f32 %v3665, %v3708
          %v3762 = vadd.f32 %v3666, %v3710
          %v3763 = vadd.f32 %v3667, %v3712
          %v3764 = vadd.f32 %v3668, %v3714
          %v3765 = vadd.f32 %v3669, %v3716
          %v3766 = vadd.f32 %v3670, %v3718
          %v3767 = vadd.f32 %v3671, %v3720
          %v3768 = vadd.f32 %v3672, %v3722
          %v3769 = vadd.f32 %v3673, %v3724
          %v3770 = vadd.f32 %v3674, %v3726
          %v3771 = vadd.f32 %v3675, %v3728
          %v3772 = vadd.f32 %v3676, %v3730
          %v3773 = vadd.f32 %v3677, %v3732
          %v3774 = vadd.f32 %v3678, %v3734
          %v3775 = vadd.f32 %v3679, %v3736
          %v3776 = vadd.f32 %v3680, %v3738
          %v3777 = vadd.f32 %v3681, %v3740
          %v3778 = vadd.f32 %v3682, %v3742
          %v3779 = vadd.f32 %v3683, %v3744
          %v3780 = vadd.f32 %v3684, %v3746
          %v3781 = vadd.f32 %v3685, %v3748
          %v3782 = vadd.f32 %v3686, %v3750
          %v3783 = vmul.f32 %v3496, %v3104
          %v3784 = vmul.f32 %v3498, %v3105
          %v3785 = vmul.f32 %v3500, %v3106
          %v3786 = vmul.f32 %v3502, %v3107
          %v3787 = vmul.f32 %v3504, %v3108
          %v3788 = vmul.f32 %v3506, %v3109
          %v3789 = vmul.f32 %v3508, %v3110
          %v3790 = vmul.f32 %v3510, %v3111
          %v3791 = vmul.f32 %v3512, %v3112
          %v3792 = vmul.f32 %v3514, %v3113
          %v3793 = vmul.f32 %v3516, %v3114
          %v3794 = vmul.f32 %v3518, %v3115
          %v3795 = vmul.f32 %v3520, %v3116
          %v3796 = vmul.f32 %v3522, %v3117
          %v3797 = vmul.f32 %v3524, %v3118
          %v3798 = vmul.f32 %v3526, %v3119
          %v3799 = vmul.f32 %v3528, %v3120
          %v3800 = vmul.f32 %v3530, %v3121
          %v3801 = vmul.f32 %v3532, %v3122
          %v3802 = vmul.f32 %v3534, %v3123
          %v3803 = vmul.f32 %v3536, %v3124
          %v3804 = vmul.f32 %v3538, %v3125
          %v3805 = vmul.f32 %v3540, %v3126
          %v3806 = vmul.f32 %v3542, %v3127
          %v3807 = vmul.f32 %v3544, %v3128
          %v3808 = vmul.f32 %v3546, %v3129
          %v3809 = vmul.f32 %v3548, %v3130
          %v3810 = vmul.f32 %v3550, %v3131
          %v3811 = vmul.f32 %v3552, %v3132
          %v3812 = vmul.f32 %v3554, %v3133
          %v3813 = vmul.f32 %v3556, %v3134
          %v3814 = vmul.f32 %v3558, %v3135
          %v3815 = vpack.c.bf16 %v3594, %v3592
          %v3816 = vpack.c.bf16 %v3598, %v3596
          %v3817 = vpack.c.bf16 %v3602, %v3600
          %v3818 = vpack.c.bf16 %v3606, %v3604
          %v3819 = vpack.c.bf16 %v3610, %v3608
          %v3820 = vpack.c.bf16 %v3614, %v3612
          %v3821 = vpack.c.bf16 %v3618, %v3616
          %v3822 = vpack.c.bf16 %v3622, %v3620
          %v3823 = vpack.c.bf16 %v3626, %v3624
          %v3824 = vpack.c.bf16 %v3630, %v3628
          %v3825 = vpack.c.bf16 %v3634, %v3632
          %v3826 = vpack.c.bf16 %v3638, %v3636
          %v3827 = vpack.c.bf16 %v3642, %v3640
          %v3828 = vpack.c.bf16 %v3646, %v3644
          %v3829 = vpack.c.bf16 %v3650, %v3648
          %v3830 = vpack.c.bf16 %v3654, %v3652
          %3831 = vmatprep.subr.bf16.mxu0 0
          %3832 = vmatpush1.bf16.msra.mxu0 %v3157
          %3833 = vmatprep.subr.bf16.mxu0 0
          %3834 = vmatpush1.bf16.msra.mxu0 %v3158
          %3835 = vmatprep.subr.bf16.mxu0 0
          %3836 = vmatpush1.bf16.msra.mxu0 %v3159
          %3837 = vmatprep.subr.bf16.mxu0 0
          %3838 = vmatpush1.bf16.msra.mxu0 %v3160
          %3839 = vmatprep.subr.bf16.mxu0 0
          %3840 = vmatpush1.bf16.msra.mxu0 %v3161
          %3841 = vmatprep.subr.bf16.mxu0 0
          %3842 = vmatpush1.bf16.msra.mxu0 %v3162
          %3843 = vmatprep.subr.bf16.mxu0 0
          %3844 = vmatpush1.bf16.msra.mxu0 %v3163
          %3845 = vmatprep.subr.bf16.mxu0 0
          %3846 = vmatpush1.bf16.msra.mxu0 %v3164
          %3847 = vmatprep.subr.bf16.mxu0 0
          %3848 = vmatpush1.bf16.msra.mxu0 0
          %3849 = vmatprep.subr.bf16.mxu0 0
          %3850 = vmatpush1.bf16.msra.mxu0 0
          %3851 = vmatprep.subr.bf16.mxu0 0
          %3852 = vmatpush1.bf16.msra.mxu0 0
          %3853 = vmatprep.subr.bf16.mxu0 0
          %3854 = vmatpush1.bf16.msra.mxu0 0
          %3855 = vmatprep.subr.bf16.mxu0 0
          %3856 = vmatpush1.bf16.msra.mxu0 0
          %3857 = vmatprep.subr.bf16.mxu0 0
          %3858 = vmatpush1.bf16.msra.mxu0 0
          %3859 = vmatprep.subr.bf16.mxu0 0
          %3860 = vmatpush1.bf16.msra.mxu0 0
          %3861 = vmatprep.subr.bf16.mxu0 0
          %3862 = vmatpush1.bf16.msra.mxu0 0
          %3863 = vmatprep.mubr.bf16.mxu0 0
          %3864 = vmatmul.mubr.bf16.gmra.mrb[0].mxu0 %v3815
          %v3865 = vpop.f32.mrb[0].mxu0
          %v3866 = vadd.f32 0.0, %v3865
          %v3867 = vpop.f32.mrb[0].mxu0
          %v3868 = vpop.f32.mrb[0].mxu0
          %v3869 = vadd.f32 0.0, %v3868
          %v3870 = vpop.f32.mrb[0].mxu0
          %3871 = vmatprep.mubr.bf16.mxu0 0
          %3872 = vmatmul.mubr.bf16.gmra.mrb[0].mxu0 %v3816
          %v3873 = vpop.f32.mrb[0].mxu0
          %v3874 = vadd.f32 0.0, %v3873
          %v3875 = vpop.f32.mrb[0].mxu0
          %v3876 = vpop.f32.mrb[0].mxu0
          %v3877 = vadd.f32 0.0, %v3876
          %v3878 = vpop.f32.mrb[0].mxu0
          %3879 = vmatprep.mubr.bf16.mxu0 0
          %3880 = vmatmul.mubr.bf16.gmra.mrb[0].mxu0 %v3817
          %v3881 = vpop.f32.mrb[0].mxu0
          %v3882 = vadd.f32 0.0, %v3881
          %v3883 = vpop.f32.mrb[0].mxu0
          %v3884 = vpop.f32.mrb[0].mxu0
          %v3885 = vadd.f32 0.0, %v3884
          %v3886 = vpop.f32.mrb[0].mxu0
          %3887 = vmatprep.mubr.bf16.mxu0 0
          %3888 = vmatmul.mubr.bf16.gmra.mrb[0].mxu0 %v3818
          %v3889 = vpop.f32.mrb[0].mxu0
          %v3890 = vadd.f32 0.0, %v3889
          %v3891 = vpop.f32.mrb[0].mxu0
          %v3892 = vpop.f32.mrb[0].mxu0
          %v3893 = vadd.f32 0.0, %v3892
          %v3894 = vpop.f32.mrb[0].mxu0
          %3895 = vmatprep.mubr.bf16.mxu0 0
          %3896 = vmatmul.mubr.bf16.gmra.mrb[0].mxu0 %v3819
          %v3897 = vpop.f32.mrb[0].mxu0
          %v3898 = vadd.f32 0.0, %v3897
          %v3899 = vpop.f32.mrb[0].mxu0
          %v3900 = vpop.f32.mrb[0].mxu0
          %v3901 = vadd.f32 0.0, %v3900
          %v3902 = vpop.f32.mrb[0].mxu0
          %3903 = vmatprep.mubr.bf16.mxu0 0
          %3904 = vmatmul.mubr.bf16.gmra.mrb[0].mxu0 %v3820
          %v3905 = vpop.f32.mrb[0].mxu0
          %v3906 = vadd.f32 0.0, %v3905
          %v3907 = vpop.f32.mrb[0].mxu0
          %v3908 = vpop.f32.mrb[0].mxu0
          %v3909 = vadd.f32 0.0, %v3908
          %v3910 = vpop.f32.mrb[0].mxu0
          %3911 = vmatprep.mubr.bf16.mxu0 0
          %3912 = vmatmul.mubr.bf16.gmra.mrb[0].mxu0 %v3821
          %v3913 = vpop.f32.mrb[0].mxu0
          %v3914 = vadd.f32 0.0, %v3913
          %v3915 = vpop.f32.mrb[0].mxu0
          %v3916 = vpop.f32.mrb[0].mxu0
          %v3917 = vadd.f32 0.0, %v3916
          %v3918 = vpop.f32.mrb[0].mxu0
          %3919 = vmatprep.mubr.bf16.mxu0 0
          %3920 = vmatmul.mubr.bf16.gmra.mrb[0].mxu0 %v3822
          %v3921 = vpop.f32.mrb[0].mxu0
          %v3922 = vadd.f32 0.0, %v3921
          %v3923 = vpop.f32.mrb[0].mxu0
          %v3924 = vpop.f32.mrb[0].mxu0
          %v3925 = vadd.f32 0.0, %v3924
          %v3926 = vpop.f32.mrb[0].mxu0
          %3927 = vdwg.mxu0
          %3928 = vmatprep.subr.bf16.mxu0 0
          %3929 = vmatpush1.bf16.msra.mxu0 %v3165
          %3930 = vmatprep.subr.bf16.mxu0 0
          %3931 = vmatpush1.bf16.msra.mxu0 %v3166
          %3932 = vmatprep.subr.bf16.mxu0 0
          %3933 = vmatpush1.bf16.msra.mxu0 %v3167
          %3934 = vmatprep.subr.bf16.mxu0 0
          %3935 = vmatpush1.bf16.msra.mxu0 %v3168
          %3936 = vmatprep.subr.bf16.mxu0 0
          %3937 = vmatpush1.bf16.msra.mxu0 %v3169
          %3938 = vmatprep.subr.bf16.mxu0 0
          %3939 = vmatpush1.bf16.msra.mxu0 %v3170
          %3940 = vmatprep.subr.bf16.mxu0 0
          %3941 = vmatpush1.bf16.msra.mxu0 %v3171
          %3942 = vmatprep.subr.bf16.mxu0 0
          %3943 = vmatpush1.bf16.msra.mxu0 %v3172
          %3944 = vmatprep.subr.bf16.mxu0 0
          %3945 = vmatpush1.bf16.msra.mxu0 0
          %3946 = vmatprep.subr.bf16.mxu0 0
          %3947 = vmatpush1.bf16.msra.mxu0 0
          %3948 = vmatprep.subr.bf16.mxu0 0
          %3949 = vmatpush1.bf16.msra.mxu0 0
          %3950 = vmatprep.subr.bf16.mxu0 0
          %3951 = vmatpush1.bf16.msra.mxu0 0
          %3952 = vmatprep.subr.bf16.mxu0 0
          %3953 = vmatpush1.bf16.msra.mxu0 0
          %3954 = vmatprep.subr.bf16.mxu0 0
          %3955 = vmatpush1.bf16.msra.mxu0 0
          %3956 = vmatprep.subr.bf16.mxu0 0
          %3957 = vmatpush1.bf16.msra.mxu0 0
          %3958 = vmatprep.subr.bf16.mxu0 0
          %3959 = vmatpush1.bf16.msra.mxu0 0
          %3960 = vmatprep.mubr.bf16.mxu0 0
          %3961 = vmatmul.mubr.bf16.gmra.mrb[0].mxu0 %v3823
          %v3962 = vpop.f32.mrb[0].mxu0
          %v3963 = vadd.f32 0.0, %v3962
          %v3964 = vpop.f32.mrb[0].mxu0
          %v3965 = vpop.f32.mrb[0].mxu0
          %v3966 = vadd.f32 0.0, %v3965
          %v3967 = vpop.f32.mrb[0].mxu0
          %3968 = vmatprep.mubr.bf16.mxu0 0
          %3969 = vmatmul.mubr.bf16.gmra.mrb[0].mxu0 %v3824
          %v3970 = vpop.f32.mrb[0].mxu0
          %v3971 = vadd.f32 0.0, %v3970
          %v3972 = vpop.f32.mrb[0].mxu0
          %v3973 = vpop.f32.mrb[0].mxu0
          %v3974 = vadd.f32 0.0, %v3973
          %v3975 = vpop.f32.mrb[0].mxu0
          %3976 = vmatprep.mubr.bf16.mxu0 0
          %3977 = vmatmul.mubr.bf16.gmra.mrb[0].mxu0 %v3825
          %v3978 = vpop.f32.mrb[0].mxu0
          %v3979 = vadd.f32 0.0, %v3978
          %v3980 = vpop.f32.mrb[0].mxu0
          %v3981 = vpop.f32.mrb[0].mxu0
          %v3982 = vadd.f32 0.0, %v3981
          %v3983 = vpop.f32.mrb[0].mxu0
          %3984 = vmatprep.mubr.bf16.mxu0 0
          %3985 = vmatmul.mubr.bf16.gmra.mrb[0].mxu0 %v3826
          %v3986 = vpop.f32.mrb[0].mxu0
          %v3987 = vadd.f32 0.0, %v3986
          %v3988 = vpop.f32.mrb[0].mxu0
          %v3989 = vpop.f32.mrb[0].mxu0
          %v3990 = vadd.f32 0.0, %v3989
          %v3991 = vpop.f32.mrb[0].mxu0
          %3992 = vmatprep.mubr.bf16.mxu0 0
          %3993 = vmatmul.mubr.bf16.gmra.mrb[0].mxu0 %v3827
          %v3994 = vpop.f32.mrb[0].mxu0
          %v3995 = vadd.f32 0.0, %v3994
          %v3996 = vpop.f32.mrb[0].mxu0
          %v3997 = vpop.f32.mrb[0].mxu0
          %v3998 = vadd.f32 0.0, %v3997
          %v3999 = vpop.f32.mrb[0].mxu0
          %4000 = vmatprep.mubr.bf16.mxu0 0
          %4001 = vmatmul.mubr.bf16.gmra.mrb[0].mxu0 %v3828
          %v4002 = vpop.f32.mrb[0].mxu0
          %v4003 = vadd.f32 0.0, %v4002
          %v4004 = vpop.f32.mrb[0].mxu0
          %v4005 = vpop.f32.mrb[0].mxu0
          %v4006 = vadd.f32 0.0, %v4005
          %v4007 = vpop.f32.mrb[0].mxu0
          %4008 = vmatprep.mubr.bf16.mxu0 0
          %4009 = vmatmul.mubr.bf16.gmra.mrb[0].mxu0 %v3829
          %v4010 = vpop.f32.mrb[0].mxu0
          %v4011 = vadd.f32 0.0, %v4010
          %v4012 = vpop.f32.mrb[0].mxu0
          %v4013 = vpop.f32.mrb[0].mxu0
          %v4014 = vadd.f32 0.0, %v4013
          %v4015 = vpop.f32.mrb[0].mxu0
          %4016 = vmatprep.mubr.bf16.mxu0 0
          %4017 = vmatmul.mubr.bf16.gmra.mrb[0].mxu0 %v3830
          %v4018 = vpop.f32.mrb[0].mxu0
          %v4019 = vadd.f32 0.0, %v4018
          %v4020 = vpop.f32.mrb[0].mxu0
          %v4021 = vpop.f32.mrb[0].mxu0
          %v4022 = vadd.f32 0.0, %v4021
          %v4023 = vpop.f32.mrb[0].mxu0
          %4024 = vdwg.mxu0
          %v4025 = vadd.f32 %v3783, %v3866
          %v4026 = vadd.f32 %v3784, %v3869
          %v4027 = vadd.f32 %v3785, %v3874
          %v4028 = vadd.f32 %v3786, %v3877
          %v4029 = vadd.f32 %v3787, %v3882
          %v4030 = vadd.f32 %v3788, %v3885
          %v4031 = vadd.f32 %v3789, %v3890
          %v4032 = vadd.f32 %v3790, %v3893
          %v4033 = vadd.f32 %v3791, %v3898
          %v4034 = vadd.f32 %v3792, %v3901
          %v4035 = vadd.f32 %v3793, %v3906
          %v4036 = vadd.f32 %v3794, %v3909
          %v4037 = vadd.f32 %v3795, %v3914
          %v4038 = vadd.f32 %v3796, %v3917
          %v4039 = vadd.f32 %v3797, %v3922
          %v4040 = vadd.f32 %v3798, %v3925
          %v4041 = vadd.f32 %v3799, %v3963
          %v4042 = vadd.f32 %v3800, %v3966
          %v4043 = vadd.f32 %v3801, %v3971
          %v4044 = vadd.f32 %v3802, %v3974
          %v4045 = vadd.f32 %v3803, %v3979
          %v4046 = vadd.f32 %v3804, %v3982
          %v4047 = vadd.f32 %v3805, %v3987
          %v4048 = vadd.f32 %v3806, %v3990
          %v4049 = vadd.f32 %v3807, %v3995
          %v4050 = vadd.f32 %v3808, %v3998
          %v4051 = vadd.f32 %v3809, %v4003
          %v4052 = vadd.f32 %v3810, %v4006
          %v4053 = vadd.f32 %v3811, %v4011
          %v4054 = vadd.f32 %v3812, %v4014
          %v4055 = vadd.f32 %v3813, %v4019
          %v4056 = vadd.f32 %v3814, %v4022
        $region89: #{tpu_custom_call.1} parent=51 // loop_footer
          %s3039 = sadd.s32 1, %s3035
        $region90: #{tpu_custom_call.1} parent=51 // loop_footer_branch
          %3034 = sbr.rel target = $region86
        $region91: #{tpu_custom_call.1} parent=51 // loop_exit
          _
        %v4057 = vrcp.pop %v3072
        %v4058 = vrcp.pop %v3073
        %v4059 = vrcp.pop %v3074
        %v4060 = vrcp.pop %v3075
        %v4061 = vrcp.pop %v3076
        %v4062 = vrcp.pop %v3077
        %v4063 = vrcp.pop %v3078
        %v4064 = vrcp.pop %v3079
        %v4065 = vrcp.pop %v3080
        %v4066 = vrcp.pop %v3081
        %v4067 = vrcp.pop %v3082
        %v4068 = vrcp.pop %v3083
        %v4069 = vrcp.pop %v3084
        %v4070 = vrcp.pop %v3085
        %v4071 = vrcp.pop %v3086
        %v4072 = vrcp.pop %v3087
        %v4073 = vrcp.pop %v3088
        %v4074 = vrcp.pop %v3089
        %v4075 = vrcp.pop %v3090
        %v4076 = vrcp.pop %v3091
        %v4077 = vrcp.pop %v3092
        %v4078 = vrcp.pop %v3093
        %v4079 = vrcp.pop %v3094
        %v4080 = vrcp.pop %v3095
        %v4081 = vrcp.pop %v3096
        %v4082 = vrcp.pop %v3097
        %v4083 = vrcp.pop %v3098
        %v4084 = vrcp.pop %v3099
        %v4085 = vrcp.pop %v3100
        %v4086 = vrcp.pop %v3101
        %v4087 = vrcp.pop %v3102
        %v4088 = vrcp.pop %v3103
        %v4089 = vmul.f32 %v3104, %v4057
        %v4090 = vmul.f32 %v3105, %v4058
        %v4091 = vmul.f32 %v3106, %v4059
        %v4092 = vmul.f32 %v3107, %v4060
        %v4093 = vmul.f32 %v3108, %v4061
        %v4094 = vmul.f32 %v3109, %v4062
        %v4095 = vmul.f32 %v3110, %v4063
        %v4096 = vmul.f32 %v3111, %v4064
        %v4097 = vmul.f32 %v3112, %v4065
        %v4098 = vmul.f32 %v3113, %v4066
        %v4099 = vmul.f32 %v3114, %v4067
        %v4100 = vmul.f32 %v3115, %v4068
        %v4101 = vmul.f32 %v3116, %v4069
        %v4102 = vmul.f32 %v3117, %v4070
        %v4103 = vmul.f32 %v3118, %v4071
        %v4104 = vmul.f32 %v3119, %v4072
        %v4105 = vmul.f32 %v3120, %v4073
        %v4106 = vmul.f32 %v3121, %v4074
        %v4107 = vmul.f32 %v3122, %v4075
        %v4108 = vmul.f32 %v3123, %v4076
        %v4109 = vmul.f32 %v3124, %v4077
        %v4110 = vmul.f32 %v3125, %v4078
        %v4111 = vmul.f32 %v3126, %v4079
        %v4112 = vmul.f32 %v3127, %v4080
        %v4113 = vmul.f32 %v3128, %v4081
        %v4114 = vmul.f32 %v3129, %v4082
        %v4115 = vmul.f32 %v3130, %v4083
        %v4116 = vmul.f32 %v3131, %v4084
        %v4117 = vmul.f32 %v3132, %v4085
        %v4118 = vmul.f32 %v3133, %v4086
        %v4119 = vmul.f32 %v3134, %v4087
        %v4120 = vmul.f32 %v3135, %v4088
        %v4121 = vpack.c.bf16 %v4090, %v4089
        %v4122 = vpack.c.bf16 %v4106, %v4105
        %v4123 = vpack.c.bf16 %v4092, %v4091
        %v4124 = vpack.c.bf16 %v4108, %v4107
        %v4125 = vpack.c.bf16 %v4094, %v4093
        %v4126 = vpack.c.bf16 %v4110, %v4109
        %v4127 = vpack.c.bf16 %v4096, %v4095
        %v4128 = vpack.c.bf16 %v4112, %v4111
        %v4129 = vpack.c.bf16 %v4098, %v4097
        %v4130 = vpack.c.bf16 %v4114, %v4113
        %v4131 = vpack.c.bf16 %v4100, %v4099
        %v4132 = vpack.c.bf16 %v4116, %v4115
        %v4133 = vpack.c.bf16 %v4102, %v4101
        %v4134 = vpack.c.bf16 %v4118, %v4117
        %v4135 = vpack.c.bf16 %v4104, %v4103
        %v4136 = vpack.c.bf16 %v4120, %v4119
        %v4137 = vld [vmem:[#allocation11] sm:$0xff]
        %v4138 = vld [vmem:[#allocation11 + $0x8] sm:$0xff]
        %v4139 = vld [vmem:[#allocation11 + $0x10] sm:$0xff]
        %v4140 = vld [vmem:[#allocation11 + $0x18] sm:$0xff]
        %v4141 = vld [vmem:[#allocation11 + $0x20] sm:$0xff]
        %v4142 = vld [vmem:[#allocation11 + $0x28] sm:$0xff]
        %v4143 = vld [vmem:[#allocation11 + $0x30] sm:$0xff]
        %v4144 = vld [vmem:[#allocation11 + $0x38] sm:$0xff]
        %v4145 = vld [vmem:[#allocation11 + $0x40] sm:$0xff]
        %v4146 = vld [vmem:[#allocation11 + $0x48] sm:$0xff]
        %v4147 = vld [vmem:[#allocation11 + $0x50] sm:$0xff]
        %v4148 = vld [vmem:[#allocation11 + $0x58] sm:$0xff]
        %v4149 = vld [vmem:[#allocation11 + $0x60] sm:$0xff]
        %v4150 = vld [vmem:[#allocation11 + $0x68] sm:$0xff]
        %v4151 = vld [vmem:[#allocation11 + $0x70] sm:$0xff]
        %v4152 = vld [vmem:[#allocation11 + $0x78] sm:$0xff]
        %v4153 = vld [vmem:[#allocation11 + $0x80] sm:$0xff]
        %v4154 = vld [vmem:[#allocation11 + $0x88] sm:$0xff]
        %v4155 = vld [vmem:[#allocation11 + $0x90] sm:$0xff]
        %v4156 = vld [vmem:[#allocation11 + $0x98] sm:$0xff]
        %v4157 = vld [vmem:[#allocation11 + $0xa0] sm:$0xff]
        %v4158 = vld [vmem:[#allocation11 + $0xa8] sm:$0xff]
        %v4159 = vld [vmem:[#allocation11 + $0xb0] sm:$0xff]
        %v4160 = vld [vmem:[#allocation11 + $0xb8] sm:$0xff]
        %v4161 = vld [vmem:[#allocation11 + $0xc0] sm:$0xff]
        %v4162 = vld [vmem:[#allocation11 + $0xc8] sm:$0xff]
        %v4163 = vld [vmem:[#allocation11 + $0xd0] sm:$0xff]
        %v4164 = vld [vmem:[#allocation11 + $0xd8] sm:$0xff]
        %v4165 = vld [vmem:[#allocation11 + $0xe0] sm:$0xff]
        %v4166 = vld [vmem:[#allocation11 + $0xe8] sm:$0xff]
        %v4167 = vld [vmem:[#allocation11 + $0xf0] sm:$0xff]
        %v4168 = vld [vmem:[#allocation11 + $0xf8] sm:$0xff]
        %v4169 = vlaneseq
        %v4170 = vshrl.u32 %v4169, 7
        %v4171 = vsub.s32 3, %v4170
        %v4172 = vrot.slane %v567, %v4171
        %v4173 = vlaneseq
        %v4174 = vshrl.u32 %v4173, 7
        %v4175 = vsub.s32 3, %v4174
        %v4176 = vrot.slane %v568, %v4175
        %v4209 = vunpack.c.l.b16 %v4137
        %v4210 = vunpack.c.h.b16 %v4137
        %v4211 = vunpack.c.l.b16 %v4138
        %v4212 = vunpack.c.h.b16 %v4138
        %v4213 = vunpack.c.l.b16 %v4139
        %v4214 = vunpack.c.h.b16 %v4139
        %v4215 = vunpack.c.l.b16 %v4140
        %v4216 = vunpack.c.h.b16 %v4140
        %v4217 = vunpack.c.l.b16 %v4141
        %v4218 = vunpack.c.h.b16 %v4141
        %v4219 = vunpack.c.l.b16 %v4142
        %v4220 = vunpack.c.h.b16 %v4142
        %v4221 = vunpack.c.l.b16 %v4143
        %v4222 = vunpack.c.h.b16 %v4143
        %v4223 = vunpack.c.l.b16 %v4144
        %v4224 = vunpack.c.h.b16 %v4144
        %v4225 = vunpack.c.l.b16 %v4145
        %v4226 = vunpack.c.h.b16 %v4145
        %v4227 = vunpack.c.l.b16 %v4146
        %v4228 = vunpack.c.h.b16 %v4146
        %v4229 = vunpack.c.l.b16 %v4147
        %v4230 = vunpack.c.h.b16 %v4147
        %v4231 = vunpack.c.l.b16 %v4148
        %v4232 = vunpack.c.h.b16 %v4148
        %v4233 = vunpack.c.l.b16 %v4149
        %v4234 = vunpack.c.h.b16 %v4149
        %v4235 = vunpack.c.l.b16 %v4150
        %v4236 = vunpack.c.h.b16 %v4150
        %v4237 = vunpack.c.l.b16 %v4151
        %v4238 = vunpack.c.h.b16 %v4151
        %v4239 = vunpack.c.l.b16 %v4152
        %v4240 = vunpack.c.h.b16 %v4152
        %v4241 = vunpack.c.l.b16 %v4153
        %v4242 = vunpack.c.h.b16 %v4153
        %v4243 = vunpack.c.l.b16 %v4154
        %v4244 = vunpack.c.h.b16 %v4154
        %v4245 = vunpack.c.l.b16 %v4155
        %v4246 = vunpack.c.h.b16 %v4155
        %v4247 = vunpack.c.l.b16 %v4156
        %v4248 = vunpack.c.h.b16 %v4156
        %v4249 = vunpack.c.l.b16 %v4157
        %v4250 = vunpack.c.h.b16 %v4157
        %v4251 = vunpack.c.l.b16 %v4158
        %v4252 = vunpack.c.h.b16 %v4158
        %v4253 = vunpack.c.l.b16 %v4159
        %v4254 = vunpack.c.h.b16 %v4159
        %v4255 = vunpack.c.l.b16 %v4160
        %v4256 = vunpack.c.h.b16 %v4160
        %v4257 = vunpack.c.l.b16 %v4161
        %v4258 = vunpack.c.h.b16 %v4161
        %v4259 = vunpack.c.l.b16 %v4162
        %v4260 = vunpack.c.h.b16 %v4162
        %v4261 = vunpack.c.l.b16 %v4163
        %v4262 = vunpack.c.h.b16 %v4163
        %v4263 = vunpack.c.l.b16 %v4164
        %v4264 = vunpack.c.h.b16 %v4164
        %v4265 = vunpack.c.l.b16 %v4165
        %v4266 = vunpack.c.h.b16 %v4165
        %v4267 = vunpack.c.l.b16 %v4166
        %v4268 = vunpack.c.h.b16 %v4166
        %v4269 = vunpack.c.l.b16 %v4167
        %v4270 = vunpack.c.h.b16 %v4167
        %v4271 = vunpack.c.l.b16 %v4168
        %v4272 = vunpack.c.h.b16 %v4168
        %v4273 = vpack.c.b16 %v4211, %v4209
        %v4274 = vpack.c.b16 %v4212, %v4210
        %v4275 = vpack.c.b16 %v4215, %v4213
        %v4276 = vpack.c.b16 %v4216, %v4214
        %v4277 = vpack.c.b16 %v4219, %v4217
        %v4278 = vpack.c.b16 %v4220, %v4218
        %v4279 = vpack.c.b16 %v4223, %v4221
        %v4280 = vpack.c.b16 %v4224, %v4222
        %v4281 = vpack.c.b16 %v4227, %v4225
        %v4282 = vpack.c.b16 %v4228, %v4226
        %v4283 = vpack.c.b16 %v4231, %v4229
        %v4284 = vpack.c.b16 %v4232, %v4230
        %v4285 = vpack.c.b16 %v4235, %v4233
        %v4286 = vpack.c.b16 %v4236, %v4234
        %v4287 = vpack.c.b16 %v4239, %v4237
        %v4288 = vpack.c.b16 %v4240, %v4238
        %v4289 = vpack.c.b16 %v4243, %v4241
        %v4290 = vpack.c.b16 %v4244, %v4242
        %v4291 = vpack.c.b16 %v4247, %v4245
        %v4292 = vpack.c.b16 %v4248, %v4246
        %v4293 = vpack.c.b16 %v4251, %v4249
        %v4294 = vpack.c.b16 %v4252, %v4250
        %v4295 = vpack.c.b16 %v4255, %v4253
        %v4296 = vpack.c.b16 %v4256, %v4254
        %v4297 = vpack.c.b16 %v4259, %v4257
        %v4298 = vpack.c.b16 %v4260, %v4258
        %v4299 = vpack.c.b16 %v4263, %v4261
        %v4300 = vpack.c.b16 %v4264, %v4262
        %v4301 = vpack.c.b16 %v4267, %v4265
        %v4302 = vpack.c.b16 %v4268, %v4266
        %v4303 = vpack.c.b16 %v4271, %v4269
        %v4304 = vpack.c.b16 %v4272, %v4270
        %4337 = vmatprep.subr.bf16.mxu0 %v4274
        %4338 = vmatpush1.bf16.msra.mxu0 %v4273
        %4339 = vmatprep.subr.bf16.mxu0 %v4276
        %4340 = vmatpush1.bf16.msra.mxu0 %v4275
        %4341 = vmatprep.subr.bf16.mxu0 %v4278
        %4342 = vmatpush1.bf16.msra.mxu0 %v4277
        %4343 = vmatprep.subr.bf16.mxu0 %v4280
        %4344 = vmatpush1.bf16.msra.mxu0 %v4279
        %4345 = vmatprep.subr.bf16.mxu0 %v4282
        %4346 = vmatpush1.bf16.msra.mxu0 %v4281
        %4347 = vmatprep.subr.bf16.mxu0 %v4284
        %4348 = vmatpush1.bf16.msra.mxu0 %v4283
        %4349 = vmatprep.subr.bf16.mxu0 %v4286
        %4350 = vmatpush1.bf16.msra.mxu0 %v4285
        %4351 = vmatprep.subr.bf16.mxu0 %v4288
        %4352 = vmatpush1.bf16.msra.mxu0 %v4287
        %4353 = vmatprep.subr.bf16.mxu0 %v4290
        %4354 = vmatpush1.bf16.msra.mxu0 %v4289
        %4355 = vmatprep.subr.bf16.mxu0 %v4292
        %4356 = vmatpush1.bf16.msra.mxu0 %v4291
        %4357 = vmatprep.subr.bf16.mxu0 %v4294
        %4358 = vmatpush1.bf16.msra.mxu0 %v4293
        %4359 = vmatprep.subr.bf16.mxu0 %v4296
        %4360 = vmatpush1.bf16.msra.mxu0 %v4295
        %4361 = vmatprep.subr.bf16.mxu0 %v4298
        %4362 = vmatpush1.bf16.msra.mxu0 %v4297
        %4363 = vmatprep.subr.bf16.mxu0 %v4300
        %4364 = vmatpush1.bf16.msra.mxu0 %v4299
        %4365 = vmatprep.subr.bf16.mxu0 %v4302
        %4366 = vmatpush1.bf16.msra.mxu0 %v4301
        %4367 = vmatprep.subr.bf16.mxu0 %v4304
        %4368 = vmatpush1.bf16.msra.mxu0 %v4303
        %4369 = vmatprep.mubr.bf16.mxu0 %v4122
        %4370 = vmatmul.mubr.bf16.gmra.mrb[0].mxu0 %v4121
        %v4371 = vpop.f32.mrb[0].mxu0
        %v4372 = vadd.f32 %v4172, %v4371
        %v4373 = vpop.f32.mrb[0].mxu0
        %v4374 = vadd.f32 %v4176, %v4373
        %v4375 = vpop.f32.mrb[0].mxu0
        %v4376 = vadd.f32 %v4172, %v4375
        %v4377 = vpop.f32.mrb[0].mxu0
        %v4378 = vadd.f32 %v4176, %v4377
        %4379 = vmatprep.mubr.bf16.mxu0 %v4124
        %4380 = vmatmul.mubr.bf16.gmra.mrb[0].mxu0 %v4123
        %v4381 = vpop.f32.mrb[0].mxu0
        %v4382 = vadd.f32 %v4172, %v4381
        %v4383 = vpop.f32.mrb[0].mxu0
        %v4384 = vadd.f32 %v4176, %v4383
        %v4385 = vpop.f32.mrb[0].mxu0
        %v4386 = vadd.f32 %v4172, %v4385
        %v4387 = vpop.f32.mrb[0].mxu0
        %v4388 = vadd.f32 %v4176, %v4387
        %4389 = vmatprep.mubr.bf16.mxu0 %v4126
        %4390 = vmatmul.mubr.bf16.gmra.mrb[0].mxu0 %v4125
        %v4391 = vpop.f32.mrb[0].mxu0
        %v4392 = vadd.f32 %v4172, %v4391
        %v4393 = vpop.f32.mrb[0].mxu0
        %v4394 = vadd.f32 %v4176, %v4393
        %v4395 = vpop.f32.mrb[0].mxu0
        %v4396 = vadd.f32 %v4172, %v4395
        %v4397 = vpop.f32.mrb[0].mxu0
        %v4398 = vadd.f32 %v4176, %v4397
        %4399 = vmatprep.mubr.bf16.mxu0 %v4128
        %4400 = vmatmul.mubr.bf16.gmra.mrb[0].mxu0 %v4127
        %v4401 = vpop.f32.mrb[0].mxu0
        %v4402 = vadd.f32 %v4172, %v4401
        %v4403 = vpop.f32.mrb[0].mxu0
        %v4404 = vadd.f32 %v4176, %v4403
        %v4405 = vpop.f32.mrb[0].mxu0
        %v4406 = vadd.f32 %v4172, %v4405
        %v4407 = vpop.f32.mrb[0].mxu0
        %v4408 = vadd.f32 %v4176, %v4407
        %4409 = vmatprep.mubr.bf16.mxu0 %v4130
        %4410 = vmatmul.mubr.bf16.gmra.mrb[0].mxu0 %v4129
        %v4411 = vpop.f32.mrb[0].mxu0
        %v4412 = vadd.f32 %v4172, %v4411
        %v4413 = vpop.f32.mrb[0].mxu0
        %v4414 = vadd.f32 %v4176, %v4413
        %v4415 = vpop.f32.mrb[0].mxu0
        %v4416 = vadd.f32 %v4172, %v4415
        %v4417 = vpop.f32.mrb[0].mxu0
        %v4418 = vadd.f32 %v4176, %v4417
        %4419 = vmatprep.mubr.bf16.mxu0 %v4132
        %4420 = vmatmul.mubr.bf16.gmra.mrb[0].mxu0 %v4131
        %v4421 = vpop.f32.mrb[0].mxu0
        %v4422 = vadd.f32 %v4172, %v4421
        %v4423 = vpop.f32.mrb[0].mxu0
        %v4424 = vadd.f32 %v4176, %v4423
        %v4425 = vpop.f32.mrb[0].mxu0
        %v4426 = vadd.f32 %v4172, %v4425
        %v4427 = vpop.f32.mrb[0].mxu0
        %v4428 = vadd.f32 %v4176, %v4427
        %4429 = vmatprep.mubr.bf16.mxu0 %v4134
        %4430 = vmatmul.mubr.bf16.gmra.mrb[0].mxu0 %v4133
        %v4431 = vpop.f32.mrb[0].mxu0
        %v4432 = vadd.f32 %v4172, %v4431
        %v4433 = vpop.f32.mrb[0].mxu0
        %v4434 = vadd.f32 %v4176, %v4433
        %v4435 = vpop.f32.mrb[0].mxu0
        %v4436 = vadd.f32 %v4172, %v4435
        %v4437 = vpop.f32.mrb[0].mxu0
        %v4438 = vadd.f32 %v4176, %v4437
        %4439 = vmatprep.mubr.bf16.mxu0 %v4136
        %4440 = vmatmul.mubr.bf16.gmra.mrb[0].mxu0 %v4135
        %v4441 = vpop.f32.mrb[0].mxu0
        %v4442 = vadd.f32 %v4172, %v4441
        %v4443 = vpop.f32.mrb[0].mxu0
        %v4444 = vadd.f32 %v4176, %v4443
        %v4445 = vpop.f32.mrb[0].mxu0
        %v4446 = vadd.f32 %v4172, %v4445
        %v4447 = vpop.f32.mrb[0].mxu0
        %v4448 = vadd.f32 %v4176, %v4447
        %4449 = vdwg.mxu0
        %v4450 = vadd.f32 %v471, %v4372
        %v4451 = vadd.f32 %v472, %v4374
        %v4452 = vadd.f32 %v473, %v4376
        %v4453 = vadd.f32 %v474, %v4378
        %v4454 = vadd.f32 %v475, %v4382
        %v4455 = vadd.f32 %v476, %v4384
        %v4456 = vadd.f32 %v477, %v4386
        %v4457 = vadd.f32 %v478, %v4388
        %v4458 = vadd.f32 %v479, %v4392
        %v4459 = vadd.f32 %v480, %v4394
        %v4460 = vadd.f32 %v481, %v4396
        %v4461 = vadd.f32 %v482, %v4398
        %v4462 = vadd.f32 %v483, %v4402
        %v4463 = vadd.f32 %v484, %v4404
        %v4464 = vadd.f32 %v485, %v4406
        %v4465 = vadd.f32 %v486, %v4408
        %v4466 = vadd.f32 %v487, %v4412
        %v4467 = vadd.f32 %v488, %v4414
        %v4468 = vadd.f32 %v489, %v4416
        %v4469 = vadd.f32 %v490, %v4418
        %v4470 = vadd.f32 %v491, %v4422
        %v4471 = vadd.f32 %v492, %v4424
        %v4472 = vadd.f32 %v493, %v4426
        %v4473 = vadd.f32 %v494, %v4428
        %v4474 = vadd.f32 %v495, %v4432
        %v4475 = vadd.f32 %v496, %v4434
        %v4476 = vadd.f32 %v497, %v4436
        %v4477 = vadd.f32 %v498, %v4438
        %v4478 = vadd.f32 %v499, %v4442
        %v4479 = vadd.f32 %v500, %v4444
        %v4480 = vadd.f32 %v501, %v4446
        %v4481 = vadd.f32 %v502, %v4448
        %v4482 = vadd.f32 %v4450, %v4451
        %4483 = vadd.xlane.f32.xlu0 %v4482
        %v4484 = vpop.xlane.xlu0 %4483
        %v4485 = vadd.f32 %v4452, %v4453
        %4486 = vadd.xlane.f32.xlu0 %v4485
        %v4487 = vpop.xlane.xlu0 %4486
        %v4488 = vadd.f32 %v4454, %v4455
        %4489 = vadd.xlane.f32.xlu0 %v4488
        %v4490 = vpop.xlane.xlu0 %4489
        %v4491 = vadd.f32 %v4456, %v4457
        %4492 = vadd.xlane.f32.xlu0 %v4491
        %v4493 = vpop.xlane.xlu0 %4492
        %v4494 = vadd.f32 %v4458, %v4459
        %4495 = vadd.xlane.f32.xlu0 %v4494
        %v4496 = vpop.xlane.xlu0 %4495
        %v4497 = vadd.f32 %v4460, %v4461
        %4498 = vadd.xlane.f32.xlu0 %v4497
        %v4499 = vpop.xlane.xlu0 %4498
        %v4500 = vadd.f32 %v4462, %v4463
        %4501 = vadd.xlane.f32.xlu0 %v4500
        %v4502 = vpop.xlane.xlu0 %4501
        %v4503 = vadd.f32 %v4464, %v4465
        %4504 = vadd.xlane.f32.xlu0 %v4503
        %v4505 = vpop.xlane.xlu0 %4504
        %v4506 = vadd.f32 %v4466, %v4467
        %4507 = vadd.xlane.f32.xlu0 %v4506
        %v4508 = vpop.xlane.xlu0 %4507
        %v4509 = vadd.f32 %v4468, %v4469
        %4510 = vadd.xlane.f32.xlu0 %v4509
        %v4511 = vpop.xlane.xlu0 %4510
        %v4512 = vadd.f32 %v4470, %v4471
        %4513 = vadd.xlane.f32.xlu0 %v4512
        %v4514 = vpop.xlane.xlu0 %4513
        %v4515 = vadd.f32 %v4472, %v4473
        %4516 = vadd.xlane.f32.xlu0 %v4515
        %v4517 = vpop.xlane.xlu0 %4516
        %v4518 = vadd.f32 %v4474, %v4475
        %4519 = vadd.xlane.f32.xlu0 %v4518
        %v4520 = vpop.xlane.xlu0 %4519
        %v4521 = vadd.f32 %v4476, %v4477
        %4522 = vadd.xlane.f32.xlu0 %v4521
        %v4523 = vpop.xlane.xlu0 %4522
        %v4524 = vadd.f32 %v4478, %v4479
        %4525 = vadd.xlane.f32.xlu0 %v4524
        %v4526 = vpop.xlane.xlu0 %4525
        %v4527 = vadd.f32 %v4480, %v4481
        %4528 = vadd.xlane.f32.xlu0 %v4527
        %v4529 = vpop.xlane.xlu0 %4528
        %v4530 = vmul.f32 %v4484, %v619
        %v4531 = vmul.f32 %v4487, %v619
        %v4532 = vmul.f32 %v4490, %v619
        %v4533 = vmul.f32 %v4493, %v619
        %v4534 = vmul.f32 %v4496, %v619
        %v4535 = vmul.f32 %v4499, %v619
        %v4536 = vmul.f32 %v4502, %v619
        %v4537 = vmul.f32 %v4505, %v619
        %v4538 = vmul.f32 %v4508, %v619
        %v4539 = vmul.f32 %v4511, %v619
        %v4540 = vmul.f32 %v4514, %v619
        %v4541 = vmul.f32 %v4517, %v619
        %v4542 = vmul.f32 %v4520, %v619
        %v4543 = vmul.f32 %v4523, %v619
        %v4544 = vmul.f32 %v4526, %v619
        %v4545 = vmul.f32 %v4529, %v619
        %v4546 = vsub.f32 %v4450, %v4530
        %v4547 = vsub.f32 %v4451, %v4530
        %v4548 = vsub.f32 %v4452, %v4531
        %v4549 = vsub.f32 %v4453, %v4531
        %v4550 = vsub.f32 %v4454, %v4532
        %v4551 = vsub.f32 %v4455, %v4532
        %v4552 = vsub.f32 %v4456, %v4533
        %v4553 = vsub.f32 %v4457, %v4533
        %v4554 = vsub.f32 %v4458, %v4534
        %v4555 = vsub.f32 %v4459, %v4534
        %v4556 = vsub.f32 %v4460, %v4535
        %v4557 = vsub.f32 %v4461, %v4535
        %v4558 = vsub.f32 %v4462, %v4536
        %v4559 = vsub.f32 %v4463, %v4536
        %v4560 = vsub.f32 %v4464, %v4537
        %v4561 = vsub.f32 %v4465, %v4537
        %v4562 = vsub.f32 %v4466, %v4538
        %v4563 = vsub.f32 %v4467, %v4538
        %v4564 = vsub.f32 %v4468, %v4539
        %v4565 = vsub.f32 %v4469, %v4539
        %v4566 = vsub.f32 %v4470, %v4540
        %v4567 = vsub.f32 %v4471, %v4540
        %v4568 = vsub.f32 %v4472, %v4541
        %v4569 = vsub.f32 %v4473, %v4541
        %v4570 = vsub.f32 %v4474, %v4542
        %v4571 = vsub.f32 %v4475, %v4542
        %v4572 = vsub.f32 %v4476, %v4543
        %v4573 = vsub.f32 %v4477, %v4543
        %v4574 = vsub.f32 %v4478, %v4544
        %v4575 = vsub.f32 %v4479, %v4544
        %v4576 = vsub.f32 %v4480, %v4545
        %v4577 = vsub.f32 %v4481, %v4545
        %v4578 = vmul.f32 %v4546, %v4546
        %v4579 = vmul.f32 %v4547, %v4547
        %v4580 = vmul.f32 %v4548, %v4548
        %v4581 = vmul.f32 %v4549, %v4549
        %v4582 = vmul.f32 %v4550, %v4550
        %v4583 = vmul.f32 %v4551, %v4551
        %v4584 = vmul.f32 %v4552, %v4552
        %v4585 = vmul.f32 %v4553, %v4553
        %v4586 = vmul.f32 %v4554, %v4554
        %v4587 = vmul.f32 %v4555, %v4555
        %v4588 = vmul.f32 %v4556, %v4556
        %v4589 = vmul.f32 %v4557, %v4557
        %v4590 = vmul.f32 %v4558, %v4558
        %v4591 = vmul.f32 %v4559, %v4559
        %v4592 = vmul.f32 %v4560, %v4560
        %v4593 = vmul.f32 %v4561, %v4561
        %v4594 = vmul.f32 %v4562, %v4562
        %v4595 = vmul.f32 %v4563, %v4563
        %v4596 = vmul.f32 %v4564, %v4564
        %v4597 = vmul.f32 %v4565, %v4565
        %v4598 = vmul.f32 %v4566, %v4566
        %v4599 = vmul.f32 %v4567, %v4567
        %v4600 = vmul.f32 %v4568, %v4568
        %v4601 = vmul.f32 %v4569, %v4569
        %v4602 = vmul.f32 %v4570, %v4570
        %v4603 = vmul.f32 %v4571, %v4571
        %v4604 = vmul.f32 %v4572, %v4572
        %v4605 = vmul.f32 %v4573, %v4573
        %v4606 = vmul.f32 %v4574, %v4574
        %v4607 = vmul.f32 %v4575, %v4575
        %v4608 = vmul.f32 %v4576, %v4576
        %v4609 = vmul.f32 %v4577, %v4577
        %v4610 = vadd.f32 %v4578, %v4579
        %4611 = vadd.xlane.f32.xlu0 %v4610
        %v4612 = vpop.xlane.xlu0 %4611
        %v4613 = vadd.f32 %v4580, %v4581
        %4614 = vadd.xlane.f32.xlu0 %v4613
        %v4615 = vpop.xlane.xlu0 %4614
        %v4616 = vadd.f32 %v4582, %v4583
        %4617 = vadd.xlane.f32.xlu0 %v4616
        %v4618 = vpop.xlane.xlu0 %4617
        %v4619 = vadd.f32 %v4584, %v4585
        %4620 = vadd.xlane.f32.xlu0 %v4619
        %v4621 = vpop.xlane.xlu0 %4620
        %v4622 = vadd.f32 %v4586, %v4587
        %4623 = vadd.xlane.f32.xlu0 %v4622
        %v4624 = vpop.xlane.xlu0 %4623
        %v4625 = vadd.f32 %v4588, %v4589
        %4626 = vadd.xlane.f32.xlu0 %v4625
        %v4627 = vpop.xlane.xlu0 %4626
        %v4628 = vadd.f32 %v4590, %v4591
        %4629 = vadd.xlane.f32.xlu0 %v4628
        %v4630 = vpop.xlane.xlu0 %4629
        %v4631 = vadd.f32 %v4592, %v4593
        %4632 = vadd.xlane.f32.xlu0 %v4631
        %v4633 = vpop.xlane.xlu0 %4632
        %v4634 = vadd.f32 %v4594, %v4595
        %4635 = vadd.xlane.f32.xlu0 %v4634
        %v4636 = vpop.xlane.xlu0 %4635
        %v4637 = vadd.f32 %v4596, %v4597
        %4638 = vadd.xlane.f32.xlu0 %v4637
        %v4639 = vpop.xlane.xlu0 %4638
        %v4640 = vadd.f32 %v4598, %v4599
        %4641 = vadd.xlane.f32.xlu0 %v4640
        %v4642 = vpop.xlane.xlu0 %4641
        %v4643 = vadd.f32 %v4600, %v4601
        %4644 = vadd.xlane.f32.xlu0 %v4643
        %v4645 = vpop.xlane.xlu0 %4644
        %v4646 = vadd.f32 %v4602, %v4603
        %4647 = vadd.xlane.f32.xlu0 %v4646
        %v4648 = vpop.xlane.xlu0 %4647
        %v4649 = vadd.f32 %v4604, %v4605
        %4650 = vadd.xlane.f32.xlu0 %v4649
        %v4651 = vpop.xlane.xlu0 %4650
        %v4652 = vadd.f32 %v4606, %v4607
        %4653 = vadd.xlane.f32.xlu0 %v4652
        %v4654 = vpop.xlane.xlu0 %4653
        %v4655 = vadd.f32 %v4608, %v4609
        %4656 = vadd.xlane.f32.xlu0 %v4655
        %v4657 = vpop.xlane.xlu0 %4656
        %v4658 = vmul.f32 %v4612, %v619
        %v4659 = vmul.f32 %v4615, %v619
        %v4660 = vmul.f32 %v4618, %v619
        %v4661 = vmul.f32 %v4621, %v619
        %v4662 = vmul.f32 %v4624, %v619
        %v4663 = vmul.f32 %v4627, %v619
        %v4664 = vmul.f32 %v4630, %v619
        %v4665 = vmul.f32 %v4633, %v619
        %v4666 = vmul.f32 %v4636, %v619
        %v4667 = vmul.f32 %v4639, %v619
        %v4668 = vmul.f32 %v4642, %v619
        %v4669 = vmul.f32 %v4645, %v619
        %v4670 = vmul.f32 %v4648, %v619
        %v4671 = vmul.f32 %v4651, %v619
        %v4672 = vmul.f32 %v4654, %v619
        %v4673 = vmul.f32 %v4657, %v619
        %v4674 = vadd.f32 %v4658, 1e-05
        %v4675 = vadd.f32 %v4659, 1e-05
        %v4676 = vadd.f32 %v4660, 1e-05
        %v4677 = vadd.f32 %v4661, 1e-05
        %v4678 = vadd.f32 %v4662, 1e-05
        %v4679 = vadd.f32 %v4663, 1e-05
        %v4680 = vadd.f32 %v4664, 1e-05
        %v4681 = vadd.f32 %v4665, 1e-05
        %v4682 = vadd.f32 %v4666, 1e-05
        %v4683 = vadd.f32 %v4667, 1e-05
        %v4684 = vadd.f32 %v4668, 1e-05
        %v4685 = vadd.f32 %v4669, 1e-05
        %v4686 = vadd.f32 %v4670, 1e-05
        %v4687 = vadd.f32 %v4671, 1e-05
        %v4688 = vadd.f32 %v4672, 1e-05
        %v4689 = vadd.f32 %v4673, 1e-05
        %v4690 = vrsqrt.pop %v4674
        %v4691 = vrsqrt.pop %v4675
        %v4692 = vrsqrt.pop %v4676
        %v4693 = vrsqrt.pop %v4677
        %v4694 = vrsqrt.pop %v4678
        %v4695 = vrsqrt.pop %v4679
        %v4696 = vrsqrt.pop %v4680
        %v4697 = vrsqrt.pop %v4681
        %v4698 = vrsqrt.pop %v4682
        %v4699 = vrsqrt.pop %v4683
        %v4700 = vrsqrt.pop %v4684
        %v4701 = vrsqrt.pop %v4685
        %v4702 = vrsqrt.pop %v4686
        %v4703 = vrsqrt.pop %v4687
        %v4704 = vrsqrt.pop %v4688
        %v4705 = vrsqrt.pop %v4689
        %v4706 = vmul.f32 %v4546, %v4690
        %v4707 = vmul.f32 %v4547, %v4690
        %v4708 = vmul.f32 %v4548, %v4691
        %v4709 = vmul.f32 %v4549, %v4691
        %v4710 = vmul.f32 %v4550, %v4692
        %v4711 = vmul.f32 %v4551, %v4692
        %v4712 = vmul.f32 %v4552, %v4693
        %v4713 = vmul.f32 %v4553, %v4693
        %v4714 = vmul.f32 %v4554, %v4694
        %v4715 = vmul.f32 %v4555, %v4694
        %v4716 = vmul.f32 %v4556, %v4695
        %v4717 = vmul.f32 %v4557, %v4695
        %v4718 = vmul.f32 %v4558, %v4696
        %v4719 = vmul.f32 %v4559, %v4696
        %v4720 = vmul.f32 %v4560, %v4697
        %v4721 = vmul.f32 %v4561, %v4697
        %v4722 = vmul.f32 %v4562, %v4698
        %v4723 = vmul.f32 %v4563, %v4698
        %v4724 = vmul.f32 %v4564, %v4699
        %v4725 = vmul.f32 %v4565, %v4699
        %v4726 = vmul.f32 %v4566, %v4700
        %v4727 = vmul.f32 %v4567, %v4700
        %v4728 = vmul.f32 %v4568, %v4701
        %v4729 = vmul.f32 %v4569, %v4701
        %v4730 = vmul.f32 %v4570, %v4702
        %v4731 = vmul.f32 %v4571, %v4702
        %v4732 = vmul.f32 %v4572, %v4703
        %v4733 = vmul.f32 %v4573, %v4703
        %v4734 = vmul.f32 %v4574, %v4704
        %v4735 = vmul.f32 %v4575, %v4704
        %v4736 = vmul.f32 %v4576, %v4705
        %v4737 = vmul.f32 %v4577, %v4705
        %v4738 = vlaneseq
        %v4739 = vshrl.u32 %v4738, 7
        %v4740 = vsub.s32 7, %v4739
        %v4741 = vrot.slane %v567, %v4740
        %v4742 = vlaneseq
        %v4743 = vshrl.u32 %v4742, 7
        %v4744 = vsub.s32 7, %v4743
        %v4745 = vrot.slane %v568, %v4744
        %v4746 = vmul.f32 %v4706, %v4741
        %v4747 = vmul.f32 %v4707, %v4745
        %v4748 = vmul.f32 %v4708, %v4741
        %v4749 = vmul.f32 %v4709, %v4745
        %v4750 = vmul.f32 %v4710, %v4741
        %v4751 = vmul.f32 %v4711, %v4745
        %v4752 = vmul.f32 %v4712, %v4741
        %v4753 = vmul.f32 %v4713, %v4745
        %v4754 = vmul.f32 %v4714, %v4741
        %v4755 = vmul.f32 %v4715, %v4745
        %v4756 = vmul.f32 %v4716, %v4741
        %v4757 = vmul.f32 %v4717, %v4745
        %v4758 = vmul.f32 %v4718, %v4741
        %v4759 = vmul.f32 %v4719, %v4745
        %v4760 = vmul.f32 %v4720, %v4741
        %v4761 = vmul.f32 %v4721, %v4745
        %v4762 = vmul.f32 %v4722, %v4741
        %v4763 = vmul.f32 %v4723, %v4745
        %v4764 = vmul.f32 %v4724, %v4741
        %v4765 = vmul.f32 %v4725, %v4745
        %v4766 = vmul.f32 %v4726, %v4741
        %v4767 = vmul.f32 %v4727, %v4745
        %v4768 = vmul.f32 %v4728, %v4741
        %v4769 = vmul.f32 %v4729, %v4745
        %v4770 = vmul.f32 %v4730, %v4741
        %v4771 = vmul.f32 %v4731, %v4745
        %v4772 = vmul.f32 %v4732, %v4741
        %v4773 = vmul.f32 %v4733, %v4745
        %v4774 = vmul.f32 %v4734, %v4741
        %v4775 = vmul.f32 %v4735, %v4745
        %v4776 = vmul.f32 %v4736, %v4741
        %v4777 = vmul.f32 %v4737, %v4745
        %v4778 = vlaneseq
        %v4779 = vshrl.u32 %v4778, 7
        %v4780 = vsub.s32 0, %v4779
        %v4781 = vrot.slane %v569, %v4780
        %v4782 = vlaneseq
        %v4783 = vshrl.u32 %v4782, 7
        %v4784 = vsub.s32 0, %v4783
        %v4785 = vrot.slane %v570, %v4784
        %v4786 = vadd.f32 %v4746, %v4781
        %v4787 = vadd.f32 %v4747, %v4785
        %v4788 = vadd.f32 %v4748, %v4781
        %v4789 = vadd.f32 %v4749, %v4785
        %v4790 = vadd.f32 %v4750, %v4781
        %v4791 = vadd.f32 %v4751, %v4785
        %v4792 = vadd.f32 %v4752, %v4781
        %v4793 = vadd.f32 %v4753, %v4785
        %v4794 = vadd.f32 %v4754, %v4781
        %v4795 = vadd.f32 %v4755, %v4785
        %v4796 = vadd.f32 %v4756, %v4781
        %v4797 = vadd.f32 %v4757, %v4785
        %v4798 = vadd.f32 %v4758, %v4781
        %v4799 = vadd.f32 %v4759, %v4785
        %v4800 = vadd.f32 %v4760, %v4781
        %v4801 = vadd.f32 %v4761, %v4785
        %v4802 = vadd.f32 %v4762, %v4781
        %v4803 = vadd.f32 %v4763, %v4785
        %v4804 = vadd.f32 %v4764, %v4781
        %v4805 = vadd.f32 %v4765, %v4785
        %v4806 = vadd.f32 %v4766, %v4781
        %v4807 = vadd.f32 %v4767, %v4785
        %v4808 = vadd.f32 %v4768, %v4781
        %v4809 = vadd.f32 %v4769, %v4785
        %v4810 = vadd.f32 %v4770, %v4781
        %v4811 = vadd.f32 %v4771, %v4785
        %v4812 = vadd.f32 %v4772, %v4781
        %v4813 = vadd.f32 %v4773, %v4785
        %v4814 = vadd.f32 %v4774, %v4781
        %v4815 = vadd.f32 %v4775, %v4785
        %v4816 = vadd.f32 %v4776, %v4781
        %v4817 = vadd.f32 %v4777, %v4785
        %v4818 = vpack.c.bf16 %v4788, %v4786
        %v4819 = vpack.c.bf16 %v4789, %v4787
        %v4820 = vpack.c.bf16 %v4792, %v4790
        %v4821 = vpack.c.bf16 %v4793, %v4791
        %v4822 = vpack.c.bf16 %v4796, %v4794
        %v4823 = vpack.c.bf16 %v4797, %v4795
        %v4824 = vpack.c.bf16 %v4800, %v4798
        %v4825 = vpack.c.bf16 %v4801, %v4799
        %v4826 = vpack.c.bf16 %v4804, %v4802
        %v4827 = vpack.c.bf16 %v4805, %v4803
        %v4828 = vpack.c.bf16 %v4808, %v4806
        %v4829 = vpack.c.bf16 %v4809, %v4807
        %v4830 = vpack.c.bf16 %v4812, %v4810
        %v4831 = vpack.c.bf16 %v4813, %v4811
        %v4832 = vpack.c.bf16 %v4816, %v4814
        %v4833 = vpack.c.bf16 %v4817, %v4815
        %v4834 = vld [vmem:[#allocation13] sm:$0xff]
        %v4835 = vld [vmem:[#allocation13 + $0x8] sm:$0xff]
        %v4836 = vld [vmem:[#allocation13 + $0x10] sm:$0xff]
        %v4837 = vld [vmem:[#allocation13 + $0x18] sm:$0xff]
        %v4838 = vld [vmem:[#allocation13 + $0x20] sm:$0xff]
        %v4839 = vld [vmem:[#allocation13 + $0x28] sm:$0xff]
        %v4840 = vld [vmem:[#allocation13 + $0x30] sm:$0xff]
        %v4841 = vld [vmem:[#allocation13 + $0x38] sm:$0xff]
        %v4842 = vld [vmem:[#allocation13 + $0x40] sm:$0xff]
        %v4843 = vld [vmem:[#allocation13 + $0x48] sm:$0xff]
        %v4844 = vld [vmem:[#allocation13 + $0x50] sm:$0xff]
        %v4845 = vld [vmem:[#allocation13 + $0x58] sm:$0xff]
        %v4846 = vld [vmem:[#allocation13 + $0x60] sm:$0xff]
        %v4847 = vld [vmem:[#allocation13 + $0x68] sm:$0xff]
        %v4848 = vld [vmem:[#allocation13 + $0x70] sm:$0xff]
        %v4849 = vld [vmem:[#allocation13 + $0x78] sm:$0xff]
        %v4850 = vld [vmem:[#allocation13 + $0x80] sm:$0xff]
        %v4851 = vld [vmem:[#allocation13 + $0x88] sm:$0xff]
        %v4852 = vld [vmem:[#allocation13 + $0x90] sm:$0xff]
        %v4853 = vld [vmem:[#allocation13 + $0x98] sm:$0xff]
        %v4854 = vld [vmem:[#allocation13 + $0xa0] sm:$0xff]
        %v4855 = vld [vmem:[#allocation13 + $0xa8] sm:$0xff]
        %v4856 = vld [vmem:[#allocation13 + $0xb0] sm:$0xff]
        %v4857 = vld [vmem:[#allocation13 + $0xb8] sm:$0xff]
        %v4858 = vld [vmem:[#allocation13 + $0xc0] sm:$0xff]
        %v4859 = vld [vmem:[#allocation13 + $0xc8] sm:$0xff]
        %v4860 = vld [vmem:[#allocation13 + $0xd0] sm:$0xff]
        %v4861 = vld [vmem:[#allocation13 + $0xd8] sm:$0xff]
        %v4862 = vld [vmem:[#allocation13 + $0xe0] sm:$0xff]
        %v4863 = vld [vmem:[#allocation13 + $0xe8] sm:$0xff]
        %v4864 = vld [vmem:[#allocation13 + $0xf0] sm:$0xff]
        %v4865 = vld [vmem:[#allocation13 + $0xf8] sm:$0xff]
        %v4866 = vld [vmem:[#allocation13 + $0x100] sm:$0xff]
        %v4867 = vld [vmem:[#allocation13 + $0x108] sm:$0xff]
        %v4868 = vld [vmem:[#allocation13 + $0x110] sm:$0xff]
        %v4869 = vld [vmem:[#allocation13 + $0x118] sm:$0xff]
        %v4870 = vld [vmem:[#allocation13 + $0x120] sm:$0xff]
        %v4871 = vld [vmem:[#allocation13 + $0x128] sm:$0xff]
        %v4872 = vld [vmem:[#allocation13 + $0x130] sm:$0xff]
        %v4873 = vld [vmem:[#allocation13 + $0x138] sm:$0xff]
        %v4874 = vld [vmem:[#allocation13 + $0x140] sm:$0xff]
        %v4875 = vld [vmem:[#allocation13 + $0x148] sm:$0xff]
        %v4876 = vld [vmem:[#allocation13 + $0x150] sm:$0xff]
        %v4877 = vld [vmem:[#allocation13 + $0x158] sm:$0xff]
        %v4878 = vld [vmem:[#allocation13 + $0x160] sm:$0xff]
        %v4879 = vld [vmem:[#allocation13 + $0x168] sm:$0xff]
        %v4880 = vld [vmem:[#allocation13 + $0x170] sm:$0xff]
        %v4881 = vld [vmem:[#allocation13 + $0x178] sm:$0xff]
        %v4882 = vld [vmem:[#allocation13 + $0x180] sm:$0xff]
        %v4883 = vld [vmem:[#allocation13 + $0x188] sm:$0xff]
        %v4884 = vld [vmem:[#allocation13 + $0x190] sm:$0xff]
        %v4885 = vld [vmem:[#allocation13 + $0x198] sm:$0xff]
        %v4886 = vld [vmem:[#allocation13 + $0x1a0] sm:$0xff]
        %v4887 = vld [vmem:[#allocation13 + $0x1a8] sm:$0xff]
        %v4888 = vld [vmem:[#allocation13 + $0x1b0] sm:$0xff]
        %v4889 = vld [vmem:[#allocation13 + $0x1b8] sm:$0xff]
        %v4890 = vld [vmem:[#allocation13 + $0x1c0] sm:$0xff]
        %v4891 = vld [vmem:[#allocation13 + $0x1c8] sm:$0xff]
        %v4892 = vld [vmem:[#allocation13 + $0x1d0] sm:$0xff]
        %v4893 = vld [vmem:[#allocation13 + $0x1d8] sm:$0xff]
        %v4894 = vld [vmem:[#allocation13 + $0x1e0] sm:$0xff]
        %v4895 = vld [vmem:[#allocation13 + $0x1e8] sm:$0xff]
        %v4896 = vld [vmem:[#allocation13 + $0x1f0] sm:$0xff]
        %v4897 = vld [vmem:[#allocation13 + $0x1f8] sm:$0xff]
        %v4898 = vld [vmem:[#allocation17] sm:$0xf]
        %v4900 = vlaneseq
        %v4901 = vshrl.u32 %v4900, 7
        %v4902 = vsub.s32 0, %v4901
        %v4903 = vrot.slane %v4898, %v4902
        %v4904 = vlaneseq
        %v4905 = vshrl.u32 %v4904, 7
        %v4906 = vsub.s32 1, %v4905
        %v4907 = vrot.slane %v4898, %v4906
        %v4908 = vlaneseq
        %v4909 = vshrl.u32 %v4908, 7
        %v4910 = vsub.s32 2, %v4909
        %v4911 = vrot.slane %v4898, %v4910
        %v4912 = vlaneseq
        %v4913 = vshrl.u32 %v4912, 7
        %v4914 = vsub.s32 3, %v4913
        %v4915 = vrot.slane %v4898, %v4914
        %v4984 = vunpack.c.l.b16 %v4834
        %v4985 = vunpack.c.h.b16 %v4834
        %v4986 = vunpack.c.l.b16 %v4835
        %v4987 = vunpack.c.h.b16 %v4835
        %v4988 = vunpack.c.l.b16 %v4836
        %v4989 = vunpack.c.h.b16 %v4836
        %v4990 = vunpack.c.l.b16 %v4837
        %v4991 = vunpack.c.h.b16 %v4837
        %v4992 = vunpack.c.l.b16 %v4838
        %v4993 = vunpack.c.h.b16 %v4838
        %v4994 = vunpack.c.l.b16 %v4839
        %v4995 = vunpack.c.h.b16 %v4839
        %v4996 = vunpack.c.l.b16 %v4840
        %v4997 = vunpack.c.h.b16 %v4840
        %v4998 = vunpack.c.l.b16 %v4841
        %v4999 = vunpack.c.h.b16 %v4841
        %v5000 = vunpack.c.l.b16 %v4842
        %v5001 = vunpack.c.h.b16 %v4842
        %v5002 = vunpack.c.l.b16 %v4843
        %v5003 = vunpack.c.h.b16 %v4843
        %v5004 = vunpack.c.l.b16 %v4844
        %v5005 = vunpack.c.h.b16 %v4844
        %v5006 = vunpack.c.l.b16 %v4845
        %v5007 = vunpack.c.h.b16 %v4845
        %v5008 = vunpack.c.l.b16 %v4846
        %v5009 = vunpack.c.h.b16 %v4846
        %v5010 = vunpack.c.l.b16 %v4847
        %v5011 = vunpack.c.h.b16 %v4847
        %v5012 = vunpack.c.l.b16 %v4848
        %v5013 = vunpack.c.h.b16 %v4848
        %v5014 = vunpack.c.l.b16 %v4849
        %v5015 = vunpack.c.h.b16 %v4849
        %v5016 = vunpack.c.l.b16 %v4850
        %v5017 = vunpack.c.h.b16 %v4850
        %v5018 = vunpack.c.l.b16 %v4851
        %v5019 = vunpack.c.h.b16 %v4851
        %v5020 = vunpack.c.l.b16 %v4852
        %v5021 = vunpack.c.h.b16 %v4852
        %v5022 = vunpack.c.l.b16 %v4853
        %v5023 = vunpack.c.h.b16 %v4853
        %v5024 = vunpack.c.l.b16 %v4854
        %v5025 = vunpack.c.h.b16 %v4854
        %v5026 = vunpack.c.l.b16 %v4855
        %v5027 = vunpack.c.h.b16 %v4855
        %v5028 = vunpack.c.l.b16 %v4856
        %v5029 = vunpack.c.h.b16 %v4856
        %v5030 = vunpack.c.l.b16 %v4857
        %v5031 = vunpack.c.h.b16 %v4857
        %v5032 = vunpack.c.l.b16 %v4858
        %v5033 = vunpack.c.h.b16 %v4858
        %v5034 = vunpack.c.l.b16 %v4859
        %v5035 = vunpack.c.h.b16 %v4859
        %v5036 = vunpack.c.l.b16 %v4860
        %v5037 = vunpack.c.h.b16 %v4860
        %v5038 = vunpack.c.l.b16 %v4861
        %v5039 = vunpack.c.h.b16 %v4861
        %v5040 = vunpack.c.l.b16 %v4862
        %v5041 = vunpack.c.h.b16 %v4862
        %v5042 = vunpack.c.l.b16 %v4863
        %v5043 = vunpack.c.h.b16 %v4863
        %v5044 = vunpack.c.l.b16 %v4864
        %v5045 = vunpack.c.h.b16 %v4864
        %v5046 = vunpack.c.l.b16 %v4865
        %v5047 = vunpack.c.h.b16 %v4865
        %v5048 = vunpack.c.l.b16 %v4866
        %v5049 = vunpack.c.h.b16 %v4866
        %v5050 = vunpack.c.l.b16 %v4867
        %v5051 = vunpack.c.h.b16 %v4867
        %v5052 = vunpack.c.l.b16 %v4868
        %v5053 = vunpack.c.h.b16 %v4868
        %v5054 = vunpack.c.l.b16 %v4869
        %v5055 = vunpack.c.h.b16 %v4869
        %v5056 = vunpack.c.l.b16 %v4870
        %v5057 = vunpack.c.h.b16 %v4870
        %v5058 = vunpack.c.l.b16 %v4871
        %v5059 = vunpack.c.h.b16 %v4871
        %v5060 = vunpack.c.l.b16 %v4872
        %v5061 = vunpack.c.h.b16 %v4872
        %v5062 = vunpack.c.l.b16 %v4873
        %v5063 = vunpack.c.h.b16 %v4873
        %v5064 = vunpack.c.l.b16 %v4874
        %v5065 = vunpack.c.h.b16 %v4874
        %v5066 = vunpack.c.l.b16 %v4875
        %v5067 = vunpack.c.h.b16 %v4875
        %v5068 = vunpack.c.l.b16 %v4876
        %v5069 = vunpack.c.h.b16 %v4876
        %v5070 = vunpack.c.l.b16 %v4877
        %v5071 = vunpack.c.h.b16 %v4877
        %v5072 = vunpack.c.l.b16 %v4878
        %v5073 = vunpack.c.h.b16 %v4878
        %v5074 = vunpack.c.l.b16 %v4879
        %v5075 = vunpack.c.h.b16 %v4879
        %v5076 = vunpack.c.l.b16 %v4880
        %v5077 = vunpack.c.h.b16 %v4880
        %v5078 = vunpack.c.l.b16 %v4881
        %v5079 = vunpack.c.h.b16 %v4881
        %v5080 = vunpack.c.l.b16 %v4882
        %v5081 = vunpack.c.h.b16 %v4882
        %v5082 = vunpack.c.l.b16 %v4883
        %v5083 = vunpack.c.h.b16 %v4883
        %v5084 = vunpack.c.l.b16 %v4884
        %v5085 = vunpack.c.h.b16 %v4884
        %v5086 = vunpack.c.l.b16 %v4885
        %v5087 = vunpack.c.h.b16 %v4885
        %v5088 = vunpack.c.l.b16 %v4886
        %v5089 = vunpack.c.h.b16 %v4886
        %v5090 = vunpack.c.l.b16 %v4887
        %v5091 = vunpack.c.h.b16 %v4887
        %v5092 = vunpack.c.l.b16 %v4888
        %v5093 = vunpack.c.h.b16 %v4888
        %v5094 = vunpack.c.l.b16 %v4889
        %v5095 = vunpack.c.h.b16 %v4889
        %v5096 = vunpack.c.l.b16 %v4890
        %v5097 = vunpack.c.h.b16 %v4890
        %v5098 = vunpack.c.l.b16 %v4891
        %v5099 = vunpack.c.h.b16 %v4891
        %v5100 = vunpack.c.l.b16 %v4892
        %v5101 = vunpack.c.h.b16 %v4892
        %v5102 = vunpack.c.l.b16 %v4893
        %v5103 = vunpack.c.h.b16 %v4893
        %v5104 = vunpack.c.l.b16 %v4894
        %v5105 = vunpack.c.h.b16 %v4894
        %v5106 = vunpack.c.l.b16 %v4895
        %v5107 = vunpack.c.h.b16 %v4895
        %v5108 = vunpack.c.l.b16 %v4896
        %v5109 = vunpack.c.h.b16 %v4896
        %v5110 = vunpack.c.l.b16 %v4897
        %v5111 = vunpack.c.h.b16 %v4897
        %v5112 = vpack.c.b16 %v4988, %v4984
        %v5113 = vpack.c.b16 %v4989, %v4985
        %v5114 = vpack.c.b16 %v4990, %v4986
        %v5115 = vpack.c.b16 %v4991, %v4987
        %v5116 = vpack.c.b16 %v4996, %v4992
        %v5117 = vpack.c.b16 %v4997, %v4993
        %v5118 = vpack.c.b16 %v4998, %v4994
        %v5119 = vpack.c.b16 %v4999, %v4995
        %v5120 = vpack.c.b16 %v5004, %v5000
        %v5121 = vpack.c.b16 %v5005, %v5001
        %v5122 = vpack.c.b16 %v5006, %v5002
        %v5123 = vpack.c.b16 %v5007, %v5003
        %v5124 = vpack.c.b16 %v5012, %v5008
        %v5125 = vpack.c.b16 %v5013, %v5009
        %v5126 = vpack.c.b16 %v5014, %v5010
        %v5127 = vpack.c.b16 %v5015, %v5011
        %v5128 = vpack.c.b16 %v5020, %v5016
        %v5129 = vpack.c.b16 %v5021, %v5017
        %v5130 = vpack.c.b16 %v5022, %v5018
        %v5131 = vpack.c.b16 %v5023, %v5019
        %v5132 = vpack.c.b16 %v5028, %v5024
        %v5133 = vpack.c.b16 %v5029, %v5025
        %v5134 = vpack.c.b16 %v5030, %v5026
        %v5135 = vpack.c.b16 %v5031, %v5027
        %v5136 = vpack.c.b16 %v5036, %v5032
        %v5137 = vpack.c.b16 %v5037, %v5033
        %v5138 = vpack.c.b16 %v5038, %v5034
        %v5139 = vpack.c.b16 %v5039, %v5035
        %v5140 = vpack.c.b16 %v5044, %v5040
        %v5141 = vpack.c.b16 %v5045, %v5041
        %v5142 = vpack.c.b16 %v5046, %v5042
        %v5143 = vpack.c.b16 %v5047, %v5043
        %v5144 = vpack.c.b16 %v5052, %v5048
        %v5145 = vpack.c.b16 %v5053, %v5049
        %v5146 = vpack.c.b16 %v5054, %v5050
        %v5147 = vpack.c.b16 %v5055, %v5051
        %v5148 = vpack.c.b16 %v5060, %v5056
        %v5149 = vpack.c.b16 %v5061, %v5057
        %v5150 = vpack.c.b16 %v5062, %v5058
        %v5151 = vpack.c.b16 %v5063, %v5059
        %v5152 = vpack.c.b16 %v5068, %v5064
        %v5153 = vpack.c.b16 %v5069, %v5065
        %v5154 = vpack.c.b16 %v5070, %v5066
        %v5155 = vpack.c.b16 %v5071, %v5067
        %v5156 = vpack.c.b16 %v5076, %v5072
        %v5157 = vpack.c.b16 %v5077, %v5073
        %v5158 = vpack.c.b16 %v5078, %v5074
        %v5159 = vpack.c.b16 %v5079, %v5075
        %v5160 = vpack.c.b16 %v5084, %v5080
        %v5161 = vpack.c.b16 %v5085, %v5081
        %v5162 = vpack.c.b16 %v5086, %v5082
        %v5163 = vpack.c.b16 %v5087, %v5083
        %v5164 = vpack.c.b16 %v5092, %v5088
        %v5165 = vpack.c.b16 %v5093, %v5089
        %v5166 = vpack.c.b16 %v5094, %v5090
        %v5167 = vpack.c.b16 %v5095, %v5091
        %v5168 = vpack.c.b16 %v5100, %v5096
        %v5169 = vpack.c.b16 %v5101, %v5097
        %v5170 = vpack.c.b16 %v5102, %v5098
        %v5171 = vpack.c.b16 %v5103, %v5099
        %v5172 = vpack.c.b16 %v5108, %v5104
        %v5173 = vpack.c.b16 %v5109, %v5105
        %v5174 = vpack.c.b16 %v5110, %v5106
        %v5175 = vpack.c.b16 %v5111, %v5107
        %5240 = vmatprep.subr.bf16.mxu0 %v5113
        %5241 = vmatpush1.bf16.msra.mxu0 %v5112
        %5242 = vmatprep.subr.bf16.mxu0 %v5117
        %5243 = vmatpush1.bf16.msra.mxu0 %v5116
        %5244 = vmatprep.subr.bf16.mxu0 %v5121
        %5245 = vmatpush1.bf16.msra.mxu0 %v5120
        %5246 = vmatprep.subr.bf16.mxu0 %v5125
        %5247 = vmatpush1.bf16.msra.mxu0 %v5124
        %5248 = vmatprep.subr.bf16.mxu0 %v5129
        %5249 = vmatpush1.bf16.msra.mxu0 %v5128
        %5250 = vmatprep.subr.bf16.mxu0 %v5133
        %5251 = vmatpush1.bf16.msra.mxu0 %v5132
        %5252 = vmatprep.subr.bf16.mxu0 %v5137
        %5253 = vmatpush1.bf16.msra.mxu0 %v5136
        %5254 = vmatprep.subr.bf16.mxu0 %v5141
        %5255 = vmatpush1.bf16.msra.mxu0 %v5140
        %5256 = vmatprep.subr.bf16.mxu0 %v5145
        %5257 = vmatpush1.bf16.msra.mxu0 %v5144
        %5258 = vmatprep.subr.bf16.mxu0 %v5149
        %5259 = vmatpush1.bf16.msra.mxu0 %v5148
        %5260 = vmatprep.subr.bf16.mxu0 %v5153
        %5261 = vmatpush1.bf16.msra.mxu0 %v5152
        %5262 = vmatprep.subr.bf16.mxu0 %v5157
        %5263 = vmatpush1.bf16.msra.mxu0 %v5156
        %5264 = vmatprep.subr.bf16.mxu0 %v5161
        %5265 = vmatpush1.bf16.msra.mxu0 %v5160
        %5266 = vmatprep.subr.bf16.mxu0 %v5165
        %5267 = vmatpush1.bf16.msra.mxu0 %v5164
        %5268 = vmatprep.subr.bf16.mxu0 %v5169
        %5269 = vmatpush1.bf16.msra.mxu0 %v5168
        %5270 = vmatprep.subr.bf16.mxu0 %v5173
        %5271 = vmatpush1.bf16.msra.mxu0 %v5172
        %5272 = vmatprep.mubr.bf16.mxu0 %v4819
        %5273 = vmatmul.mubr.bf16.gmra.mrb[0].mxu0 %v4818
        %v5274 = vpop.f32.mrb[0].mxu0
        %v5275 = vadd.f32 %v4903, %v5274
        %v5276 = vpop.f32.mrb[0].mxu0
        %v5277 = vadd.f32 %v4907, %v5276
        %v5278 = vpop.f32.mrb[0].mxu0
        %v5279 = vadd.f32 %v4903, %v5278
        %v5280 = vpop.f32.mrb[0].mxu0
        %v5281 = vadd.f32 %v4907, %v5280
        %5282 = vmatprep.mubr.bf16.mxu0 %v4821
        %5283 = vmatmul.mubr.bf16.gmra.mrb[0].mxu0 %v4820
        %v5284 = vpop.f32.mrb[0].mxu0
        %v5285 = vadd.f32 %v4903, %v5284
        %v5286 = vpop.f32.mrb[0].mxu0
        %v5287 = vadd.f32 %v4907, %v5286
        %v5288 = vpop.f32.mrb[0].mxu0
        %v5289 = vadd.f32 %v4903, %v5288
        %v5290 = vpop.f32.mrb[0].mxu0
        %v5291 = vadd.f32 %v4907, %v5290
        %5292 = vmatprep.mubr.bf16.mxu0 %v4823
        %5293 = vmatmul.mubr.bf16.gmra.mrb[0].mxu0 %v4822
        %v5294 = vpop.f32.mrb[0].mxu0
        %v5295 = vadd.f32 %v4903, %v5294
        %v5296 = vpop.f32.mrb[0].mxu0
        %v5297 = vadd.f32 %v4907, %v5296
        %v5298 = vpop.f32.mrb[0].mxu0
        %v5299 = vadd.f32 %v4903, %v5298
        %v5300 = vpop.f32.mrb[0].mxu0
        %v5301 = vadd.f32 %v4907, %v5300
        %5302 = vmatprep.mubr.bf16.mxu0 %v4825
        %5303 = vmatmul.mubr.bf16.gmra.mrb[0].mxu0 %v4824
        %v5304 = vpop.f32.mrb[0].mxu0
        %v5305 = vadd.f32 %v4903, %v5304
        %v5306 = vpop.f32.mrb[0].mxu0
        %v5307 = vadd.f32 %v4907, %v5306
        %v5308 = vpop.f32.mrb[0].mxu0
        %v5309 = vadd.f32 %v4903, %v5308
        %v5310 = vpop.f32.mrb[0].mxu0
        %v5311 = vadd.f32 %v4907, %v5310
        %5312 = vmatprep.mubr.bf16.mxu0 %v4827
        %5313 = vmatmul.mubr.bf16.gmra.mrb[0].mxu0 %v4826
        %v5314 = vpop.f32.mrb[0].mxu0
        %v5315 = vadd.f32 %v4903, %v5314
        %v5316 = vpop.f32.mrb[0].mxu0
        %v5317 = vadd.f32 %v4907, %v5316
        %v5318 = vpop.f32.mrb[0].mxu0
        %v5319 = vadd.f32 %v4903, %v5318
        %v5320 = vpop.f32.mrb[0].mxu0
        %v5321 = vadd.f32 %v4907, %v5320
        %5322 = vmatprep.mubr.bf16.mxu0 %v4829
        %5323 = vmatmul.mubr.bf16.gmra.mrb[0].mxu0 %v4828
        %v5324 = vpop.f32.mrb[0].mxu0
        %v5325 = vadd.f32 %v4903, %v5324
        %v5326 = vpop.f32.mrb[0].mxu0
        %v5327 = vadd.f32 %v4907, %v5326
        %v5328 = vpop.f32.mrb[0].mxu0
        %v5329 = vadd.f32 %v4903, %v5328
        %v5330 = vpop.f32.mrb[0].mxu0
        %v5331 = vadd.f32 %v4907, %v5330
        %5332 = vmatprep.mubr.bf16.mxu0 %v4831
        %5333 = vmatmul.mubr.bf16.gmra.mrb[0].mxu0 %v4830
        %v5334 = vpop.f32.mrb[0].mxu0
        %v5335 = vadd.f32 %v4903, %v5334
        %v5336 = vpop.f32.mrb[0].mxu0
        %v5337 = vadd.f32 %v4907, %v5336
        %v5338 = vpop.f32.mrb[0].mxu0
        %v5339 = vadd.f32 %v4903, %v5338
        %v5340 = vpop.f32.mrb[0].mxu0
        %v5341 = vadd.f32 %v4907, %v5340
        %5342 = vmatprep.mubr.bf16.mxu0 %v4833
        %5343 = vmatmul.mubr.bf16.gmra.mrb[0].mxu0 %v4832
        %v5344 = vpop.f32.mrb[0].mxu0
        %v5345 = vadd.f32 %v4903, %v5344
        %v5346 = vpop.f32.mrb[0].mxu0
        %v5347 = vadd.f32 %v4907, %v5346
        %v5348 = vpop.f32.mrb[0].mxu0
        %v5349 = vadd.f32 %v4903, %v5348
        %v5350 = vpop.f32.mrb[0].mxu0
        %v5351 = vadd.f32 %v4907, %v5350
        %5352 = vdwg.mxu0
        %5353 = vmatprep.subr.bf16.mxu0 %v5115
        %5354 = vmatpush1.bf16.msra.mxu0 %v5114
        %5355 = vmatprep.subr.bf16.mxu0 %v5119
        %5356 = vmatpush1.bf16.msra.mxu0 %v5118
        %5357 = vmatprep.subr.bf16.mxu0 %v5123
        %5358 = vmatpush1.bf16.msra.mxu0 %v5122
        %5359 = vmatprep.subr.bf16.mxu0 %v5127
        %5360 = vmatpush1.bf16.msra.mxu0 %v5126
        %5361 = vmatprep.subr.bf16.mxu0 %v5131
        %5362 = vmatpush1.bf16.msra.mxu0 %v5130
        %5363 = vmatprep.subr.bf16.mxu0 %v5135
        %5364 = vmatpush1.bf16.msra.mxu0 %v5134
        %5365 = vmatprep.subr.bf16.mxu0 %v5139
        %5366 = vmatpush1.bf16.msra.mxu0 %v5138
        %5367 = vmatprep.subr.bf16.mxu0 %v5143
        %5368 = vmatpush1.bf16.msra.mxu0 %v5142
        %5369 = vmatprep.subr.bf16.mxu0 %v5147
        %5370 = vmatpush1.bf16.msra.mxu0 %v5146
        %5371 = vmatprep.subr.bf16.mxu0 %v5151
        %5372 = vmatpush1.bf16.msra.mxu0 %v5150
        %5373 = vmatprep.subr.bf16.mxu0 %v5155
        %5374 = vmatpush1.bf16.msra.mxu0 %v5154
        %5375 = vmatprep.subr.bf16.mxu0 %v5159
        %5376 = vmatpush1.bf16.msra.mxu0 %v5158
        %5377 = vmatprep.subr.bf16.mxu0 %v5163
        %5378 = vmatpush1.bf16.msra.mxu0 %v5162
        %5379 = vmatprep.subr.bf16.mxu0 %v5167
        %5380 = vmatpush1.bf16.msra.mxu0 %v5166
        %5381 = vmatprep.subr.bf16.mxu0 %v5171
        %5382 = vmatpush1.bf16.msra.mxu0 %v5170
        %5383 = vmatprep.subr.bf16.mxu0 %v5175
        %5384 = vmatpush1.bf16.msra.mxu0 %v5174
        %5385 = vmatprep.mubr.bf16.mxu0 %v4819
        %5386 = vmatmul.mubr.bf16.gmra.mrb[0].mxu0 %v4818
        %v5387 = vpop.f32.mrb[0].mxu0
        %v5388 = vadd.f32 %v4911, %v5387
        %v5389 = vpop.f32.mrb[0].mxu0
        %v5390 = vadd.f32 %v4915, %v5389
        %v5391 = vpop.f32.mrb[0].mxu0
        %v5392 = vadd.f32 %v4911, %v5391
        %v5393 = vpop.f32.mrb[0].mxu0
        %v5394 = vadd.f32 %v4915, %v5393
        %5395 = vmatprep.mubr.bf16.mxu0 %v4821
        %5396 = vmatmul.mubr.bf16.gmra.mrb[0].mxu0 %v4820
        %v5397 = vpop.f32.mrb[0].mxu0
        %v5398 = vadd.f32 %v4911, %v5397
        %v5399 = vpop.f32.mrb[0].mxu0
        %v5400 = vadd.f32 %v4915, %v5399
        %v5401 = vpop.f32.mrb[0].mxu0
        %v5402 = vadd.f32 %v4911, %v5401
        %v5403 = vpop.f32.mrb[0].mxu0
        %v5404 = vadd.f32 %v4915, %v5403
        %5405 = vmatprep.mubr.bf16.mxu0 %v4823
        %5406 = vmatmul.mubr.bf16.gmra.mrb[0].mxu0 %v4822
        %v5407 = vpop.f32.mrb[0].mxu0
        %v5408 = vadd.f32 %v4911, %v5407
        %v5409 = vpop.f32.mrb[0].mxu0
        %v5410 = vadd.f32 %v4915, %v5409
        %v5411 = vpop.f32.mrb[0].mxu0
        %v5412 = vadd.f32 %v4911, %v5411
        %v5413 = vpop.f32.mrb[0].mxu0
        %v5414 = vadd.f32 %v4915, %v5413
        %5415 = vmatprep.mubr.bf16.mxu0 %v4825
        %5416 = vmatmul.mubr.bf16.gmra.mrb[0].mxu0 %v4824
        %v5417 = vpop.f32.mrb[0].mxu0
        %v5418 = vadd.f32 %v4911, %v5417
        %v5419 = vpop.f32.mrb[0].mxu0
        %v5420 = vadd.f32 %v4915, %v5419
        %v5421 = vpop.f32.mrb[0].mxu0
        %v5422 = vadd.f32 %v4911, %v5421
        %v5423 = vpop.f32.mrb[0].mxu0
        %v5424 = vadd.f32 %v4915, %v5423
        %5425 = vmatprep.mubr.bf16.mxu0 %v4827
        %5426 = vmatmul.mubr.bf16.gmra.mrb[0].mxu0 %v4826
        %v5427 = vpop.f32.mrb[0].mxu0
        %v5428 = vadd.f32 %v4911, %v5427
        %v5429 = vpop.f32.mrb[0].mxu0
        %v5430 = vadd.f32 %v4915, %v5429
        %v5431 = vpop.f32.mrb[0].mxu0
        %v5432 = vadd.f32 %v4911, %v5431
        %v5433 = vpop.f32.mrb[0].mxu0
        %v5434 = vadd.f32 %v4915, %v5433
        %5435 = vmatprep.mubr.bf16.mxu0 %v4829
        %5436 = vmatmul.mubr.bf16.gmra.mrb[0].mxu0 %v4828
        %v5437 = vpop.f32.mrb[0].mxu0
        %v5438 = vadd.f32 %v4911, %v5437
        %v5439 = vpop.f32.mrb[0].mxu0
        %v5440 = vadd.f32 %v4915, %v5439
        %v5441 = vpop.f32.mrb[0].mxu0
        %v5442 = vadd.f32 %v4911, %v5441
        %v5443 = vpop.f32.mrb[0].mxu0
        %v5444 = vadd.f32 %v4915, %v5443
        %5445 = vmatprep.mubr.bf16.mxu0 %v4831
        %5446 = vmatmul.mubr.bf16.gmra.mrb[0].mxu0 %v4830
        %v5447 = vpop.f32.mrb[0].mxu0
        %v5448 = vadd.f32 %v4911, %v5447
        %v5449 = vpop.f32.mrb[0].mxu0
        %v5450 = vadd.f32 %v4915, %v5449
        %v5451 = vpop.f32.mrb[0].mxu0
        %v5452 = vadd.f32 %v4911, %v5451
        %v5453 = vpop.f32.mrb[0].mxu0
        %v5454 = vadd.f32 %v4915, %v5453
        %5455 = vmatprep.mubr.bf16.mxu0 %v4833
        %5456 = vmatmul.mubr.bf16.gmra.mrb[0].mxu0 %v4832
        %v5457 = vpop.f32.mrb[0].mxu0
        %v5458 = vadd.f32 %v4911, %v5457
        %v5459 = vpop.f32.mrb[0].mxu0
        %v5460 = vadd.f32 %v4915, %v5459
        %v5461 = vpop.f32.mrb[0].mxu0
        %v5462 = vadd.f32 %v4911, %v5461
        %v5463 = vpop.f32.mrb[0].mxu0
        %v5464 = vadd.f32 %v4915, %v5463
        %5465 = vdwg.mxu0
        %v5466 = vmax.f32 %v5275, 0.0
        %v5467 = vmax.f32 %v5277, 0.0
        %v5468 = vmax.f32 %v5388, 0.0
        %v5469 = vmax.f32 %v5390, 0.0
        %v5470 = vmax.f32 %v5279, 0.0
        %v5471 = vmax.f32 %v5281, 0.0
        %v5472 = vmax.f32 %v5392, 0.0
        %v5473 = vmax.f32 %v5394, 0.0
        %v5474 = vmax.f32 %v5285, 0.0
        %v5475 = vmax.f32 %v5287, 0.0
        %v5476 = vmax.f32 %v5398, 0.0
        %v5477 = vmax.f32 %v5400, 0.0
        %v5478 = vmax.f32 %v5289, 0.0
        %v5479 = vmax.f32 %v5291, 0.0
        %v5480 = vmax.f32 %v5402, 0.0
        %v5481 = vmax.f32 %v5404, 0.0
        %v5482 = vmax.f32 %v5295, 0.0
        %v5483 = vmax.f32 %v5297, 0.0
        %v5484 = vmax.f32 %v5408, 0.0
        %v5485 = vmax.f32 %v5410, 0.0
        %v5486 = vmax.f32 %v5299, 0.0
        %v5487 = vmax.f32 %v5301, 0.0
        %v5488 = vmax.f32 %v5412, 0.0
        %v5489 = vmax.f32 %v5414, 0.0
        %v5490 = vmax.f32 %v5305, 0.0
        %v5491 = vmax.f32 %v5307, 0.0
        %v5492 = vmax.f32 %v5418, 0.0
        %v5493 = vmax.f32 %v5420, 0.0
        %v5494 = vmax.f32 %v5309, 0.0
        %v5495 = vmax.f32 %v5311, 0.0
        %v5496 = vmax.f32 %v5422, 0.0
        %v5497 = vmax.f32 %v5424, 0.0
        %v5498 = vmax.f32 %v5315, 0.0
        %v5499 = vmax.f32 %v5317, 0.0
        %v5500 = vmax.f32 %v5428, 0.0
        %v5501 = vmax.f32 %v5430, 0.0
        %v5502 = vmax.f32 %v5319, 0.0
        %v5503 = vmax.f32 %v5321, 0.0
        %v5504 = vmax.f32 %v5432, 0.0
        %v5505 = vmax.f32 %v5434, 0.0
        %v5506 = vmax.f32 %v5325, 0.0
        %v5507 = vmax.f32 %v5327, 0.0
        %v5508 = vmax.f32 %v5438, 0.0
        %v5509 = vmax.f32 %v5440, 0.0
        %v5510 = vmax.f32 %v5329, 0.0
        %v5511 = vmax.f32 %v5331, 0.0
        %v5512 = vmax.f32 %v5442, 0.0
        %v5513 = vmax.f32 %v5444, 0.0
        %v5514 = vmax.f32 %v5335, 0.0
        %v5515 = vmax.f32 %v5337, 0.0
        %v5516 = vmax.f32 %v5448, 0.0
        %v5517 = vmax.f32 %v5450, 0.0
        %v5518 = vmax.f32 %v5339, 0.0
        %v5519 = vmax.f32 %v5341, 0.0
        %v5520 = vmax.f32 %v5452, 0.0
        %v5521 = vmax.f32 %v5454, 0.0
        %v5522 = vmax.f32 %v5345, 0.0
        %v5523 = vmax.f32 %v5347, 0.0
        %v5524 = vmax.f32 %v5458, 0.0
        %v5525 = vmax.f32 %v5460, 0.0
        %v5526 = vmax.f32 %v5349, 0.0
        %v5527 = vmax.f32 %v5351, 0.0
        %v5528 = vmax.f32 %v5462, 0.0
        %v5529 = vmax.f32 %v5464, 0.0
        %v5530 = vpack.c.bf16 %v5470, %v5466
        %v5531 = vpack.c.bf16 %v5471, %v5467
        %v5532 = vpack.c.bf16 %v5472, %v5468
        %v5533 = vpack.c.bf16 %v5473, %v5469
        %v5534 = vpack.c.bf16 %v5478, %v5474
        %v5535 = vpack.c.bf16 %v5479, %v5475
        %v5536 = vpack.c.bf16 %v5480, %v5476
        %v5537 = vpack.c.bf16 %v5481, %v5477
        %v5538 = vpack.c.bf16 %v5486, %v5482
        %v5539 = vpack.c.bf16 %v5487, %v5483
        %v5540 = vpack.c.bf16 %v5488, %v5484
        %v5541 = vpack.c.bf16 %v5489, %v5485
        %v5542 = vpack.c.bf16 %v5494, %v5490
        %v5543 = vpack.c.bf16 %v5495, %v5491
        %v5544 = vpack.c.bf16 %v5496, %v5492
        %v5545 = vpack.c.bf16 %v5497, %v5493
        %v5546 = vpack.c.bf16 %v5502, %v5498
        %v5547 = vpack.c.bf16 %v5503, %v5499
        %v5548 = vpack.c.bf16 %v5504, %v5500
        %v5549 = vpack.c.bf16 %v5505, %v5501
        %v5550 = vpack.c.bf16 %v5510, %v5506
        %v5551 = vpack.c.bf16 %v5511, %v5507
        %v5552 = vpack.c.bf16 %v5512, %v5508
        %v5553 = vpack.c.bf16 %v5513, %v5509
        %v5554 = vpack.c.bf16 %v5518, %v5514
        %v5555 = vpack.c.bf16 %v5519, %v5515
        %v5556 = vpack.c.bf16 %v5520, %v5516
        %v5557 = vpack.c.bf16 %v5521, %v5517
        %v5558 = vpack.c.bf16 %v5526, %v5522
        %v5559 = vpack.c.bf16 %v5527, %v5523
        %v5560 = vpack.c.bf16 %v5528, %v5524
        %v5561 = vpack.c.bf16 %v5529, %v5525
        %v5562 = vld [vmem:[#allocation14] sm:$0xff]
        %v5563 = vld [vmem:[#allocation14 + $0x8] sm:$0xff]
        %v5564 = vld [vmem:[#allocation14 + $0x10] sm:$0xff]
        %v5565 = vld [vmem:[#allocation14 + $0x18] sm:$0xff]
        %v5566 = vld [vmem:[#allocation14 + $0x20] sm:$0xff]
        %v5567 = vld [vmem:[#allocation14 + $0x28] sm:$0xff]
        %v5568 = vld [vmem:[#allocation14 + $0x30] sm:$0xff]
        %v5569 = vld [vmem:[#allocation14 + $0x38] sm:$0xff]
        %v5570 = vld [vmem:[#allocation14 + $0x40] sm:$0xff]
        %v5571 = vld [vmem:[#allocation14 + $0x48] sm:$0xff]
        %v5572 = vld [vmem:[#allocation14 + $0x50] sm:$0xff]
        %v5573 = vld [vmem:[#allocation14 + $0x58] sm:$0xff]
        %v5574 = vld [vmem:[#allocation14 + $0x60] sm:$0xff]
        %v5575 = vld [vmem:[#allocation14 + $0x68] sm:$0xff]
        %v5576 = vld [vmem:[#allocation14 + $0x70] sm:$0xff]
        %v5577 = vld [vmem:[#allocation14 + $0x78] sm:$0xff]
        %v5578 = vld [vmem:[#allocation14 + $0x80] sm:$0xff]
        %v5579 = vld [vmem:[#allocation14 + $0x88] sm:$0xff]
        %v5580 = vld [vmem:[#allocation14 + $0x90] sm:$0xff]
        %v5581 = vld [vmem:[#allocation14 + $0x98] sm:$0xff]
        %v5582 = vld [vmem:[#allocation14 + $0xa0] sm:$0xff]
        %v5583 = vld [vmem:[#allocation14 + $0xa8] sm:$0xff]
        %v5584 = vld [vmem:[#allocation14 + $0xb0] sm:$0xff]
        %v5585 = vld [vmem:[#allocation14 + $0xb8] sm:$0xff]
        %v5586 = vld [vmem:[#allocation14 + $0xc0] sm:$0xff]
        %v5587 = vld [vmem:[#allocation14 + $0xc8] sm:$0xff]
        %v5588 = vld [vmem:[#allocation14 + $0xd0] sm:$0xff]
        %v5589 = vld [vmem:[#allocation14 + $0xd8] sm:$0xff]
        %v5590 = vld [vmem:[#allocation14 + $0xe0] sm:$0xff]
        %v5591 = vld [vmem:[#allocation14 + $0xe8] sm:$0xff]
        %v5592 = vld [vmem:[#allocation14 + $0xf0] sm:$0xff]
        %v5593 = vld [vmem:[#allocation14 + $0xf8] sm:$0xff]
        %v5594 = vld [vmem:[#allocation14 + $0x100] sm:$0xff]
        %v5595 = vld [vmem:[#allocation14 + $0x108] sm:$0xff]
        %v5596 = vld [vmem:[#allocation14 + $0x110] sm:$0xff]
        %v5597 = vld [vmem:[#allocation14 + $0x118] sm:$0xff]
        %v5598 = vld [vmem:[#allocation14 + $0x120] sm:$0xff]
        %v5599 = vld [vmem:[#allocation14 + $0x128] sm:$0xff]
        %v5600 = vld [vmem:[#allocation14 + $0x130] sm:$0xff]
        %v5601 = vld [vmem:[#allocation14 + $0x138] sm:$0xff]
        %v5602 = vld [vmem:[#allocation14 + $0x140] sm:$0xff]
        %v5603 = vld [vmem:[#allocation14 + $0x148] sm:$0xff]
        %v5604 = vld [vmem:[#allocation14 + $0x150] sm:$0xff]
        %v5605 = vld [vmem:[#allocation14 + $0x158] sm:$0xff]
        %v5606 = vld [vmem:[#allocation14 + $0x160] sm:$0xff]
        %v5607 = vld [vmem:[#allocation14 + $0x168] sm:$0xff]
        %v5608 = vld [vmem:[#allocation14 + $0x170] sm:$0xff]
        %v5609 = vld [vmem:[#allocation14 + $0x178] sm:$0xff]
        %v5610 = vld [vmem:[#allocation14 + $0x180] sm:$0xff]
        %v5611 = vld [vmem:[#allocation14 + $0x188] sm:$0xff]
        %v5612 = vld [vmem:[#allocation14 + $0x190] sm:$0xff]
        %v5613 = vld [vmem:[#allocation14 + $0x198] sm:$0xff]
        %v5614 = vld [vmem:[#allocation14 + $0x1a0] sm:$0xff]
        %v5615 = vld [vmem:[#allocation14 + $0x1a8] sm:$0xff]
        %v5616 = vld [vmem:[#allocation14 + $0x1b0] sm:$0xff]
        %v5617 = vld [vmem:[#allocation14 + $0x1b8] sm:$0xff]
        %v5618 = vld [vmem:[#allocation14 + $0x1c0] sm:$0xff]
        %v5619 = vld [vmem:[#allocation14 + $0x1c8] sm:$0xff]
        %v5620 = vld [vmem:[#allocation14 + $0x1d0] sm:$0xff]
        %v5621 = vld [vmem:[#allocation14 + $0x1d8] sm:$0xff]
        %v5622 = vld [vmem:[#allocation14 + $0x1e0] sm:$0xff]
        %v5623 = vld [vmem:[#allocation14 + $0x1e8] sm:$0xff]
        %v5624 = vld [vmem:[#allocation14 + $0x1f0] sm:$0xff]
        %v5625 = vld [vmem:[#allocation14 + $0x1f8] sm:$0xff]
        %v5690 = vunpack.c.l.b16 %v5562
        %v5691 = vunpack.c.h.b16 %v5562
        %v5692 = vunpack.c.l.b16 %v5563
        %v5693 = vunpack.c.h.b16 %v5563
        %v5694 = vunpack.c.l.b16 %v5564
        %v5695 = vunpack.c.h.b16 %v5564
        %v5696 = vunpack.c.l.b16 %v5565
        %v5697 = vunpack.c.h.b16 %v5565
        %v5698 = vunpack.c.l.b16 %v5566
        %v5699 = vunpack.c.h.b16 %v5566
        %v5700 = vunpack.c.l.b16 %v5567
        %v5701 = vunpack.c.h.b16 %v5567
        %v5702 = vunpack.c.l.b16 %v5568
        %v5703 = vunpack.c.h.b16 %v5568
        %v5704 = vunpack.c.l.b16 %v5569
        %v5705 = vunpack.c.h.b16 %v5569
        %v5706 = vunpack.c.l.b16 %v5570
        %v5707 = vunpack.c.h.b16 %v5570
        %v5708 = vunpack.c.l.b16 %v5571
        %v5709 = vunpack.c.h.b16 %v5571
        %v5710 = vunpack.c.l.b16 %v5572
        %v5711 = vunpack.c.h.b16 %v5572
        %v5712 = vunpack.c.l.b16 %v5573
        %v5713 = vunpack.c.h.b16 %v5573
        %v5714 = vunpack.c.l.b16 %v5574
        %v5715 = vunpack.c.h.b16 %v5574
        %v5716 = vunpack.c.l.b16 %v5575
        %v5717 = vunpack.c.h.b16 %v5575
        %v5718 = vunpack.c.l.b16 %v5576
        %v5719 = vunpack.c.h.b16 %v5576
        %v5720 = vunpack.c.l.b16 %v5577
        %v5721 = vunpack.c.h.b16 %v5577
        %v5722 = vunpack.c.l.b16 %v5578
        %v5723 = vunpack.c.h.b16 %v5578
        %v5724 = vunpack.c.l.b16 %v5579
        %v5725 = vunpack.c.h.b16 %v5579
        %v5726 = vunpack.c.l.b16 %v5580
        %v5727 = vunpack.c.h.b16 %v5580
        %v5728 = vunpack.c.l.b16 %v5581
        %v5729 = vunpack.c.h.b16 %v5581
        %v5730 = vunpack.c.l.b16 %v5582
        %v5731 = vunpack.c.h.b16 %v5582
        %v5732 = vunpack.c.l.b16 %v5583
        %v5733 = vunpack.c.h.b16 %v5583
        %v5734 = vunpack.c.l.b16 %v5584
        %v5735 = vunpack.c.h.b16 %v5584
        %v5736 = vunpack.c.l.b16 %v5585
        %v5737 = vunpack.c.h.b16 %v5585
        %v5738 = vunpack.c.l.b16 %v5586
        %v5739 = vunpack.c.h.b16 %v5586
        %v5740 = vunpack.c.l.b16 %v5587
        %v5741 = vunpack.c.h.b16 %v5587
        %v5742 = vunpack.c.l.b16 %v5588
        %v5743 = vunpack.c.h.b16 %v5588
        %v5744 = vunpack.c.l.b16 %v5589
        %v5745 = vunpack.c.h.b16 %v5589
        %v5746 = vunpack.c.l.b16 %v5590
        %v5747 = vunpack.c.h.b16 %v5590
        %v5748 = vunpack.c.l.b16 %v5591
        %v5749 = vunpack.c.h.b16 %v5591
        %v5750 = vunpack.c.l.b16 %v5592
        %v5751 = vunpack.c.h.b16 %v5592
        %v5752 = vunpack.c.l.b16 %v5593
        %v5753 = vunpack.c.h.b16 %v5593
        %v5754 = vunpack.c.l.b16 %v5594
        %v5755 = vunpack.c.h.b16 %v5594
        %v5756 = vunpack.c.l.b16 %v5595
        %v5757 = vunpack.c.h.b16 %v5595
        %v5758 = vunpack.c.l.b16 %v5596
        %v5759 = vunpack.c.h.b16 %v5596
        %v5760 = vunpack.c.l.b16 %v5597
        %v5761 = vunpack.c.h.b16 %v5597
        %v5762 = vunpack.c.l.b16 %v5598
        %v5763 = vunpack.c.h.b16 %v5598
        %v5764 = vunpack.c.l.b16 %v5599
        %v5765 = vunpack.c.h.b16 %v5599
        %v5766 = vunpack.c.l.b16 %v5600
        %v5767 = vunpack.c.h.b16 %v5600
        %v5768 = vunpack.c.l.b16 %v5601
        %v5769 = vunpack.c.h.b16 %v5601
        %v5770 = vunpack.c.l.b16 %v5602
        %v5771 = vunpack.c.h.b16 %v5602
        %v5772 = vunpack.c.l.b16 %v5603
        %v5773 = vunpack.c.h.b16 %v5603
        %v5774 = vunpack.c.l.b16 %v5604
        %v5775 = vunpack.c.h.b16 %v5604
        %v5776 = vunpack.c.l.b16 %v5605
        %v5777 = vunpack.c.h.b16 %v5605
        %v5778 = vunpack.c.l.b16 %v5606
        %v5779 = vunpack.c.h.b16 %v5606
        %v5780 = vunpack.c.l.b16 %v5607
        %v5781 = vunpack.c.h.b16 %v5607
        %v5782 = vunpack.c.l.b16 %v5608
        %v5783 = vunpack.c.h.b16 %v5608
        %v5784 = vunpack.c.l.b16 %v5609
        %v5785 = vunpack.c.h.b16 %v5609
        %v5786 = vunpack.c.l.b16 %v5610
        %v5787 = vunpack.c.h.b16 %v5610
        %v5788 = vunpack.c.l.b16 %v5611
        %v5789 = vunpack.c.h.b16 %v5611
        %v5790 = vunpack.c.l.b16 %v5612
        %v5791 = vunpack.c.h.b16 %v5612
        %v5792 = vunpack.c.l.b16 %v5613
        %v5793 = vunpack.c.h.b16 %v5613
        %v5794 = vunpack.c.l.b16 %v5614
        %v5795 = vunpack.c.h.b16 %v5614
        %v5796 = vunpack.c.l.b16 %v5615
        %v5797 = vunpack.c.h.b16 %v5615
        %v5798 = vunpack.c.l.b16 %v5616
        %v5799 = vunpack.c.h.b16 %v5616
        %v5800 = vunpack.c.l.b16 %v5617
        %v5801 = vunpack.c.h.b16 %v5617
        %v5802 = vunpack.c.l.b16 %v5618
        %v5803 = vunpack.c.h.b16 %v5618
        %v5804 = vunpack.c.l.b16 %v5619
        %v5805 = vunpack.c.h.b16 %v5619
        %v5806 = vunpack.c.l.b16 %v5620
        %v5807 = vunpack.c.h.b16 %v5620
        %v5808 = vunpack.c.l.b16 %v5621
        %v5809 = vunpack.c.h.b16 %v5621
        %v5810 = vunpack.c.l.b16 %v5622
        %v5811 = vunpack.c.h.b16 %v5622
        %v5812 = vunpack.c.l.b16 %v5623
        %v5813 = vunpack.c.h.b16 %v5623
        %v5814 = vunpack.c.l.b16 %v5624
        %v5815 = vunpack.c.h.b16 %v5624
        %v5816 = vunpack.c.l.b16 %v5625
        %v5817 = vunpack.c.h.b16 %v5625
        %v5818 = vpack.c.b16 %v5692, %v5690
        %v5819 = vpack.c.b16 %v5693, %v5691
        %v5820 = vpack.c.b16 %v5696, %v5694
        %v5821 = vpack.c.b16 %v5697, %v5695
        %v5822 = vpack.c.b16 %v5700, %v5698
        %v5823 = vpack.c.b16 %v5701, %v5699
        %v5824 = vpack.c.b16 %v5704, %v5702
        %v5825 = vpack.c.b16 %v5705, %v5703
        %v5826 = vpack.c.b16 %v5708, %v5706
        %v5827 = vpack.c.b16 %v5709, %v5707
        %v5828 = vpack.c.b16 %v5712, %v5710
        %v5829 = vpack.c.b16 %v5713, %v5711
        %v5830 = vpack.c.b16 %v5716, %v5714
        %v5831 = vpack.c.b16 %v5717, %v5715
        %v5832 = vpack.c.b16 %v5720, %v5718
        %v5833 = vpack.c.b16 %v5721, %v5719
        %v5834 = vpack.c.b16 %v5724, %v5722
        %v5835 = vpack.c.b16 %v5725, %v5723
        %v5836 = vpack.c.b16 %v5728, %v5726
        %v5837 = vpack.c.b16 %v5729, %v5727
        %v5838 = vpack.c.b16 %v5732, %v5730
        %v5839 = vpack.c.b16 %v5733, %v5731
        %v5840 = vpack.c.b16 %v5736, %v5734
        %v5841 = vpack.c.b16 %v5737, %v5735
        %v5842 = vpack.c.b16 %v5740, %v5738
        %v5843 = vpack.c.b16 %v5741, %v5739
        %v5844 = vpack.c.b16 %v5744, %v5742
        %v5845 = vpack.c.b16 %v5745, %v5743
        %v5846 = vpack.c.b16 %v5748, %v5746
        %v5847 = vpack.c.b16 %v5749, %v5747
        %v5848 = vpack.c.b16 %v5752, %v5750
        %v5849 = vpack.c.b16 %v5753, %v5751
        %v5850 = vpack.c.b16 %v5756, %v5754
        %v5851 = vpack.c.b16 %v5757, %v5755
        %v5852 = vpack.c.b16 %v5760, %v5758
        %v5853 = vpack.c.b16 %v5761, %v5759
        %v5854 = vpack.c.b16 %v5764, %v5762
        %v5855 = vpack.c.b16 %v5765, %v5763
        %v5856 = vpack.c.b16 %v5768, %v5766
        %v5857 = vpack.c.b16 %v5769, %v5767
        %v5858 = vpack.c.b16 %v5772, %v5770
        %v5859 = vpack.c.b16 %v5773, %v5771
        %v5860 = vpack.c.b16 %v5776, %v5774
        %v5861 = vpack.c.b16 %v5777, %v5775
        %v5862 = vpack.c.b16 %v5780, %v5778
        %v5863 = vpack.c.b16 %v5781, %v5779
        %v5864 = vpack.c.b16 %v5784, %v5782
        %v5865 = vpack.c.b16 %v5785, %v5783
        %v5866 = vpack.c.b16 %v5788, %v5786
        %v5867 = vpack.c.b16 %v5789, %v5787
        %v5868 = vpack.c.b16 %v5792, %v5790
        %v5869 = vpack.c.b16 %v5793, %v5791
        %v5870 = vpack.c.b16 %v5796, %v5794
        %v5871 = vpack.c.b16 %v5797, %v5795
        %v5872 = vpack.c.b16 %v5800, %v5798
        %v5873 = vpack.c.b16 %v5801, %v5799
        %v5874 = vpack.c.b16 %v5804, %v5802
        %v5875 = vpack.c.b16 %v5805, %v5803
        %v5876 = vpack.c.b16 %v5808, %v5806
        %v5877 = vpack.c.b16 %v5809, %v5807
        %v5878 = vpack.c.b16 %v5812, %v5810
        %v5879 = vpack.c.b16 %v5813, %v5811
        %v5880 = vpack.c.b16 %v5816, %v5814
        %v5881 = vpack.c.b16 %v5817, %v5815
        %5946 = vmatprep.subr.bf16.mxu0 %v5819
        %5947 = vmatpush1.bf16.msra.mxu0 %v5818
        %5948 = vmatprep.subr.bf16.mxu0 %v5821
        %5949 = vmatpush1.bf16.msra.mxu0 %v5820
        %5950 = vmatprep.subr.bf16.mxu0 %v5823
        %5951 = vmatpush1.bf16.msra.mxu0 %v5822
        %5952 = vmatprep.subr.bf16.mxu0 %v5825
        %5953 = vmatpush1.bf16.msra.mxu0 %v5824
        %5954 = vmatprep.subr.bf16.mxu0 %v5827
        %5955 = vmatpush1.bf16.msra.mxu0 %v5826
        %5956 = vmatprep.subr.bf16.mxu0 %v5829
        %5957 = vmatpush1.bf16.msra.mxu0 %v5828
        %5958 = vmatprep.subr.bf16.mxu0 %v5831
        %5959 = vmatpush1.bf16.msra.mxu0 %v5830
        %5960 = vmatprep.subr.bf16.mxu0 %v5833
        %5961 = vmatpush1.bf16.msra.mxu0 %v5832
        %5962 = vmatprep.subr.bf16.mxu0 %v5835
        %5963 = vmatpush1.bf16.msra.mxu0 %v5834
        %5964 = vmatprep.subr.bf16.mxu0 %v5837
        %5965 = vmatpush1.bf16.msra.mxu0 %v5836
        %5966 = vmatprep.subr.bf16.mxu0 %v5839
        %5967 = vmatpush1.bf16.msra.mxu0 %v5838
        %5968 = vmatprep.subr.bf16.mxu0 %v5841
        %5969 = vmatpush1.bf16.msra.mxu0 %v5840
        %5970 = vmatprep.subr.bf16.mxu0 %v5843
        %5971 = vmatpush1.bf16.msra.mxu0 %v5842
        %5972 = vmatprep.subr.bf16.mxu0 %v5845
        %5973 = vmatpush1.bf16.msra.mxu0 %v5844
        %5974 = vmatprep.subr.bf16.mxu0 %v5847
        %5975 = vmatpush1.bf16.msra.mxu0 %v5846
        %5976 = vmatprep.subr.bf16.mxu0 %v5849
        %5977 = vmatpush1.bf16.msra.mxu0 %v5848
        %5978 = vmatprep.mubr.bf16.mxu0 %v5531
        %5979 = vmatmul.mubr.bf16.gmra.mrb[0].mxu0 %v5530
        %v5980 = vpop.f32.mrb[0].mxu0
        %v5981 = vadd.f32 0.0, %v5980
        %v5982 = vpop.f32.mrb[0].mxu0
        %v5983 = vadd.f32 0.0, %v5982
        %v5984 = vpop.f32.mrb[0].mxu0
        %v5985 = vadd.f32 0.0, %v5984
        %v5986 = vpop.f32.mrb[0].mxu0
        %v5987 = vadd.f32 0.0, %v5986
        %5988 = vmatprep.mubr.bf16.mxu0 %v5535
        %5989 = vmatmul.mubr.bf16.gmra.mrb[0].mxu0 %v5534
        %v5990 = vpop.f32.mrb[0].mxu0
        %v5991 = vadd.f32 0.0, %v5990
        %v5992 = vpop.f32.mrb[0].mxu0
        %v5993 = vadd.f32 0.0, %v5992
        %v5994 = vpop.f32.mrb[0].mxu0
        %v5995 = vadd.f32 0.0, %v5994
        %v5996 = vpop.f32.mrb[0].mxu0
        %v5997 = vadd.f32 0.0, %v5996
        %5998 = vmatprep.mubr.bf16.mxu0 %v5539
        %5999 = vmatmul.mubr.bf16.gmra.mrb[0].mxu0 %v5538
        %v6000 = vpop.f32.mrb[0].mxu0
        %v6001 = vadd.f32 0.0, %v6000
        %v6002 = vpop.f32.mrb[0].mxu0
        %v6003 = vadd.f32 0.0, %v6002
        %v6004 = vpop.f32.mrb[0].mxu0
        %v6005 = vadd.f32 0.0, %v6004
        %v6006 = vpop.f32.mrb[0].mxu0
        %v6007 = vadd.f32 0.0, %v6006
        %6008 = vmatprep.mubr.bf16.mxu0 %v5543
        %6009 = vmatmul.mubr.bf16.gmra.mrb[0].mxu0 %v5542
        %v6010 = vpop.f32.mrb[0].mxu0
        %v6011 = vadd.f32 0.0, %v6010
        %v6012 = vpop.f32.mrb[0].mxu0
        %v6013 = vadd.f32 0.0, %v6012
        %v6014 = vpop.f32.mrb[0].mxu0
        %v6015 = vadd.f32 0.0, %v6014
        %v6016 = vpop.f32.mrb[0].mxu0
        %v6017 = vadd.f32 0.0, %v6016
        %6018 = vmatprep.mubr.bf16.mxu0 %v5547
        %6019 = vmatmul.mubr.bf16.gmra.mrb[0].mxu0 %v5546
        %v6020 = vpop.f32.mrb[0].mxu0
        %v6021 = vadd.f32 0.0, %v6020
        %v6022 = vpop.f32.mrb[0].mxu0
        %v6023 = vadd.f32 0.0, %v6022
        %v6024 = vpop.f32.mrb[0].mxu0
        %v6025 = vadd.f32 0.0, %v6024
        %v6026 = vpop.f32.mrb[0].mxu0
        %v6027 = vadd.f32 0.0, %v6026
        %6028 = vmatprep.mubr.bf16.mxu0 %v5551
        %6029 = vmatmul.mubr.bf16.gmra.mrb[0].mxu0 %v5550
        %v6030 = vpop.f32.mrb[0].mxu0
        %v6031 = vadd.f32 0.0, %v6030
        %v6032 = vpop.f32.mrb[0].mxu0
        %v6033 = vadd.f32 0.0, %v6032
        %v6034 = vpop.f32.mrb[0].mxu0
        %v6035 = vadd.f32 0.0, %v6034
        %v6036 = vpop.f32.mrb[0].mxu0
        %v6037 = vadd.f32 0.0, %v6036
        %6038 = vmatprep.mubr.bf16.mxu0 %v5555
        %6039 = vmatmul.mubr.bf16.gmra.mrb[0].mxu0 %v5554
        %v6040 = vpop.f32.mrb[0].mxu0
        %v6041 = vadd.f32 0.0, %v6040
        %v6042 = vpop.f32.mrb[0].mxu0
        %v6043 = vadd.f32 0.0, %v6042
        %v6044 = vpop.f32.mrb[0].mxu0
        %v6045 = vadd.f32 0.0, %v6044
        %v6046 = vpop.f32.mrb[0].mxu0
        %v6047 = vadd.f32 0.0, %v6046
        %6048 = vmatprep.mubr.bf16.mxu0 %v5559
        %6049 = vmatmul.mubr.bf16.gmra.mrb[0].mxu0 %v5558
        %v6050 = vpop.f32.mrb[0].mxu0
        %v6051 = vadd.f32 0.0, %v6050
        %v6052 = vpop.f32.mrb[0].mxu0
        %v6053 = vadd.f32 0.0, %v6052
        %v6054 = vpop.f32.mrb[0].mxu0
        %v6055 = vadd.f32 0.0, %v6054
        %v6056 = vpop.f32.mrb[0].mxu0
        %v6057 = vadd.f32 0.0, %v6056
        %6058 = vdwg.mxu0
        %6059 = vmatprep.subr.bf16.mxu0 %v5851
        %6060 = vmatpush1.bf16.msra.mxu0 %v5850
        %6061 = vmatprep.subr.bf16.mxu0 %v5853
        %6062 = vmatpush1.bf16.msra.mxu0 %v5852
        %6063 = vmatprep.subr.bf16.mxu0 %v5855
        %6064 = vmatpush1.bf16.msra.mxu0 %v5854
        %6065 = vmatprep.subr.bf16.mxu0 %v5857
        %6066 = vmatpush1.bf16.msra.mxu0 %v5856
        %6067 = vmatprep.subr.bf16.mxu0 %v5859
        %6068 = vmatpush1.bf16.msra.mxu0 %v5858
        %6069 = vmatprep.subr.bf16.mxu0 %v5861
        %6070 = vmatpush1.bf16.msra.mxu0 %v5860
        %6071 = vmatprep.subr.bf16.mxu0 %v5863
        %6072 = vmatpush1.bf16.msra.mxu0 %v5862
        %6073 = vmatprep.subr.bf16.mxu0 %v5865
        %6074 = vmatpush1.bf16.msra.mxu0 %v5864
        %6075 = vmatprep.subr.bf16.mxu0 %v5867
        %6076 = vmatpush1.bf16.msra.mxu0 %v5866
        %6077 = vmatprep.subr.bf16.mxu0 %v5869
        %6078 = vmatpush1.bf16.msra.mxu0 %v5868
        %6079 = vmatprep.subr.bf16.mxu0 %v5871
        %6080 = vmatpush1.bf16.msra.mxu0 %v5870
        %6081 = vmatprep.subr.bf16.mxu0 %v5873
        %6082 = vmatpush1.bf16.msra.mxu0 %v5872
        %6083 = vmatprep.subr.bf16.mxu0 %v5875
        %6084 = vmatpush1.bf16.msra.mxu0 %v5874
        %6085 = vmatprep.subr.bf16.mxu0 %v5877
        %6086 = vmatpush1.bf16.msra.mxu0 %v5876
        %6087 = vmatprep.subr.bf16.mxu0 %v5879
        %6088 = vmatpush1.bf16.msra.mxu0 %v5878
        %6089 = vmatprep.subr.bf16.mxu0 %v5881
        %6090 = vmatpush1.bf16.msra.mxu0 %v5880
        %6091 = vmatprep.mubr.bf16.mxu0 %v5533
        %6092 = vmatmul.mubr.bf16.gmra.mrb[0].mxu0 %v5532
        %v6093 = vpop.f32.mrb[0].mxu0
        %v6094 = vadd.f32 %v5981, %v6093
        %v6095 = vpop.f32.mrb[0].mxu0
        %v6096 = vadd.f32 %v5983, %v6095
        %v6097 = vpop.f32.mrb[0].mxu0
        %v6098 = vadd.f32 %v5985, %v6097
        %v6099 = vpop.f32.mrb[0].mxu0
        %v6100 = vadd.f32 %v5987, %v6099
        %6101 = vmatprep.mubr.bf16.mxu0 %v5537
        %6102 = vmatmul.mubr.bf16.gmra.mrb[0].mxu0 %v5536
        %v6103 = vpop.f32.mrb[0].mxu0
        %v6104 = vadd.f32 %v5991, %v6103
        %v6105 = vpop.f32.mrb[0].mxu0
        %v6106 = vadd.f32 %v5993, %v6105
        %v6107 = vpop.f32.mrb[0].mxu0
        %v6108 = vadd.f32 %v5995, %v6107
        %v6109 = vpop.f32.mrb[0].mxu0
        %v6110 = vadd.f32 %v5997, %v6109
        %6111 = vmatprep.mubr.bf16.mxu0 %v5541
        %6112 = vmatmul.mubr.bf16.gmra.mrb[0].mxu0 %v5540
        %v6113 = vpop.f32.mrb[0].mxu0
        %v6114 = vadd.f32 %v6001, %v6113
        %v6115 = vpop.f32.mrb[0].mxu0
        %v6116 = vadd.f32 %v6003, %v6115
        %v6117 = vpop.f32.mrb[0].mxu0
        %v6118 = vadd.f32 %v6005, %v6117
        %v6119 = vpop.f32.mrb[0].mxu0
        %v6120 = vadd.f32 %v6007, %v6119
        %6121 = vmatprep.mubr.bf16.mxu0 %v5545
        %6122 = vmatmul.mubr.bf16.gmra.mrb[0].mxu0 %v5544
        %v6123 = vpop.f32.mrb[0].mxu0
        %v6124 = vadd.f32 %v6011, %v6123
        %v6125 = vpop.f32.mrb[0].mxu0
        %v6126 = vadd.f32 %v6013, %v6125
        %v6127 = vpop.f32.mrb[0].mxu0
        %v6128 = vadd.f32 %v6015, %v6127
        %v6129 = vpop.f32.mrb[0].mxu0
        %v6130 = vadd.f32 %v6017, %v6129
        %6131 = vmatprep.mubr.bf16.mxu0 %v5549
        %6132 = vmatmul.mubr.bf16.gmra.mrb[0].mxu0 %v5548
        %v6133 = vpop.f32.mrb[0].mxu0
        %v6134 = vadd.f32 %v6021, %v6133
        %v6135 = vpop.f32.mrb[0].mxu0
        %v6136 = vadd.f32 %v6023, %v6135
        %v6137 = vpop.f32.mrb[0].mxu0
        %v6138 = vadd.f32 %v6025, %v6137
        %v6139 = vpop.f32.mrb[0].mxu0
        %v6140 = vadd.f32 %v6027, %v6139
        %6141 = vmatprep.mubr.bf16.mxu0 %v5553
        %6142 = vmatmul.mubr.bf16.gmra.mrb[0].mxu0 %v5552
        %v6143 = vpop.f32.mrb[0].mxu0
        %v6144 = vadd.f32 %v6031, %v6143
        %v6145 = vpop.f32.mrb[0].mxu0
        %v6146 = vadd.f32 %v6033, %v6145
        %v6147 = vpop.f32.mrb[0].mxu0
        %v6148 = vadd.f32 %v6035, %v6147
        %v6149 = vpop.f32.mrb[0].mxu0
        %v6150 = vadd.f32 %v6037, %v6149
        %6151 = vmatprep.mubr.bf16.mxu0 %v5557
        %6152 = vmatmul.mubr.bf16.gmra.mrb[0].mxu0 %v5556
        %v6153 = vpop.f32.mrb[0].mxu0
        %v6154 = vadd.f32 %v6041, %v6153
        %v6155 = vpop.f32.mrb[0].mxu0
        %v6156 = vadd.f32 %v6043, %v6155
        %v6157 = vpop.f32.mrb[0].mxu0
        %v6158 = vadd.f32 %v6045, %v6157
        %v6159 = vpop.f32.mrb[0].mxu0
        %v6160 = vadd.f32 %v6047, %v6159
        %6161 = vmatprep.mubr.bf16.mxu0 %v5561
        %6162 = vmatmul.mubr.bf16.gmra.mrb[0].mxu0 %v5560
        %v6163 = vpop.f32.mrb[0].mxu0
        %v6164 = vadd.f32 %v6051, %v6163
        %v6165 = vpop.f32.mrb[0].mxu0
        %v6166 = vadd.f32 %v6053, %v6165
        %v6167 = vpop.f32.mrb[0].mxu0
        %v6168 = vadd.f32 %v6055, %v6167
        %v6169 = vpop.f32.mrb[0].mxu0
        %v6170 = vadd.f32 %v6057, %v6169
        %6171 = vdwg.mxu0
        %v6172 = vadd.f32 %v4450, %v6094
        %v6173 = vadd.f32 %v4451, %v6096
        %v6174 = vadd.f32 %v4452, %v6098
        %v6175 = vadd.f32 %v4453, %v6100
        %v6176 = vadd.f32 %v4454, %v6104
        %v6177 = vadd.f32 %v4455, %v6106
        %v6178 = vadd.f32 %v4456, %v6108
        %v6179 = vadd.f32 %v4457, %v6110
        %v6180 = vadd.f32 %v4458, %v6114
        %v6181 = vadd.f32 %v4459, %v6116
        %v6182 = vadd.f32 %v4460, %v6118
        %v6183 = vadd.f32 %v4461, %v6120
        %v6184 = vadd.f32 %v4462, %v6124
        %v6185 = vadd.f32 %v4463, %v6126
        %v6186 = vadd.f32 %v4464, %v6128
        %v6187 = vadd.f32 %v4465, %v6130
        %v6188 = vadd.f32 %v4466, %v6134
        %v6189 = vadd.f32 %v4467, %v6136
        %v6190 = vadd.f32 %v4468, %v6138
        %v6191 = vadd.f32 %v4469, %v6140
        %v6192 = vadd.f32 %v4470, %v6144
        %v6193 = vadd.f32 %v4471, %v6146
        %v6194 = vadd.f32 %v4472, %v6148
        %v6195 = vadd.f32 %v4473, %v6150
        %v6196 = vadd.f32 %v4474, %v6154
        %v6197 = vadd.f32 %v4475, %v6156
        %v6198 = vadd.f32 %v4476, %v6158
        %v6199 = vadd.f32 %v4477, %v6160
        %v6200 = vadd.f32 %v4478, %v6164
        %v6201 = vadd.f32 %v4479, %v6166
        %v6202 = vadd.f32 %v4480, %v6168
        %v6203 = vadd.f32 %v4481, %v6170
        %v6204 = vlaneseq
        %v6205 = vshrl.u32 %v6204, 7
        %v6206 = vsub.s32 4, %v6205
        %v6207 = vrot.slane %v567, %v6206
        %v6208 = vlaneseq
        %v6209 = vshrl.u32 %v6208, 7
        %v6210 = vsub.s32 4, %v6209
        %v6211 = vrot.slane %v568, %v6210
        %v6212 = vadd.f32 %v6172, %v6207
        %v6213 = vadd.f32 %v6173, %v6211
        %v6214 = vadd.f32 %v6174, %v6207
        %v6215 = vadd.f32 %v6175, %v6211
        %v6216 = vadd.f32 %v6176, %v6207
        %v6217 = vadd.f32 %v6177, %v6211
        %v6218 = vadd.f32 %v6178, %v6207
        %v6219 = vadd.f32 %v6179, %v6211
        %v6220 = vadd.f32 %v6180, %v6207
        %v6221 = vadd.f32 %v6181, %v6211
        %v6222 = vadd.f32 %v6182, %v6207
        %v6223 = vadd.f32 %v6183, %v6211
        %v6224 = vadd.f32 %v6184, %v6207
        %v6225 = vadd.f32 %v6185, %v6211
        %v6226 = vadd.f32 %v6186, %v6207
        %v6227 = vadd.f32 %v6187, %v6211
        %v6228 = vadd.f32 %v6188, %v6207
        %v6229 = vadd.f32 %v6189, %v6211
        %v6230 = vadd.f32 %v6190, %v6207
        %v6231 = vadd.f32 %v6191, %v6211
        %v6232 = vadd.f32 %v6192, %v6207
        %v6233 = vadd.f32 %v6193, %v6211
        %v6234 = vadd.f32 %v6194, %v6207
        %v6235 = vadd.f32 %v6195, %v6211
        %v6236 = vadd.f32 %v6196, %v6207
        %v6237 = vadd.f32 %v6197, %v6211
        %v6238 = vadd.f32 %v6198, %v6207
        %v6239 = vadd.f32 %v6199, %v6211
        %v6240 = vadd.f32 %v6200, %v6207
        %v6241 = vadd.f32 %v6201, %v6211
        %v6242 = vadd.f32 %v6202, %v6207
        %v6243 = vadd.f32 %v6203, %v6211
        %6244 = vst [vmem:[%s467] sm:$0xff] %v6212
        %6245 = vst [vmem:[%s467 + $0x8] sm:$0xff] %v6213
        %6246 = vst [vmem:[%s467 + $0x10] sm:$0xff] %v6214
        %6247 = vst [vmem:[%s467 + $0x18] sm:$0xff] %v6215
        %6248 = vst [vmem:[%s467 + $0x20] sm:$0xff] %v6216
        %6249 = vst [vmem:[%s467 + $0x28] sm:$0xff] %v6217
        %6250 = vst [vmem:[%s467 + $0x30] sm:$0xff] %v6218
        %6251 = vst [vmem:[%s467 + $0x38] sm:$0xff] %v6219
        %6252 = vst [vmem:[%s467 + $0x40] sm:$0xff] %v6220
        %6253 = vst [vmem:[%s467 + $0x48] sm:$0xff] %v6221
        %6254 = vst [vmem:[%s467 + $0x50] sm:$0xff] %v6222
        %6255 = vst [vmem:[%s467 + $0x58] sm:$0xff] %v6223
        %6256 = vst [vmem:[%s467 + $0x60] sm:$0xff] %v6224
        %6257 = vst [vmem:[%s467 + $0x68] sm:$0xff] %v6225
        %6258 = vst [vmem:[%s467 + $0x70] sm:$0xff] %v6226
        %6259 = vst [vmem:[%s467 + $0x78] sm:$0xff] %v6227
        %6260 = vst [vmem:[%s467 + $0x80] sm:$0xff] %v6228
        %6261 = vst [vmem:[%s467 + $0x88] sm:$0xff] %v6229
        %6262 = vst [vmem:[%s467 + $0x90] sm:$0xff] %v6230
        %6263 = vst [vmem:[%s467 + $0x98] sm:$0xff] %v6231
        %6264 = vst [vmem:[%s467 + $0xa0] sm:$0xff] %v6232
        %6265 = vst [vmem:[%s467 + $0xa8] sm:$0xff] %v6233
        %6266 = vst [vmem:[%s467 + $0xb0] sm:$0xff] %v6234
        %6267 = vst [vmem:[%s467 + $0xb8] sm:$0xff] %v6235
        %6268 = vst [vmem:[%s467 + $0xc0] sm:$0xff] %v6236
        %6269 = vst [vmem:[%s467 + $0xc8] sm:$0xff] %v6237
        %6270 = vst [vmem:[%s467 + $0xd0] sm:$0xff] %v6238
        %6271 = vst [vmem:[%s467 + $0xd8] sm:$0xff] %v6239
        %6272 = vst [vmem:[%s467 + $0xe0] sm:$0xff] %v6240
        %6273 = vst [vmem:[%s467 + $0xe8] sm:$0xff] %v6241
        %6274 = vst [vmem:[%s467 + $0xf0] sm:$0xff] %v6242
        %6275 = vst [vmem:[%s467 + $0xf8] sm:$0xff] %v6243
        %s6276 = sand.u32 %s233, 1
        %s6277 = scalar_lea.sflag [#allocation7], %s6276
        %s6278 = sand.u32 %s233, 1
        %s6279 = smul.addr %s6278, 256
        %s6280 = scalar_lea.vmem [#allocation19], %s6279
        // Predicated region
        $region92: #{tpu_custom_call.1} parent=51 // pred_check
          %p6281 = pneg %p243
        $region93: #{tpu_custom_call.1} parent=51 // pred_check_branch
          %6283 = sbr.rel (%p6281) target = $region95
        $region94: #{tpu_custom_call.1} parent=51 // pred_region
          %s6284 = smul.u32 16, %s36
          %s6286 = ssub.s32 4096, 4096
          %6287 = vsyncadd %s6277, %s6286
          %s6288 = smul.addr %s6284, 2
          %s6289 = smul.addr %s35, 64
          %s6290 = sadd.s32 %s6288, %s6289
          %s6291 = smul.addr %s6290, 128
          %s6292 = scalar_lea.hbm %s8, %s6291
          %s6293 = sshll.u32 %s6280, 4
          %s6294 = int_to_ptr.vmem [resolvable:$true] %s6293
          %6299 = dma.vmem_to_hbm [thread:$0]  %s6294, 4096, %s6292, %s6277, 256, 256, 16
        $region95: #{tpu_custom_call.1} parent=51 // pred_fallthru
          _
      $region52: #{tpu_custom_call.1} parent=5 // pred_fallthru
        _
      %p6300 = scmp.le.s32.totalorder 2, %s26
      // Predicated region
      $region96: #{tpu_custom_call.1} parent=5 // pred_check
        %p6301 = pneg %p6300
      $region97: #{tpu_custom_call.1} parent=5 // pred_check_branch
        %6303 = sbr.rel (%p6301) target = $region99
      $region98: #{tpu_custom_call.1} parent=5 // pred_region
        %s6304 = ssub.s32 %s26, 2
        // Predicated region
        $region100: #{tpu_custom_call.1} parent=98 // pred_check
          %p6305 = pneg %p249
        $region101: #{tpu_custom_call.1} parent=98 // pred_check_branch
          %6307 = sbr.rel (%p6305) target = $region103
        $region102: #{tpu_custom_call.1} parent=98 // pred_region
          %s6308 = sand.u32 %s234, 1
          %s6309 = scalar_lea.sflag [#allocation7], %s6308
          %s6310 = sand.u32 %s234, 1
          %s6311 = smul.addr %s6310, 256
          %s6312 = scalar_lea.vmem [#allocation19], %s6311
          %6313 = dma.done %s6309, 4096
        $region103: #{tpu_custom_call.1} parent=98 // pred_fallthru
          _
      $region99: #{tpu_custom_call.1} parent=5 // pred_fallthru
        _
    $region6: #{tpu_custom_call.1} parent=1 // loop_footer
      %s30 = sadd.s32 1, %s26
    $region7: #{tpu_custom_call.1} parent=1 // loop_footer_branch
      %25 = sbr.rel target = $region3
    $region8: #{tpu_custom_call.1} parent=1 // loop_exit
      _
    %6314 = vsyncpa [#allocation6], 1
    %s6315 = scalar_lea.sflag [#allocation6], 1
    %6316 = vsyncpa %s6315, 1
    %6317 = vsyncpa [#allocation9], 1
    %s6318 = scalar_lea.sflag [#allocation9], 1
    %6319 = vsyncpa %s6318, 1
    %6320 = vsyncpa [#allocation12], 1
    %6321 = vsyncpa [#allocation15], 1
    %6322 = vsyncpa [#allocation18], 1
    %6323 = vsyncpa [#allocation7], 1
    %s6324 = scalar_lea.sflag [#allocation7], 1
    %6325 = vsyncpa %s6324, 1

</llo_original>
